<compile_context>
chip_gen: v7x
topology: tpu7x:2x2x1
jax: 0.10.0
libtpu: 0.0.40
codegen_flags: <defaults>
</compile_context>

<pallas_src>
import functools

import jax
import jax.numpy as jnp
from jax import lax
from jax.experimental import pallas as pl
from jax.experimental.pallas import tpu as pltpu

LANE = 128   # TPU lane width; channel axis padded to a multiple of this.
LEFT = 8     # sublane-aligned left halo of the mid scratch (interior starts here).


def basic_block_kernel(xpad_ref, w1_ref, s1_ref, b1_ref,
                       w2_ref, s2_ref, b2_ref, out_ref, mid_ref, *, th):
    """One batch element per grid step.

    xpad_ref: (1, H+2, W+2, Cp) bf16  spatially zero-padded + channel-padded input
    w1_ref:   (3, 3*Cp, Pp)     bf16  conv1 weights, im2col over kx (per ky)
    s1_ref/b1_ref: (1, Pp)      f32   folded BN1 scale / bias (eval mode)
    w2_ref:   (3, 3*Pp, Pp)     bf16  conv2 weights
    s2_ref/b2_ref: (1, Pp)      f32   folded BN2 scale / bias
    out_ref:  (1, H, W, Pp)     bf16  output
    mid_ref:  (H+2, Wm, Pp)     bf16  VMEM scratch; interior columns [LEFT, LEFT+W)
    """
    _, Hp, Wp, Cp = xpad_ref.shape
    H, W = Hp - 2, Wp - 2
    Pp = out_ref.shape[-1]
    Hm, Wm, _ = mid_ref.shape
    n_tiles = H // th

    # Zero only the halo of the intermediate scratch (interior is fully
    # overwritten).  Redone every grid step so the kernel stays correct if the
    # batch axis is sharded across TensorCores (megacore).
    zrow = jnp.zeros((1, Wm, Pp), mid_ref.dtype)
    mid_ref[0:1, :, :] = zrow
    mid_ref[Hm - 1:Hm, :, :] = zrow
    mid_ref[:, 0:LEFT, :] = jnp.zeros((Hm, LEFT, Pp), mid_ref.dtype)          # left halo block
    mid_ref[:, LEFT + W:Wm, :] = jnp.zeros((Hm, Wm - LEFT - W, Pp), mid_ref.dtype)  # right halo

    s1 = s1_ref[...]
    b1 = b1_ref[...]
    s2 = s2_ref[...]
    b2 = b2_ref[...]

    # ---- conv1 (3x3, stride 1, pad 1, no bias) -> ReLU -> BN1 for th rows ----
    def conv1_rows(ty):
        acc = None
        for ky in range(3):
            # im2col over kx: one MXU matmul per ky with K = 3*Cp (bf16 -> f32 acc).
            patch = jnp.concatenate(
                [xpad_ref[0, pl.ds(ty + ky, th), kx:kx + W, :] for kx in range(3)],
                axis=-1).reshape(th * W, 3 * Cp)
            m = jnp.dot(patch, w1_ref[ky], preferred_element_type=jnp.float32)
            acc = m if acc is None else acc + m
        out1 = jnp.maximum(acc, 0.0) * s1 + b1        # ReLU, then folded BN1 affine
        # Sublane-aligned interior store (column LEFT is a multiple of 8).
        mid_ref[pl.ds(1 + ty, th), LEFT:LEFT + W, :] = (
            out1.reshape(th, W, Pp).astype(mid_ref.dtype))

    # ---- conv2 -> ReLU -> BN2 -> + residual (from xpad interior) for th rows ----
    def conv2_rows(ty):
        acc = None
        for ky in range(3):
            patch = jnp.concatenate(
                [mid_ref[pl.ds(ty + ky, th), (LEFT - 1) + kx:(LEFT - 1) + kx + W, :]
                 for kx in range(3)],
                axis=-1).reshape(th * W, 3 * Pp)
            m = jnp.dot(patch, w2_ref[ky], preferred_element_type=jnp.float32)
            acc = m if acc is None else acc + m
        out2 = jnp.maximum(acc, 0.0) * s2 + b2        # ReLU, then folded BN2 affine
        res = xpad_ref[0, pl.ds(1 + ty, th), 1:1 + W, :].astype(jnp.float32)
        out2 = out2.reshape(th, W, Pp) + res          # residual add (f32 accumulate)
        out_ref[0, pl.ds(ty, th), :, :] = out2.astype(out_ref.dtype)

    if n_tiles == 1:
        conv1_rows(0)
        conv2_rows(0)
    else:
        def body1(t, c):
            conv1_rows(pl.multiple_of(t * th, th))
            return c

        lax.fori_loop(0, n_tiles, body1, 0)

        def body2(t, c):
            conv2_rows(pl.multiple_of(t * th, th))
            return c

        lax.fori_loop(0, n_tiles, body2, 0)


def _fold_bn(gamma, beta, mean, var, eps):
    s = gamma / jnp.sqrt(var + eps)
    return s, beta - mean * s


def _pick_th(H, W, max_m=1024):
    """Largest divisor of H with th*W <= max_m (prefers M >= 256 when possible)."""
    best = 1
    for d in range(1, H + 1):
        if H % d == 0 and d * W <= max_m:
            best = d
    return best


def basic_block_forward(x_nchw, w1, gamma1, beta1, mean1, var1,
                        w2, gamma2, beta2, mean2, var2, eps=1e-5):
    """x_nchw: (N, C, H, W) float32.  Conv weights in PyTorch layout (out, in, 3, 3)."""
    N, C, H, W = x_nchw.shape
    P = w1.shape[0]
    assert C == P, "stride=1 / downsample=None requires inplanes == planes"
    Cp = ((C + LANE - 1) // LANE) * LANE      # lane-dense channel padding
    Pp = Cp
    Hp, Wp = H + 2, W + 2
    Hm = H + 2
    Wm = 8 * ((W + LEFT + 1 + 7) // 8)        # LEFT halo + W + >=1 right halo, mult of 8

    # Fold BatchNorm (inference / running-stats mode) into per-channel scale/bias.
    s1, b1 = _fold_bn(gamma1, beta1, mean1, var1, eps)
    s2, b2 = _fold_bn(gamma2, beta2, mean2, var2, eps)

    def pad_vec(v):
        return jnp.pad(v, (0, Pp - P)).reshape(1, Pp).astype(jnp.float32)

    s1p, b1p, s2p, b2p = pad_vec(s1), pad_vec(b1), pad_vec(s2), pad_vec(b2)

    # Single fused prologue: NCHW -> NHWC, cast bf16, spatial(1) + channel pad.
    x_nhwc = jnp.transpose(x_nchw, (0, 2, 3, 1)).astype(jnp.bfloat16)
    xpad = jnp.pad(x_nhwc, ((0, 0), (1, 1), (1, 1), (0, Cp - C)))

    # (out, in, 3, 3) -> (kh, kw, in, out) -> pad channels -> (3, 3*Cin, Cout), bf16.
    def prep_w(w):
        wk = jnp.transpose(w, (2, 3, 1, 0))
        wk = jnp.pad(wk, ((0, 0), (0, 0), (0, Cp - C), (0, Pp - P)))
        return wk.reshape(3, 3 * Cp, Pp).astype(jnp.bfloat16)

    w1_k, w2_k = prep_w(w1), prep_w(w2)

    # Row tile: matmul M dim = th*W, targeting >=256 (fills 256-wide MXU) but <=1024.
    th = _pick_th(H, W)

    # Explicit VMEM budget.
    vmem_est = (
        2 * Hp * Wp * Cp * 2              # xpad block (bf16), double-buffered
        + 2 * H * W * Pp * 2              # output block (bf16), double-buffered
        + 2 * 3 * 3 * Cp * Pp * 2         # conv1 + conv2 weights (bf16), single-buffered
        + Hm * Wm * Pp * 2                # mid scratch (bf16)
        + 4 * th * W * (3 * Cp * 2 + Pp * 4)   # in-kernel patch / accumulator temporaries
    )
    vmem_limit = int(min(48 * 1024 * 1024, max(32 * 1024 * 1024, 2 * vmem_est)))

    flops = 2 * N * 2 * (H * W) * (9 * Cp) * Pp
    bytes_accessed = (xpad.size * 2 + N * H * W * Pp * 2
                      + w1_k.size * 2 + w2_k.size * 2 + 4 * Pp * 4)
    cost = pl.CostEstimate(flops=flops, transcendentals=0,
                           bytes_accessed=bytes_accessed)

    const3 = lambda n: (0, 0, 0)
    const2 = lambda n: (0, 0)
    single = pl.Buffered(1)   # constant-index inputs: no double buffering needed

    kernel = functools.partial(basic_block_kernel, th=th)
    out_nhwc = pl.pallas_call(
        kernel,
        out_shape=jax.ShapeDtypeStruct((N, H, W, Pp), jnp.bfloat16),
        grid=(N,),
        in_specs=[
            pl.BlockSpec((1, Hp, Wp, Cp), lambda n: (n, 0, 0, 0)),
            pl.BlockSpec((3, 3 * Cp, Pp), const3, pipeline_mode=single),
            pl.BlockSpec((1, Pp), const2, pipeline_mode=single),
            pl.BlockSpec((1, Pp), const2, pipeline_mode=single),
            pl.BlockSpec((3, 3 * Cp, Pp), const3, pipeline_mode=single),
            pl.BlockSpec((1, Pp), const2, pipeline_mode=single),
            pl.BlockSpec((1, Pp), const2, pipeline_mode=single),
        ],
        out_specs=pl.BlockSpec((1, H, W, Pp), lambda n: (n, 0, 0, 0)),
        scratch_shapes=[pltpu.VMEM((Hm, Wm, Pp), jnp.bfloat16)],
        compiler_params=pltpu.CompilerParams(
            dimension_semantics=("parallel",),
            vmem_limit_bytes=vmem_limit),
        cost_estimate=cost,
    )(xpad, w1_k, s1p, b1p, w2_k, s2p, b2p)

    # Strip channel padding, cast back, NHWC -> NCHW to match PyTorch convention.
    return jnp.transpose(out_nhwc[..., :P].astype(x_nchw.dtype), (0, 3, 1, 2))


def _reference(x_nchw, w1, gamma1, beta1, mean1, var1,
               w2, gamma2, beta2, mean2, var2, eps=1e-5):
    """Pure-JAX f32 reference mirroring the PyTorch forward (eval-mode BN)."""
    def conv3x3(x, w):
        return lax.conv_general_dilated(
            x, w, window_strides=(1, 1), padding=((1, 1), (1, 1)),
            dimension_numbers=("NCHW", "OIHW", "NCHW"))

    def bn(x, g, b, m, v):
        g = g[None, :, None, None]; b = b[None, :, None, None]
        m = m[None, :, None, None]; v = v[None, :, None, None]
        return (x - m) / jnp.sqrt(v + eps) * g + b

    out = conv3x3(x_nchw, w1)
    out = jnp.maximum(out, 0.0)
    out = bn(out, gamma1, beta1, mean1, var1)
    out = conv3x3(out, w2)
    out = jnp.maximum(out, 0.0)
    out = bn(out, gamma2, beta2, mean2, var2)
    return out + x_nchw


if __name__ == "__main__":
    N, C, H, W = 2, 8, 16, 16           # inplanes = planes = 8, stride = 1
    P = C

    key = jax.random.PRNGKey(0)
    k_x, k_w1, k_w2 = jax.random.split(key, 3)

    x = jax.random.normal(k_x, (N, C, H, W), jnp.float32)
    # PyTorch weight layout: (out, in, 3, 3).
    w1 = 0.1 * jax.random.normal(k_w1, (P, C, 3, 3), jnp.float32)
    w2 = 0.1 * jax.random.normal(k_w2, (P, P, 3, 3), jnp.float32)
    gamma1 = 1.0 + 0.1 * jnp.arange(P, dtype=jnp.float32)
    beta1 = 0.01 * jnp.arange(P, dtype=jnp.float32)
    mean1 = 0.05 * jnp.arange(P, dtype=jnp.float32)
    var1 = 1.0 + 0.02 * jnp.arange(P, dtype=jnp.float32)
    gamma2 = 1.0 - 0.05 * jnp.arange(P, dtype=jnp.float32)
    beta2 = -0.02 * jnp.arange(P, dtype=jnp.float32)
    mean2 = -0.03 * jnp.arange(P, dtype=jnp.float32)
    var2 = 1.0 + 0.01 * jnp.arange(P, dtype=jnp.float32)

    params = (w1, gamma1, beta1, mean1, var1, w2, gamma2, beta2, mean2, var2)

    fwd = jax.jit(basic_block_forward)
    out = fwd(x, *params)
    out = jax.block_until_ready(out)

    ref = _reference(x, *params)
    assert out.shape == (N, C, H, W)
    max_err = jnp.max(jnp.abs(out - ref))
    # Tolerance covers bf16 MXU operands, bf16 mid/residual/output rounding.
    assert jnp.allclose(out, ref, atol=4e-2, rtol=4e-2), f"max abs err {max_err}"

    print("KERNEL_OK")
</pallas_src>

<mosaic_0001>
module attributes {stable_mosaic.version = 11 : i64} {
  func.func @basic_block_kernel(%arg0: i32, %arg1: memref<1x18x18x128xbf16, #tpu.memory_space<vmem>>, %arg2: memref<3x384x128xbf16, #tpu.memory_space<vmem>>, %arg3: memref<1x128xf32, #tpu.memory_space<vmem>>, %arg4: memref<1x128xf32, #tpu.memory_space<vmem>>, %arg5: memref<3x384x128xbf16, #tpu.memory_space<vmem>>, %arg6: memref<1x128xf32, #tpu.memory_space<vmem>>, %arg7: memref<1x128xf32, #tpu.memory_space<vmem>>, %arg8: memref<1x16x16x128xbf16, #tpu.memory_space<vmem>>, %arg9: memref<18x32x128xbf16, #tpu.memory_space<vmem>>) attributes {dimension_semantics = [#tpu.dimension_semantics<parallel>], iteration_bounds = array<i64: 2>, scalar_prefetch = 0 : i64, scratch_operands = 1 : i64, tpu.core_type = #tpu.core_type<tc>, window_params = [{transform_indices = @transform_0, window_bounds = array<i64: 1, 18, 18, 128>}, {pipeline_mode = #tpu.pipeline_mode<synchronous>, transform_indices = @transform_1, window_bounds = array<i64: 3, 384, 128>}, {pipeline_mode = #tpu.pipeline_mode<synchronous>, transform_indices = @transform_2, window_bounds = array<i64: 1, 128>}, {pipeline_mode = #tpu.pipeline_mode<synchronous>, transform_indices = @transform_3, window_bounds = array<i64: 1, 128>}, {pipeline_mode = #tpu.pipeline_mode<synchronous>, transform_indices = @transform_4, window_bounds = array<i64: 3, 384, 128>}, {pipeline_mode = #tpu.pipeline_mode<synchronous>, transform_indices = @transform_5, window_bounds = array<i64: 1, 128>}, {pipeline_mode = #tpu.pipeline_mode<synchronous>, transform_indices = @transform_6, window_bounds = array<i64: 1, 128>}, {transform_indices = @transform_7, window_bounds = array<i64: 1, 16, 16, 128>}]} {
    %cst = arith.constant 0.000000e+00 : bf16
    %0 = vector.broadcast %cst : bf16 to vector<1x32x128xbf16>
    %c0 = arith.constant 0 : index
    %c0_0 = arith.constant 0 : index
    %c0_1 = arith.constant 0 : index
    %1 = vector.load %arg9[%c0, %c0_0, %c0_1] : memref<18x32x128xbf16, #tpu.memory_space<vmem>>, vector<1x32x128xbf16>
    tpu.vector_store %arg9[%c0, %c0_0, %c0_1], %0 {strides = array<i32>} : memref<18x32x128xbf16, #tpu.memory_space<vmem>>, vector<1x32x128xbf16>,
    %c17 = arith.constant 17 : index
    %c0_2 = arith.constant 0 : index
    %c0_3 = arith.constant 0 : index
    %2 = vector.load %arg9[%c17, %c0_2, %c0_3] : memref<18x32x128xbf16, #tpu.memory_space<vmem>>, vector<1x32x128xbf16>
    tpu.vector_store %arg9[%c17, %c0_2, %c0_3], %0 {strides = array<i32>} : memref<18x32x128xbf16, #tpu.memory_space<vmem>>, vector<1x32x128xbf16>,
    %cst_4 = arith.constant 0.000000e+00 : bf16
    %3 = vector.broadcast %cst_4 : bf16 to vector<18x8x128xbf16>
    %c0_5 = arith.constant 0 : index
    %c0_6 = arith.constant 0 : index
    %c0_7 = arith.constant 0 : index
    %4 = vector.load %arg9[%c0_5, %c0_6, %c0_7] : memref<18x32x128xbf16, #tpu.memory_space<vmem>>, vector<18x8x128xbf16>
    tpu.vector_store %arg9[%c0_5, %c0_6, %c0_7], %3 {strides = array<i32>} : memref<18x32x128xbf16, #tpu.memory_space<vmem>>, vector<18x8x128xbf16>,
    %cst_8 = arith.constant 0.000000e+00 : bf16
    %5 = vector.broadcast %cst_8 : bf16 to vector<18x8x128xbf16>
    %c0_9 = arith.constant 0 : index
    %c24 = arith.constant 24 : index
    %c0_10 = arith.constant 0 : index
    %6 = vector.load %arg9[%c0_9, %c24, %c0_10] : memref<18x32x128xbf16, #tpu.memory_space<vmem>>, vector<18x8x128xbf16>
    tpu.vector_store %arg9[%c0_9, %c24, %c0_10], %5 {strides = array<i32>} : memref<18x32x128xbf16, #tpu.memory_space<vmem>>, vector<18x8x128xbf16>,
    %c0_11 = arith.constant 0 : index
    %c0_12 = arith.constant 0 : index
    %7 = vector.load %arg3[%c0_11, %c0_12] : memref<1x128xf32, #tpu.memory_space<vmem>>, vector<1x128xf32>
    %c0_13 = arith.constant 0 : index
    %c0_14 = arith.constant 0 : index
    %8 = vector.load %arg4[%c0_13, %c0_14] : memref<1x128xf32, #tpu.memory_space<vmem>>, vector<1x128xf32>
    %c0_15 = arith.constant 0 : index
    %c0_16 = arith.constant 0 : index
    %9 = vector.load %arg6[%c0_15, %c0_16] : memref<1x128xf32, #tpu.memory_space<vmem>>, vector<1x128xf32>
    %c0_17 = arith.constant 0 : index
    %c0_18 = arith.constant 0 : index
    %10 = vector.load %arg7[%c0_17, %c0_18] : memref<1x128xf32, #tpu.memory_space<vmem>>, vector<1x128xf32>
    %c0_19 = arith.constant 0 : index
    %c0_20 = arith.constant 0 : index
    %c0_21 = arith.constant 0 : index
    %c0_22 = arith.constant 0 : index
    %11 = vector.load %arg1[%c0_19, %c0_20, %c0_21, %c0_22] : memref<1x18x18x128xbf16, #tpu.memory_space<vmem>>, vector<1x16x16x128xbf16>
    %12 = vector.shape_cast %11 : vector<1x16x16x128xbf16> to vector<16x16x128xbf16>
    %c0_23 = arith.constant 0 : index
    %c0_24 = arith.constant 0 : index
    %c1 = arith.constant 1 : index
    %c0_25 = arith.constant 0 : index
    %13 = vector.load %arg1[%c0_23, %c0_24, %c1, %c0_25] : memref<1x18x18x128xbf16, #tpu.memory_space<vmem>>, vector<1x16x16x128xbf16>
    %14 = vector.shape_cast %13 : vector<1x16x16x128xbf16> to vector<16x16x128xbf16>
    %c0_26 = arith.constant 0 : index
    %c0_27 = arith.constant 0 : index
    %c2 = arith.constant 2 : index
    %c0_28 = arith.constant 0 : index
    %15 = vector.load %arg1[%c0_26, %c0_27, %c2, %c0_28] : memref<1x18x18x128xbf16, #tpu.memory_space<vmem>>, vector<1x16x16x128xbf16>
    %16 = vector.shape_cast %15 : vector<1x16x16x128xbf16> to vector<16x16x128xbf16>
    %17 = tpu.concatenate %12, %14, %16 in 2 : vector<16x16x128xbf16>, vector<16x16x128xbf16>, vector<16x16x128xbf16> -> vector<16x16x384xbf16>
    %18 = vector.shape_cast %17 : vector<16x16x384xbf16> to vector<256x384xbf16>
    %c0_29 = arith.constant 0 : index
    %c0_30 = arith.constant 0 : index
    %c0_31 = arith.constant 0 : index
    %19 = vector.load %arg2[%c0_29, %c0_30, %c0_31] : memref<3x384x128xbf16, #tpu.memory_space<vmem>>, vector<1x384x128xbf16>
    %20 = vector.shape_cast %19 : vector<1x384x128xbf16> to vector<384x128xbf16>
    %cst_32 = arith.constant dense<0.000000e+00> : vector<256x128xf32>
    %21 = tpu.matmul %18, %20, %cst_32 {dimension_numbers = #tpu.dot_dimension_numbers<[1], [0], [0], [1], [0, 0, 1, 1], [], []>} : vector<256x384xbf16>, vector<384x128xbf16>, vector<256x128xf32> -> vector<256x128xf32>
    %c0_33 = arith.constant 0 : index
    %c1_34 = arith.constant 1 : index
    %c0_35 = arith.constant 0 : index
    %c0_36 = arith.constant 0 : index
    %22 = vector.load %arg1[%c0_33, %c1_34, %c0_35, %c0_36] : memref<1x18x18x128xbf16, #tpu.memory_space<vmem>>, vector<1x16x16x128xbf16>
    %23 = vector.shape_cast %22 : vector<1x16x16x128xbf16> to vector<16x16x128xbf16>
    %c0_37 = arith.constant 0 : index
    %c1_38 = arith.constant 1 : index
    %c1_39 = arith.constant 1 : index
    %c0_40 = arith.constant 0 : index
    %24 = vector.load %arg1[%c0_37, %c1_38, %c1_39, %c0_40] : memref<1x18x18x128xbf16, #tpu.memory_space<vmem>>, vector<1x16x16x128xbf16>
    %25 = vector.shape_cast %24 : vector<1x16x16x128xbf16> to vector<16x16x128xbf16>
    %c0_41 = arith.constant 0 : index
    %c1_42 = arith.constant 1 : index
    %c2_43 = arith.constant 2 : index
    %c0_44 = arith.constant 0 : index
    %26 = vector.load %arg1[%c0_41, %c1_42, %c2_43, %c0_44] : memref<1x18x18x128xbf16, #tpu.memory_space<vmem>>, vector<1x16x16x128xbf16>
    %27 = vector.shape_cast %26 : vector<1x16x16x128xbf16> to vector<16x16x128xbf16>
    %28 = tpu.concatenate %23, %25, %27 in 2 : vector<16x16x128xbf16>, vector<16x16x128xbf16>, vector<16x16x128xbf16> -> vector<16x16x384xbf16>
    %29 = vector.shape_cast %28 : vector<16x16x384xbf16> to vector<256x384xbf16>
    %c1_45 = arith.constant 1 : index
    %c0_46 = arith.constant 0 : index
    %c0_47 = arith.constant 0 : index
    %30 = vector.load %arg2[%c1_45, %c0_46, %c0_47] : memref<3x384x128xbf16, #tpu.memory_space<vmem>>, vector<1x384x128xbf16>
    %31 = vector.shape_cast %30 : vector<1x384x128xbf16> to vector<384x128xbf16>
    %cst_48 = arith.constant dense<0.000000e+00> : vector<256x128xf32>
    %32 = tpu.matmul %29, %31, %cst_48 {dimension_numbers = #tpu.dot_dimension_numbers<[1], [0], [0], [1], [0, 0, 1, 1], [], []>} : vector<256x384xbf16>, vector<384x128xbf16>, vector<256x128xf32> -> vector<256x128xf32>
    %33 = arith.addf %21, %32 : vector<256x128xf32>
    %c0_49 = arith.constant 0 : index
    %c2_50 = arith.constant 2 : index
    %c0_51 = arith.constant 0 : index
    %c0_52 = arith.constant 0 : index
    %34 = vector.load %arg1[%c0_49, %c2_50, %c0_51, %c0_52] : memref<1x18x18x128xbf16, #tpu.memory_space<vmem>>, vector<1x16x16x128xbf16>
    %35 = vector.shape_cast %34 : vector<1x16x16x128xbf16> to vector<16x16x128xbf16>
    %c0_53 = arith.constant 0 : index
    %c2_54 = arith.constant 2 : index
    %c1_55 = arith.constant 1 : index
    %c0_56 = arith.constant 0 : index
    %36 = vector.load %arg1[%c0_53, %c2_54, %c1_55, %c0_56] : memref<1x18x18x128xbf16, #tpu.memory_space<vmem>>, vector<1x16x16x128xbf16>
    %37 = vector.shape_cast %36 : vector<1x16x16x128xbf16> to vector<16x16x128xbf16>
    %c0_57 = arith.constant 0 : index
    %c2_58 = arith.constant 2 : index
    %c2_59 = arith.constant 2 : index
    %c0_60 = arith.constant 0 : index
    %38 = vector.load %arg1[%c0_57, %c2_58, %c2_59, %c0_60] : memref<1x18x18x128xbf16, #tpu.memory_space<vmem>>, vector<1x16x16x128xbf16>
    %39 = vector.shape_cast %38 : vector<1x16x16x128xbf16> to vector<16x16x128xbf16>
    %40 = tpu.concatenate %35, %37, %39 in 2 : vector<16x16x128xbf16>, vector<16x16x128xbf16>, vector<16x16x128xbf16> -> vector<16x16x384xbf16>
    %41 = vector.shape_cast %40 : vector<16x16x384xbf16> to vector<256x384xbf16>
    %c2_61 = arith.constant 2 : index
    %c0_62 = arith.constant 0 : index
    %c0_63 = arith.constant 0 : index
    %42 = vector.load %arg2[%c2_61, %c0_62, %c0_63] : memref<3x384x128xbf16, #tpu.memory_space<vmem>>, vector<1x384x128xbf16>
    %43 = vector.shape_cast %42 : vector<1x384x128xbf16> to vector<384x128xbf16>
    %cst_64 = arith.constant dense<0.000000e+00> : vector<256x128xf32>
    %44 = tpu.matmul %41, %43, %cst_64 {dimension_numbers = #tpu.dot_dimension_numbers<[1], [0], [0], [1], [0, 0, 1, 1], [], []>} : vector<256x384xbf16>, vector<384x128xbf16>, vector<256x128xf32> -> vector<256x128xf32>
    %45 = arith.addf %33, %44 : vector<256x128xf32>
    %cst_65 = arith.constant 0.000000e+00 : f32
    %46 = vector.broadcast %cst_65 : f32 to vector<256x128xf32>
    %47 = arith.maximumf %45, %46 : vector<256x128xf32>
    %48 = vector.broadcast %7 : vector<1x128xf32> to vector<256x128xf32>
    %49 = arith.mulf %47, %48 : vector<256x128xf32>
    %50 = vector.broadcast %8 : vector<1x128xf32> to vector<256x128xf32>
    %51 = arith.addf %49, %50 : vector<256x128xf32>
    %52 = vector.shape_cast %51 : vector<256x128xf32> to vector<16x16x128xf32>
    %53 = arith.truncf %52 : vector<16x16x128xf32> to vector<16x16x128xbf16>
    %c1_66 = arith.constant 1 : index
    %c8 = arith.constant 8 : index
    %c0_67 = arith.constant 0 : index
    %54 = vector.load %arg9[%c1_66, %c8, %c0_67] : memref<18x32x128xbf16, #tpu.memory_space<vmem>>, vector<16x16x128xbf16>
    tpu.vector_store %arg9[%c1_66, %c8, %c0_67], %53 {strides = array<i32>} : memref<18x32x128xbf16, #tpu.memory_space<vmem>>, vector<16x16x128xbf16>,
    %c0_68 = arith.constant 0 : index
    %c7 = arith.constant 7 : index
    %c0_69 = arith.constant 0 : index
    %55 = vector.load %arg9[%c0_68, %c7, %c0_69] : memref<18x32x128xbf16, #tpu.memory_space<vmem>>, vector<16x16x128xbf16>
    %c0_70 = arith.constant 0 : index
    %c8_71 = arith.constant 8 : index
    %c0_72 = arith.constant 0 : index
    %56 = vector.load %arg9[%c0_70, %c8_71, %c0_72] : memref<18x32x128xbf16, #tpu.memory_space<vmem>>, vector<16x16x128xbf16>
    %c0_73 = arith.constant 0 : index
    %c9 = arith.constant 9 : index
    %c0_74 = arith.constant 0 : index
    %57 = vector.load %arg9[%c0_73, %c9, %c0_74] : memref<18x32x128xbf16, #tpu.memory_space<vmem>>, vector<16x16x128xbf16>
    %58 = tpu.concatenate %55, %56, %57 in 2 : vector<16x16x128xbf16>, vector<16x16x128xbf16>, vector<16x16x128xbf16> -> vector<16x16x384xbf16>
    %59 = vector.shape_cast %58 : vector<16x16x384xbf16> to vector<256x384xbf16>
    %c0_75 = arith.constant 0 : index
    %c0_76 = arith.constant 0 : index
    %c0_77 = arith.constant 0 : index
    %60 = vector.load %arg5[%c0_75, %c0_76, %c0_77] : memref<3x384x128xbf16, #tpu.memory_space<vmem>>, vector<1x384x128xbf16>
    %61 = vector.shape_cast %60 : vector<1x384x128xbf16> to vector<384x128xbf16>
    %cst_78 = arith.constant dense<0.000000e+00> : vector<256x128xf32>
    %62 = tpu.matmul %59, %61, %cst_78 {dimension_numbers = #tpu.dot_dimension_numbers<[1], [0], [0], [1], [0, 0, 1, 1], [], []>} : vector<256x384xbf16>, vector<384x128xbf16>, vector<256x128xf32> -> vector<256x128xf32>
    %c1_79 = arith.constant 1 : index
    %c7_80 = arith.constant 7 : index
    %c0_81 = arith.constant 0 : index
    %63 = vector.load %arg9[%c1_79, %c7_80, %c0_81] : memref<18x32x128xbf16, #tpu.memory_space<vmem>>, vector<16x16x128xbf16>
    %c1_82 = arith.constant 1 : index
    %c8_83 = arith.constant 8 : index
    %c0_84 = arith.constant 0 : index
    %64 = vector.load %arg9[%c1_82, %c8_83, %c0_84] : memref<18x32x128xbf16, #tpu.memory_space<vmem>>, vector<16x16x128xbf16>
    %c1_85 = arith.constant 1 : index
    %c9_86 = arith.constant 9 : index
    %c0_87 = arith.constant 0 : index
    %65 = vector.load %arg9[%c1_85, %c9_86, %c0_87] : memref<18x32x128xbf16, #tpu.memory_space<vmem>>, vector<16x16x128xbf16>
    %66 = tpu.concatenate %63, %64, %65 in 2 : vector<16x16x128xbf16>, vector<16x16x128xbf16>, vector<16x16x128xbf16> -> vector<16x16x384xbf16>
    %67 = vector.shape_cast %66 : vector<16x16x384xbf16> to vector<256x384xbf16>
    %c1_88 = arith.constant 1 : index
    %c0_89 = arith.constant 0 : index
    %c0_90 = arith.constant 0 : index
    %68 = vector.load %arg5[%c1_88, %c0_89, %c0_90] : memref<3x384x128xbf16, #tpu.memory_space<vmem>>, vector<1x384x128xbf16>
    %69 = vector.shape_cast %68 : vector<1x384x128xbf16> to vector<384x128xbf16>
    %cst_91 = arith.constant dense<0.000000e+00> : vector<256x128xf32>
    %70 = tpu.matmul %67, %69, %cst_91 {dimension_numbers = #tpu.dot_dimension_numbers<[1], [0], [0], [1], [0, 0, 1, 1], [], []>} : vector<256x384xbf16>, vector<384x128xbf16>, vector<256x128xf32> -> vector<256x128xf32>
    %71 = arith.addf %62, %70 : vector<256x128xf32>
    %c2_92 = arith.constant 2 : index
    %c7_93 = arith.constant 7 : index
    %c0_94 = arith.constant 0 : index
    %72 = vector.load %arg9[%c2_92, %c7_93, %c0_94] : memref<18x32x128xbf16, #tpu.memory_space<vmem>>, vector<16x16x128xbf16>
    %c2_95 = arith.constant 2 : index
    %c8_96 = arith.constant 8 : index
    %c0_97 = arith.constant 0 : index
    %73 = vector.load %arg9[%c2_95, %c8_96, %c0_97] : memref<18x32x128xbf16, #tpu.memory_space<vmem>>, vector<16x16x128xbf16>
    %c2_98 = arith.constant 2 : index
    %c9_99 = arith.constant 9 : index
    %c0_100 = arith.constant 0 : index
    %74 = vector.load %arg9[%c2_98, %c9_99, %c0_100] : memref<18x32x128xbf16, #tpu.memory_space<vmem>>, vector<16x16x128xbf16>
    %75 = tpu.concatenate %72, %73, %74 in 2 : vector<16x16x128xbf16>, vector<16x16x128xbf16>, vector<16x16x128xbf16> -> vector<16x16x384xbf16>
    %76 = vector.shape_cast %75 : vector<16x16x384xbf16> to vector<256x384xbf16>
    %c2_101 = arith.constant 2 : index
    %c0_102 = arith.constant 0 : index
    %c0_103 = arith.constant 0 : index
    %77 = vector.load %arg5[%c2_101, %c0_102, %c0_103] : memref<3x384x128xbf16, #tpu.memory_space<vmem>>, vector<1x384x128xbf16>
    %78 = vector.shape_cast %77 : vector<1x384x128xbf16> to vector<384x128xbf16>
    %cst_104 = arith.constant dense<0.000000e+00> : vector<256x128xf32>
    %79 = tpu.matmul %76, %78, %cst_104 {dimension_numbers = #tpu.dot_dimension_numbers<[1], [0], [0], [1], [0, 0, 1, 1], [], []>} : vector<256x384xbf16>, vector<384x128xbf16>, vector<256x128xf32> -> vector<256x128xf32>
    %80 = arith.addf %71, %79 : vector<256x128xf32>
    %cst_105 = arith.constant 0.000000e+00 : f32
    %81 = vector.broadcast %cst_105 : f32 to vector<256x128xf32>
    %82 = arith.maximumf %80, %81 : vector<256x128xf32>
    %83 = vector.broadcast %9 : vector<1x128xf32> to vector<256x128xf32>
    %84 = arith.mulf %82, %83 : vector<256x128xf32>
    %85 = vector.broadcast %10 : vector<1x128xf32> to vector<256x128xf32>
    %86 = arith.addf %84, %85 : vector<256x128xf32>
    %c0_106 = arith.constant 0 : index
    %c1_107 = arith.constant 1 : index
    %c1_108 = arith.constant 1 : index
    %c0_109 = arith.constant 0 : index
    %87 = vector.load %arg1[%c0_106, %c1_107, %c1_108, %c0_109] : memref<1x18x18x128xbf16, #tpu.memory_space<vmem>>, vector<1x16x16x128xbf16>
    %88 = vector.shape_cast %87 : vector<1x16x16x128xbf16> to vector<16x16x128xbf16>
    %89 = arith.extf %88 : vector<16x16x128xbf16> to vector<16x16x128xf32>
    %90 = vector.shape_cast %86 : vector<256x128xf32> to vector<16x16x128xf32>
    %91 = arith.addf %90, %89 : vector<16x16x128xf32>
    %92 = arith.truncf %91 : vector<16x16x128xf32> to vector<16x16x128xbf16>
    %c0_110 = arith.constant 0 : index
    %c0_111 = arith.constant 0 : index
    %c0_112 = arith.constant 0 : index
    %c0_113 = arith.constant 0 : index
    %93 = vector.load %arg8[%c0_110, %c0_111, %c0_112, %c0_113] : memref<1x16x16x128xbf16, #tpu.memory_space<vmem>>, vector<1x16x16x128xbf16>
    %94 = vector.shape_cast %93 : vector<1x16x16x128xbf16> to vector<16x16x128xbf16>
    %95 = vector.shape_cast %92 : vector<16x16x128xbf16> to vector<1x16x16x128xbf16>
    tpu.vector_store %arg8[%c0_110, %c0_111, %c0_112, %c0_113], %95 {strides = array<i32>} : memref<1x16x16x128xbf16, #tpu.memory_space<vmem>>, vector<1x16x16x128xbf16>,
    return
  }
  func.func @transform_0(%arg0: i32) -> (i32, i32, i32, i32) {
    %c0_i32 = arith.constant 0 : i32
    %c0_i32_0 = arith.constant 0 : i32
    %c0_i32_1 = arith.constant 0 : i32
    %c0_i32_2 = arith.constant 0 : i32
    return %arg0, %c0_i32, %c0_i32_0, %c0_i32_1 : i32, i32, i32, i32
  }
  func.func @transform_1(%arg0: i32) -> (i32, i32, i32) {
    %c0_i32 = arith.constant 0 : i32
    %c0_i32_0 = arith.constant 0 : i32
    %c0_i32_1 = arith.constant 0 : i32
    %c0_i32_2 = arith.constant 0 : i32
    return %c0_i32, %c0_i32_0, %c0_i32_1 : i32, i32, i32
  }
  func.func @transform_2(%arg0: i32) -> (i32, i32) {
    %c0_i32 = arith.constant 0 : i32
    %c0_i32_0 = arith.constant 0 : i32
    %c0_i32_1 = arith.constant 0 : i32
    return %c0_i32, %c0_i32_0 : i32, i32
  }
  func.func @transform_3(%arg0: i32) -> (i32, i32) {
    %c0_i32 = arith.constant 0 : i32
    %c0_i32_0 = arith.constant 0 : i32
    %c0_i32_1 = arith.constant 0 : i32
    return %c0_i32, %c0_i32_0 : i32, i32
  }
  func.func @transform_4(%arg0: i32) -> (i32, i32, i32) {
    %c0_i32 = arith.constant 0 : i32
    %c0_i32_0 = arith.constant 0 : i32
    %c0_i32_1 = arith.constant 0 : i32
    %c0_i32_2 = arith.constant 0 : i32
    return %c0_i32, %c0_i32_0, %c0_i32_1 : i32, i32, i32
  }
  func.func @transform_5(%arg0: i32) -> (i32, i32) {
    %c0_i32 = arith.constant 0 : i32
    %c0_i32_0 = arith.constant 0 : i32
    %c0_i32_1 = arith.constant 0 : i32
    return %c0_i32, %c0_i32_0 : i32, i32
  }
  func.func @transform_6(%arg0: i32) -> (i32, i32) {
    %c0_i32 = arith.constant 0 : i32
    %c0_i32_0 = arith.constant 0 : i32
    %c0_i32_1 = arith.constant 0 : i32
    return %c0_i32, %c0_i32_0 : i32, i32
  }
  func.func @transform_7(%arg0: i32) -> (i32, i32, i32, i32) {
    %c0_i32 = arith.constant 0 : i32
    %c0_i32_0 = arith.constant 0 : i32
    %c0_i32_1 = arith.constant 0 : i32
    %c0_i32_2 = arith.constant 0 : i32
    return %arg0, %c0_i32, %c0_i32_0, %c0_i32_1 : i32, i32, i32, i32
  }
}

</mosaic_0001>

<llo_original>
// kernel: basic_block_forward.1
$region0: #{basic_block_forward.1}
  #allocation0 [shape = 'u32[]', space=smem, size = 0x4, offset = 0x4, fixed_abs, tag = 'smem constant byte address 0x4 - core index']
  #allocation1 [shape = 'u32[144,128]{1,0:T(1,128)}', space=vmem, size = 0x12000, scoped, tag = 'internal scratch']
  #allocation2 [shape = 'bf16[18,32,128]{2,1,0:T(16,128)(2,1)}', space=vmem, size = 0x24000, scoped, tag = 'scratch operand']
  %s0 = inlined_call_operand.vmem [shape: bf16[2,18,18,128], index: 0, kind: input, shape index: {}]
  %s1 = inlined_call_operand.vmem [shape: bf16[3,384,128], index: 1, kind: input, shape index: {}]
  %s2 = inlined_call_operand.vmem [shape: f32[1,128], index: 2, kind: input, shape index: {}]
  %s3 = inlined_call_operand.vmem [shape: f32[1,128], index: 3, kind: input, shape index: {}]
  %s4 = inlined_call_operand.vmem [shape: bf16[3,384,128], index: 4, kind: input, shape index: {}]
  %s5 = inlined_call_operand.vmem [shape: f32[1,128], index: 5, kind: input, shape index: {}]
  %s6 = inlined_call_operand.vmem [shape: f32[1,128], index: 6, kind: input, shape index: {}]
  %s7 = inlined_call_operand.vmem [shape: bf16[2,16,16,128], index: 7, kind: output, shape index: {}]
  %s8 = sld [smem:[#allocation0]]
  $region61: #{basic_block_forward.1} parent=0
    _
  %s10 = ssub.s32 1, %s8
  %s11 = scalar_select 0, %s10, %s8
  loop: start=0, step=1, limit=4
  $region2: #{basic_block_forward.1} parent=0 // loop_pre_header
    _
  $region3: #{basic_block_forward.1} parent=0 // loop_header
    %s13 = sphi 0, %s17
    %p14 = scmp.ge.s32.totalorder %s13, 4
    %s23 = sphi 0, %s25
    %s26 = sphi 0, %s23
    %s27 = sphi 0, %s26
    %s43 = sphi 0, %s27
    %s47 = sphi 0, %s47
    %s49 = sphi 0, %s47
    %s50 = sphi 0, %s49
    %s64 = sphi 0, %s50
    %s68 = sphi 0, %s68
    %s70 = sphi 0, %s68
    %s71 = sphi 0, %s70
    %s85 = sphi 0, %s71
    %s89 = sphi 0, %s89
    %s91 = sphi 0, %s89
    %s92 = sphi 0, %s91
    %s106 = sphi 0, %s92
    %s110 = sphi 0, %s110
    %s112 = sphi 0, %s110
    %s113 = sphi 0, %s112
    %s127 = sphi 0, %s113
    %s131 = sphi 0, %s131
    %s133 = sphi 0, %s131
    %s134 = sphi 0, %s133
    %s148 = sphi 0, %s134
    %s152 = sphi 0, %s152
    %s154 = sphi 0, %s152
    %s155 = sphi 0, %s154
    %s169 = sphi 0, %s155
    %s175 = sphi 0, %s177
    %s178 = sphi 0, %s175
    %s179 = sphi 0, %s178
    %s195 = sphi 0, %s179
  $region4: #{basic_block_forward.1} parent=0 // loop_header_branch
    %16 = sbr.rel (%p14) target = $region8
  $region5: #{basic_block_forward.1} parent=0 // loop_body
    %s18 = ssub.s32 %s13, 1
    %s19 = ssub.s32 %s13, 2
    %s20 = sadd.s32 %s13, 1
    %s21 = ssub.s32 %s13, %s20
    %p22 = scmp.eq.s32.totalorder %s21, 0
    %s24 = sadd.s32 %s23, 1
    %s25 = scalar_select %p22, %s23, %s24
    %p28 = pneg %p22
    %p29 = scmp.eq.s32.totalorder %s13, 1
    %p30 = por %p28, %p29
    %p31 = scmp.ne.s32.totalorder %s23, %s26
    %p32 = scmp.eq.s32.totalorder %s13, 0
    %p33 = por %p31, %p32
    %p34 = scmp.ne.s32.totalorder %s23, %s26
    %p35 = scmp.eq.s32.totalorder %s18, 1
    %p36 = por %p34, %p35
    %p37 = scmp.ne.s32.totalorder %s26, %s27
    %p38 = scmp.eq.s32.totalorder %s18, 0
    %p39 = por %p37, %p38
    %p40 = scmp.ne.s32.totalorder %s26, %s27
    %p41 = scmp.eq.s32.totalorder %s19, 1
    %p42 = por %p40, %p41
    %p44 = scmp.ne.s32.totalorder %s27, %s43
    %p45 = scmp.eq.s32.totalorder %s19, 0
    %p46 = por %p44, %p45
    %s48 = sadd.s32 %s47, 1
    %p51 = scmp.eq.s32.totalorder %s13, 1
    %p52 = scmp.ne.s32.totalorder %s47, %s49
    %p53 = scmp.eq.s32.totalorder %s13, 0
    %p54 = por %p52, %p53
    %p55 = scmp.ne.s32.totalorder %s47, %s49
    %p56 = scmp.eq.s32.totalorder %s18, 1
    %p57 = por %p55, %p56
    %p58 = scmp.ne.s32.totalorder %s49, %s50
    %p59 = scmp.eq.s32.totalorder %s18, 0
    %p60 = por %p58, %p59
    %p61 = scmp.ne.s32.totalorder %s49, %s50
    %p62 = scmp.eq.s32.totalorder %s19, 1
    %p63 = por %p61, %p62
    %p65 = scmp.ne.s32.totalorder %s50, %s64
    %p66 = scmp.eq.s32.totalorder %s19, 0
    %p67 = por %p65, %p66
    %s69 = sadd.s32 %s68, 1
    %p72 = scmp.eq.s32.totalorder %s13, 1
    %p73 = scmp.ne.s32.totalorder %s68, %s70
    %p74 = scmp.eq.s32.totalorder %s13, 0
    %p75 = por %p73, %p74
    %p76 = scmp.ne.s32.totalorder %s68, %s70
    %p77 = scmp.eq.s32.totalorder %s18, 1
    %p78 = por %p76, %p77
    %p79 = scmp.ne.s32.totalorder %s70, %s71
    %p80 = scmp.eq.s32.totalorder %s18, 0
    %p81 = por %p79, %p80
    %p82 = scmp.ne.s32.totalorder %s70, %s71
    %p83 = scmp.eq.s32.totalorder %s19, 1
    %p84 = por %p82, %p83
    %p86 = scmp.ne.s32.totalorder %s71, %s85
    %p87 = scmp.eq.s32.totalorder %s19, 0
    %p88 = por %p86, %p87
    %s90 = sadd.s32 %s89, 1
    %p93 = scmp.eq.s32.totalorder %s13, 1
    %p94 = scmp.ne.s32.totalorder %s89, %s91
    %p95 = scmp.eq.s32.totalorder %s13, 0
    %p96 = por %p94, %p95
    %p97 = scmp.ne.s32.totalorder %s89, %s91
    %p98 = scmp.eq.s32.totalorder %s18, 1
    %p99 = por %p97, %p98
    %p100 = scmp.ne.s32.totalorder %s91, %s92
    %p101 = scmp.eq.s32.totalorder %s18, 0
    %p102 = por %p100, %p101
    %p103 = scmp.ne.s32.totalorder %s91, %s92
    %p104 = scmp.eq.s32.totalorder %s19, 1
    %p105 = por %p103, %p104
    %p107 = scmp.ne.s32.totalorder %s92, %s106
    %p108 = scmp.eq.s32.totalorder %s19, 0
    %p109 = por %p107, %p108
    %s111 = sadd.s32 %s110, 1
    %p114 = scmp.eq.s32.totalorder %s13, 1
    %p115 = scmp.ne.s32.totalorder %s110, %s112
    %p116 = scmp.eq.s32.totalorder %s13, 0
    %p117 = por %p115, %p116
    %p118 = scmp.ne.s32.totalorder %s110, %s112
    %p119 = scmp.eq.s32.totalorder %s18, 1
    %p120 = por %p118, %p119
    %p121 = scmp.ne.s32.totalorder %s112, %s113
    %p122 = scmp.eq.s32.totalorder %s18, 0
    %p123 = por %p121, %p122
    %p124 = scmp.ne.s32.totalorder %s112, %s113
    %p125 = scmp.eq.s32.totalorder %s19, 1
    %p126 = por %p124, %p125
    %p128 = scmp.ne.s32.totalorder %s113, %s127
    %p129 = scmp.eq.s32.totalorder %s19, 0
    %p130 = por %p128, %p129
    %s132 = sadd.s32 %s131, 1
    %p135 = scmp.eq.s32.totalorder %s13, 1
    %p136 = scmp.ne.s32.totalorder %s131, %s133
    %p137 = scmp.eq.s32.totalorder %s13, 0
    %p138 = por %p136, %p137
    %p139 = scmp.ne.s32.totalorder %s131, %s133
    %p140 = scmp.eq.s32.totalorder %s18, 1
    %p141 = por %p139, %p140
    %p142 = scmp.ne.s32.totalorder %s133, %s134
    %p143 = scmp.eq.s32.totalorder %s18, 0
    %p144 = por %p142, %p143
    %p145 = scmp.ne.s32.totalorder %s133, %s134
    %p146 = scmp.eq.s32.totalorder %s19, 1
    %p147 = por %p145, %p146
    %p149 = scmp.ne.s32.totalorder %s134, %s148
    %p150 = scmp.eq.s32.totalorder %s19, 0
    %p151 = por %p149, %p150
    %s153 = sadd.s32 %s152, 1
    %p156 = scmp.eq.s32.totalorder %s13, 1
    %p157 = scmp.ne.s32.totalorder %s152, %s154
    %p158 = scmp.eq.s32.totalorder %s13, 0
    %p159 = por %p157, %p158
    %p160 = scmp.ne.s32.totalorder %s152, %s154
    %p161 = scmp.eq.s32.totalorder %s18, 1
    %p162 = por %p160, %p161
    %p163 = scmp.ne.s32.totalorder %s154, %s155
    %p164 = scmp.eq.s32.totalorder %s18, 0
    %p165 = por %p163, %p164
    %p166 = scmp.ne.s32.totalorder %s154, %s155
    %p167 = scmp.eq.s32.totalorder %s19, 1
    %p168 = por %p166, %p167
    %p170 = scmp.ne.s32.totalorder %s155, %s169
    %p171 = scmp.eq.s32.totalorder %s19, 0
    %p172 = por %p170, %p171
    %s173 = ssub.s32 %s13, %s20
    %p174 = scmp.eq.s32.totalorder %s173, 0
    %s176 = sadd.s32 %s175, 1
    %s177 = scalar_select %p174, %s175, %s176
    %p180 = pneg %p174
    %p181 = scmp.eq.s32.totalorder %s13, 1
    %p182 = por %p180, %p181
    %p183 = scmp.ne.s32.totalorder %s175, %s178
    %p184 = scmp.eq.s32.totalorder %s13, 0
    %p185 = por %p183, %p184
    %p186 = scmp.ne.s32.totalorder %s175, %s178
    %p187 = scmp.eq.s32.totalorder %s18, 1
    %p188 = por %p186, %p187
    %p189 = scmp.ne.s32.totalorder %s178, %s179
    %p190 = scmp.eq.s32.totalorder %s18, 0
    %p191 = por %p189, %p190
    %p192 = scmp.ne.s32.totalorder %s178, %s179
    %p193 = scmp.eq.s32.totalorder %s19, 1
    %p194 = por %p192, %p193
    %p196 = scmp.ne.s32.totalorder %s179, %s195
    %p197 = scmp.eq.s32.totalorder %s19, 0
    %p198 = por %p196, %p197
    %p199 = scmp.le.s32.totalorder 1, %s13
    %p200 = scmp.lt.s32.totalorder %s13, 3
    %p201 = pnand %p199, %p200
    %p202 = pneg %p201
    // Predicated region
    $region9: #{basic_block_forward.1} parent=5 // pred_check
      _
    $region10: #{basic_block_forward.1} parent=5 // pred_check_branch
      %204 = sbr.rel (%p201) target = $region12
    $region11: #{basic_block_forward.1} parent=5 // pred_region
      %s205 = ssub.s32 %s13, 1
      // Predicated region
      $region13: #{basic_block_forward.1} parent=11 // pred_check
        %p206 = pneg %p60
      $region14: #{basic_block_forward.1} parent=11 // pred_check_branch
        %208 = sbr.rel (%p206) target = $region16
      $region15: #{basic_block_forward.1} parent=11 // pred_region
        _
      $region16: #{basic_block_forward.1} parent=11 // pred_fallthru
        _
      // Predicated region
      $region17: #{basic_block_forward.1} parent=11 // pred_check
        %p209 = pneg %p81
      $region18: #{basic_block_forward.1} parent=11 // pred_check_branch
        %211 = sbr.rel (%p209) target = $region20
      $region19: #{basic_block_forward.1} parent=11 // pred_region
        _
      $region20: #{basic_block_forward.1} parent=11 // pred_fallthru
        _
      // Predicated region
      $region21: #{basic_block_forward.1} parent=11 // pred_check
        %p212 = pneg %p102
      $region22: #{basic_block_forward.1} parent=11 // pred_check_branch
        %214 = sbr.rel (%p212) target = $region24
      $region23: #{basic_block_forward.1} parent=11 // pred_region
        _
      $region24: #{basic_block_forward.1} parent=11 // pred_fallthru
        _
      // Predicated region
      $region25: #{basic_block_forward.1} parent=11 // pred_check
        %p215 = pneg %p123
      $region26: #{basic_block_forward.1} parent=11 // pred_check_branch
        %217 = sbr.rel (%p215) target = $region28
      $region27: #{basic_block_forward.1} parent=11 // pred_region
        _
      $region28: #{basic_block_forward.1} parent=11 // pred_fallthru
        _
      // Predicated region
      $region29: #{basic_block_forward.1} parent=11 // pred_check
        %p218 = pneg %p144
      $region30: #{basic_block_forward.1} parent=11 // pred_check_branch
        %220 = sbr.rel (%p218) target = $region32
      $region31: #{basic_block_forward.1} parent=11 // pred_region
        _
      $region32: #{basic_block_forward.1} parent=11 // pred_fallthru
        _
      // Predicated region
      $region33: #{basic_block_forward.1} parent=11 // pred_check
        %p221 = pneg %p165
      $region34: #{basic_block_forward.1} parent=11 // pred_check_branch
        %223 = sbr.rel (%p221) target = $region36
      $region35: #{basic_block_forward.1} parent=11 // pred_region
        _
      $region36: #{basic_block_forward.1} parent=11 // pred_fallthru
        _
    $region12: #{basic_block_forward.1} parent=5 // pred_fallthru
      _
    %p224 = scmp.lt.s32.totalorder %s13, 2
    // Predicated region
    $region37: #{basic_block_forward.1} parent=5 // pred_check
      %p225 = pneg %p224
    $region38: #{basic_block_forward.1} parent=5 // pred_check_branch
      %227 = sbr.rel (%p225) target = $region40
    $region39: #{basic_block_forward.1} parent=5 // pred_region
      // Predicated region
      $region41: #{basic_block_forward.1} parent=39 // pred_check
        %p228 = pneg %p33
      $region42: #{basic_block_forward.1} parent=39 // pred_check_branch
        %230 = sbr.rel (%p228) target = $region44
      $region43: #{basic_block_forward.1} parent=39 // pred_region
        %p231 = scmp.lt.s32.totalorder %s13, 1
        %s232 = scalar_select %p231, %s13, 1
        %s233 = smul.addr %s232, 54
        %s234 = smul.addr %s233, 4
        %s235 = scalar_lea.vmem %s0, %s234
      $region44: #{basic_block_forward.1} parent=39 // pred_fallthru
        _
    $region40: #{basic_block_forward.1} parent=5 // pred_fallthru
      _
    %p236 = scmp.le.s32.totalorder 1, %s13
    %p237 = scmp.lt.s32.totalorder %s13, 3
    %p238 = pnand %p236, %p237
    %p239 = pneg %p238
    // Predicated region
    $region45: #{basic_block_forward.1} parent=5 // pred_check
      _
    $region46: #{basic_block_forward.1} parent=5 // pred_check_branch
      %241 = sbr.rel (%p238) target = $region48
    $region47: #{basic_block_forward.1} parent=5 // pred_region
      %s242 = ssub.s32 %s13, 1
      %p243 = scmp.lt.s32.totalorder %s18, 1
      %s244 = scalar_select %p243, %s18, 1
      %s245 = smul.addr %s244, 54
      %s246 = smul.addr %s245, 4
      %s247 = scalar_lea.vmem %s0, %s246
      %p248 = pneg %p39
      %p249 = pneg %p36
      %p250 = pneg %p60
      %p251 = pneg %p57
      %p252 = pneg %p81
      %p253 = pneg %p78
      %p254 = pneg %p102
      %p255 = pneg %p99
      %p256 = pneg %p123
      %p257 = pneg %p120
      %p258 = pneg %p144
      %p259 = pneg %p141
      %p260 = pneg %p165
      %p261 = pneg %p162
      %p262 = pneg %p191
      %p263 = pneg %p188
      %p264 = scmp.lt.s32.totalorder %s18, 1
      %s265 = scalar_select %p264, %s18, 1
      %s266 = smul.addr %s265, 32
      %s267 = smul.addr %s266, 4
      %s268 = scalar_lea.vmem %s7, %s267
      %p269 = scmp.lt.s32.totalorder %s18, 1
      %s270 = scalar_select %p269, %s18, 1
      %s271 = smul.addr %s270, 54
      %s272 = smul.addr %s271, 4
      %s273 = scalar_lea.vmem %s0, %s272
      %p274 = scmp.lt.s32.totalorder %s18, 1
      %s275 = scalar_select %p274, %s18, 1
      %s276 = smul.addr %s275, 32
      %s277 = smul.addr %s276, 4
      %s278 = scalar_lea.vmem %s7, %s277
      %280 = vst [vmem:[#allocation2] sm:$0xff] 0
      %281 = vst [vmem:[#allocation2 + $0x8] sm:$0xff] 0
      %s282 = scalar_lea.vmem [#allocation2], 272
      %283 = vst [vmem:[%s282] sm:$0xff] 0
      %284 = vst [vmem:[%s282 + $0x8] sm:$0xff] 0
      %285 = vst [vmem:[#allocation2] sm:$0xf] 0
      %286 = vst [vmem:[#allocation2 + $0x10] sm:$0xf] 0
      %287 = vst [vmem:[#allocation2 + $0x20] sm:$0xf] 0
      %288 = vst [vmem:[#allocation2 + $0x30] sm:$0xf] 0
      %289 = vst [vmem:[#allocation2 + $0x40] sm:$0xf] 0
      %290 = vst [vmem:[#allocation2 + $0x50] sm:$0xf] 0
      %291 = vst [vmem:[#allocation2 + $0x60] sm:$0xf] 0
      %292 = vst [vmem:[#allocation2 + $0x70] sm:$0xf] 0
      %293 = vst [vmem:[#allocation2 + $0x80] sm:$0xf] 0
      %294 = vst [vmem:[#allocation2 + $0x90] sm:$0xf] 0
      %295 = vst [vmem:[#allocation2 + $0xa0] sm:$0xf] 0
      %296 = vst [vmem:[#allocation2 + $0xb0] sm:$0xf] 0
      %297 = vst [vmem:[#allocation2 + $0xc0] sm:$0xf] 0
      %298 = vst [vmem:[#allocation2 + $0xd0] sm:$0xf] 0
      %299 = vst [vmem:[#allocation2 + $0xe0] sm:$0xf] 0
      %300 = vst [vmem:[#allocation2 + $0xf0] sm:$0xf] 0
      %301 = vst [vmem:[#allocation2 + $0x100] sm:$0xf] 0
      %302 = vst [vmem:[#allocation2 + $0x110] sm:$0xf] 0
      %303 = vst [vmem:[#allocation2 + $0x8] sm:$0xf0] 0
      %304 = vst [vmem:[#allocation2 + $0x18] sm:$0xf0] 0
      %305 = vst [vmem:[#allocation2 + $0x28] sm:$0xf0] 0
      %306 = vst [vmem:[#allocation2 + $0x38] sm:$0xf0] 0
      %307 = vst [vmem:[#allocation2 + $0x48] sm:$0xf0] 0
      %308 = vst [vmem:[#allocation2 + $0x58] sm:$0xf0] 0
      %309 = vst [vmem:[#allocation2 + $0x68] sm:$0xf0] 0
      %310 = vst [vmem:[#allocation2 + $0x78] sm:$0xf0] 0
      %311 = vst [vmem:[#allocation2 + $0x88] sm:$0xf0] 0
      %312 = vst [vmem:[#allocation2 + $0x98] sm:$0xf0] 0
      %313 = vst [vmem:[#allocation2 + $0xa8] sm:$0xf0] 0
      %314 = vst [vmem:[#allocation2 + $0xb8] sm:$0xf0] 0
      %315 = vst [vmem:[#allocation2 + $0xc8] sm:$0xf0] 0
      %316 = vst [vmem:[#allocation2 + $0xd8] sm:$0xf0] 0
      %317 = vst [vmem:[#allocation2 + $0xe8] sm:$0xf0] 0
      %318 = vst [vmem:[#allocation2 + $0xf8] sm:$0xf0] 0
      %319 = vst [vmem:[#allocation2 + $0x108] sm:$0xf0] 0
      %320 = vst [vmem:[#allocation2 + $0x118] sm:$0xf0] 0
      %v321 = vld [vmem:[%s2] sm:$0x1]
      %v322 = vld [vmem:[%s3] sm:$0x1]
      %v323 = vld [vmem:[%s5] sm:$0x1]
      %v324 = vld [vmem:[%s6] sm:$0x1]
      %v325 = vld [vmem:[%s273] sm:$0xf]
      %v326 = vld [vmem:[%s273 + $0x4] sm:$0xf]
      %v327 = vld [vmem:[%s273 + $0xc] sm:$0xf]
      %v328 = vld [vmem:[%s273 + $0x10] sm:$0xf]
      %v329 = vld [vmem:[%s273 + $0x18] sm:$0xf]
      %v330 = vld [vmem:[%s273 + $0x1c] sm:$0xf]
      %v331 = vld [vmem:[%s273 + $0x24] sm:$0xf]
      %v332 = vld [vmem:[%s273 + $0x28] sm:$0xf]
      %v333 = vld [vmem:[%s273 + $0x30] sm:$0xf]
      %v334 = vld [vmem:[%s273 + $0x34] sm:$0xf]
      %v335 = vld [vmem:[%s273 + $0x3c] sm:$0xf]
      %v336 = vld [vmem:[%s273 + $0x40] sm:$0xf]
      %v337 = vld [vmem:[%s273 + $0x48] sm:$0xf]
      %v338 = vld [vmem:[%s273 + $0x4c] sm:$0xf]
      %v339 = vld [vmem:[%s273 + $0x54] sm:$0xf]
      %v340 = vld [vmem:[%s273 + $0x58] sm:$0xf]
      %v341 = vld [vmem:[%s273 + $0x60] sm:$0xf]
      %v342 = vld [vmem:[%s273 + $0x64] sm:$0xf]
      %v343 = vld [vmem:[%s273 + $0x6c] sm:$0xf]
      %v344 = vld [vmem:[%s273 + $0x70] sm:$0xf]
      %v345 = vld [vmem:[%s273 + $0x78] sm:$0xf]
      %v346 = vld [vmem:[%s273 + $0x7c] sm:$0xf]
      %v347 = vld [vmem:[%s273 + $0x84] sm:$0xf]
      %v348 = vld [vmem:[%s273 + $0x88] sm:$0xf]
      %v349 = vld [vmem:[%s273 + $0x90] sm:$0xf]
      %v350 = vld [vmem:[%s273 + $0x94] sm:$0xf]
      %v351 = vld [vmem:[%s273 + $0x9c] sm:$0xf]
      %v352 = vld [vmem:[%s273 + $0xa0] sm:$0xf]
      %v353 = vld [vmem:[%s273 + $0xa8] sm:$0xf]
      %v354 = vld [vmem:[%s273 + $0xac] sm:$0xf]
      %v355 = vld [vmem:[%s273 + $0xb4] sm:$0xf]
      %v356 = vld [vmem:[%s273 + $0xb8] sm:$0xf]
      %v357 = vld [vmem:[%s273 + $0x8] sm:$0x1]
      %v358 = vld [vmem:[%s273 + $0x14] sm:$0x1]
      %v359 = vld [vmem:[%s273 + $0x20] sm:$0x1]
      %v360 = vld [vmem:[%s273 + $0x2c] sm:$0x1]
      %v361 = vld [vmem:[%s273 + $0x38] sm:$0x1]
      %v362 = vld [vmem:[%s273 + $0x44] sm:$0x1]
      %v363 = vld [vmem:[%s273 + $0x50] sm:$0x1]
      %v364 = vld [vmem:[%s273 + $0x5c] sm:$0x1]
      %v365 = vld [vmem:[%s273 + $0x68] sm:$0x1]
      %v366 = vld [vmem:[%s273 + $0x74] sm:$0x1]
      %v367 = vld [vmem:[%s273 + $0x80] sm:$0x1]
      %v368 = vld [vmem:[%s273 + $0x8c] sm:$0x1]
      %v369 = vld [vmem:[%s273 + $0x98] sm:$0x1]
      %v370 = vld [vmem:[%s273 + $0xa4] sm:$0x1]
      %v371 = vld [vmem:[%s273 + $0xb0] sm:$0x1]
      %v372 = vld [vmem:[%s273 + $0xbc] sm:$0x1]
      %v373 = vld [vmem:[%s273] sm:$0xe]
      %v374 = vld [vmem:[%s273 + $0xc] sm:$0xe]
      %v375 = vld [vmem:[%s273 + $0x18] sm:$0xe]
      %v376 = vld [vmem:[%s273 + $0x24] sm:$0xe]
      %v377 = vld [vmem:[%s273 + $0x30] sm:$0xe]
      %v378 = vld [vmem:[%s273 + $0x3c] sm:$0xe]
      %v379 = vld [vmem:[%s273 + $0x48] sm:$0xe]
      %v380 = vld [vmem:[%s273 + $0x54] sm:$0xe]
      %v381 = vld [vmem:[%s273 + $0x60] sm:$0xe]
      %v382 = vld [vmem:[%s273 + $0x6c] sm:$0xe]
      %v383 = vld [vmem:[%s273 + $0x78] sm:$0xe]
      %v384 = vld [vmem:[%s273 + $0x84] sm:$0xe]
      %v385 = vld [vmem:[%s273 + $0x90] sm:$0xe]
      %v386 = vld [vmem:[%s273 + $0x9c] sm:$0xe]
      %v387 = vld [vmem:[%s273 + $0xa8] sm:$0xe]
      %v388 = vld [vmem:[%s273 + $0xb4] sm:$0xe]
      %v421 = vunpack.c.l.b16 %v325
      %v422 = vunpack.c.l.b16 %v326
      %v423 = vunpack.c.l.b16 %v327
      %v424 = vunpack.c.l.b16 %v328
      %v425 = vunpack.c.l.b16 %v329
      %v426 = vunpack.c.l.b16 %v330
      %v427 = vunpack.c.l.b16 %v331
      %v428 = vunpack.c.l.b16 %v332
      %v429 = vunpack.c.l.b16 %v333
      %v430 = vunpack.c.l.b16 %v334
      %v431 = vunpack.c.l.b16 %v335
      %v432 = vunpack.c.l.b16 %v336
      %v433 = vunpack.c.l.b16 %v337
      %v434 = vunpack.c.l.b16 %v338
      %v435 = vunpack.c.l.b16 %v339
      %v436 = vunpack.c.l.b16 %v340
      %v437 = vunpack.c.l.b16 %v341
      %v438 = vunpack.c.l.b16 %v342
      %v439 = vunpack.c.l.b16 %v343
      %v440 = vunpack.c.l.b16 %v344
      %v441 = vunpack.c.l.b16 %v345
      %v442 = vunpack.c.l.b16 %v346
      %v443 = vunpack.c.l.b16 %v347
      %v444 = vunpack.c.l.b16 %v348
      %v445 = vunpack.c.l.b16 %v349
      %v446 = vunpack.c.l.b16 %v350
      %v447 = vunpack.c.l.b16 %v351
      %v448 = vunpack.c.l.b16 %v352
      %v449 = vunpack.c.l.b16 %v353
      %v450 = vunpack.c.l.b16 %v354
      %v451 = vunpack.c.l.b16 %v355
      %v452 = vunpack.c.l.b16 %v356
      %v453 = vpack.c.b16 %v422, %v421
      %v454 = vpack.c.b16 %v424, %v423
      %v455 = vpack.c.b16 %v426, %v425
      %v456 = vpack.c.b16 %v428, %v427
      %v457 = vpack.c.b16 %v430, %v429
      %v458 = vpack.c.b16 %v432, %v431
      %v459 = vpack.c.b16 %v434, %v433
      %v460 = vpack.c.b16 %v436, %v435
      %v461 = vpack.c.b16 %v438, %v437
      %v462 = vpack.c.b16 %v440, %v439
      %v463 = vpack.c.b16 %v442, %v441
      %v464 = vpack.c.b16 %v444, %v443
      %v465 = vpack.c.b16 %v446, %v445
      %v466 = vpack.c.b16 %v448, %v447
      %v467 = vpack.c.b16 %v450, %v449
      %v468 = vpack.c.b16 %v452, %v451
      %v501 = vunpack.c.l.b16 %v357
      %v502 = vunpack.c.l.b16 %v358
      %v503 = vunpack.c.l.b16 %v359
      %v504 = vunpack.c.l.b16 %v360
      %v505 = vunpack.c.l.b16 %v361
      %v506 = vunpack.c.l.b16 %v362
      %v507 = vunpack.c.l.b16 %v363
      %v508 = vunpack.c.l.b16 %v364
      %v509 = vunpack.c.l.b16 %v365
      %v510 = vunpack.c.l.b16 %v366
      %v511 = vunpack.c.l.b16 %v367
      %v512 = vunpack.c.l.b16 %v368
      %v513 = vunpack.c.l.b16 %v369
      %v514 = vunpack.c.l.b16 %v370
      %v515 = vunpack.c.l.b16 %v371
      %v516 = vunpack.c.l.b16 %v372
      %v517 = vpack.c.b16 %v501, %v501
      %v518 = vpack.c.b16 %v502, %v502
      %v519 = vpack.c.b16 %v503, %v503
      %v520 = vpack.c.b16 %v504, %v504
      %v521 = vpack.c.b16 %v505, %v505
      %v522 = vpack.c.b16 %v506, %v506
      %v523 = vpack.c.b16 %v507, %v507
      %v524 = vpack.c.b16 %v508, %v508
      %v525 = vpack.c.b16 %v509, %v509
      %v526 = vpack.c.b16 %v510, %v510
      %v527 = vpack.c.b16 %v511, %v511
      %v528 = vpack.c.b16 %v512, %v512
      %v529 = vpack.c.b16 %v513, %v513
      %v530 = vpack.c.b16 %v514, %v514
      %v531 = vpack.c.b16 %v515, %v515
      %v532 = vpack.c.b16 %v516, %v516
      %vm533 = vsmask.f32 7424
      %v535 = vshrl.u32 %v453, 16
      %v537 = vshll.u32 %v453, 16
      %v539 = vrot.slane %v537, 1
      %v540 = vor.u32 %v535, %v539
      %v542 = vshll.u32 %v517, 16
      %v544 = vrot.slane %v542, 1
      %v545 = vsel %vm533, %v540, %v544
      %v547 = vshrl.u32 %v454, 16
      %v549 = vshll.u32 %v454, 16
      %v551 = vrot.slane %v549, 1
      %v552 = vor.u32 %v547, %v551
      %v554 = vshll.u32 %v518, 16
      %v556 = vrot.slane %v554, 1
      %v557 = vsel %vm533, %v552, %v556
      %v559 = vshrl.u32 %v455, 16
      %v561 = vshll.u32 %v455, 16
      %v563 = vrot.slane %v561, 1
      %v564 = vor.u32 %v559, %v563
      %v566 = vshll.u32 %v519, 16
      %v568 = vrot.slane %v566, 1
      %v569 = vsel %vm533, %v564, %v568
      %v571 = vshrl.u32 %v456, 16
      %v573 = vshll.u32 %v456, 16
      %v575 = vrot.slane %v573, 1
      %v576 = vor.u32 %v571, %v575
      %v578 = vshll.u32 %v520, 16
      %v580 = vrot.slane %v578, 1
      %v581 = vsel %vm533, %v576, %v580
      %v583 = vshrl.u32 %v457, 16
      %v585 = vshll.u32 %v457, 16
      %v587 = vrot.slane %v585, 1
      %v588 = vor.u32 %v583, %v587
      %v590 = vshll.u32 %v521, 16
      %v592 = vrot.slane %v590, 1
      %v593 = vsel %vm533, %v588, %v592
      %v595 = vshrl.u32 %v458, 16
      %v597 = vshll.u32 %v458, 16
      %v599 = vrot.slane %v597, 1
      %v600 = vor.u32 %v595, %v599
      %v602 = vshll.u32 %v522, 16
      %v604 = vrot.slane %v602, 1
      %v605 = vsel %vm533, %v600, %v604
      %v607 = vshrl.u32 %v459, 16
      %v609 = vshll.u32 %v459, 16
      %v611 = vrot.slane %v609, 1
      %v612 = vor.u32 %v607, %v611
      %v614 = vshll.u32 %v523, 16
      %v616 = vrot.slane %v614, 1
      %v617 = vsel %vm533, %v612, %v616
      %v619 = vshrl.u32 %v460, 16
      %v621 = vshll.u32 %v460, 16
      %v623 = vrot.slane %v621, 1
      %v624 = vor.u32 %v619, %v623
      %v626 = vshll.u32 %v524, 16
      %v628 = vrot.slane %v626, 1
      %v629 = vsel %vm533, %v624, %v628
      %v631 = vshrl.u32 %v461, 16
      %v633 = vshll.u32 %v461, 16
      %v635 = vrot.slane %v633, 1
      %v636 = vor.u32 %v631, %v635
      %v638 = vshll.u32 %v525, 16
      %v640 = vrot.slane %v638, 1
      %v641 = vsel %vm533, %v636, %v640
      %v643 = vshrl.u32 %v462, 16
      %v645 = vshll.u32 %v462, 16
      %v647 = vrot.slane %v645, 1
      %v648 = vor.u32 %v643, %v647
      %v650 = vshll.u32 %v526, 16
      %v652 = vrot.slane %v650, 1
      %v653 = vsel %vm533, %v648, %v652
      %v655 = vshrl.u32 %v463, 16
      %v657 = vshll.u32 %v463, 16
      %v659 = vrot.slane %v657, 1
      %v660 = vor.u32 %v655, %v659
      %v662 = vshll.u32 %v527, 16
      %v664 = vrot.slane %v662, 1
      %v665 = vsel %vm533, %v660, %v664
      %v667 = vshrl.u32 %v464, 16
      %v669 = vshll.u32 %v464, 16
      %v671 = vrot.slane %v669, 1
      %v672 = vor.u32 %v667, %v671
      %v674 = vshll.u32 %v528, 16
      %v676 = vrot.slane %v674, 1
      %v677 = vsel %vm533, %v672, %v676
      %v679 = vshrl.u32 %v465, 16
      %v681 = vshll.u32 %v465, 16
      %v683 = vrot.slane %v681, 1
      %v684 = vor.u32 %v679, %v683
      %v686 = vshll.u32 %v529, 16
      %v688 = vrot.slane %v686, 1
      %v689 = vsel %vm533, %v684, %v688
      %v691 = vshrl.u32 %v466, 16
      %v693 = vshll.u32 %v466, 16
      %v695 = vrot.slane %v693, 1
      %v696 = vor.u32 %v691, %v695
      %v698 = vshll.u32 %v530, 16
      %v700 = vrot.slane %v698, 1
      %v701 = vsel %vm533, %v696, %v700
      %v703 = vshrl.u32 %v467, 16
      %v705 = vshll.u32 %v467, 16
      %v707 = vrot.slane %v705, 1
      %v708 = vor.u32 %v703, %v707
      %v710 = vshll.u32 %v531, 16
      %v712 = vrot.slane %v710, 1
      %v713 = vsel %vm533, %v708, %v712
      %v715 = vshrl.u32 %v468, 16
      %v717 = vshll.u32 %v468, 16
      %v719 = vrot.slane %v717, 1
      %v720 = vor.u32 %v715, %v719
      %v722 = vshll.u32 %v532, 16
      %v724 = vrot.slane %v722, 1
      %v725 = vsel %vm533, %v720, %v724
      %v758 = vunpack.c.l.b16 %v373
      %v759 = vunpack.c.l.b16 %v374
      %v760 = vunpack.c.l.b16 %v375
      %v761 = vunpack.c.l.b16 %v376
      %v762 = vunpack.c.l.b16 %v377
      %v763 = vunpack.c.l.b16 %v378
      %v764 = vunpack.c.l.b16 %v379
      %v765 = vunpack.c.l.b16 %v380
      %v766 = vunpack.c.l.b16 %v381
      %v767 = vunpack.c.l.b16 %v382
      %v768 = vunpack.c.l.b16 %v383
      %v769 = vunpack.c.l.b16 %v384
      %v770 = vunpack.c.l.b16 %v385
      %v771 = vunpack.c.l.b16 %v386
      %v772 = vunpack.c.l.b16 %v387
      %v773 = vunpack.c.l.b16 %v388
      %v774 = vpack.c.b16 %v422, %v758
      %v775 = vpack.c.b16 %v424, %v759
      %v776 = vpack.c.b16 %v426, %v760
      %v777 = vpack.c.b16 %v428, %v761
      %v778 = vpack.c.b16 %v430, %v762
      %v779 = vpack.c.b16 %v432, %v763
      %v780 = vpack.c.b16 %v434, %v764
      %v781 = vpack.c.b16 %v436, %v765
      %v782 = vpack.c.b16 %v438, %v766
      %v783 = vpack.c.b16 %v440, %v767
      %v784 = vpack.c.b16 %v442, %v768
      %v785 = vpack.c.b16 %v444, %v769
      %v786 = vpack.c.b16 %v446, %v770
      %v787 = vpack.c.b16 %v448, %v771
      %v788 = vpack.c.b16 %v450, %v772
      %v789 = vpack.c.b16 %v452, %v773
      %vm790 = vcmask 1046528
      %v791 = vrot.slane %v774, 1
      %v792 = vrot.slane %v517, 1
      %v793 = vsel %vm790, %v791, %v792
      %v794 = vrot.slane %v775, 1
      %v795 = vrot.slane %v518, 1
      %v796 = vsel %vm790, %v794, %v795
      %v797 = vrot.slane %v776, 1
      %v798 = vrot.slane %v519, 1
      %v799 = vsel %vm790, %v797, %v798
      %v800 = vrot.slane %v777, 1
      %v801 = vrot.slane %v520, 1
      %v802 = vsel %vm790, %v800, %v801
      %v803 = vrot.slane %v778, 1
      %v804 = vrot.slane %v521, 1
      %v805 = vsel %vm790, %v803, %v804
      %v806 = vrot.slane %v779, 1
      %v807 = vrot.slane %v522, 1
      %v808 = vsel %vm790, %v806, %v807
      %v809 = vrot.slane %v780, 1
      %v810 = vrot.slane %v523, 1
      %v811 = vsel %vm790, %v809, %v810
      %v812 = vrot.slane %v781, 1
      %v813 = vrot.slane %v524, 1
      %v814 = vsel %vm790, %v812, %v813
      %v815 = vrot.slane %v782, 1
      %v816 = vrot.slane %v525, 1
      %v817 = vsel %vm790, %v815, %v816
      %v818 = vrot.slane %v783, 1
      %v819 = vrot.slane %v526, 1
      %v820 = vsel %vm790, %v818, %v819
      %v821 = vrot.slane %v784, 1
      %v822 = vrot.slane %v527, 1
      %v823 = vsel %vm790, %v821, %v822
      %v824 = vrot.slane %v785, 1
      %v825 = vrot.slane %v528, 1
      %v826 = vsel %vm790, %v824, %v825
      %v827 = vrot.slane %v786, 1
      %v828 = vrot.slane %v529, 1
      %v829 = vsel %vm790, %v827, %v828
      %v830 = vrot.slane %v787, 1
      %v831 = vrot.slane %v530, 1
      %v832 = vsel %vm790, %v830, %v831
      %v833 = vrot.slane %v788, 1
      %v834 = vrot.slane %v531, 1
      %v835 = vsel %vm790, %v833, %v834
      %v836 = vrot.slane %v789, 1
      %v837 = vrot.slane %v532, 1
      %v838 = vsel %vm790, %v836, %v837
      %v855 = vld [vmem:[%s1] sm:$0xf]
      %v856 = vld [vmem:[%s1 + $0x4] sm:$0xf]
      %v857 = vld [vmem:[%s1 + $0x8] sm:$0xf]
      %v858 = vld [vmem:[%s1 + $0xc] sm:$0xf]
      %v859 = vld [vmem:[%s1 + $0x10] sm:$0xf]
      %v860 = vld [vmem:[%s1 + $0x14] sm:$0xf]
      %v861 = vld [vmem:[%s1 + $0x18] sm:$0xf]
      %v862 = vld [vmem:[%s1 + $0x1c] sm:$0xf]
      %v863 = vld [vmem:[%s1 + $0x20] sm:$0xf]
      %v864 = vld [vmem:[%s1 + $0x24] sm:$0xf]
      %v865 = vld [vmem:[%s1 + $0x28] sm:$0xf]
      %v866 = vld [vmem:[%s1 + $0x2c] sm:$0xf]
      %v867 = vld [vmem:[%s1 + $0x30] sm:$0xf]
      %v868 = vld [vmem:[%s1 + $0x34] sm:$0xf]
      %v869 = vld [vmem:[%s1 + $0x38] sm:$0xf]
      %v870 = vld [vmem:[%s1 + $0x3c] sm:$0xf]
      %v871 = vld [vmem:[%s1 + $0x40] sm:$0xf]
      %v872 = vld [vmem:[%s1 + $0x44] sm:$0xf]
      %v873 = vld [vmem:[%s1 + $0x48] sm:$0xf]
      %v874 = vld [vmem:[%s1 + $0x4c] sm:$0xf]
      %v875 = vld [vmem:[%s1 + $0x50] sm:$0xf]
      %v876 = vld [vmem:[%s1 + $0x54] sm:$0xf]
      %v877 = vld [vmem:[%s1 + $0x58] sm:$0xf]
      %v878 = vld [vmem:[%s1 + $0x5c] sm:$0xf]
      %v879 = vld [vmem:[%s1 + $0x60] sm:$0xf]
      %v880 = vld [vmem:[%s1 + $0x64] sm:$0xf]
      %v881 = vld [vmem:[%s1 + $0x68] sm:$0xf]
      %v882 = vld [vmem:[%s1 + $0x6c] sm:$0xf]
      %v883 = vld [vmem:[%s1 + $0x70] sm:$0xf]
      %v884 = vld [vmem:[%s1 + $0x74] sm:$0xf]
      %v885 = vld [vmem:[%s1 + $0x78] sm:$0xf]
      %v886 = vld [vmem:[%s1 + $0x7c] sm:$0xf]
      %v887 = vld [vmem:[%s1 + $0x80] sm:$0xf]
      %v888 = vld [vmem:[%s1 + $0x84] sm:$0xf]
      %v889 = vld [vmem:[%s1 + $0x88] sm:$0xf]
      %v890 = vld [vmem:[%s1 + $0x8c] sm:$0xf]
      %v891 = vld [vmem:[%s1 + $0x90] sm:$0xf]
      %v892 = vld [vmem:[%s1 + $0x94] sm:$0xf]
      %v893 = vld [vmem:[%s1 + $0x98] sm:$0xf]
      %v894 = vld [vmem:[%s1 + $0x9c] sm:$0xf]
      %v895 = vld [vmem:[%s1 + $0xa0] sm:$0xf]
      %v896 = vld [vmem:[%s1 + $0xa4] sm:$0xf]
      %v897 = vld [vmem:[%s1 + $0xa8] sm:$0xf]
      %v898 = vld [vmem:[%s1 + $0xac] sm:$0xf]
      %v899 = vld [vmem:[%s1 + $0xb0] sm:$0xf]
      %v900 = vld [vmem:[%s1 + $0xb4] sm:$0xf]
      %v901 = vld [vmem:[%s1 + $0xb8] sm:$0xf]
      %v902 = vld [vmem:[%s1 + $0xbc] sm:$0xf]
      %s903 = scalar_lea.vmem %s273, 12
      %v904 = vld [vmem:[%s903] sm:$0xf]
      %v905 = vld [vmem:[%s903 + $0x4] sm:$0xf]
      %v906 = vld [vmem:[%s903 + $0xc] sm:$0xf]
      %v907 = vld [vmem:[%s903 + $0x10] sm:$0xf]
      %v908 = vld [vmem:[%s903 + $0x18] sm:$0xf]
      %v909 = vld [vmem:[%s903 + $0x1c] sm:$0xf]
      %v910 = vld [vmem:[%s903 + $0x24] sm:$0xf]
      %v911 = vld [vmem:[%s903 + $0x28] sm:$0xf]
      %v912 = vld [vmem:[%s903 + $0x30] sm:$0xf]
      %v913 = vld [vmem:[%s903 + $0x34] sm:$0xf]
      %v914 = vld [vmem:[%s903 + $0x3c] sm:$0xf]
      %v915 = vld [vmem:[%s903 + $0x40] sm:$0xf]
      %v916 = vld [vmem:[%s903 + $0x48] sm:$0xf]
      %v917 = vld [vmem:[%s903 + $0x4c] sm:$0xf]
      %v918 = vld [vmem:[%s903 + $0x54] sm:$0xf]
      %v919 = vld [vmem:[%s903 + $0x58] sm:$0xf]
      %v920 = vld [vmem:[%s903 + $0x60] sm:$0xf]
      %v921 = vld [vmem:[%s903 + $0x64] sm:$0xf]
      %v922 = vld [vmem:[%s903 + $0x6c] sm:$0xf]
      %v923 = vld [vmem:[%s903 + $0x70] sm:$0xf]
      %v924 = vld [vmem:[%s903 + $0x78] sm:$0xf]
      %v925 = vld [vmem:[%s903 + $0x7c] sm:$0xf]
      %v926 = vld [vmem:[%s903 + $0x84] sm:$0xf]
      %v927 = vld [vmem:[%s903 + $0x88] sm:$0xf]
      %v928 = vld [vmem:[%s903 + $0x90] sm:$0xf]
      %v929 = vld [vmem:[%s903 + $0x94] sm:$0xf]
      %v930 = vld [vmem:[%s903 + $0x9c] sm:$0xf]
      %v931 = vld [vmem:[%s903 + $0xa0] sm:$0xf]
      %v932 = vld [vmem:[%s903 + $0xa8] sm:$0xf]
      %v933 = vld [vmem:[%s903 + $0xac] sm:$0xf]
      %v934 = vld [vmem:[%s903 + $0xb4] sm:$0xf]
      %v935 = vld [vmem:[%s903 + $0xb8] sm:$0xf]
      %v936 = vld [vmem:[%s903 + $0x8] sm:$0x1]
      %v937 = vld [vmem:[%s903 + $0x14] sm:$0x1]
      %v938 = vld [vmem:[%s903 + $0x20] sm:$0x1]
      %v939 = vld [vmem:[%s903 + $0x2c] sm:$0x1]
      %v940 = vld [vmem:[%s903 + $0x38] sm:$0x1]
      %v941 = vld [vmem:[%s903 + $0x44] sm:$0x1]
      %v942 = vld [vmem:[%s903 + $0x50] sm:$0x1]
      %v943 = vld [vmem:[%s903 + $0x5c] sm:$0x1]
      %v944 = vld [vmem:[%s903 + $0x68] sm:$0x1]
      %v945 = vld [vmem:[%s903 + $0x74] sm:$0x1]
      %v946 = vld [vmem:[%s903 + $0x80] sm:$0x1]
      %v947 = vld [vmem:[%s903 + $0x8c] sm:$0x1]
      %v948 = vld [vmem:[%s903 + $0x98] sm:$0x1]
      %v949 = vld [vmem:[%s903 + $0xa4] sm:$0x1]
      %v950 = vld [vmem:[%s903 + $0xb0] sm:$0x1]
      %v951 = vld [vmem:[%s903 + $0xbc] sm:$0x1]
      %v952 = vld [vmem:[%s903] sm:$0xe]
      %v953 = vld [vmem:[%s903 + $0xc] sm:$0xe]
      %v954 = vld [vmem:[%s903 + $0x18] sm:$0xe]
      %v955 = vld [vmem:[%s903 + $0x24] sm:$0xe]
      %v956 = vld [vmem:[%s903 + $0x30] sm:$0xe]
      %v957 = vld [vmem:[%s903 + $0x3c] sm:$0xe]
      %v958 = vld [vmem:[%s903 + $0x48] sm:$0xe]
      %v959 = vld [vmem:[%s903 + $0x54] sm:$0xe]
      %v960 = vld [vmem:[%s903 + $0x60] sm:$0xe]
      %v961 = vld [vmem:[%s903 + $0x6c] sm:$0xe]
      %v962 = vld [vmem:[%s903 + $0x78] sm:$0xe]
      %v963 = vld [vmem:[%s903 + $0x84] sm:$0xe]
      %v964 = vld [vmem:[%s903 + $0x90] sm:$0xe]
      %v965 = vld [vmem:[%s903 + $0x9c] sm:$0xe]
      %v966 = vld [vmem:[%s903 + $0xa8] sm:$0xe]
      %v967 = vld [vmem:[%s903 + $0xb4] sm:$0xe]
      %v1000 = vunpack.c.l.b16 %v904
      %v1001 = vunpack.c.l.b16 %v905
      %v1002 = vunpack.c.l.b16 %v906
      %v1003 = vunpack.c.l.b16 %v907
      %v1004 = vunpack.c.l.b16 %v908
      %v1005 = vunpack.c.l.b16 %v909
      %v1006 = vunpack.c.l.b16 %v910
      %v1007 = vunpack.c.l.b16 %v911
      %v1008 = vunpack.c.l.b16 %v912
      %v1009 = vunpack.c.l.b16 %v913
      %v1010 = vunpack.c.l.b16 %v914
      %v1011 = vunpack.c.l.b16 %v915
      %v1012 = vunpack.c.l.b16 %v916
      %v1013 = vunpack.c.l.b16 %v917
      %v1014 = vunpack.c.l.b16 %v918
      %v1015 = vunpack.c.l.b16 %v919
      %v1016 = vunpack.c.l.b16 %v920
      %v1017 = vunpack.c.l.b16 %v921
      %v1018 = vunpack.c.l.b16 %v922
      %v1019 = vunpack.c.l.b16 %v923
      %v1020 = vunpack.c.l.b16 %v924
      %v1021 = vunpack.c.l.b16 %v925
      %v1022 = vunpack.c.l.b16 %v926
      %v1023 = vunpack.c.l.b16 %v927
      %v1024 = vunpack.c.l.b16 %v928
      %v1025 = vunpack.c.l.b16 %v929
      %v1026 = vunpack.c.l.b16 %v930
      %v1027 = vunpack.c.l.b16 %v931
      %v1028 = vunpack.c.l.b16 %v932
      %v1029 = vunpack.c.l.b16 %v933
      %v1030 = vunpack.c.l.b16 %v934
      %v1031 = vunpack.c.l.b16 %v935
      %v1032 = vpack.c.b16 %v1001, %v1000
      %v1033 = vpack.c.b16 %v1003, %v1002
      %v1034 = vpack.c.b16 %v1005, %v1004
      %v1035 = vpack.c.b16 %v1007, %v1006
      %v1036 = vpack.c.b16 %v1009, %v1008
      %v1037 = vpack.c.b16 %v1011, %v1010
      %v1038 = vpack.c.b16 %v1013, %v1012
      %v1039 = vpack.c.b16 %v1015, %v1014
      %v1040 = vpack.c.b16 %v1017, %v1016
      %v1041 = vpack.c.b16 %v1019, %v1018
      %v1042 = vpack.c.b16 %v1021, %v1020
      %v1043 = vpack.c.b16 %v1023, %v1022
      %v1044 = vpack.c.b16 %v1025, %v1024
      %v1045 = vpack.c.b16 %v1027, %v1026
      %v1046 = vpack.c.b16 %v1029, %v1028
      %v1047 = vpack.c.b16 %v1031, %v1030
      %v1080 = vunpack.c.l.b16 %v936
      %v1081 = vunpack.c.l.b16 %v937
      %v1082 = vunpack.c.l.b16 %v938
      %v1083 = vunpack.c.l.b16 %v939
      %v1084 = vunpack.c.l.b16 %v940
      %v1085 = vunpack.c.l.b16 %v941
      %v1086 = vunpack.c.l.b16 %v942
      %v1087 = vunpack.c.l.b16 %v943
      %v1088 = vunpack.c.l.b16 %v944
      %v1089 = vunpack.c.l.b16 %v945
      %v1090 = vunpack.c.l.b16 %v946
      %v1091 = vunpack.c.l.b16 %v947
      %v1092 = vunpack.c.l.b16 %v948
      %v1093 = vunpack.c.l.b16 %v949
      %v1094 = vunpack.c.l.b16 %v950
      %v1095 = vunpack.c.l.b16 %v951
      %v1096 = vpack.c.b16 %v1080, %v1080
      %v1097 = vpack.c.b16 %v1081, %v1081
      %v1098 = vpack.c.b16 %v1082, %v1082
      %v1099 = vpack.c.b16 %v1083, %v1083
      %v1100 = vpack.c.b16 %v1084, %v1084
      %v1101 = vpack.c.b16 %v1085, %v1085
      %v1102 = vpack.c.b16 %v1086, %v1086
      %v1103 = vpack.c.b16 %v1087, %v1087
      %v1104 = vpack.c.b16 %v1088, %v1088
      %v1105 = vpack.c.b16 %v1089, %v1089
      %v1106 = vpack.c.b16 %v1090, %v1090
      %v1107 = vpack.c.b16 %v1091, %v1091
      %v1108 = vpack.c.b16 %v1092, %v1092
      %v1109 = vpack.c.b16 %v1093, %v1093
      %v1110 = vpack.c.b16 %v1094, %v1094
      %v1111 = vpack.c.b16 %v1095, %v1095
      %v1113 = vshrl.u32 %v1032, 16
      %v1115 = vshll.u32 %v1032, 16
      %v1117 = vrot.slane %v1115, 1
      %v1118 = vor.u32 %v1113, %v1117
      %v1120 = vshll.u32 %v1096, 16
      %v1122 = vrot.slane %v1120, 1
      %v1123 = vsel %vm533, %v1118, %v1122
      %v1125 = vshrl.u32 %v1033, 16
      %v1127 = vshll.u32 %v1033, 16
      %v1129 = vrot.slane %v1127, 1
      %v1130 = vor.u32 %v1125, %v1129
      %v1132 = vshll.u32 %v1097, 16
      %v1134 = vrot.slane %v1132, 1
      %v1135 = vsel %vm533, %v1130, %v1134
      %v1137 = vshrl.u32 %v1034, 16
      %v1139 = vshll.u32 %v1034, 16
      %v1141 = vrot.slane %v1139, 1
      %v1142 = vor.u32 %v1137, %v1141
      %v1144 = vshll.u32 %v1098, 16
      %v1146 = vrot.slane %v1144, 1
      %v1147 = vsel %vm533, %v1142, %v1146
      %v1149 = vshrl.u32 %v1035, 16
      %v1151 = vshll.u32 %v1035, 16
      %v1153 = vrot.slane %v1151, 1
      %v1154 = vor.u32 %v1149, %v1153
      %v1156 = vshll.u32 %v1099, 16
      %v1158 = vrot.slane %v1156, 1
      %v1159 = vsel %vm533, %v1154, %v1158
      %v1161 = vshrl.u32 %v1036, 16
      %v1163 = vshll.u32 %v1036, 16
      %v1165 = vrot.slane %v1163, 1
      %v1166 = vor.u32 %v1161, %v1165
      %v1168 = vshll.u32 %v1100, 16
      %v1170 = vrot.slane %v1168, 1
      %v1171 = vsel %vm533, %v1166, %v1170
      %v1173 = vshrl.u32 %v1037, 16
      %v1175 = vshll.u32 %v1037, 16
      %v1177 = vrot.slane %v1175, 1
      %v1178 = vor.u32 %v1173, %v1177
      %v1180 = vshll.u32 %v1101, 16
      %v1182 = vrot.slane %v1180, 1
      %v1183 = vsel %vm533, %v1178, %v1182
      %v1185 = vshrl.u32 %v1038, 16
      %v1187 = vshll.u32 %v1038, 16
      %v1189 = vrot.slane %v1187, 1
      %v1190 = vor.u32 %v1185, %v1189
      %v1192 = vshll.u32 %v1102, 16
      %v1194 = vrot.slane %v1192, 1
      %v1195 = vsel %vm533, %v1190, %v1194
      %v1197 = vshrl.u32 %v1039, 16
      %v1199 = vshll.u32 %v1039, 16
      %v1201 = vrot.slane %v1199, 1
      %v1202 = vor.u32 %v1197, %v1201
      %v1204 = vshll.u32 %v1103, 16
      %v1206 = vrot.slane %v1204, 1
      %v1207 = vsel %vm533, %v1202, %v1206
      %v1209 = vshrl.u32 %v1040, 16
      %v1211 = vshll.u32 %v1040, 16
      %v1213 = vrot.slane %v1211, 1
      %v1214 = vor.u32 %v1209, %v1213
      %v1216 = vshll.u32 %v1104, 16
      %v1218 = vrot.slane %v1216, 1
      %v1219 = vsel %vm533, %v1214, %v1218
      %v1221 = vshrl.u32 %v1041, 16
      %v1223 = vshll.u32 %v1041, 16
      %v1225 = vrot.slane %v1223, 1
      %v1226 = vor.u32 %v1221, %v1225
      %v1228 = vshll.u32 %v1105, 16
      %v1230 = vrot.slane %v1228, 1
      %v1231 = vsel %vm533, %v1226, %v1230
      %v1233 = vshrl.u32 %v1042, 16
      %v1235 = vshll.u32 %v1042, 16
      %v1237 = vrot.slane %v1235, 1
      %v1238 = vor.u32 %v1233, %v1237
      %v1240 = vshll.u32 %v1106, 16
      %v1242 = vrot.slane %v1240, 1
      %v1243 = vsel %vm533, %v1238, %v1242
      %v1245 = vshrl.u32 %v1043, 16
      %v1247 = vshll.u32 %v1043, 16
      %v1249 = vrot.slane %v1247, 1
      %v1250 = vor.u32 %v1245, %v1249
      %v1252 = vshll.u32 %v1107, 16
      %v1254 = vrot.slane %v1252, 1
      %v1255 = vsel %vm533, %v1250, %v1254
      %v1257 = vshrl.u32 %v1044, 16
      %v1259 = vshll.u32 %v1044, 16
      %v1261 = vrot.slane %v1259, 1
      %v1262 = vor.u32 %v1257, %v1261
      %v1264 = vshll.u32 %v1108, 16
      %v1266 = vrot.slane %v1264, 1
      %v1267 = vsel %vm533, %v1262, %v1266
      %v1269 = vshrl.u32 %v1045, 16
      %v1271 = vshll.u32 %v1045, 16
      %v1273 = vrot.slane %v1271, 1
      %v1274 = vor.u32 %v1269, %v1273
      %v1276 = vshll.u32 %v1109, 16
      %v1278 = vrot.slane %v1276, 1
      %v1279 = vsel %vm533, %v1274, %v1278
      %v1281 = vshrl.u32 %v1046, 16
      %v1283 = vshll.u32 %v1046, 16
      %v1285 = vrot.slane %v1283, 1
      %v1286 = vor.u32 %v1281, %v1285
      %v1288 = vshll.u32 %v1110, 16
      %v1290 = vrot.slane %v1288, 1
      %v1291 = vsel %vm533, %v1286, %v1290
      %v1293 = vshrl.u32 %v1047, 16
      %v1295 = vshll.u32 %v1047, 16
      %v1297 = vrot.slane %v1295, 1
      %v1298 = vor.u32 %v1293, %v1297
      %v1300 = vshll.u32 %v1111, 16
      %v1302 = vrot.slane %v1300, 1
      %v1303 = vsel %vm533, %v1298, %v1302
      %v1336 = vunpack.c.l.b16 %v952
      %v1337 = vunpack.c.l.b16 %v953
      %v1338 = vunpack.c.l.b16 %v954
      %v1339 = vunpack.c.l.b16 %v955
      %v1340 = vunpack.c.l.b16 %v956
      %v1341 = vunpack.c.l.b16 %v957
      %v1342 = vunpack.c.l.b16 %v958
      %v1343 = vunpack.c.l.b16 %v959
      %v1344 = vunpack.c.l.b16 %v960
      %v1345 = vunpack.c.l.b16 %v961
      %v1346 = vunpack.c.l.b16 %v962
      %v1347 = vunpack.c.l.b16 %v963
      %v1348 = vunpack.c.l.b16 %v964
      %v1349 = vunpack.c.l.b16 %v965
      %v1350 = vunpack.c.l.b16 %v966
      %v1351 = vunpack.c.l.b16 %v967
      %v1352 = vpack.c.b16 %v1001, %v1336
      %v1353 = vpack.c.b16 %v1003, %v1337
      %v1354 = vpack.c.b16 %v1005, %v1338
      %v1355 = vpack.c.b16 %v1007, %v1339
      %v1356 = vpack.c.b16 %v1009, %v1340
      %v1357 = vpack.c.b16 %v1011, %v1341
      %v1358 = vpack.c.b16 %v1013, %v1342
      %v1359 = vpack.c.b16 %v1015, %v1343
      %v1360 = vpack.c.b16 %v1017, %v1344
      %v1361 = vpack.c.b16 %v1019, %v1345
      %v1362 = vpack.c.b16 %v1021, %v1346
      %v1363 = vpack.c.b16 %v1023, %v1347
      %v1364 = vpack.c.b16 %v1025, %v1348
      %v1365 = vpack.c.b16 %v1027, %v1349
      %v1366 = vpack.c.b16 %v1029, %v1350
      %v1367 = vpack.c.b16 %v1031, %v1351
      %v1368 = vrot.slane %v1352, 1
      %v1369 = vrot.slane %v1096, 1
      %v1370 = vsel %vm790, %v1368, %v1369
      %v1371 = vrot.slane %v1353, 1
      %v1372 = vrot.slane %v1097, 1
      %v1373 = vsel %vm790, %v1371, %v1372
      %v1374 = vrot.slane %v1354, 1
      %v1375 = vrot.slane %v1098, 1
      %v1376 = vsel %vm790, %v1374, %v1375
      %v1377 = vrot.slane %v1355, 1
      %v1378 = vrot.slane %v1099, 1
      %v1379 = vsel %vm790, %v1377, %v1378
      %v1380 = vrot.slane %v1356, 1
      %v1381 = vrot.slane %v1100, 1
      %v1382 = vsel %vm790, %v1380, %v1381
      %v1383 = vrot.slane %v1357, 1
      %v1384 = vrot.slane %v1101, 1
      %v1385 = vsel %vm790, %v1383, %v1384
      %v1386 = vrot.slane %v1358, 1
      %v1387 = vrot.slane %v1102, 1
      %v1388 = vsel %vm790, %v1386, %v1387
      %v1389 = vrot.slane %v1359, 1
      %v1390 = vrot.slane %v1103, 1
      %v1391 = vsel %vm790, %v1389, %v1390
      %v1392 = vrot.slane %v1360, 1
      %v1393 = vrot.slane %v1104, 1
      %v1394 = vsel %vm790, %v1392, %v1393
      %v1395 = vrot.slane %v1361, 1
      %v1396 = vrot.slane %v1105, 1
      %v1397 = vsel %vm790, %v1395, %v1396
      %v1398 = vrot.slane %v1362, 1
      %v1399 = vrot.slane %v1106, 1
      %v1400 = vsel %vm790, %v1398, %v1399
      %v1401 = vrot.slane %v1363, 1
      %v1402 = vrot.slane %v1107, 1
      %v1403 = vsel %vm790, %v1401, %v1402
      %v1404 = vrot.slane %v1364, 1
      %v1405 = vrot.slane %v1108, 1
      %v1406 = vsel %vm790, %v1404, %v1405
      %v1407 = vrot.slane %v1365, 1
      %v1408 = vrot.slane %v1109, 1
      %v1409 = vsel %vm790, %v1407, %v1408
      %v1410 = vrot.slane %v1366, 1
      %v1411 = vrot.slane %v1110, 1
      %v1412 = vsel %vm790, %v1410, %v1411
      %v1413 = vrot.slane %v1367, 1
      %v1414 = vrot.slane %v1111, 1
      %v1415 = vsel %vm790, %v1413, %v1414
      %s1432 = scalar_lea.vmem %s1, 192
      %v1433 = vld [vmem:[%s1432] sm:$0xf]
      %v1434 = vld [vmem:[%s1432 + $0x4] sm:$0xf]
      %v1435 = vld [vmem:[%s1432 + $0x8] sm:$0xf]
      %v1436 = vld [vmem:[%s1432 + $0xc] sm:$0xf]
      %v1437 = vld [vmem:[%s1432 + $0x10] sm:$0xf]
      %v1438 = vld [vmem:[%s1432 + $0x14] sm:$0xf]
      %v1439 = vld [vmem:[%s1432 + $0x18] sm:$0xf]
      %v1440 = vld [vmem:[%s1432 + $0x1c] sm:$0xf]
      %v1441 = vld [vmem:[%s1432 + $0x20] sm:$0xf]
      %v1442 = vld [vmem:[%s1432 + $0x24] sm:$0xf]
      %v1443 = vld [vmem:[%s1432 + $0x28] sm:$0xf]
      %v1444 = vld [vmem:[%s1432 + $0x2c] sm:$0xf]
      %v1445 = vld [vmem:[%s1432 + $0x30] sm:$0xf]
      %v1446 = vld [vmem:[%s1432 + $0x34] sm:$0xf]
      %v1447 = vld [vmem:[%s1432 + $0x38] sm:$0xf]
      %v1448 = vld [vmem:[%s1432 + $0x3c] sm:$0xf]
      %v1449 = vld [vmem:[%s1432 + $0x40] sm:$0xf]
      %v1450 = vld [vmem:[%s1432 + $0x44] sm:$0xf]
      %v1451 = vld [vmem:[%s1432 + $0x48] sm:$0xf]
      %v1452 = vld [vmem:[%s1432 + $0x4c] sm:$0xf]
      %v1453 = vld [vmem:[%s1432 + $0x50] sm:$0xf]
      %v1454 = vld [vmem:[%s1432 + $0x54] sm:$0xf]
      %v1455 = vld [vmem:[%s1432 + $0x58] sm:$0xf]
      %v1456 = vld [vmem:[%s1432 + $0x5c] sm:$0xf]
      %v1457 = vld [vmem:[%s1432 + $0x60] sm:$0xf]
      %v1458 = vld [vmem:[%s1432 + $0x64] sm:$0xf]
      %v1459 = vld [vmem:[%s1432 + $0x68] sm:$0xf]
      %v1460 = vld [vmem:[%s1432 + $0x6c] sm:$0xf]
      %v1461 = vld [vmem:[%s1432 + $0x70] sm:$0xf]
      %v1462 = vld [vmem:[%s1432 + $0x74] sm:$0xf]
      %v1463 = vld [vmem:[%s1432 + $0x78] sm:$0xf]
      %v1464 = vld [vmem:[%s1432 + $0x7c] sm:$0xf]
      %v1465 = vld [vmem:[%s1432 + $0x80] sm:$0xf]
      %v1466 = vld [vmem:[%s1432 + $0x84] sm:$0xf]
      %v1467 = vld [vmem:[%s1432 + $0x88] sm:$0xf]
      %v1468 = vld [vmem:[%s1432 + $0x8c] sm:$0xf]
      %v1469 = vld [vmem:[%s1432 + $0x90] sm:$0xf]
      %v1470 = vld [vmem:[%s1432 + $0x94] sm:$0xf]
      %v1471 = vld [vmem:[%s1432 + $0x98] sm:$0xf]
      %v1472 = vld [vmem:[%s1432 + $0x9c] sm:$0xf]
      %v1473 = vld [vmem:[%s1432 + $0xa0] sm:$0xf]
      %v1474 = vld [vmem:[%s1432 + $0xa4] sm:$0xf]
      %v1475 = vld [vmem:[%s1432 + $0xa8] sm:$0xf]
      %v1476 = vld [vmem:[%s1432 + $0xac] sm:$0xf]
      %v1477 = vld [vmem:[%s1432 + $0xb0] sm:$0xf]
      %v1478 = vld [vmem:[%s1432 + $0xb4] sm:$0xf]
      %v1479 = vld [vmem:[%s1432 + $0xb8] sm:$0xf]
      %v1480 = vld [vmem:[%s1432 + $0xbc] sm:$0xf]
      %v1529 = vunpack.c.l.b16 %v1433
      %v1530 = vunpack.c.l.b16 %v1434
      %v1531 = vunpack.c.l.b16 %v1435
      %v1532 = vunpack.c.l.b16 %v1436
      %v1533 = vunpack.c.l.b16 %v1437
      %v1534 = vunpack.c.l.b16 %v1438
      %v1535 = vunpack.c.l.b16 %v1439
      %v1536 = vunpack.c.l.b16 %v1440
      %v1537 = vunpack.c.l.b16 %v1441
      %v1538 = vunpack.c.l.b16 %v1442
      %v1539 = vunpack.c.l.b16 %v1443
      %v1540 = vunpack.c.l.b16 %v1444
      %v1541 = vunpack.c.l.b16 %v1445
      %v1542 = vunpack.c.l.b16 %v1446
      %v1543 = vunpack.c.l.b16 %v1447
      %v1544 = vunpack.c.l.b16 %v1448
      %v1545 = vunpack.c.l.b16 %v1449
      %v1546 = vunpack.c.l.b16 %v1450
      %v1547 = vunpack.c.l.b16 %v1451
      %v1548 = vunpack.c.l.b16 %v1452
      %v1549 = vunpack.c.l.b16 %v1453
      %v1550 = vunpack.c.l.b16 %v1454
      %v1551 = vunpack.c.l.b16 %v1455
      %v1552 = vunpack.c.l.b16 %v1456
      %v1553 = vunpack.c.l.b16 %v1457
      %v1554 = vunpack.c.l.b16 %v1458
      %v1555 = vunpack.c.l.b16 %v1459
      %v1556 = vunpack.c.l.b16 %v1460
      %v1557 = vunpack.c.l.b16 %v1461
      %v1558 = vunpack.c.l.b16 %v1462
      %v1559 = vunpack.c.l.b16 %v1463
      %v1560 = vunpack.c.l.b16 %v1464
      %v1561 = vunpack.c.l.b16 %v1465
      %v1562 = vunpack.c.l.b16 %v1466
      %v1563 = vunpack.c.l.b16 %v1467
      %v1564 = vunpack.c.l.b16 %v1468
      %v1565 = vunpack.c.l.b16 %v1469
      %v1566 = vunpack.c.l.b16 %v1470
      %v1567 = vunpack.c.l.b16 %v1471
      %v1568 = vunpack.c.l.b16 %v1472
      %v1569 = vunpack.c.l.b16 %v1473
      %v1570 = vunpack.c.l.b16 %v1474
      %v1571 = vunpack.c.l.b16 %v1475
      %v1572 = vunpack.c.l.b16 %v1476
      %v1573 = vunpack.c.l.b16 %v1477
      %v1574 = vunpack.c.l.b16 %v1478
      %v1575 = vunpack.c.l.b16 %v1479
      %v1576 = vunpack.c.l.b16 %v1480
      %v1577 = vpack.c.b16 %v1530, %v1529
      %v1578 = vpack.c.b16 %v1532, %v1531
      %v1579 = vpack.c.b16 %v1534, %v1533
      %v1580 = vpack.c.b16 %v1536, %v1535
      %v1581 = vpack.c.b16 %v1538, %v1537
      %v1582 = vpack.c.b16 %v1540, %v1539
      %v1583 = vpack.c.b16 %v1542, %v1541
      %v1584 = vpack.c.b16 %v1544, %v1543
      %v1585 = vpack.c.b16 %v1546, %v1545
      %v1586 = vpack.c.b16 %v1548, %v1547
      %v1587 = vpack.c.b16 %v1550, %v1549
      %v1588 = vpack.c.b16 %v1552, %v1551
      %v1589 = vpack.c.b16 %v1554, %v1553
      %v1590 = vpack.c.b16 %v1556, %v1555
      %v1591 = vpack.c.b16 %v1558, %v1557
      %v1592 = vpack.c.b16 %v1560, %v1559
      %v1593 = vpack.c.b16 %v1562, %v1561
      %v1594 = vpack.c.b16 %v1564, %v1563
      %v1595 = vpack.c.b16 %v1566, %v1565
      %v1596 = vpack.c.b16 %v1568, %v1567
      %v1597 = vpack.c.b16 %v1570, %v1569
      %v1598 = vpack.c.b16 %v1572, %v1571
      %v1599 = vpack.c.b16 %v1574, %v1573
      %v1600 = vpack.c.b16 %v1576, %v1575
      %1625 = vmatprep.subr.bf16.mxu0 0
      %1626 = vmatpush1.bf16.msra.mxu0 %v1577
      %1627 = vmatprep.subr.bf16.mxu0 0
      %1628 = vmatpush1.bf16.msra.mxu0 %v1578
      %1629 = vmatprep.subr.bf16.mxu0 0
      %1630 = vmatpush1.bf16.msra.mxu0 %v1579
      %1631 = vmatprep.subr.bf16.mxu0 0
      %1632 = vmatpush1.bf16.msra.mxu0 %v1580
      %1633 = vmatprep.subr.bf16.mxu0 0
      %1634 = vmatpush1.bf16.msra.mxu0 %v1581
      %1635 = vmatprep.subr.bf16.mxu0 0
      %1636 = vmatpush1.bf16.msra.mxu0 %v1582
      %1637 = vmatprep.subr.bf16.mxu0 0
      %1638 = vmatpush1.bf16.msra.mxu0 %v1583
      %1639 = vmatprep.subr.bf16.mxu0 0
      %1640 = vmatpush1.bf16.msra.mxu0 %v1584
      %1641 = vmatprep.subr.bf16.mxu0 0
      %1642 = vmatpush1.bf16.msra.mxu0 %v1585
      %1643 = vmatprep.subr.bf16.mxu0 0
      %1644 = vmatpush1.bf16.msra.mxu0 %v1586
      %1645 = vmatprep.subr.bf16.mxu0 0
      %1646 = vmatpush1.bf16.msra.mxu0 %v1587
      %1647 = vmatprep.subr.bf16.mxu0 0
      %1648 = vmatpush1.bf16.msra.mxu0 %v1588
      %1649 = vmatprep.subr.bf16.mxu0 0
      %1650 = vmatpush1.bf16.msra.mxu0 %v1589
      %1651 = vmatprep.subr.bf16.mxu0 0
      %1652 = vmatpush1.bf16.msra.mxu0 %v1590
      %1653 = vmatprep.subr.bf16.mxu0 0
      %1654 = vmatpush1.bf16.msra.mxu0 %v1591
      %1655 = vmatprep.subr.bf16.mxu0 0
      %1656 = vmatpush1.bf16.msra.mxu0 %v1592
      %1657 = vmatprep.mubr.bf16.mxu0 %v1123
      %1658 = vmatmul.mubr.bf16.gmra.mrb[0].mxu0 %v1032
      %v1659 = vpop.f32.mrb[0].mxu0
      %v1660 = vadd.f32 0.0, %v1659
      %v1661 = vpop.f32.mrb[0].mxu0
      %v1662 = vpop.f32.mrb[0].mxu0
      %v1663 = vadd.f32 0.0, %v1662
      %v1664 = vpop.f32.mrb[0].mxu0
      %1665 = vmatprep.mubr.bf16.mxu0 %v1135
      %1666 = vmatmul.mubr.bf16.gmra.mrb[0].mxu0 %v1033
      %v1667 = vpop.f32.mrb[0].mxu0
      %v1668 = vadd.f32 0.0, %v1667
      %v1669 = vpop.f32.mrb[0].mxu0
      %v1670 = vpop.f32.mrb[0].mxu0
      %v1671 = vadd.f32 0.0, %v1670
      %v1672 = vpop.f32.mrb[0].mxu0
      %1673 = vmatprep.mubr.bf16.mxu0 %v1147
      %1674 = vmatmul.mubr.bf16.gmra.mrb[0].mxu0 %v1034
      %v1675 = vpop.f32.mrb[0].mxu0
      %v1676 = vadd.f32 0.0, %v1675
      %v1677 = vpop.f32.mrb[0].mxu0
      %v1678 = vpop.f32.mrb[0].mxu0
      %v1679 = vadd.f32 0.0, %v1678
      %v1680 = vpop.f32.mrb[0].mxu0
      %1681 = vmatprep.mubr.bf16.mxu0 %v1159
      %1682 = vmatmul.mubr.bf16.gmra.mrb[0].mxu0 %v1035
      %v1683 = vpop.f32.mrb[0].mxu0
      %v1684 = vadd.f32 0.0, %v1683
      %v1685 = vpop.f32.mrb[0].mxu0
      %v1686 = vpop.f32.mrb[0].mxu0
      %v1687 = vadd.f32 0.0, %v1686
      %v1688 = vpop.f32.mrb[0].mxu0
      %1689 = vmatprep.mubr.bf16.mxu0 %v1171
      %1690 = vmatmul.mubr.bf16.gmra.mrb[0].mxu0 %v1036
      %v1691 = vpop.f32.mrb[0].mxu0
      %v1692 = vadd.f32 0.0, %v1691
      %v1693 = vpop.f32.mrb[0].mxu0
      %v1694 = vpop.f32.mrb[0].mxu0
      %v1695 = vadd.f32 0.0, %v1694
      %v1696 = vpop.f32.mrb[0].mxu0
      %1697 = vmatprep.mubr.bf16.mxu0 %v1183
      %1698 = vmatmul.mubr.bf16.gmra.mrb[0].mxu0 %v1037
      %v1699 = vpop.f32.mrb[0].mxu0
      %v1700 = vadd.f32 0.0, %v1699
      %v1701 = vpop.f32.mrb[0].mxu0
      %v1702 = vpop.f32.mrb[0].mxu0
      %v1703 = vadd.f32 0.0, %v1702
      %v1704 = vpop.f32.mrb[0].mxu0
      %1705 = vmatprep.mubr.bf16.mxu0 %v1195
      %1706 = vmatmul.mubr.bf16.gmra.mrb[0].mxu0 %v1038
      %v1707 = vpop.f32.mrb[0].mxu0
      %v1708 = vadd.f32 0.0, %v1707
      %v1709 = vpop.f32.mrb[0].mxu0
      %v1710 = vpop.f32.mrb[0].mxu0
      %v1711 = vadd.f32 0.0, %v1710
      %v1712 = vpop.f32.mrb[0].mxu0
      %1713 = vmatprep.mubr.bf16.mxu0 %v1207
      %1714 = vmatmul.mubr.bf16.gmra.mrb[0].mxu0 %v1039
      %v1715 = vpop.f32.mrb[0].mxu0
      %v1716 = vadd.f32 0.0, %v1715
      %v1717 = vpop.f32.mrb[0].mxu0
      %v1718 = vpop.f32.mrb[0].mxu0
      %v1719 = vadd.f32 0.0, %v1718
      %v1720 = vpop.f32.mrb[0].mxu0
      %1721 = vmatprep.mubr.bf16.mxu0 %v1219
      %1722 = vmatmul.mubr.bf16.gmra.mrb[0].mxu0 %v1040
      %v1723 = vpop.f32.mrb[0].mxu0
      %v1724 = vadd.f32 0.0, %v1723
      %v1725 = vpop.f32.mrb[0].mxu0
      %v1726 = vpop.f32.mrb[0].mxu0
      %v1727 = vadd.f32 0.0, %v1726
      %v1728 = vpop.f32.mrb[0].mxu0
      %1729 = vmatprep.mubr.bf16.mxu0 %v1231
      %1730 = vmatmul.mubr.bf16.gmra.mrb[0].mxu0 %v1041
      %v1731 = vpop.f32.mrb[0].mxu0
      %v1732 = vadd.f32 0.0, %v1731
      %v1733 = vpop.f32.mrb[0].mxu0
      %v1734 = vpop.f32.mrb[0].mxu0
      %v1735 = vadd.f32 0.0, %v1734
      %v1736 = vpop.f32.mrb[0].mxu0
      %1737 = vmatprep.mubr.bf16.mxu0 %v1243
      %1738 = vmatmul.mubr.bf16.gmra.mrb[0].mxu0 %v1042
      %v1739 = vpop.f32.mrb[0].mxu0
      %v1740 = vadd.f32 0.0, %v1739
      %v1741 = vpop.f32.mrb[0].mxu0
      %v1742 = vpop.f32.mrb[0].mxu0
      %v1743 = vadd.f32 0.0, %v1742
      %v1744 = vpop.f32.mrb[0].mxu0
      %1745 = vmatprep.mubr.bf16.mxu0 %v1255
      %1746 = vmatmul.mubr.bf16.gmra.mrb[0].mxu0 %v1043
      %v1747 = vpop.f32.mrb[0].mxu0
      %v1748 = vadd.f32 0.0, %v1747
      %v1749 = vpop.f32.mrb[0].mxu0
      %v1750 = vpop.f32.mrb[0].mxu0
      %v1751 = vadd.f32 0.0, %v1750
      %v1752 = vpop.f32.mrb[0].mxu0
      %1753 = vmatprep.mubr.bf16.mxu0 %v1267
      %1754 = vmatmul.mubr.bf16.gmra.mrb[0].mxu0 %v1044
      %v1755 = vpop.f32.mrb[0].mxu0
      %v1756 = vadd.f32 0.0, %v1755
      %v1757 = vpop.f32.mrb[0].mxu0
      %v1758 = vpop.f32.mrb[0].mxu0
      %v1759 = vadd.f32 0.0, %v1758
      %v1760 = vpop.f32.mrb[0].mxu0
      %1761 = vmatprep.mubr.bf16.mxu0 %v1279
      %1762 = vmatmul.mubr.bf16.gmra.mrb[0].mxu0 %v1045
      %v1763 = vpop.f32.mrb[0].mxu0
      %v1764 = vadd.f32 0.0, %v1763
      %v1765 = vpop.f32.mrb[0].mxu0
      %v1766 = vpop.f32.mrb[0].mxu0
      %v1767 = vadd.f32 0.0, %v1766
      %v1768 = vpop.f32.mrb[0].mxu0
      %1769 = vmatprep.mubr.bf16.mxu0 %v1291
      %1770 = vmatmul.mubr.bf16.gmra.mrb[0].mxu0 %v1046
      %v1771 = vpop.f32.mrb[0].mxu0
      %v1772 = vadd.f32 0.0, %v1771
      %v1773 = vpop.f32.mrb[0].mxu0
      %v1774 = vpop.f32.mrb[0].mxu0
      %v1775 = vadd.f32 0.0, %v1774
      %v1776 = vpop.f32.mrb[0].mxu0
      %1777 = vmatprep.mubr.bf16.mxu0 %v1303
      %1778 = vmatmul.mubr.bf16.gmra.mrb[0].mxu0 %v1047
      %v1779 = vpop.f32.mrb[0].mxu0
      %v1780 = vadd.f32 0.0, %v1779
      %v1781 = vpop.f32.mrb[0].mxu0
      %v1782 = vpop.f32.mrb[0].mxu0
      %v1783 = vadd.f32 0.0, %v1782
      %v1784 = vpop.f32.mrb[0].mxu0
      %1785 = vdwg.mxu0
      %1786 = vmatprep.subr.bf16.mxu0 0
      %1787 = vmatpush1.bf16.msra.mxu0 %v1593
      %1788 = vmatprep.subr.bf16.mxu0 0
      %1789 = vmatpush1.bf16.msra.mxu0 %v1594
      %1790 = vmatprep.subr.bf16.mxu0 0
      %1791 = vmatpush1.bf16.msra.mxu0 %v1595
      %1792 = vmatprep.subr.bf16.mxu0 0
      %1793 = vmatpush1.bf16.msra.mxu0 %v1596
      %1794 = vmatprep.subr.bf16.mxu0 0
      %1795 = vmatpush1.bf16.msra.mxu0 %v1597
      %1796 = vmatprep.subr.bf16.mxu0 0
      %1797 = vmatpush1.bf16.msra.mxu0 %v1598
      %1798 = vmatprep.subr.bf16.mxu0 0
      %1799 = vmatpush1.bf16.msra.mxu0 %v1599
      %1800 = vmatprep.subr.bf16.mxu0 0
      %1801 = vmatpush1.bf16.msra.mxu0 %v1600
      %1802 = vmatprep.subr.bf16.mxu0 0
      %1803 = vmatpush1.bf16.msra.mxu0 0
      %1804 = vmatprep.subr.bf16.mxu0 0
      %1805 = vmatpush1.bf16.msra.mxu0 0
      %1806 = vmatprep.subr.bf16.mxu0 0
      %1807 = vmatpush1.bf16.msra.mxu0 0
      %1808 = vmatprep.subr.bf16.mxu0 0
      %1809 = vmatpush1.bf16.msra.mxu0 0
      %1810 = vmatprep.subr.bf16.mxu0 0
      %1811 = vmatpush1.bf16.msra.mxu0 0
      %1812 = vmatprep.subr.bf16.mxu0 0
      %1813 = vmatpush1.bf16.msra.mxu0 0
      %1814 = vmatprep.subr.bf16.mxu0 0
      %1815 = vmatpush1.bf16.msra.mxu0 0
      %1816 = vmatprep.subr.bf16.mxu0 0
      %1817 = vmatpush1.bf16.msra.mxu0 0
      %1818 = vmatprep.mubr.bf16.mxu0 0
      %1819 = vmatmul.mubr.bf16.gmra.mrb[0].mxu0 %v1370
      %v1820 = vpop.f32.mrb[0].mxu0
      %v1821 = vadd.f32 %v1660, %v1820
      %v1822 = vpop.f32.mrb[0].mxu0
      %v1823 = vpop.f32.mrb[0].mxu0
      %v1824 = vadd.f32 %v1663, %v1823
      %v1825 = vpop.f32.mrb[0].mxu0
      %1826 = vmatprep.mubr.bf16.mxu0 0
      %1827 = vmatmul.mubr.bf16.gmra.mrb[0].mxu0 %v1373
      %v1828 = vpop.f32.mrb[0].mxu0
      %v1829 = vadd.f32 %v1668, %v1828
      %v1830 = vpop.f32.mrb[0].mxu0
      %v1831 = vpop.f32.mrb[0].mxu0
      %v1832 = vadd.f32 %v1671, %v1831
      %v1833 = vpop.f32.mrb[0].mxu0
      %1834 = vmatprep.mubr.bf16.mxu0 0
      %1835 = vmatmul.mubr.bf16.gmra.mrb[0].mxu0 %v1376
      %v1836 = vpop.f32.mrb[0].mxu0
      %v1837 = vadd.f32 %v1676, %v1836
      %v1838 = vpop.f32.mrb[0].mxu0
      %v1839 = vpop.f32.mrb[0].mxu0
      %v1840 = vadd.f32 %v1679, %v1839
      %v1841 = vpop.f32.mrb[0].mxu0
      %1842 = vmatprep.mubr.bf16.mxu0 0
      %1843 = vmatmul.mubr.bf16.gmra.mrb[0].mxu0 %v1379
      %v1844 = vpop.f32.mrb[0].mxu0
      %v1845 = vadd.f32 %v1684, %v1844
      %v1846 = vpop.f32.mrb[0].mxu0
      %v1847 = vpop.f32.mrb[0].mxu0
      %v1848 = vadd.f32 %v1687, %v1847
      %v1849 = vpop.f32.mrb[0].mxu0
      %1850 = vmatprep.mubr.bf16.mxu0 0
      %1851 = vmatmul.mubr.bf16.gmra.mrb[0].mxu0 %v1382
      %v1852 = vpop.f32.mrb[0].mxu0
      %v1853 = vadd.f32 %v1692, %v1852
      %v1854 = vpop.f32.mrb[0].mxu0
      %v1855 = vpop.f32.mrb[0].mxu0
      %v1856 = vadd.f32 %v1695, %v1855
      %v1857 = vpop.f32.mrb[0].mxu0
      %1858 = vmatprep.mubr.bf16.mxu0 0
      %1859 = vmatmul.mubr.bf16.gmra.mrb[0].mxu0 %v1385
      %v1860 = vpop.f32.mrb[0].mxu0
      %v1861 = vadd.f32 %v1700, %v1860
      %v1862 = vpop.f32.mrb[0].mxu0
      %v1863 = vpop.f32.mrb[0].mxu0
      %v1864 = vadd.f32 %v1703, %v1863
      %v1865 = vpop.f32.mrb[0].mxu0
      %1866 = vmatprep.mubr.bf16.mxu0 0
      %1867 = vmatmul.mubr.bf16.gmra.mrb[0].mxu0 %v1388
      %v1868 = vpop.f32.mrb[0].mxu0
      %v1869 = vadd.f32 %v1708, %v1868
      %v1870 = vpop.f32.mrb[0].mxu0
      %v1871 = vpop.f32.mrb[0].mxu0
      %v1872 = vadd.f32 %v1711, %v1871
      %v1873 = vpop.f32.mrb[0].mxu0
      %1874 = vmatprep.mubr.bf16.mxu0 0
      %1875 = vmatmul.mubr.bf16.gmra.mrb[0].mxu0 %v1391
      %v1876 = vpop.f32.mrb[0].mxu0
      %v1877 = vadd.f32 %v1716, %v1876
      %v1878 = vpop.f32.mrb[0].mxu0
      %v1879 = vpop.f32.mrb[0].mxu0
      %v1880 = vadd.f32 %v1719, %v1879
      %v1881 = vpop.f32.mrb[0].mxu0
      %1882 = vmatprep.mubr.bf16.mxu0 0
      %1883 = vmatmul.mubr.bf16.gmra.mrb[0].mxu0 %v1394
      %v1884 = vpop.f32.mrb[0].mxu0
      %v1885 = vadd.f32 %v1724, %v1884
      %v1886 = vpop.f32.mrb[0].mxu0
      %v1887 = vpop.f32.mrb[0].mxu0
      %v1888 = vadd.f32 %v1727, %v1887
      %v1889 = vpop.f32.mrb[0].mxu0
      %1890 = vmatprep.mubr.bf16.mxu0 0
      %1891 = vmatmul.mubr.bf16.gmra.mrb[0].mxu0 %v1397
      %v1892 = vpop.f32.mrb[0].mxu0
      %v1893 = vadd.f32 %v1732, %v1892
      %v1894 = vpop.f32.mrb[0].mxu0
      %v1895 = vpop.f32.mrb[0].mxu0
      %v1896 = vadd.f32 %v1735, %v1895
      %v1897 = vpop.f32.mrb[0].mxu0
      %1898 = vmatprep.mubr.bf16.mxu0 0
      %1899 = vmatmul.mubr.bf16.gmra.mrb[0].mxu0 %v1400
      %v1900 = vpop.f32.mrb[0].mxu0
      %v1901 = vadd.f32 %v1740, %v1900
      %v1902 = vpop.f32.mrb[0].mxu0
      %v1903 = vpop.f32.mrb[0].mxu0
      %v1904 = vadd.f32 %v1743, %v1903
      %v1905 = vpop.f32.mrb[0].mxu0
      %1906 = vmatprep.mubr.bf16.mxu0 0
      %1907 = vmatmul.mubr.bf16.gmra.mrb[0].mxu0 %v1403
      %v1908 = vpop.f32.mrb[0].mxu0
      %v1909 = vadd.f32 %v1748, %v1908
      %v1910 = vpop.f32.mrb[0].mxu0
      %v1911 = vpop.f32.mrb[0].mxu0
      %v1912 = vadd.f32 %v1751, %v1911
      %v1913 = vpop.f32.mrb[0].mxu0
      %1914 = vmatprep.mubr.bf16.mxu0 0
      %1915 = vmatmul.mubr.bf16.gmra.mrb[0].mxu0 %v1406
      %v1916 = vpop.f32.mrb[0].mxu0
      %v1917 = vadd.f32 %v1756, %v1916
      %v1918 = vpop.f32.mrb[0].mxu0
      %v1919 = vpop.f32.mrb[0].mxu0
      %v1920 = vadd.f32 %v1759, %v1919
      %v1921 = vpop.f32.mrb[0].mxu0
      %1922 = vmatprep.mubr.bf16.mxu0 0
      %1923 = vmatmul.mubr.bf16.gmra.mrb[0].mxu0 %v1409
      %v1924 = vpop.f32.mrb[0].mxu0
      %v1925 = vadd.f32 %v1764, %v1924
      %v1926 = vpop.f32.mrb[0].mxu0
      %v1927 = vpop.f32.mrb[0].mxu0
      %v1928 = vadd.f32 %v1767, %v1927
      %v1929 = vpop.f32.mrb[0].mxu0
      %1930 = vmatprep.mubr.bf16.mxu0 0
      %1931 = vmatmul.mubr.bf16.gmra.mrb[0].mxu0 %v1412
      %v1932 = vpop.f32.mrb[0].mxu0
      %v1933 = vadd.f32 %v1772, %v1932
      %v1934 = vpop.f32.mrb[0].mxu0
      %v1935 = vpop.f32.mrb[0].mxu0
      %v1936 = vadd.f32 %v1775, %v1935
      %v1937 = vpop.f32.mrb[0].mxu0
      %1938 = vmatprep.mubr.bf16.mxu0 0
      %1939 = vmatmul.mubr.bf16.gmra.mrb[0].mxu0 %v1415
      %v1940 = vpop.f32.mrb[0].mxu0
      %v1941 = vadd.f32 %v1780, %v1940
      %v1942 = vpop.f32.mrb[0].mxu0
      %v1943 = vpop.f32.mrb[0].mxu0
      %v1944 = vadd.f32 %v1783, %v1943
      %v1945 = vpop.f32.mrb[0].mxu0
      %1946 = vdwg.mxu0
      %v1995 = vunpack.c.l.b16 %v855
      %v1996 = vunpack.c.l.b16 %v856
      %v1997 = vunpack.c.l.b16 %v857
      %v1998 = vunpack.c.l.b16 %v858
      %v1999 = vunpack.c.l.b16 %v859
      %v2000 = vunpack.c.l.b16 %v860
      %v2001 = vunpack.c.l.b16 %v861
      %v2002 = vunpack.c.l.b16 %v862
      %v2003 = vunpack.c.l.b16 %v863
      %v2004 = vunpack.c.l.b16 %v864
      %v2005 = vunpack.c.l.b16 %v865
      %v2006 = vunpack.c.l.b16 %v866
      %v2007 = vunpack.c.l.b16 %v867
      %v2008 = vunpack.c.l.b16 %v868
      %v2009 = vunpack.c.l.b16 %v869
      %v2010 = vunpack.c.l.b16 %v870
      %v2011 = vunpack.c.l.b16 %v871
      %v2012 = vunpack.c.l.b16 %v872
      %v2013 = vunpack.c.l.b16 %v873
      %v2014 = vunpack.c.l.b16 %v874
      %v2015 = vunpack.c.l.b16 %v875
      %v2016 = vunpack.c.l.b16 %v876
      %v2017 = vunpack.c.l.b16 %v877
      %v2018 = vunpack.c.l.b16 %v878
      %v2019 = vunpack.c.l.b16 %v879
      %v2020 = vunpack.c.l.b16 %v880
      %v2021 = vunpack.c.l.b16 %v881
      %v2022 = vunpack.c.l.b16 %v882
      %v2023 = vunpack.c.l.b16 %v883
      %v2024 = vunpack.c.l.b16 %v884
      %v2025 = vunpack.c.l.b16 %v885
      %v2026 = vunpack.c.l.b16 %v886
      %v2027 = vunpack.c.l.b16 %v887
      %v2028 = vunpack.c.l.b16 %v888
      %v2029 = vunpack.c.l.b16 %v889
      %v2030 = vunpack.c.l.b16 %v890
      %v2031 = vunpack.c.l.b16 %v891
      %v2032 = vunpack.c.l.b16 %v892
      %v2033 = vunpack.c.l.b16 %v893
      %v2034 = vunpack.c.l.b16 %v894
      %v2035 = vunpack.c.l.b16 %v895
      %v2036 = vunpack.c.l.b16 %v896
      %v2037 = vunpack.c.l.b16 %v897
      %v2038 = vunpack.c.l.b16 %v898
      %v2039 = vunpack.c.l.b16 %v899
      %v2040 = vunpack.c.l.b16 %v900
      %v2041 = vunpack.c.l.b16 %v901
      %v2042 = vunpack.c.l.b16 %v902
      %v2043 = vpack.c.b16 %v1996, %v1995
      %v2044 = vpack.c.b16 %v1998, %v1997
      %v2045 = vpack.c.b16 %v2000, %v1999
      %v2046 = vpack.c.b16 %v2002, %v2001
      %v2047 = vpack.c.b16 %v2004, %v2003
      %v2048 = vpack.c.b16 %v2006, %v2005
      %v2049 = vpack.c.b16 %v2008, %v2007
      %v2050 = vpack.c.b16 %v2010, %v2009
      %v2051 = vpack.c.b16 %v2012, %v2011
      %v2052 = vpack.c.b16 %v2014, %v2013
      %v2053 = vpack.c.b16 %v2016, %v2015
      %v2054 = vpack.c.b16 %v2018, %v2017
      %v2055 = vpack.c.b16 %v2020, %v2019
      %v2056 = vpack.c.b16 %v2022, %v2021
      %v2057 = vpack.c.b16 %v2024, %v2023
      %v2058 = vpack.c.b16 %v2026, %v2025
      %v2059 = vpack.c.b16 %v2028, %v2027
      %v2060 = vpack.c.b16 %v2030, %v2029
      %v2061 = vpack.c.b16 %v2032, %v2031
      %v2062 = vpack.c.b16 %v2034, %v2033
      %v2063 = vpack.c.b16 %v2036, %v2035
      %v2064 = vpack.c.b16 %v2038, %v2037
      %v2065 = vpack.c.b16 %v2040, %v2039
      %v2066 = vpack.c.b16 %v2042, %v2041
      %2091 = vmatprep.subr.bf16.mxu0 0
      %2092 = vmatpush1.bf16.msra.mxu0 %v2043
      %2093 = vmatprep.subr.bf16.mxu0 0
      %2094 = vmatpush1.bf16.msra.mxu0 %v2044
      %2095 = vmatprep.subr.bf16.mxu0 0
      %2096 = vmatpush1.bf16.msra.mxu0 %v2045
      %2097 = vmatprep.subr.bf16.mxu0 0
      %2098 = vmatpush1.bf16.msra.mxu0 %v2046
      %2099 = vmatprep.subr.bf16.mxu0 0
      %2100 = vmatpush1.bf16.msra.mxu0 %v2047
      %2101 = vmatprep.subr.bf16.mxu0 0
      %2102 = vmatpush1.bf16.msra.mxu0 %v2048
      %2103 = vmatprep.subr.bf16.mxu0 0
      %2104 = vmatpush1.bf16.msra.mxu0 %v2049
      %2105 = vmatprep.subr.bf16.mxu0 0
      %2106 = vmatpush1.bf16.msra.mxu0 %v2050
      %2107 = vmatprep.subr.bf16.mxu0 0
      %2108 = vmatpush1.bf16.msra.mxu0 %v2051
      %2109 = vmatprep.subr.bf16.mxu0 0
      %2110 = vmatpush1.bf16.msra.mxu0 %v2052
      %2111 = vmatprep.subr.bf16.mxu0 0
      %2112 = vmatpush1.bf16.msra.mxu0 %v2053
      %2113 = vmatprep.subr.bf16.mxu0 0
      %2114 = vmatpush1.bf16.msra.mxu0 %v2054
      %2115 = vmatprep.subr.bf16.mxu0 0
      %2116 = vmatpush1.bf16.msra.mxu0 %v2055
      %2117 = vmatprep.subr.bf16.mxu0 0
      %2118 = vmatpush1.bf16.msra.mxu0 %v2056
      %2119 = vmatprep.subr.bf16.mxu0 0
      %2120 = vmatpush1.bf16.msra.mxu0 %v2057
      %2121 = vmatprep.subr.bf16.mxu0 0
      %2122 = vmatpush1.bf16.msra.mxu0 %v2058
      %2123 = vmatprep.mubr.bf16.mxu0 %v545
      %2124 = vmatmul.mubr.bf16.gmra.mrb[0].mxu0 %v453
      %v2125 = vpop.f32.mrb[0].mxu0
      %v2126 = vadd.f32 %v1821, %v2125
      %v2127 = vpop.f32.mrb[0].mxu0
      %v2128 = vpop.f32.mrb[0].mxu0
      %v2129 = vadd.f32 %v1824, %v2128
      %v2130 = vpop.f32.mrb[0].mxu0
      %2131 = vmatprep.mubr.bf16.mxu0 %v557
      %2132 = vmatmul.mubr.bf16.gmra.mrb[0].mxu0 %v454
      %v2133 = vpop.f32.mrb[0].mxu0
      %v2134 = vadd.f32 %v1829, %v2133
      %v2135 = vpop.f32.mrb[0].mxu0
      %v2136 = vpop.f32.mrb[0].mxu0
      %v2137 = vadd.f32 %v1832, %v2136
      %v2138 = vpop.f32.mrb[0].mxu0
      %2139 = vmatprep.mubr.bf16.mxu0 %v569
      %2140 = vmatmul.mubr.bf16.gmra.mrb[0].mxu0 %v455
      %v2141 = vpop.f32.mrb[0].mxu0
      %v2142 = vadd.f32 %v1837, %v2141
      %v2143 = vpop.f32.mrb[0].mxu0
      %v2144 = vpop.f32.mrb[0].mxu0
      %v2145 = vadd.f32 %v1840, %v2144
      %v2146 = vpop.f32.mrb[0].mxu0
      %2147 = vmatprep.mubr.bf16.mxu0 %v581
      %2148 = vmatmul.mubr.bf16.gmra.mrb[0].mxu0 %v456
      %v2149 = vpop.f32.mrb[0].mxu0
      %v2150 = vadd.f32 %v1845, %v2149
      %v2151 = vpop.f32.mrb[0].mxu0
      %v2152 = vpop.f32.mrb[0].mxu0
      %v2153 = vadd.f32 %v1848, %v2152
      %v2154 = vpop.f32.mrb[0].mxu0
      %2155 = vmatprep.mubr.bf16.mxu0 %v593
      %2156 = vmatmul.mubr.bf16.gmra.mrb[0].mxu0 %v457
      %v2157 = vpop.f32.mrb[0].mxu0
      %v2158 = vadd.f32 %v1853, %v2157
      %v2159 = vpop.f32.mrb[0].mxu0
      %v2160 = vpop.f32.mrb[0].mxu0
      %v2161 = vadd.f32 %v1856, %v2160
      %v2162 = vpop.f32.mrb[0].mxu0
      %2163 = vmatprep.mubr.bf16.mxu0 %v605
      %2164 = vmatmul.mubr.bf16.gmra.mrb[0].mxu0 %v458
      %v2165 = vpop.f32.mrb[0].mxu0
      %v2166 = vadd.f32 %v1861, %v2165
      %v2167 = vpop.f32.mrb[0].mxu0
      %v2168 = vpop.f32.mrb[0].mxu0
      %v2169 = vadd.f32 %v1864, %v2168
      %v2170 = vpop.f32.mrb[0].mxu0
      %2171 = vmatprep.mubr.bf16.mxu0 %v617
      %2172 = vmatmul.mubr.bf16.gmra.mrb[0].mxu0 %v459
      %v2173 = vpop.f32.mrb[0].mxu0
      %v2174 = vadd.f32 %v1869, %v2173
      %v2175 = vpop.f32.mrb[0].mxu0
      %v2176 = vpop.f32.mrb[0].mxu0
      %v2177 = vadd.f32 %v1872, %v2176
      %v2178 = vpop.f32.mrb[0].mxu0
      %2179 = vmatprep.mubr.bf16.mxu0 %v629
      %2180 = vmatmul.mubr.bf16.gmra.mrb[0].mxu0 %v460
      %v2181 = vpop.f32.mrb[0].mxu0
      %v2182 = vadd.f32 %v1877, %v2181
      %v2183 = vpop.f32.mrb[0].mxu0
      %v2184 = vpop.f32.mrb[0].mxu0
      %v2185 = vadd.f32 %v1880, %v2184
      %v2186 = vpop.f32.mrb[0].mxu0
      %2187 = vmatprep.mubr.bf16.mxu0 %v641
      %2188 = vmatmul.mubr.bf16.gmra.mrb[0].mxu0 %v461
      %v2189 = vpop.f32.mrb[0].mxu0
      %v2190 = vadd.f32 %v1885, %v2189
      %v2191 = vpop.f32.mrb[0].mxu0
      %v2192 = vpop.f32.mrb[0].mxu0
      %v2193 = vadd.f32 %v1888, %v2192
      %v2194 = vpop.f32.mrb[0].mxu0
      %2195 = vmatprep.mubr.bf16.mxu0 %v653
      %2196 = vmatmul.mubr.bf16.gmra.mrb[0].mxu0 %v462
      %v2197 = vpop.f32.mrb[0].mxu0
      %v2198 = vadd.f32 %v1893, %v2197
      %v2199 = vpop.f32.mrb[0].mxu0
      %v2200 = vpop.f32.mrb[0].mxu0
      %v2201 = vadd.f32 %v1896, %v2200
      %v2202 = vpop.f32.mrb[0].mxu0
      %2203 = vmatprep.mubr.bf16.mxu0 %v665
      %2204 = vmatmul.mubr.bf16.gmra.mrb[0].mxu0 %v463
      %v2205 = vpop.f32.mrb[0].mxu0
      %v2206 = vadd.f32 %v1901, %v2205
      %v2207 = vpop.f32.mrb[0].mxu0
      %v2208 = vpop.f32.mrb[0].mxu0
      %v2209 = vadd.f32 %v1904, %v2208
      %v2210 = vpop.f32.mrb[0].mxu0
      %2211 = vmatprep.mubr.bf16.mxu0 %v677
      %2212 = vmatmul.mubr.bf16.gmra.mrb[0].mxu0 %v464
      %v2213 = vpop.f32.mrb[0].mxu0
      %v2214 = vadd.f32 %v1909, %v2213
      %v2215 = vpop.f32.mrb[0].mxu0
      %v2216 = vpop.f32.mrb[0].mxu0
      %v2217 = vadd.f32 %v1912, %v2216
      %v2218 = vpop.f32.mrb[0].mxu0
      %2219 = vmatprep.mubr.bf16.mxu0 %v689
      %2220 = vmatmul.mubr.bf16.gmra.mrb[0].mxu0 %v465
      %v2221 = vpop.f32.mrb[0].mxu0
      %v2222 = vadd.f32 %v1917, %v2221
      %v2223 = vpop.f32.mrb[0].mxu0
      %v2224 = vpop.f32.mrb[0].mxu0
      %v2225 = vadd.f32 %v1920, %v2224
      %v2226 = vpop.f32.mrb[0].mxu0
      %2227 = vmatprep.mubr.bf16.mxu0 %v701
      %2228 = vmatmul.mubr.bf16.gmra.mrb[0].mxu0 %v466
      %v2229 = vpop.f32.mrb[0].mxu0
      %v2230 = vadd.f32 %v1925, %v2229
      %v2231 = vpop.f32.mrb[0].mxu0
      %v2232 = vpop.f32.mrb[0].mxu0
      %v2233 = vadd.f32 %v1928, %v2232
      %v2234 = vpop.f32.mrb[0].mxu0
      %2235 = vmatprep.mubr.bf16.mxu0 %v713
      %2236 = vmatmul.mubr.bf16.gmra.mrb[0].mxu0 %v467
      %v2237 = vpop.f32.mrb[0].mxu0
      %v2238 = vadd.f32 %v1933, %v2237
      %v2239 = vpop.f32.mrb[0].mxu0
      %v2240 = vpop.f32.mrb[0].mxu0
      %v2241 = vadd.f32 %v1936, %v2240
      %v2242 = vpop.f32.mrb[0].mxu0
      %2243 = vmatprep.mubr.bf16.mxu0 %v725
      %2244 = vmatmul.mubr.bf16.gmra.mrb[0].mxu0 %v468
      %v2245 = vpop.f32.mrb[0].mxu0
      %v2246 = vadd.f32 %v1941, %v2245
      %v2247 = vpop.f32.mrb[0].mxu0
      %v2248 = vpop.f32.mrb[0].mxu0
      %v2249 = vadd.f32 %v1944, %v2248
      %v2250 = vpop.f32.mrb[0].mxu0
      %2251 = vdwg.mxu0
      %2252 = vmatprep.subr.bf16.mxu0 0
      %2253 = vmatpush1.bf16.msra.mxu0 %v2059
      %2254 = vmatprep.subr.bf16.mxu0 0
      %2255 = vmatpush1.bf16.msra.mxu0 %v2060
      %2256 = vmatprep.subr.bf16.mxu0 0
      %2257 = vmatpush1.bf16.msra.mxu0 %v2061
      %2258 = vmatprep.subr.bf16.mxu0 0
      %2259 = vmatpush1.bf16.msra.mxu0 %v2062
      %2260 = vmatprep.subr.bf16.mxu0 0
      %2261 = vmatpush1.bf16.msra.mxu0 %v2063
      %2262 = vmatprep.subr.bf16.mxu0 0
      %2263 = vmatpush1.bf16.msra.mxu0 %v2064
      %2264 = vmatprep.subr.bf16.mxu0 0
      %2265 = vmatpush1.bf16.msra.mxu0 %v2065
      %2266 = vmatprep.subr.bf16.mxu0 0
      %2267 = vmatpush1.bf16.msra.mxu0 %v2066
      %2268 = vmatprep.subr.bf16.mxu0 0
      %2269 = vmatpush1.bf16.msra.mxu0 0
      %2270 = vmatprep.subr.bf16.mxu0 0
      %2271 = vmatpush1.bf16.msra.mxu0 0
      %2272 = vmatprep.subr.bf16.mxu0 0
      %2273 = vmatpush1.bf16.msra.mxu0 0
      %2274 = vmatprep.subr.bf16.mxu0 0
      %2275 = vmatpush1.bf16.msra.mxu0 0
      %2276 = vmatprep.subr.bf16.mxu0 0
      %2277 = vmatpush1.bf16.msra.mxu0 0
      %2278 = vmatprep.subr.bf16.mxu0 0
      %2279 = vmatpush1.bf16.msra.mxu0 0
      %2280 = vmatprep.subr.bf16.mxu0 0
      %2281 = vmatpush1.bf16.msra.mxu0 0
      %2282 = vmatprep.subr.bf16.mxu0 0
      %2283 = vmatpush1.bf16.msra.mxu0 0
      %2284 = vmatprep.mubr.bf16.mxu0 0
      %2285 = vmatmul.mubr.bf16.gmra.mrb[0].mxu0 %v793
      %v2286 = vpop.f32.mrb[0].mxu0
      %v2287 = vadd.f32 %v2126, %v2286
      %v2288 = vpop.f32.mrb[0].mxu0
      %v2289 = vpop.f32.mrb[0].mxu0
      %v2290 = vadd.f32 %v2129, %v2289
      %v2291 = vpop.f32.mrb[0].mxu0
      %2292 = vmatprep.mubr.bf16.mxu0 0
      %2293 = vmatmul.mubr.bf16.gmra.mrb[0].mxu0 %v796
      %v2294 = vpop.f32.mrb[0].mxu0
      %v2295 = vadd.f32 %v2134, %v2294
      %v2296 = vpop.f32.mrb[0].mxu0
      %v2297 = vpop.f32.mrb[0].mxu0
      %v2298 = vadd.f32 %v2137, %v2297
      %v2299 = vpop.f32.mrb[0].mxu0
      %2300 = vmatprep.mubr.bf16.mxu0 0
      %2301 = vmatmul.mubr.bf16.gmra.mrb[0].mxu0 %v799
      %v2302 = vpop.f32.mrb[0].mxu0
      %v2303 = vadd.f32 %v2142, %v2302
      %v2304 = vpop.f32.mrb[0].mxu0
      %v2305 = vpop.f32.mrb[0].mxu0
      %v2306 = vadd.f32 %v2145, %v2305
      %v2307 = vpop.f32.mrb[0].mxu0
      %2308 = vmatprep.mubr.bf16.mxu0 0
      %2309 = vmatmul.mubr.bf16.gmra.mrb[0].mxu0 %v802
      %v2310 = vpop.f32.mrb[0].mxu0
      %v2311 = vadd.f32 %v2150, %v2310
      %v2312 = vpop.f32.mrb[0].mxu0
      %v2313 = vpop.f32.mrb[0].mxu0
      %v2314 = vadd.f32 %v2153, %v2313
      %v2315 = vpop.f32.mrb[0].mxu0
      %2316 = vmatprep.mubr.bf16.mxu0 0
      %2317 = vmatmul.mubr.bf16.gmra.mrb[0].mxu0 %v805
      %v2318 = vpop.f32.mrb[0].mxu0
      %v2319 = vadd.f32 %v2158, %v2318
      %v2320 = vpop.f32.mrb[0].mxu0
      %v2321 = vpop.f32.mrb[0].mxu0
      %v2322 = vadd.f32 %v2161, %v2321
      %v2323 = vpop.f32.mrb[0].mxu0
      %2324 = vmatprep.mubr.bf16.mxu0 0
      %2325 = vmatmul.mubr.bf16.gmra.mrb[0].mxu0 %v808
      %v2326 = vpop.f32.mrb[0].mxu0
      %v2327 = vadd.f32 %v2166, %v2326
      %v2328 = vpop.f32.mrb[0].mxu0
      %v2329 = vpop.f32.mrb[0].mxu0
      %v2330 = vadd.f32 %v2169, %v2329
      %v2331 = vpop.f32.mrb[0].mxu0
      %2332 = vmatprep.mubr.bf16.mxu0 0
      %2333 = vmatmul.mubr.bf16.gmra.mrb[0].mxu0 %v811
      %v2334 = vpop.f32.mrb[0].mxu0
      %v2335 = vadd.f32 %v2174, %v2334
      %v2336 = vpop.f32.mrb[0].mxu0
      %v2337 = vpop.f32.mrb[0].mxu0
      %v2338 = vadd.f32 %v2177, %v2337
      %v2339 = vpop.f32.mrb[0].mxu0
      %2340 = vmatprep.mubr.bf16.mxu0 0
      %2341 = vmatmul.mubr.bf16.gmra.mrb[0].mxu0 %v814
      %v2342 = vpop.f32.mrb[0].mxu0
      %v2343 = vadd.f32 %v2182, %v2342
      %v2344 = vpop.f32.mrb[0].mxu0
      %v2345 = vpop.f32.mrb[0].mxu0
      %v2346 = vadd.f32 %v2185, %v2345
      %v2347 = vpop.f32.mrb[0].mxu0
      %2348 = vmatprep.mubr.bf16.mxu0 0
      %2349 = vmatmul.mubr.bf16.gmra.mrb[0].mxu0 %v817
      %v2350 = vpop.f32.mrb[0].mxu0
      %v2351 = vadd.f32 %v2190, %v2350
      %v2352 = vpop.f32.mrb[0].mxu0
      %v2353 = vpop.f32.mrb[0].mxu0
      %v2354 = vadd.f32 %v2193, %v2353
      %v2355 = vpop.f32.mrb[0].mxu0
      %2356 = vmatprep.mubr.bf16.mxu0 0
      %2357 = vmatmul.mubr.bf16.gmra.mrb[0].mxu0 %v820
      %v2358 = vpop.f32.mrb[0].mxu0
      %v2359 = vadd.f32 %v2198, %v2358
      %v2360 = vpop.f32.mrb[0].mxu0
      %v2361 = vpop.f32.mrb[0].mxu0
      %v2362 = vadd.f32 %v2201, %v2361
      %v2363 = vpop.f32.mrb[0].mxu0
      %2364 = vmatprep.mubr.bf16.mxu0 0
      %2365 = vmatmul.mubr.bf16.gmra.mrb[0].mxu0 %v823
      %v2366 = vpop.f32.mrb[0].mxu0
      %v2367 = vadd.f32 %v2206, %v2366
      %v2368 = vpop.f32.mrb[0].mxu0
      %v2369 = vpop.f32.mrb[0].mxu0
      %v2370 = vadd.f32 %v2209, %v2369
      %v2371 = vpop.f32.mrb[0].mxu0
      %2372 = vmatprep.mubr.bf16.mxu0 0
      %2373 = vmatmul.mubr.bf16.gmra.mrb[0].mxu0 %v826
      %v2374 = vpop.f32.mrb[0].mxu0
      %v2375 = vadd.f32 %v2214, %v2374
      %v2376 = vpop.f32.mrb[0].mxu0
      %v2377 = vpop.f32.mrb[0].mxu0
      %v2378 = vadd.f32 %v2217, %v2377
      %v2379 = vpop.f32.mrb[0].mxu0
      %2380 = vmatprep.mubr.bf16.mxu0 0
      %2381 = vmatmul.mubr.bf16.gmra.mrb[0].mxu0 %v829
      %v2382 = vpop.f32.mrb[0].mxu0
      %v2383 = vadd.f32 %v2222, %v2382
      %v2384 = vpop.f32.mrb[0].mxu0
      %v2385 = vpop.f32.mrb[0].mxu0
      %v2386 = vadd.f32 %v2225, %v2385
      %v2387 = vpop.f32.mrb[0].mxu0
      %2388 = vmatprep.mubr.bf16.mxu0 0
      %2389 = vmatmul.mubr.bf16.gmra.mrb[0].mxu0 %v832
      %v2390 = vpop.f32.mrb[0].mxu0
      %v2391 = vadd.f32 %v2230, %v2390
      %v2392 = vpop.f32.mrb[0].mxu0
      %v2393 = vpop.f32.mrb[0].mxu0
      %v2394 = vadd.f32 %v2233, %v2393
      %v2395 = vpop.f32.mrb[0].mxu0
      %2396 = vmatprep.mubr.bf16.mxu0 0
      %2397 = vmatmul.mubr.bf16.gmra.mrb[0].mxu0 %v835
      %v2398 = vpop.f32.mrb[0].mxu0
      %v2399 = vadd.f32 %v2238, %v2398
      %v2400 = vpop.f32.mrb[0].mxu0
      %v2401 = vpop.f32.mrb[0].mxu0
      %v2402 = vadd.f32 %v2241, %v2401
      %v2403 = vpop.f32.mrb[0].mxu0
      %2404 = vmatprep.mubr.bf16.mxu0 0
      %2405 = vmatmul.mubr.bf16.gmra.mrb[0].mxu0 %v838
      %v2406 = vpop.f32.mrb[0].mxu0
      %v2407 = vadd.f32 %v2246, %v2406
      %v2408 = vpop.f32.mrb[0].mxu0
      %v2409 = vpop.f32.mrb[0].mxu0
      %v2410 = vadd.f32 %v2249, %v2409
      %v2411 = vpop.f32.mrb[0].mxu0
      %2412 = vdwg.mxu0
      %s2413 = scalar_lea.vmem %s273, 24
      %v2414 = vld [vmem:[%s2413] sm:$0xf]
      %v2415 = vld [vmem:[%s2413 + $0x4] sm:$0xf]
      %v2416 = vld [vmem:[%s2413 + $0xc] sm:$0xf]
      %v2417 = vld [vmem:[%s2413 + $0x10] sm:$0xf]
      %v2418 = vld [vmem:[%s2413 + $0x18] sm:$0xf]
      %v2419 = vld [vmem:[%s2413 + $0x1c] sm:$0xf]
      %v2420 = vld [vmem:[%s2413 + $0x24] sm:$0xf]
      %v2421 = vld [vmem:[%s2413 + $0x28] sm:$0xf]
      %v2422 = vld [vmem:[%s2413 + $0x30] sm:$0xf]
      %v2423 = vld [vmem:[%s2413 + $0x34] sm:$0xf]
      %v2424 = vld [vmem:[%s2413 + $0x3c] sm:$0xf]
      %v2425 = vld [vmem:[%s2413 + $0x40] sm:$0xf]
      %v2426 = vld [vmem:[%s2413 + $0x48] sm:$0xf]
      %v2427 = vld [vmem:[%s2413 + $0x4c] sm:$0xf]
      %v2428 = vld [vmem:[%s2413 + $0x54] sm:$0xf]
      %v2429 = vld [vmem:[%s2413 + $0x58] sm:$0xf]
      %v2430 = vld [vmem:[%s2413 + $0x60] sm:$0xf]
      %v2431 = vld [vmem:[%s2413 + $0x64] sm:$0xf]
      %v2432 = vld [vmem:[%s2413 + $0x6c] sm:$0xf]
      %v2433 = vld [vmem:[%s2413 + $0x70] sm:$0xf]
      %v2434 = vld [vmem:[%s2413 + $0x78] sm:$0xf]
      %v2435 = vld [vmem:[%s2413 + $0x7c] sm:$0xf]
      %v2436 = vld [vmem:[%s2413 + $0x84] sm:$0xf]
      %v2437 = vld [vmem:[%s2413 + $0x88] sm:$0xf]
      %v2438 = vld [vmem:[%s2413 + $0x90] sm:$0xf]
      %v2439 = vld [vmem:[%s2413 + $0x94] sm:$0xf]
      %v2440 = vld [vmem:[%s2413 + $0x9c] sm:$0xf]
      %v2441 = vld [vmem:[%s2413 + $0xa0] sm:$0xf]
      %v2442 = vld [vmem:[%s2413 + $0xa8] sm:$0xf]
      %v2443 = vld [vmem:[%s2413 + $0xac] sm:$0xf]
      %v2444 = vld [vmem:[%s2413 + $0xb4] sm:$0xf]
      %v2445 = vld [vmem:[%s2413 + $0xb8] sm:$0xf]
      %v2446 = vld [vmem:[%s2413 + $0x8] sm:$0x1]
      %v2447 = vld [vmem:[%s2413 + $0x14] sm:$0x1]
      %v2448 = vld [vmem:[%s2413 + $0x20] sm:$0x1]
      %v2449 = vld [vmem:[%s2413 + $0x2c] sm:$0x1]
      %v2450 = vld [vmem:[%s2413 + $0x38] sm:$0x1]
      %v2451 = vld [vmem:[%s2413 + $0x44] sm:$0x1]
      %v2452 = vld [vmem:[%s2413 + $0x50] sm:$0x1]
      %v2453 = vld [vmem:[%s2413 + $0x5c] sm:$0x1]
      %v2454 = vld [vmem:[%s2413 + $0x68] sm:$0x1]
      %v2455 = vld [vmem:[%s2413 + $0x74] sm:$0x1]
      %v2456 = vld [vmem:[%s2413 + $0x80] sm:$0x1]
      %v2457 = vld [vmem:[%s2413 + $0x8c] sm:$0x1]
      %v2458 = vld [vmem:[%s2413 + $0x98] sm:$0x1]
      %v2459 = vld [vmem:[%s2413 + $0xa4] sm:$0x1]
      %v2460 = vld [vmem:[%s2413 + $0xb0] sm:$0x1]
      %v2461 = vld [vmem:[%s2413 + $0xbc] sm:$0x1]
      %v2462 = vld [vmem:[%s2413] sm:$0xe]
      %v2463 = vld [vmem:[%s2413 + $0xc] sm:$0xe]
      %v2464 = vld [vmem:[%s2413 + $0x18] sm:$0xe]
      %v2465 = vld [vmem:[%s2413 + $0x24] sm:$0xe]
      %v2466 = vld [vmem:[%s2413 + $0x30] sm:$0xe]
      %v2467 = vld [vmem:[%s2413 + $0x3c] sm:$0xe]
      %v2468 = vld [vmem:[%s2413 + $0x48] sm:$0xe]
      %v2469 = vld [vmem:[%s2413 + $0x54] sm:$0xe]
      %v2470 = vld [vmem:[%s2413 + $0x60] sm:$0xe]
      %v2471 = vld [vmem:[%s2413 + $0x6c] sm:$0xe]
      %v2472 = vld [vmem:[%s2413 + $0x78] sm:$0xe]
      %v2473 = vld [vmem:[%s2413 + $0x84] sm:$0xe]
      %v2474 = vld [vmem:[%s2413 + $0x90] sm:$0xe]
      %v2475 = vld [vmem:[%s2413 + $0x9c] sm:$0xe]
      %v2476 = vld [vmem:[%s2413 + $0xa8] sm:$0xe]
      %v2477 = vld [vmem:[%s2413 + $0xb4] sm:$0xe]
      %v2510 = vunpack.c.l.b16 %v2414
      %v2511 = vunpack.c.l.b16 %v2415
      %v2512 = vunpack.c.l.b16 %v2416
      %v2513 = vunpack.c.l.b16 %v2417
      %v2514 = vunpack.c.l.b16 %v2418
      %v2515 = vunpack.c.l.b16 %v2419
      %v2516 = vunpack.c.l.b16 %v2420
      %v2517 = vunpack.c.l.b16 %v2421
      %v2518 = vunpack.c.l.b16 %v2422
      %v2519 = vunpack.c.l.b16 %v2423
      %v2520 = vunpack.c.l.b16 %v2424
      %v2521 = vunpack.c.l.b16 %v2425
      %v2522 = vunpack.c.l.b16 %v2426
      %v2523 = vunpack.c.l.b16 %v2427
      %v2524 = vunpack.c.l.b16 %v2428
      %v2525 = vunpack.c.l.b16 %v2429
      %v2526 = vunpack.c.l.b16 %v2430
      %v2527 = vunpack.c.l.b16 %v2431
      %v2528 = vunpack.c.l.b16 %v2432
      %v2529 = vunpack.c.l.b16 %v2433
      %v2530 = vunpack.c.l.b16 %v2434
      %v2531 = vunpack.c.l.b16 %v2435
      %v2532 = vunpack.c.l.b16 %v2436
      %v2533 = vunpack.c.l.b16 %v2437
      %v2534 = vunpack.c.l.b16 %v2438
      %v2535 = vunpack.c.l.b16 %v2439
      %v2536 = vunpack.c.l.b16 %v2440
      %v2537 = vunpack.c.l.b16 %v2441
      %v2538 = vunpack.c.l.b16 %v2442
      %v2539 = vunpack.c.l.b16 %v2443
      %v2540 = vunpack.c.l.b16 %v2444
      %v2541 = vunpack.c.l.b16 %v2445
      %v2542 = vpack.c.b16 %v2511, %v2510
      %v2543 = vpack.c.b16 %v2513, %v2512
      %v2544 = vpack.c.b16 %v2515, %v2514
      %v2545 = vpack.c.b16 %v2517, %v2516
      %v2546 = vpack.c.b16 %v2519, %v2518
      %v2547 = vpack.c.b16 %v2521, %v2520
      %v2548 = vpack.c.b16 %v2523, %v2522
      %v2549 = vpack.c.b16 %v2525, %v2524
      %v2550 = vpack.c.b16 %v2527, %v2526
      %v2551 = vpack.c.b16 %v2529, %v2528
      %v2552 = vpack.c.b16 %v2531, %v2530
      %v2553 = vpack.c.b16 %v2533, %v2532
      %v2554 = vpack.c.b16 %v2535, %v2534
      %v2555 = vpack.c.b16 %v2537, %v2536
      %v2556 = vpack.c.b16 %v2539, %v2538
      %v2557 = vpack.c.b16 %v2541, %v2540
      %v2590 = vunpack.c.l.b16 %v2446
      %v2591 = vunpack.c.l.b16 %v2447
      %v2592 = vunpack.c.l.b16 %v2448
      %v2593 = vunpack.c.l.b16 %v2449
      %v2594 = vunpack.c.l.b16 %v2450
      %v2595 = vunpack.c.l.b16 %v2451
      %v2596 = vunpack.c.l.b16 %v2452
      %v2597 = vunpack.c.l.b16 %v2453
      %v2598 = vunpack.c.l.b16 %v2454
      %v2599 = vunpack.c.l.b16 %v2455
      %v2600 = vunpack.c.l.b16 %v2456
      %v2601 = vunpack.c.l.b16 %v2457
      %v2602 = vunpack.c.l.b16 %v2458
      %v2603 = vunpack.c.l.b16 %v2459
      %v2604 = vunpack.c.l.b16 %v2460
      %v2605 = vunpack.c.l.b16 %v2461
      %v2606 = vpack.c.b16 %v2590, %v2590
      %v2607 = vpack.c.b16 %v2591, %v2591
      %v2608 = vpack.c.b16 %v2592, %v2592
      %v2609 = vpack.c.b16 %v2593, %v2593
      %v2610 = vpack.c.b16 %v2594, %v2594
      %v2611 = vpack.c.b16 %v2595, %v2595
      %v2612 = vpack.c.b16 %v2596, %v2596
      %v2613 = vpack.c.b16 %v2597, %v2597
      %v2614 = vpack.c.b16 %v2598, %v2598
      %v2615 = vpack.c.b16 %v2599, %v2599
      %v2616 = vpack.c.b16 %v2600, %v2600
      %v2617 = vpack.c.b16 %v2601, %v2601
      %v2618 = vpack.c.b16 %v2602, %v2602
      %v2619 = vpack.c.b16 %v2603, %v2603
      %v2620 = vpack.c.b16 %v2604, %v2604
      %v2621 = vpack.c.b16 %v2605, %v2605
      %v2623 = vshrl.u32 %v2542, 16
      %v2625 = vshll.u32 %v2542, 16
      %v2627 = vrot.slane %v2625, 1
      %v2628 = vor.u32 %v2623, %v2627
      %v2630 = vshll.u32 %v2606, 16
      %v2632 = vrot.slane %v2630, 1
      %v2633 = vsel %vm533, %v2628, %v2632
      %v2635 = vshrl.u32 %v2543, 16
      %v2637 = vshll.u32 %v2543, 16
      %v2639 = vrot.slane %v2637, 1
      %v2640 = vor.u32 %v2635, %v2639
      %v2642 = vshll.u32 %v2607, 16
      %v2644 = vrot.slane %v2642, 1
      %v2645 = vsel %vm533, %v2640, %v2644
      %v2647 = vshrl.u32 %v2544, 16
      %v2649 = vshll.u32 %v2544, 16
      %v2651 = vrot.slane %v2649, 1
      %v2652 = vor.u32 %v2647, %v2651
      %v2654 = vshll.u32 %v2608, 16
      %v2656 = vrot.slane %v2654, 1
      %v2657 = vsel %vm533, %v2652, %v2656
      %v2659 = vshrl.u32 %v2545, 16
      %v2661 = vshll.u32 %v2545, 16
      %v2663 = vrot.slane %v2661, 1
      %v2664 = vor.u32 %v2659, %v2663
      %v2666 = vshll.u32 %v2609, 16
      %v2668 = vrot.slane %v2666, 1
      %v2669 = vsel %vm533, %v2664, %v2668
      %v2671 = vshrl.u32 %v2546, 16
      %v2673 = vshll.u32 %v2546, 16
      %v2675 = vrot.slane %v2673, 1
      %v2676 = vor.u32 %v2671, %v2675
      %v2678 = vshll.u32 %v2610, 16
      %v2680 = vrot.slane %v2678, 1
      %v2681 = vsel %vm533, %v2676, %v2680
      %v2683 = vshrl.u32 %v2547, 16
      %v2685 = vshll.u32 %v2547, 16
      %v2687 = vrot.slane %v2685, 1
      %v2688 = vor.u32 %v2683, %v2687
      %v2690 = vshll.u32 %v2611, 16
      %v2692 = vrot.slane %v2690, 1
      %v2693 = vsel %vm533, %v2688, %v2692
      %v2695 = vshrl.u32 %v2548, 16
      %v2697 = vshll.u32 %v2548, 16
      %v2699 = vrot.slane %v2697, 1
      %v2700 = vor.u32 %v2695, %v2699
      %v2702 = vshll.u32 %v2612, 16
      %v2704 = vrot.slane %v2702, 1
      %v2705 = vsel %vm533, %v2700, %v2704
      %v2707 = vshrl.u32 %v2549, 16
      %v2709 = vshll.u32 %v2549, 16
      %v2711 = vrot.slane %v2709, 1
      %v2712 = vor.u32 %v2707, %v2711
      %v2714 = vshll.u32 %v2613, 16
      %v2716 = vrot.slane %v2714, 1
      %v2717 = vsel %vm533, %v2712, %v2716
      %v2719 = vshrl.u32 %v2550, 16
      %v2721 = vshll.u32 %v2550, 16
      %v2723 = vrot.slane %v2721, 1
      %v2724 = vor.u32 %v2719, %v2723
      %v2726 = vshll.u32 %v2614, 16
      %v2728 = vrot.slane %v2726, 1
      %v2729 = vsel %vm533, %v2724, %v2728
      %v2731 = vshrl.u32 %v2551, 16
      %v2733 = vshll.u32 %v2551, 16
      %v2735 = vrot.slane %v2733, 1
      %v2736 = vor.u32 %v2731, %v2735
      %v2738 = vshll.u32 %v2615, 16
      %v2740 = vrot.slane %v2738, 1
      %v2741 = vsel %vm533, %v2736, %v2740
      %v2743 = vshrl.u32 %v2552, 16
      %v2745 = vshll.u32 %v2552, 16
      %v2747 = vrot.slane %v2745, 1
      %v2748 = vor.u32 %v2743, %v2747
      %v2750 = vshll.u32 %v2616, 16
      %v2752 = vrot.slane %v2750, 1
      %v2753 = vsel %vm533, %v2748, %v2752
      %v2755 = vshrl.u32 %v2553, 16
      %v2757 = vshll.u32 %v2553, 16
      %v2759 = vrot.slane %v2757, 1
      %v2760 = vor.u32 %v2755, %v2759
      %v2762 = vshll.u32 %v2617, 16
      %v2764 = vrot.slane %v2762, 1
      %v2765 = vsel %vm533, %v2760, %v2764
      %v2767 = vshrl.u32 %v2554, 16
      %v2769 = vshll.u32 %v2554, 16
      %v2771 = vrot.slane %v2769, 1
      %v2772 = vor.u32 %v2767, %v2771
      %v2774 = vshll.u32 %v2618, 16
      %v2776 = vrot.slane %v2774, 1
      %v2777 = vsel %vm533, %v2772, %v2776
      %v2779 = vshrl.u32 %v2555, 16
      %v2781 = vshll.u32 %v2555, 16
      %v2783 = vrot.slane %v2781, 1
      %v2784 = vor.u32 %v2779, %v2783
      %v2786 = vshll.u32 %v2619, 16
      %v2788 = vrot.slane %v2786, 1
      %v2789 = vsel %vm533, %v2784, %v2788
      %v2791 = vshrl.u32 %v2556, 16
      %v2793 = vshll.u32 %v2556, 16
      %v2795 = vrot.slane %v2793, 1
      %v2796 = vor.u32 %v2791, %v2795
      %v2798 = vshll.u32 %v2620, 16
      %v2800 = vrot.slane %v2798, 1
      %v2801 = vsel %vm533, %v2796, %v2800
      %v2803 = vshrl.u32 %v2557, 16
      %v2805 = vshll.u32 %v2557, 16
      %v2807 = vrot.slane %v2805, 1
      %v2808 = vor.u32 %v2803, %v2807
      %v2810 = vshll.u32 %v2621, 16
      %v2812 = vrot.slane %v2810, 1
      %v2813 = vsel %vm533, %v2808, %v2812
      %v2846 = vunpack.c.l.b16 %v2462
      %v2847 = vunpack.c.l.b16 %v2463
      %v2848 = vunpack.c.l.b16 %v2464
      %v2849 = vunpack.c.l.b16 %v2465
      %v2850 = vunpack.c.l.b16 %v2466
      %v2851 = vunpack.c.l.b16 %v2467
      %v2852 = vunpack.c.l.b16 %v2468
      %v2853 = vunpack.c.l.b16 %v2469
      %v2854 = vunpack.c.l.b16 %v2470
      %v2855 = vunpack.c.l.b16 %v2471
      %v2856 = vunpack.c.l.b16 %v2472
      %v2857 = vunpack.c.l.b16 %v2473
      %v2858 = vunpack.c.l.b16 %v2474
      %v2859 = vunpack.c.l.b16 %v2475
      %v2860 = vunpack.c.l.b16 %v2476
      %v2861 = vunpack.c.l.b16 %v2477
      %v2862 = vpack.c.b16 %v2511, %v2846
      %v2863 = vpack.c.b16 %v2513, %v2847
      %v2864 = vpack.c.b16 %v2515, %v2848
      %v2865 = vpack.c.b16 %v2517, %v2849
      %v2866 = vpack.c.b16 %v2519, %v2850
      %v2867 = vpack.c.b16 %v2521, %v2851
      %v2868 = vpack.c.b16 %v2523, %v2852
      %v2869 = vpack.c.b16 %v2525, %v2853
      %v2870 = vpack.c.b16 %v2527, %v2854
      %v2871 = vpack.c.b16 %v2529, %v2855
      %v2872 = vpack.c.b16 %v2531, %v2856
      %v2873 = vpack.c.b16 %v2533, %v2857
      %v2874 = vpack.c.b16 %v2535, %v2858
      %v2875 = vpack.c.b16 %v2537, %v2859
      %v2876 = vpack.c.b16 %v2539, %v2860
      %v2877 = vpack.c.b16 %v2541, %v2861
      %v2878 = vrot.slane %v2862, 1
      %v2879 = vrot.slane %v2606, 1
      %v2880 = vsel %vm790, %v2878, %v2879
      %v2881 = vrot.slane %v2863, 1
      %v2882 = vrot.slane %v2607, 1
      %v2883 = vsel %vm790, %v2881, %v2882
      %v2884 = vrot.slane %v2864, 1
      %v2885 = vrot.slane %v2608, 1
      %v2886 = vsel %vm790, %v2884, %v2885
      %v2887 = vrot.slane %v2865, 1
      %v2888 = vrot.slane %v2609, 1
      %v2889 = vsel %vm790, %v2887, %v2888
      %v2890 = vrot.slane %v2866, 1
      %v2891 = vrot.slane %v2610, 1
      %v2892 = vsel %vm790, %v2890, %v2891
      %v2893 = vrot.slane %v2867, 1
      %v2894 = vrot.slane %v2611, 1
      %v2895 = vsel %vm790, %v2893, %v2894
      %v2896 = vrot.slane %v2868, 1
      %v2897 = vrot.slane %v2612, 1
      %v2898 = vsel %vm790, %v2896, %v2897
      %v2899 = vrot.slane %v2869, 1
      %v2900 = vrot.slane %v2613, 1
      %v2901 = vsel %vm790, %v2899, %v2900
      %v2902 = vrot.slane %v2870, 1
      %v2903 = vrot.slane %v2614, 1
      %v2904 = vsel %vm790, %v2902, %v2903
      %v2905 = vrot.slane %v2871, 1
      %v2906 = vrot.slane %v2615, 1
      %v2907 = vsel %vm790, %v2905, %v2906
      %v2908 = vrot.slane %v2872, 1
      %v2909 = vrot.slane %v2616, 1
      %v2910 = vsel %vm790, %v2908, %v2909
      %v2911 = vrot.slane %v2873, 1
      %v2912 = vrot.slane %v2617, 1
      %v2913 = vsel %vm790, %v2911, %v2912
      %v2914 = vrot.slane %v2874, 1
      %v2915 = vrot.slane %v2618, 1
      %v2916 = vsel %vm790, %v2914, %v2915
      %v2917 = vrot.slane %v2875, 1
      %v2918 = vrot.slane %v2619, 1
      %v2919 = vsel %vm790, %v2917, %v2918
      %v2920 = vrot.slane %v2876, 1
      %v2921 = vrot.slane %v2620, 1
      %v2922 = vsel %vm790, %v2920, %v2921
      %v2923 = vrot.slane %v2877, 1
      %v2924 = vrot.slane %v2621, 1
      %v2925 = vsel %vm790, %v2923, %v2924
      %s2942 = scalar_lea.vmem %s1, 384
      %v2943 = vld [vmem:[%s2942] sm:$0xf]
      %v2944 = vld [vmem:[%s2942 + $0x4] sm:$0xf]
      %v2945 = vld [vmem:[%s2942 + $0x8] sm:$0xf]
      %v2946 = vld [vmem:[%s2942 + $0xc] sm:$0xf]
      %v2947 = vld [vmem:[%s2942 + $0x10] sm:$0xf]
      %v2948 = vld [vmem:[%s2942 + $0x14] sm:$0xf]
      %v2949 = vld [vmem:[%s2942 + $0x18] sm:$0xf]
      %v2950 = vld [vmem:[%s2942 + $0x1c] sm:$0xf]
      %v2951 = vld [vmem:[%s2942 + $0x20] sm:$0xf]
      %v2952 = vld [vmem:[%s2942 + $0x24] sm:$0xf]
      %v2953 = vld [vmem:[%s2942 + $0x28] sm:$0xf]
      %v2954 = vld [vmem:[%s2942 + $0x2c] sm:$0xf]
      %v2955 = vld [vmem:[%s2942 + $0x30] sm:$0xf]
      %v2956 = vld [vmem:[%s2942 + $0x34] sm:$0xf]
      %v2957 = vld [vmem:[%s2942 + $0x38] sm:$0xf]
      %v2958 = vld [vmem:[%s2942 + $0x3c] sm:$0xf]
      %v2959 = vld [vmem:[%s2942 + $0x40] sm:$0xf]
      %v2960 = vld [vmem:[%s2942 + $0x44] sm:$0xf]
      %v2961 = vld [vmem:[%s2942 + $0x48] sm:$0xf]
      %v2962 = vld [vmem:[%s2942 + $0x4c] sm:$0xf]
      %v2963 = vld [vmem:[%s2942 + $0x50] sm:$0xf]
      %v2964 = vld [vmem:[%s2942 + $0x54] sm:$0xf]
      %v2965 = vld [vmem:[%s2942 + $0x58] sm:$0xf]
      %v2966 = vld [vmem:[%s2942 + $0x5c] sm:$0xf]
      %v2967 = vld [vmem:[%s2942 + $0x60] sm:$0xf]
      %v2968 = vld [vmem:[%s2942 + $0x64] sm:$0xf]
      %v2969 = vld [vmem:[%s2942 + $0x68] sm:$0xf]
      %v2970 = vld [vmem:[%s2942 + $0x6c] sm:$0xf]
      %v2971 = vld [vmem:[%s2942 + $0x70] sm:$0xf]
      %v2972 = vld [vmem:[%s2942 + $0x74] sm:$0xf]
      %v2973 = vld [vmem:[%s2942 + $0x78] sm:$0xf]
      %v2974 = vld [vmem:[%s2942 + $0x7c] sm:$0xf]
      %v2975 = vld [vmem:[%s2942 + $0x80] sm:$0xf]
      %v2976 = vld [vmem:[%s2942 + $0x84] sm:$0xf]
      %v2977 = vld [vmem:[%s2942 + $0x88] sm:$0xf]
      %v2978 = vld [vmem:[%s2942 + $0x8c] sm:$0xf]
      %v2979 = vld [vmem:[%s2942 + $0x90] sm:$0xf]
      %v2980 = vld [vmem:[%s2942 + $0x94] sm:$0xf]
      %v2981 = vld [vmem:[%s2942 + $0x98] sm:$0xf]
      %v2982 = vld [vmem:[%s2942 + $0x9c] sm:$0xf]
      %v2983 = vld [vmem:[%s2942 + $0xa0] sm:$0xf]
      %v2984 = vld [vmem:[%s2942 + $0xa4] sm:$0xf]
      %v2985 = vld [vmem:[%s2942 + $0xa8] sm:$0xf]
      %v2986 = vld [vmem:[%s2942 + $0xac] sm:$0xf]
      %v2987 = vld [vmem:[%s2942 + $0xb0] sm:$0xf]
      %v2988 = vld [vmem:[%s2942 + $0xb4] sm:$0xf]
      %v2989 = vld [vmem:[%s2942 + $0xb8] sm:$0xf]
      %v2990 = vld [vmem:[%s2942 + $0xbc] sm:$0xf]
      %v3039 = vunpack.c.l.b16 %v2943
      %v3040 = vunpack.c.l.b16 %v2944
      %v3041 = vunpack.c.l.b16 %v2945
      %v3042 = vunpack.c.l.b16 %v2946
      %v3043 = vunpack.c.l.b16 %v2947
      %v3044 = vunpack.c.l.b16 %v2948
      %v3045 = vunpack.c.l.b16 %v2949
      %v3046 = vunpack.c.l.b16 %v2950
      %v3047 = vunpack.c.l.b16 %v2951
      %v3048 = vunpack.c.l.b16 %v2952
      %v3049 = vunpack.c.l.b16 %v2953
      %v3050 = vunpack.c.l.b16 %v2954
      %v3051 = vunpack.c.l.b16 %v2955
      %v3052 = vunpack.c.l.b16 %v2956
      %v3053 = vunpack.c.l.b16 %v2957
      %v3054 = vunpack.c.l.b16 %v2958
      %v3055 = vunpack.c.l.b16 %v2959
      %v3056 = vunpack.c.l.b16 %v2960
      %v3057 = vunpack.c.l.b16 %v2961
      %v3058 = vunpack.c.l.b16 %v2962
      %v3059 = vunpack.c.l.b16 %v2963
      %v3060 = vunpack.c.l.b16 %v2964
      %v3061 = vunpack.c.l.b16 %v2965
      %v3062 = vunpack.c.l.b16 %v2966
      %v3063 = vunpack.c.l.b16 %v2967
      %v3064 = vunpack.c.l.b16 %v2968
      %v3065 = vunpack.c.l.b16 %v2969
      %v3066 = vunpack.c.l.b16 %v2970
      %v3067 = vunpack.c.l.b16 %v2971
      %v3068 = vunpack.c.l.b16 %v2972
      %v3069 = vunpack.c.l.b16 %v2973
      %v3070 = vunpack.c.l.b16 %v2974
      %v3071 = vunpack.c.l.b16 %v2975
      %v3072 = vunpack.c.l.b16 %v2976
      %v3073 = vunpack.c.l.b16 %v2977
      %v3074 = vunpack.c.l.b16 %v2978
      %v3075 = vunpack.c.l.b16 %v2979
      %v3076 = vunpack.c.l.b16 %v2980
      %v3077 = vunpack.c.l.b16 %v2981
      %v3078 = vunpack.c.l.b16 %v2982
      %v3079 = vunpack.c.l.b16 %v2983
      %v3080 = vunpack.c.l.b16 %v2984
      %v3081 = vunpack.c.l.b16 %v2985
      %v3082 = vunpack.c.l.b16 %v2986
      %v3083 = vunpack.c.l.b16 %v2987
      %v3084 = vunpack.c.l.b16 %v2988
      %v3085 = vunpack.c.l.b16 %v2989
      %v3086 = vunpack.c.l.b16 %v2990
      %v3087 = vpack.c.b16 %v3040, %v3039
      %v3088 = vpack.c.b16 %v3042, %v3041
      %v3089 = vpack.c.b16 %v3044, %v3043
      %v3090 = vpack.c.b16 %v3046, %v3045
      %v3091 = vpack.c.b16 %v3048, %v3047
      %v3092 = vpack.c.b16 %v3050, %v3049
      %v3093 = vpack.c.b16 %v3052, %v3051
      %v3094 = vpack.c.b16 %v3054, %v3053
      %v3095 = vpack.c.b16 %v3056, %v3055
      %v3096 = vpack.c.b16 %v3058, %v3057
      %v3097 = vpack.c.b16 %v3060, %v3059
      %v3098 = vpack.c.b16 %v3062, %v3061
      %v3099 = vpack.c.b16 %v3064, %v3063
      %v3100 = vpack.c.b16 %v3066, %v3065
      %v3101 = vpack.c.b16 %v3068, %v3067
      %v3102 = vpack.c.b16 %v3070, %v3069
      %v3103 = vpack.c.b16 %v3072, %v3071
      %v3104 = vpack.c.b16 %v3074, %v3073
      %v3105 = vpack.c.b16 %v3076, %v3075
      %v3106 = vpack.c.b16 %v3078, %v3077
      %v3107 = vpack.c.b16 %v3080, %v3079
      %v3108 = vpack.c.b16 %v3082, %v3081
      %v3109 = vpack.c.b16 %v3084, %v3083
      %v3110 = vpack.c.b16 %v3086, %v3085
      %3135 = vmatprep.subr.bf16.mxu0 0
      %3136 = vmatpush1.bf16.msra.mxu0 %v3087
      %3137 = vmatprep.subr.bf16.mxu0 0
      %3138 = vmatpush1.bf16.msra.mxu0 %v3088
      %3139 = vmatprep.subr.bf16.mxu0 0
      %3140 = vmatpush1.bf16.msra.mxu0 %v3089
      %3141 = vmatprep.subr.bf16.mxu0 0
      %3142 = vmatpush1.bf16.msra.mxu0 %v3090
      %3143 = vmatprep.subr.bf16.mxu0 0
      %3144 = vmatpush1.bf16.msra.mxu0 %v3091
      %3145 = vmatprep.subr.bf16.mxu0 0
      %3146 = vmatpush1.bf16.msra.mxu0 %v3092
      %3147 = vmatprep.subr.bf16.mxu0 0
      %3148 = vmatpush1.bf16.msra.mxu0 %v3093
      %3149 = vmatprep.subr.bf16.mxu0 0
      %3150 = vmatpush1.bf16.msra.mxu0 %v3094
      %3151 = vmatprep.subr.bf16.mxu0 0
      %3152 = vmatpush1.bf16.msra.mxu0 %v3095
      %3153 = vmatprep.subr.bf16.mxu0 0
      %3154 = vmatpush1.bf16.msra.mxu0 %v3096
      %3155 = vmatprep.subr.bf16.mxu0 0
      %3156 = vmatpush1.bf16.msra.mxu0 %v3097
      %3157 = vmatprep.subr.bf16.mxu0 0
      %3158 = vmatpush1.bf16.msra.mxu0 %v3098
      %3159 = vmatprep.subr.bf16.mxu0 0
      %3160 = vmatpush1.bf16.msra.mxu0 %v3099
      %3161 = vmatprep.subr.bf16.mxu0 0
      %3162 = vmatpush1.bf16.msra.mxu0 %v3100
      %3163 = vmatprep.subr.bf16.mxu0 0
      %3164 = vmatpush1.bf16.msra.mxu0 %v3101
      %3165 = vmatprep.subr.bf16.mxu0 0
      %3166 = vmatpush1.bf16.msra.mxu0 %v3102
      %3167 = vmatprep.mubr.bf16.mxu0 %v2633
      %3168 = vmatmul.mubr.bf16.gmra.mrb[0].mxu0 %v2542
      %v3169 = vpop.f32.mrb[0].mxu0
      %v3170 = vadd.f32 0.0, %v3169
      %v3171 = vpop.f32.mrb[0].mxu0
      %v3172 = vpop.f32.mrb[0].mxu0
      %v3173 = vadd.f32 0.0, %v3172
      %v3174 = vpop.f32.mrb[0].mxu0
      %3175 = vmatprep.mubr.bf16.mxu0 %v2645
      %3176 = vmatmul.mubr.bf16.gmra.mrb[0].mxu0 %v2543
      %v3177 = vpop.f32.mrb[0].mxu0
      %v3178 = vadd.f32 0.0, %v3177
      %v3179 = vpop.f32.mrb[0].mxu0
      %v3180 = vpop.f32.mrb[0].mxu0
      %v3181 = vadd.f32 0.0, %v3180
      %v3182 = vpop.f32.mrb[0].mxu0
      %3183 = vmatprep.mubr.bf16.mxu0 %v2657
      %3184 = vmatmul.mubr.bf16.gmra.mrb[0].mxu0 %v2544
      %v3185 = vpop.f32.mrb[0].mxu0
      %v3186 = vadd.f32 0.0, %v3185
      %v3187 = vpop.f32.mrb[0].mxu0
      %v3188 = vpop.f32.mrb[0].mxu0
      %v3189 = vadd.f32 0.0, %v3188
      %v3190 = vpop.f32.mrb[0].mxu0
      %3191 = vmatprep.mubr.bf16.mxu0 %v2669
      %3192 = vmatmul.mubr.bf16.gmra.mrb[0].mxu0 %v2545
      %v3193 = vpop.f32.mrb[0].mxu0
      %v3194 = vadd.f32 0.0, %v3193
      %v3195 = vpop.f32.mrb[0].mxu0
      %v3196 = vpop.f32.mrb[0].mxu0
      %v3197 = vadd.f32 0.0, %v3196
      %v3198 = vpop.f32.mrb[0].mxu0
      %3199 = vmatprep.mubr.bf16.mxu0 %v2681
      %3200 = vmatmul.mubr.bf16.gmra.mrb[0].mxu0 %v2546
      %v3201 = vpop.f32.mrb[0].mxu0
      %v3202 = vadd.f32 0.0, %v3201
      %v3203 = vpop.f32.mrb[0].mxu0
      %v3204 = vpop.f32.mrb[0].mxu0
      %v3205 = vadd.f32 0.0, %v3204
      %v3206 = vpop.f32.mrb[0].mxu0
      %3207 = vmatprep.mubr.bf16.mxu0 %v2693
      %3208 = vmatmul.mubr.bf16.gmra.mrb[0].mxu0 %v2547
      %v3209 = vpop.f32.mrb[0].mxu0
      %v3210 = vadd.f32 0.0, %v3209
      %v3211 = vpop.f32.mrb[0].mxu0
      %v3212 = vpop.f32.mrb[0].mxu0
      %v3213 = vadd.f32 0.0, %v3212
      %v3214 = vpop.f32.mrb[0].mxu0
      %3215 = vmatprep.mubr.bf16.mxu0 %v2705
      %3216 = vmatmul.mubr.bf16.gmra.mrb[0].mxu0 %v2548
      %v3217 = vpop.f32.mrb[0].mxu0
      %v3218 = vadd.f32 0.0, %v3217
      %v3219 = vpop.f32.mrb[0].mxu0
      %v3220 = vpop.f32.mrb[0].mxu0
      %v3221 = vadd.f32 0.0, %v3220
      %v3222 = vpop.f32.mrb[0].mxu0
      %3223 = vmatprep.mubr.bf16.mxu0 %v2717
      %3224 = vmatmul.mubr.bf16.gmra.mrb[0].mxu0 %v2549
      %v3225 = vpop.f32.mrb[0].mxu0
      %v3226 = vadd.f32 0.0, %v3225
      %v3227 = vpop.f32.mrb[0].mxu0
      %v3228 = vpop.f32.mrb[0].mxu0
      %v3229 = vadd.f32 0.0, %v3228
      %v3230 = vpop.f32.mrb[0].mxu0
      %3231 = vmatprep.mubr.bf16.mxu0 %v2729
      %3232 = vmatmul.mubr.bf16.gmra.mrb[0].mxu0 %v2550
      %v3233 = vpop.f32.mrb[0].mxu0
      %v3234 = vadd.f32 0.0, %v3233
      %v3235 = vpop.f32.mrb[0].mxu0
      %v3236 = vpop.f32.mrb[0].mxu0
      %v3237 = vadd.f32 0.0, %v3236
      %v3238 = vpop.f32.mrb[0].mxu0
      %3239 = vmatprep.mubr.bf16.mxu0 %v2741
      %3240 = vmatmul.mubr.bf16.gmra.mrb[0].mxu0 %v2551
      %v3241 = vpop.f32.mrb[0].mxu0
      %v3242 = vadd.f32 0.0, %v3241
      %v3243 = vpop.f32.mrb[0].mxu0
      %v3244 = vpop.f32.mrb[0].mxu0
      %v3245 = vadd.f32 0.0, %v3244
      %v3246 = vpop.f32.mrb[0].mxu0
      %3247 = vmatprep.mubr.bf16.mxu0 %v2753
      %3248 = vmatmul.mubr.bf16.gmra.mrb[0].mxu0 %v2552
      %v3249 = vpop.f32.mrb[0].mxu0
      %v3250 = vadd.f32 0.0, %v3249
      %v3251 = vpop.f32.mrb[0].mxu0
      %v3252 = vpop.f32.mrb[0].mxu0
      %v3253 = vadd.f32 0.0, %v3252
      %v3254 = vpop.f32.mrb[0].mxu0
      %3255 = vmatprep.mubr.bf16.mxu0 %v2765
      %3256 = vmatmul.mubr.bf16.gmra.mrb[0].mxu0 %v2553
      %v3257 = vpop.f32.mrb[0].mxu0
      %v3258 = vadd.f32 0.0, %v3257
      %v3259 = vpop.f32.mrb[0].mxu0
      %v3260 = vpop.f32.mrb[0].mxu0
      %v3261 = vadd.f32 0.0, %v3260
      %v3262 = vpop.f32.mrb[0].mxu0
      %3263 = vmatprep.mubr.bf16.mxu0 %v2777
      %3264 = vmatmul.mubr.bf16.gmra.mrb[0].mxu0 %v2554
      %v3265 = vpop.f32.mrb[0].mxu0
      %v3266 = vadd.f32 0.0, %v3265
      %v3267 = vpop.f32.mrb[0].mxu0
      %v3268 = vpop.f32.mrb[0].mxu0
      %v3269 = vadd.f32 0.0, %v3268
      %v3270 = vpop.f32.mrb[0].mxu0
      %3271 = vmatprep.mubr.bf16.mxu0 %v2789
      %3272 = vmatmul.mubr.bf16.gmra.mrb[0].mxu0 %v2555
      %v3273 = vpop.f32.mrb[0].mxu0
      %v3274 = vadd.f32 0.0, %v3273
      %v3275 = vpop.f32.mrb[0].mxu0
      %v3276 = vpop.f32.mrb[0].mxu0
      %v3277 = vadd.f32 0.0, %v3276
      %v3278 = vpop.f32.mrb[0].mxu0
      %3279 = vmatprep.mubr.bf16.mxu0 %v2801
      %3280 = vmatmul.mubr.bf16.gmra.mrb[0].mxu0 %v2556
      %v3281 = vpop.f32.mrb[0].mxu0
      %v3282 = vadd.f32 0.0, %v3281
      %v3283 = vpop.f32.mrb[0].mxu0
      %v3284 = vpop.f32.mrb[0].mxu0
      %v3285 = vadd.f32 0.0, %v3284
      %v3286 = vpop.f32.mrb[0].mxu0
      %3287 = vmatprep.mubr.bf16.mxu0 %v2813
      %3288 = vmatmul.mubr.bf16.gmra.mrb[0].mxu0 %v2557
      %v3289 = vpop.f32.mrb[0].mxu0
      %v3290 = vadd.f32 0.0, %v3289
      %v3291 = vpop.f32.mrb[0].mxu0
      %v3292 = vpop.f32.mrb[0].mxu0
      %v3293 = vadd.f32 0.0, %v3292
      %v3294 = vpop.f32.mrb[0].mxu0
      %3295 = vdwg.mxu0
      %3296 = vmatprep.subr.bf16.mxu0 0
      %3297 = vmatpush1.bf16.msra.mxu0 %v3103
      %3298 = vmatprep.subr.bf16.mxu0 0
      %3299 = vmatpush1.bf16.msra.mxu0 %v3104
      %3300 = vmatprep.subr.bf16.mxu0 0
      %3301 = vmatpush1.bf16.msra.mxu0 %v3105
      %3302 = vmatprep.subr.bf16.mxu0 0
      %3303 = vmatpush1.bf16.msra.mxu0 %v3106
      %3304 = vmatprep.subr.bf16.mxu0 0
      %3305 = vmatpush1.bf16.msra.mxu0 %v3107
      %3306 = vmatprep.subr.bf16.mxu0 0
      %3307 = vmatpush1.bf16.msra.mxu0 %v3108
      %3308 = vmatprep.subr.bf16.mxu0 0
      %3309 = vmatpush1.bf16.msra.mxu0 %v3109
      %3310 = vmatprep.subr.bf16.mxu0 0
      %3311 = vmatpush1.bf16.msra.mxu0 %v3110
      %3312 = vmatprep.subr.bf16.mxu0 0
      %3313 = vmatpush1.bf16.msra.mxu0 0
      %3314 = vmatprep.subr.bf16.mxu0 0
      %3315 = vmatpush1.bf16.msra.mxu0 0
      %3316 = vmatprep.subr.bf16.mxu0 0
      %3317 = vmatpush1.bf16.msra.mxu0 0
      %3318 = vmatprep.subr.bf16.mxu0 0
      %3319 = vmatpush1.bf16.msra.mxu0 0
      %3320 = vmatprep.subr.bf16.mxu0 0
      %3321 = vmatpush1.bf16.msra.mxu0 0
      %3322 = vmatprep.subr.bf16.mxu0 0
      %3323 = vmatpush1.bf16.msra.mxu0 0
      %3324 = vmatprep.subr.bf16.mxu0 0
      %3325 = vmatpush1.bf16.msra.mxu0 0
      %3326 = vmatprep.subr.bf16.mxu0 0
      %3327 = vmatpush1.bf16.msra.mxu0 0
      %3328 = vmatprep.mubr.bf16.mxu0 0
      %3329 = vmatmul.mubr.bf16.gmra.mrb[0].mxu0 %v2880
      %v3330 = vpop.f32.mrb[0].mxu0
      %v3331 = vadd.f32 %v3170, %v3330
      %v3332 = vpop.f32.mrb[0].mxu0
      %v3333 = vpop.f32.mrb[0].mxu0
      %v3334 = vadd.f32 %v3173, %v3333
      %v3335 = vpop.f32.mrb[0].mxu0
      %3336 = vmatprep.mubr.bf16.mxu0 0
      %3337 = vmatmul.mubr.bf16.gmra.mrb[0].mxu0 %v2883
      %v3338 = vpop.f32.mrb[0].mxu0
      %v3339 = vadd.f32 %v3178, %v3338
      %v3340 = vpop.f32.mrb[0].mxu0
      %v3341 = vpop.f32.mrb[0].mxu0
      %v3342 = vadd.f32 %v3181, %v3341
      %v3343 = vpop.f32.mrb[0].mxu0
      %3344 = vmatprep.mubr.bf16.mxu0 0
      %3345 = vmatmul.mubr.bf16.gmra.mrb[0].mxu0 %v2886
      %v3346 = vpop.f32.mrb[0].mxu0
      %v3347 = vadd.f32 %v3186, %v3346
      %v3348 = vpop.f32.mrb[0].mxu0
      %v3349 = vpop.f32.mrb[0].mxu0
      %v3350 = vadd.f32 %v3189, %v3349
      %v3351 = vpop.f32.mrb[0].mxu0
      %3352 = vmatprep.mubr.bf16.mxu0 0
      %3353 = vmatmul.mubr.bf16.gmra.mrb[0].mxu0 %v2889
      %v3354 = vpop.f32.mrb[0].mxu0
      %v3355 = vadd.f32 %v3194, %v3354
      %v3356 = vpop.f32.mrb[0].mxu0
      %v3357 = vpop.f32.mrb[0].mxu0
      %v3358 = vadd.f32 %v3197, %v3357
      %v3359 = vpop.f32.mrb[0].mxu0
      %3360 = vmatprep.mubr.bf16.mxu0 0
      %3361 = vmatmul.mubr.bf16.gmra.mrb[0].mxu0 %v2892
      %v3362 = vpop.f32.mrb[0].mxu0
      %v3363 = vadd.f32 %v3202, %v3362
      %v3364 = vpop.f32.mrb[0].mxu0
      %v3365 = vpop.f32.mrb[0].mxu0
      %v3366 = vadd.f32 %v3205, %v3365
      %v3367 = vpop.f32.mrb[0].mxu0
      %3368 = vmatprep.mubr.bf16.mxu0 0
      %3369 = vmatmul.mubr.bf16.gmra.mrb[0].mxu0 %v2895
      %v3370 = vpop.f32.mrb[0].mxu0
      %v3371 = vadd.f32 %v3210, %v3370
      %v3372 = vpop.f32.mrb[0].mxu0
      %v3373 = vpop.f32.mrb[0].mxu0
      %v3374 = vadd.f32 %v3213, %v3373
      %v3375 = vpop.f32.mrb[0].mxu0
      %3376 = vmatprep.mubr.bf16.mxu0 0
      %3377 = vmatmul.mubr.bf16.gmra.mrb[0].mxu0 %v2898
      %v3378 = vpop.f32.mrb[0].mxu0
      %v3379 = vadd.f32 %v3218, %v3378
      %v3380 = vpop.f32.mrb[0].mxu0
      %v3381 = vpop.f32.mrb[0].mxu0
      %v3382 = vadd.f32 %v3221, %v3381
      %v3383 = vpop.f32.mrb[0].mxu0
      %3384 = vmatprep.mubr.bf16.mxu0 0
      %3385 = vmatmul.mubr.bf16.gmra.mrb[0].mxu0 %v2901
      %v3386 = vpop.f32.mrb[0].mxu0
      %v3387 = vadd.f32 %v3226, %v3386
      %v3388 = vpop.f32.mrb[0].mxu0
      %v3389 = vpop.f32.mrb[0].mxu0
      %v3390 = vadd.f32 %v3229, %v3389
      %v3391 = vpop.f32.mrb[0].mxu0
      %3392 = vmatprep.mubr.bf16.mxu0 0
      %3393 = vmatmul.mubr.bf16.gmra.mrb[0].mxu0 %v2904
      %v3394 = vpop.f32.mrb[0].mxu0
      %v3395 = vadd.f32 %v3234, %v3394
      %v3396 = vpop.f32.mrb[0].mxu0
      %v3397 = vpop.f32.mrb[0].mxu0
      %v3398 = vadd.f32 %v3237, %v3397
      %v3399 = vpop.f32.mrb[0].mxu0
      %3400 = vmatprep.mubr.bf16.mxu0 0
      %3401 = vmatmul.mubr.bf16.gmra.mrb[0].mxu0 %v2907
      %v3402 = vpop.f32.mrb[0].mxu0
      %v3403 = vadd.f32 %v3242, %v3402
      %v3404 = vpop.f32.mrb[0].mxu0
      %v3405 = vpop.f32.mrb[0].mxu0
      %v3406 = vadd.f32 %v3245, %v3405
      %v3407 = vpop.f32.mrb[0].mxu0
      %3408 = vmatprep.mubr.bf16.mxu0 0
      %3409 = vmatmul.mubr.bf16.gmra.mrb[0].mxu0 %v2910
      %v3410 = vpop.f32.mrb[0].mxu0
      %v3411 = vadd.f32 %v3250, %v3410
      %v3412 = vpop.f32.mrb[0].mxu0
      %v3413 = vpop.f32.mrb[0].mxu0
      %v3414 = vadd.f32 %v3253, %v3413
      %v3415 = vpop.f32.mrb[0].mxu0
      %3416 = vmatprep.mubr.bf16.mxu0 0
      %3417 = vmatmul.mubr.bf16.gmra.mrb[0].mxu0 %v2913
      %v3418 = vpop.f32.mrb[0].mxu0
      %v3419 = vadd.f32 %v3258, %v3418
      %v3420 = vpop.f32.mrb[0].mxu0
      %v3421 = vpop.f32.mrb[0].mxu0
      %v3422 = vadd.f32 %v3261, %v3421
      %v3423 = vpop.f32.mrb[0].mxu0
      %3424 = vmatprep.mubr.bf16.mxu0 0
      %3425 = vmatmul.mubr.bf16.gmra.mrb[0].mxu0 %v2916
      %v3426 = vpop.f32.mrb[0].mxu0
      %v3427 = vadd.f32 %v3266, %v3426
      %v3428 = vpop.f32.mrb[0].mxu0
      %v3429 = vpop.f32.mrb[0].mxu0
      %v3430 = vadd.f32 %v3269, %v3429
      %v3431 = vpop.f32.mrb[0].mxu0
      %3432 = vmatprep.mubr.bf16.mxu0 0
      %3433 = vmatmul.mubr.bf16.gmra.mrb[0].mxu0 %v2919
      %v3434 = vpop.f32.mrb[0].mxu0
      %v3435 = vadd.f32 %v3274, %v3434
      %v3436 = vpop.f32.mrb[0].mxu0
      %v3437 = vpop.f32.mrb[0].mxu0
      %v3438 = vadd.f32 %v3277, %v3437
      %v3439 = vpop.f32.mrb[0].mxu0
      %3440 = vmatprep.mubr.bf16.mxu0 0
      %3441 = vmatmul.mubr.bf16.gmra.mrb[0].mxu0 %v2922
      %v3442 = vpop.f32.mrb[0].mxu0
      %v3443 = vadd.f32 %v3282, %v3442
      %v3444 = vpop.f32.mrb[0].mxu0
      %v3445 = vpop.f32.mrb[0].mxu0
      %v3446 = vadd.f32 %v3285, %v3445
      %v3447 = vpop.f32.mrb[0].mxu0
      %3448 = vmatprep.mubr.bf16.mxu0 0
      %3449 = vmatmul.mubr.bf16.gmra.mrb[0].mxu0 %v2925
      %v3450 = vpop.f32.mrb[0].mxu0
      %v3451 = vadd.f32 %v3290, %v3450
      %v3452 = vpop.f32.mrb[0].mxu0
      %v3453 = vpop.f32.mrb[0].mxu0
      %v3454 = vadd.f32 %v3293, %v3453
      %v3455 = vpop.f32.mrb[0].mxu0
      %3456 = vdwg.mxu0
      %v3457 = vadd.f32 %v2287, %v3331
      %v3458 = vadd.f32 %v2290, %v3334
      %v3459 = vadd.f32 %v2295, %v3339
      %v3460 = vadd.f32 %v2298, %v3342
      %v3461 = vadd.f32 %v2303, %v3347
      %v3462 = vadd.f32 %v2306, %v3350
      %v3463 = vadd.f32 %v2311, %v3355
      %v3464 = vadd.f32 %v2314, %v3358
      %v3465 = vadd.f32 %v2319, %v3363
      %v3466 = vadd.f32 %v2322, %v3366
      %v3467 = vadd.f32 %v2327, %v3371
      %v3468 = vadd.f32 %v2330, %v3374
      %v3469 = vadd.f32 %v2335, %v3379
      %v3470 = vadd.f32 %v2338, %v3382
      %v3471 = vadd.f32 %v2343, %v3387
      %v3472 = vadd.f32 %v2346, %v3390
      %v3473 = vadd.f32 %v2351, %v3395
      %v3474 = vadd.f32 %v2354, %v3398
      %v3475 = vadd.f32 %v2359, %v3403
      %v3476 = vadd.f32 %v2362, %v3406
      %v3477 = vadd.f32 %v2367, %v3411
      %v3478 = vadd.f32 %v2370, %v3414
      %v3479 = vadd.f32 %v2375, %v3419
      %v3480 = vadd.f32 %v2378, %v3422
      %v3481 = vadd.f32 %v2383, %v3427
      %v3482 = vadd.f32 %v2386, %v3430
      %v3483 = vadd.f32 %v2391, %v3435
      %v3484 = vadd.f32 %v2394, %v3438
      %v3485 = vadd.f32 %v2399, %v3443
      %v3486 = vadd.f32 %v2402, %v3446
      %v3487 = vadd.f32 %v2407, %v3451
      %v3488 = vadd.f32 %v2410, %v3454
      %v3489 = vmax.f32 %v3457, 0.0
      %v3490 = vmax.f32 %v3458, 0.0
      %v3491 = vmax.f32 %v3459, 0.0
      %v3492 = vmax.f32 %v3460, 0.0
      %v3493 = vmax.f32 %v3461, 0.0
      %v3494 = vmax.f32 %v3462, 0.0
      %v3495 = vmax.f32 %v3463, 0.0
      %v3496 = vmax.f32 %v3464, 0.0
      %v3497 = vmax.f32 %v3465, 0.0
      %v3498 = vmax.f32 %v3466, 0.0
      %v3499 = vmax.f32 %v3467, 0.0
      %v3500 = vmax.f32 %v3468, 0.0
      %v3501 = vmax.f32 %v3469, 0.0
      %v3502 = vmax.f32 %v3470, 0.0
      %v3503 = vmax.f32 %v3471, 0.0
      %v3504 = vmax.f32 %v3472, 0.0
      %v3505 = vmax.f32 %v3473, 0.0
      %v3506 = vmax.f32 %v3474, 0.0
      %v3507 = vmax.f32 %v3475, 0.0
      %v3508 = vmax.f32 %v3476, 0.0
      %v3509 = vmax.f32 %v3477, 0.0
      %v3510 = vmax.f32 %v3478, 0.0
      %v3511 = vmax.f32 %v3479, 0.0
      %v3512 = vmax.f32 %v3480, 0.0
      %v3513 = vmax.f32 %v3481, 0.0
      %v3514 = vmax.f32 %v3482, 0.0
      %v3515 = vmax.f32 %v3483, 0.0
      %v3516 = vmax.f32 %v3484, 0.0
      %v3517 = vmax.f32 %v3485, 0.0
      %v3518 = vmax.f32 %v3486, 0.0
      %v3519 = vmax.f32 %v3487, 0.0
      %v3520 = vmax.f32 %v3488, 0.0
      %v3522 = vlaneseq
      %v3523 = vshrl.u32 %v3522, 7
      %v3524 = vsub.s32 0, %v3523
      %v3525 = vrot.slane %v321, %v3524
      %v3527 = vmul.f32 %v3489, %v3525
      %v3528 = vmul.f32 %v3490, %v3525
      %v3529 = vmul.f32 %v3491, %v3525
      %v3530 = vmul.f32 %v3492, %v3525
      %v3531 = vmul.f32 %v3493, %v3525
      %v3532 = vmul.f32 %v3494, %v3525
      %v3533 = vmul.f32 %v3495, %v3525
      %v3534 = vmul.f32 %v3496, %v3525
      %v3535 = vmul.f32 %v3497, %v3525
      %v3536 = vmul.f32 %v3498, %v3525
      %v3537 = vmul.f32 %v3499, %v3525
      %v3538 = vmul.f32 %v3500, %v3525
      %v3539 = vmul.f32 %v3501, %v3525
      %v3540 = vmul.f32 %v3502, %v3525
      %v3541 = vmul.f32 %v3503, %v3525
      %v3542 = vmul.f32 %v3504, %v3525
      %v3543 = vmul.f32 %v3505, %v3525
      %v3544 = vmul.f32 %v3506, %v3525
      %v3545 = vmul.f32 %v3507, %v3525
      %v3546 = vmul.f32 %v3508, %v3525
      %v3547 = vmul.f32 %v3509, %v3525
      %v3548 = vmul.f32 %v3510, %v3525
      %v3549 = vmul.f32 %v3511, %v3525
      %v3550 = vmul.f32 %v3512, %v3525
      %v3551 = vmul.f32 %v3513, %v3525
      %v3552 = vmul.f32 %v3514, %v3525
      %v3553 = vmul.f32 %v3515, %v3525
      %v3554 = vmul.f32 %v3516, %v3525
      %v3555 = vmul.f32 %v3517, %v3525
      %v3556 = vmul.f32 %v3518, %v3525
      %v3557 = vmul.f32 %v3519, %v3525
      %v3558 = vmul.f32 %v3520, %v3525
      %v3560 = vlaneseq
      %v3561 = vshrl.u32 %v3560, 7
      %v3562 = vsub.s32 0, %v3561
      %v3563 = vrot.slane %v322, %v3562
      %v3565 = vadd.f32 %v3527, %v3563
      %v3566 = vadd.f32 %v3528, %v3563
      %v3567 = vadd.f32 %v3529, %v3563
      %v3568 = vadd.f32 %v3530, %v3563
      %v3569 = vadd.f32 %v3531, %v3563
      %v3570 = vadd.f32 %v3532, %v3563
      %v3571 = vadd.f32 %v3533, %v3563
      %v3572 = vadd.f32 %v3534, %v3563
      %v3573 = vadd.f32 %v3535, %v3563
      %v3574 = vadd.f32 %v3536, %v3563
      %v3575 = vadd.f32 %v3537, %v3563
      %v3576 = vadd.f32 %v3538, %v3563
      %v3577 = vadd.f32 %v3539, %v3563
      %v3578 = vadd.f32 %v3540, %v3563
      %v3579 = vadd.f32 %v3541, %v3563
      %v3580 = vadd.f32 %v3542, %v3563
      %v3581 = vadd.f32 %v3543, %v3563
      %v3582 = vadd.f32 %v3544, %v3563
      %v3583 = vadd.f32 %v3545, %v3563
      %v3584 = vadd.f32 %v3546, %v3563
      %v3585 = vadd.f32 %v3547, %v3563
      %v3586 = vadd.f32 %v3548, %v3563
      %v3587 = vadd.f32 %v3549, %v3563
      %v3588 = vadd.f32 %v3550, %v3563
      %v3589 = vadd.f32 %v3551, %v3563
      %v3590 = vadd.f32 %v3552, %v3563
      %v3591 = vadd.f32 %v3553, %v3563
      %v3592 = vadd.f32 %v3554, %v3563
      %v3593 = vadd.f32 %v3555, %v3563
      %v3594 = vadd.f32 %v3556, %v3563
      %v3595 = vadd.f32 %v3557, %v3563
      %v3596 = vadd.f32 %v3558, %v3563
      %v3597 = vpack.c.bf16 %v3566, %v3565
      %v3598 = vpack.c.bf16 %v3568, %v3567
      %v3599 = vpack.c.bf16 %v3570, %v3569
      %v3600 = vpack.c.bf16 %v3572, %v3571
      %v3601 = vpack.c.bf16 %v3574, %v3573
      %v3602 = vpack.c.bf16 %v3576, %v3575
      %v3603 = vpack.c.bf16 %v3578, %v3577
      %v3604 = vpack.c.bf16 %v3580, %v3579
      %v3605 = vpack.c.bf16 %v3582, %v3581
      %v3606 = vpack.c.bf16 %v3584, %v3583
      %v3607 = vpack.c.bf16 %v3586, %v3585
      %v3608 = vpack.c.bf16 %v3588, %v3587
      %v3609 = vpack.c.bf16 %v3590, %v3589
      %v3610 = vpack.c.bf16 %v3592, %v3591
      %v3611 = vpack.c.bf16 %v3594, %v3593
      %v3612 = vpack.c.bf16 %v3596, %v3595
      %v3629 = vrot.slane %v3597, 4
      %v3630 = vrot.slane %v3598, 4
      %v3631 = vrot.slane %v3599, 4
      %v3632 = vrot.slane %v3600, 4
      %v3633 = vrot.slane %v3601, 4
      %v3634 = vrot.slane %v3602, 4
      %v3635 = vrot.slane %v3603, 4
      %v3636 = vrot.slane %v3604, 4
      %v3637 = vrot.slane %v3605, 4
      %v3638 = vrot.slane %v3606, 4
      %v3639 = vrot.slane %v3607, 4
      %v3640 = vrot.slane %v3608, 4
      %v3641 = vrot.slane %v3609, 4
      %v3642 = vrot.slane %v3610, 4
      %v3643 = vrot.slane %v3611, 4
      %v3644 = vrot.slane %v3612, 4
      %s3661 = scalar_lea.vmem [#allocation2], 16
      %3662 = vst [vmem:[%s3661] sm:$0xf0] %v3629
      %3663 = vst [vmem:[%s3661 + $0x8] sm:$0xf] %v3629
      %3664 = vst [vmem:[%s3661 + $0x10] sm:$0xf0] %v3630
      %3665 = vst [vmem:[%s3661 + $0x18] sm:$0xf] %v3630
      %3666 = vst [vmem:[%s3661 + $0x20] sm:$0xf0] %v3631
      %3667 = vst [vmem:[%s3661 + $0x28] sm:$0xf] %v3631
      %3668 = vst [vmem:[%s3661 + $0x30] sm:$0xf0] %v3632
      %3669 = vst [vmem:[%s3661 + $0x38] sm:$0xf] %v3632
      %3670 = vst [vmem:[%s3661 + $0x40] sm:$0xf0] %v3633
      %3671 = vst [vmem:[%s3661 + $0x48] sm:$0xf] %v3633
      %3672 = vst [vmem:[%s3661 + $0x50] sm:$0xf0] %v3634
      %3673 = vst [vmem:[%s3661 + $0x58] sm:$0xf] %v3634
      %3674 = vst [vmem:[%s3661 + $0x60] sm:$0xf0] %v3635
      %3675 = vst [vmem:[%s3661 + $0x68] sm:$0xf] %v3635
      %3676 = vst [vmem:[%s3661 + $0x70] sm:$0xf0] %v3636
      %3677 = vst [vmem:[%s3661 + $0x78] sm:$0xf] %v3636
      %3678 = vst [vmem:[%s3661 + $0x80] sm:$0xf0] %v3637
      %3679 = vst [vmem:[%s3661 + $0x88] sm:$0xf] %v3637
      %3680 = vst [vmem:[%s3661 + $0x90] sm:$0xf0] %v3638
      %3681 = vst [vmem:[%s3661 + $0x98] sm:$0xf] %v3638
      %3682 = vst [vmem:[%s3661 + $0xa0] sm:$0xf0] %v3639
      %3683 = vst [vmem:[%s3661 + $0xa8] sm:$0xf] %v3639
      %3684 = vst [vmem:[%s3661 + $0xb0] sm:$0xf0] %v3640
      %3685 = vst [vmem:[%s3661 + $0xb8] sm:$0xf] %v3640
      %3686 = vst [vmem:[%s3661 + $0xc0] sm:$0xf0] %v3641
      %3687 = vst [vmem:[%s3661 + $0xc8] sm:$0xf] %v3641
      %3688 = vst [vmem:[%s3661 + $0xd0] sm:$0xf0] %v3642
      %3689 = vst [vmem:[%s3661 + $0xd8] sm:$0xf] %v3642
      %3690 = vst [vmem:[%s3661 + $0xe0] sm:$0xf0] %v3643
      %3691 = vst [vmem:[%s3661 + $0xe8] sm:$0xf] %v3643
      %3692 = vst [vmem:[%s3661 + $0xf0] sm:$0xf0] %v3644
      %3693 = vst [vmem:[%s3661 + $0xf8] sm:$0xf] %v3644
      %v3694 = vld [vmem:[#allocation2] sm:$0xf8]
      %v3695 = vld [vmem:[#allocation2 + $0x8] sm:$0xf]
      %v3696 = vld [vmem:[#allocation2 + $0x10] sm:$0xf8]
      %v3697 = vld [vmem:[#allocation2 + $0x18] sm:$0xf]
      %v3698 = vld [vmem:[#allocation2 + $0x20] sm:$0xf8]
      %v3699 = vld [vmem:[#allocation2 + $0x28] sm:$0xf]
      %v3700 = vld [vmem:[#allocation2 + $0x30] sm:$0xf8]
      %v3701 = vld [vmem:[#allocation2 + $0x38] sm:$0xf]
      %v3702 = vld [vmem:[#allocation2 + $0x40] sm:$0xf8]
      %v3703 = vld [vmem:[#allocation2 + $0x48] sm:$0xf]
      %v3704 = vld [vmem:[#allocation2 + $0x50] sm:$0xf8]
      %v3705 = vld [vmem:[#allocation2 + $0x58] sm:$0xf]
      %v3706 = vld [vmem:[#allocation2 + $0x60] sm:$0xf8]
      %v3707 = vld [vmem:[#allocation2 + $0x68] sm:$0xf]
      %v3708 = vld [vmem:[#allocation2 + $0x70] sm:$0xf8]
      %v3709 = vld [vmem:[#allocation2 + $0x78] sm:$0xf]
      %v3710 = vld [vmem:[#allocation2 + $0x80] sm:$0xf8]
      %v3711 = vld [vmem:[#allocation2 + $0x88] sm:$0xf]
      %v3712 = vld [vmem:[#allocation2 + $0x90] sm:$0xf8]
      %v3713 = vld [vmem:[#allocation2 + $0x98] sm:$0xf]
      %v3714 = vld [vmem:[#allocation2 + $0xa0] sm:$0xf8]
      %v3715 = vld [vmem:[#allocation2 + $0xa8] sm:$0xf]
      %v3716 = vld [vmem:[#allocation2 + $0xb0] sm:$0xf8]
      %v3717 = vld [vmem:[#allocation2 + $0xb8] sm:$0xf]
      %v3718 = vld [vmem:[#allocation2 + $0xc0] sm:$0xf8]
      %v3719 = vld [vmem:[#allocation2 + $0xc8] sm:$0xf]
      %v3720 = vld [vmem:[#allocation2 + $0xd0] sm:$0xf8]
      %v3721 = vld [vmem:[#allocation2 + $0xd8] sm:$0xf]
      %v3722 = vld [vmem:[#allocation2 + $0xe0] sm:$0xf8]
      %v3723 = vld [vmem:[#allocation2 + $0xe8] sm:$0xf]
      %v3724 = vld [vmem:[#allocation2 + $0xf0] sm:$0xf8]
      %v3725 = vld [vmem:[#allocation2 + $0xf8] sm:$0xf]
      %v3726 = vld [vmem:[#allocation2] sm:$0xf0]
      %v3727 = vld [vmem:[#allocation2 + $0x10] sm:$0xf0]
      %v3728 = vld [vmem:[#allocation2 + $0x20] sm:$0xf0]
      %v3729 = vld [vmem:[#allocation2 + $0x30] sm:$0xf0]
      %v3730 = vld [vmem:[#allocation2 + $0x40] sm:$0xf0]
      %v3731 = vld [vmem:[#allocation2 + $0x50] sm:$0xf0]
      %v3732 = vld [vmem:[#allocation2 + $0x60] sm:$0xf0]
      %v3733 = vld [vmem:[#allocation2 + $0x70] sm:$0xf0]
      %v3734 = vld [vmem:[#allocation2 + $0x80] sm:$0xf0]
      %v3735 = vld [vmem:[#allocation2 + $0x90] sm:$0xf0]
      %v3736 = vld [vmem:[#allocation2 + $0xa0] sm:$0xf0]
      %v3737 = vld [vmem:[#allocation2 + $0xb0] sm:$0xf0]
      %v3738 = vld [vmem:[#allocation2 + $0xc0] sm:$0xf0]
      %v3739 = vld [vmem:[#allocation2 + $0xd0] sm:$0xf0]
      %v3740 = vld [vmem:[#allocation2 + $0xe0] sm:$0xf0]
      %v3741 = vld [vmem:[#allocation2 + $0xf0] sm:$0xf0]
      %v3742 = vld [vmem:[#allocation2 + $0x8] sm:$0x1f]
      %v3743 = vld [vmem:[#allocation2 + $0x18] sm:$0x1f]
      %v3744 = vld [vmem:[#allocation2 + $0x28] sm:$0x1f]
      %v3745 = vld [vmem:[#allocation2 + $0x38] sm:$0x1f]
      %v3746 = vld [vmem:[#allocation2 + $0x48] sm:$0x1f]
      %v3747 = vld [vmem:[#allocation2 + $0x58] sm:$0x1f]
      %v3748 = vld [vmem:[#allocation2 + $0x68] sm:$0x1f]
      %v3749 = vld [vmem:[#allocation2 + $0x78] sm:$0x1f]
      %v3750 = vld [vmem:[#allocation2 + $0x88] sm:$0x1f]
      %v3751 = vld [vmem:[#allocation2 + $0x98] sm:$0x1f]
      %v3752 = vld [vmem:[#allocation2 + $0xa8] sm:$0x1f]
      %v3753 = vld [vmem:[#allocation2 + $0xb8] sm:$0x1f]
      %v3754 = vld [vmem:[#allocation2 + $0xc8] sm:$0x1f]
      %v3755 = vld [vmem:[#allocation2 + $0xd8] sm:$0x1f]
      %v3756 = vld [vmem:[#allocation2 + $0xe8] sm:$0x1f]
      %v3757 = vld [vmem:[#allocation2 + $0xf8] sm:$0x1f]
      %v3759 = vshrl.u32 %v3726, 16
      %v3761 = vshll.u32 %v3726, 16
      %v3763 = vrot.slane %v3761, 1
      %v3764 = vor.u32 %v3759, %v3763
      %v3766 = vshll.u32 %v3695, 16
      %v3768 = vrot.slane %v3766, 1
      %v3769 = vsel %vm533, %v3764, %v3768
      %v3770 = vshrl.u32 %v3695, 16
      %v3772 = vor.u32 %v3770, %v3768
      %v3774 = vshrl.u32 %v3727, 16
      %v3776 = vshll.u32 %v3727, 16
      %v3778 = vrot.slane %v3776, 1
      %v3779 = vor.u32 %v3774, %v3778
      %v3781 = vshll.u32 %v3697, 16
      %v3783 = vrot.slane %v3781, 1
      %v3784 = vsel %vm533, %v3779, %v3783
      %v3785 = vshrl.u32 %v3697, 16
      %v3787 = vor.u32 %v3785, %v3783
      %v3789 = vshrl.u32 %v3728, 16
      %v3791 = vshll.u32 %v3728, 16
      %v3793 = vrot.slane %v3791, 1
      %v3794 = vor.u32 %v3789, %v3793
      %v3796 = vshll.u32 %v3699, 16
      %v3798 = vrot.slane %v3796, 1
      %v3799 = vsel %vm533, %v3794, %v3798
      %v3800 = vshrl.u32 %v3699, 16
      %v3802 = vor.u32 %v3800, %v3798
      %v3804 = vshrl.u32 %v3729, 16
      %v3806 = vshll.u32 %v3729, 16
      %v3808 = vrot.slane %v3806, 1
      %v3809 = vor.u32 %v3804, %v3808
      %v3811 = vshll.u32 %v3701, 16
      %v3813 = vrot.slane %v3811, 1
      %v3814 = vsel %vm533, %v3809, %v3813
      %v3815 = vshrl.u32 %v3701, 16
      %v3817 = vor.u32 %v3815, %v3813
      %v3819 = vshrl.u32 %v3730, 16
      %v3821 = vshll.u32 %v3730, 16
      %v3823 = vrot.slane %v3821, 1
      %v3824 = vor.u32 %v3819, %v3823
      %v3826 = vshll.u32 %v3703, 16
      %v3828 = vrot.slane %v3826, 1
      %v3829 = vsel %vm533, %v3824, %v3828
      %v3830 = vshrl.u32 %v3703, 16
      %v3832 = vor.u32 %v3830, %v3828
      %v3834 = vshrl.u32 %v3731, 16
      %v3836 = vshll.u32 %v3731, 16
      %v3838 = vrot.slane %v3836, 1
      %v3839 = vor.u32 %v3834, %v3838
      %v3841 = vshll.u32 %v3705, 16
      %v3843 = vrot.slane %v3841, 1
      %v3844 = vsel %vm533, %v3839, %v3843
      %v3845 = vshrl.u32 %v3705, 16
      %v3847 = vor.u32 %v3845, %v3843
      %v3849 = vshrl.u32 %v3732, 16
      %v3851 = vshll.u32 %v3732, 16
      %v3853 = vrot.slane %v3851, 1
      %v3854 = vor.u32 %v3849, %v3853
      %v3856 = vshll.u32 %v3707, 16
      %v3858 = vrot.slane %v3856, 1
      %v3859 = vsel %vm533, %v3854, %v3858
      %v3860 = vshrl.u32 %v3707, 16
      %v3862 = vor.u32 %v3860, %v3858
      %v3864 = vshrl.u32 %v3733, 16
      %v3866 = vshll.u32 %v3733, 16
      %v3868 = vrot.slane %v3866, 1
      %v3869 = vor.u32 %v3864, %v3868
      %v3871 = vshll.u32 %v3709, 16
      %v3873 = vrot.slane %v3871, 1
      %v3874 = vsel %vm533, %v3869, %v3873
      %v3875 = vshrl.u32 %v3709, 16
      %v3877 = vor.u32 %v3875, %v3873
      %v3879 = vshrl.u32 %v3734, 16
      %v3881 = vshll.u32 %v3734, 16
      %v3883 = vrot.slane %v3881, 1
      %v3884 = vor.u32 %v3879, %v3883
      %v3886 = vshll.u32 %v3711, 16
      %v3888 = vrot.slane %v3886, 1
      %v3889 = vsel %vm533, %v3884, %v3888
      %v3890 = vshrl.u32 %v3711, 16
      %v3892 = vor.u32 %v3890, %v3888
      %v3894 = vshrl.u32 %v3735, 16
      %v3896 = vshll.u32 %v3735, 16
      %v3898 = vrot.slane %v3896, 1
      %v3899 = vor.u32 %v3894, %v3898
      %v3901 = vshll.u32 %v3713, 16
      %v3903 = vrot.slane %v3901, 1
      %v3904 = vsel %vm533, %v3899, %v3903
      %v3905 = vshrl.u32 %v3713, 16
      %v3907 = vor.u32 %v3905, %v3903
      %v3909 = vshrl.u32 %v3736, 16
      %v3911 = vshll.u32 %v3736, 16
      %v3913 = vrot.slane %v3911, 1
      %v3914 = vor.u32 %v3909, %v3913
      %v3916 = vshll.u32 %v3715, 16
      %v3918 = vrot.slane %v3916, 1
      %v3919 = vsel %vm533, %v3914, %v3918
      %v3920 = vshrl.u32 %v3715, 16
      %v3922 = vor.u32 %v3920, %v3918
      %v3924 = vshrl.u32 %v3737, 16
      %v3926 = vshll.u32 %v3737, 16
      %v3928 = vrot.slane %v3926, 1
      %v3929 = vor.u32 %v3924, %v3928
      %v3931 = vshll.u32 %v3717, 16
      %v3933 = vrot.slane %v3931, 1
      %v3934 = vsel %vm533, %v3929, %v3933
      %v3935 = vshrl.u32 %v3717, 16
      %v3937 = vor.u32 %v3935, %v3933
      %v3939 = vshrl.u32 %v3738, 16
      %v3941 = vshll.u32 %v3738, 16
      %v3943 = vrot.slane %v3941, 1
      %v3944 = vor.u32 %v3939, %v3943
      %v3946 = vshll.u32 %v3719, 16
      %v3948 = vrot.slane %v3946, 1
      %v3949 = vsel %vm533, %v3944, %v3948
      %v3950 = vshrl.u32 %v3719, 16
      %v3952 = vor.u32 %v3950, %v3948
      %v3954 = vshrl.u32 %v3739, 16
      %v3956 = vshll.u32 %v3739, 16
      %v3958 = vrot.slane %v3956, 1
      %v3959 = vor.u32 %v3954, %v3958
      %v3961 = vshll.u32 %v3721, 16
      %v3963 = vrot.slane %v3961, 1
      %v3964 = vsel %vm533, %v3959, %v3963
      %v3965 = vshrl.u32 %v3721, 16
      %v3967 = vor.u32 %v3965, %v3963
      %v3969 = vshrl.u32 %v3740, 16
      %v3971 = vshll.u32 %v3740, 16
      %v3973 = vrot.slane %v3971, 1
      %v3974 = vor.u32 %v3969, %v3973
      %v3976 = vshll.u32 %v3723, 16
      %v3978 = vrot.slane %v3976, 1
      %v3979 = vsel %vm533, %v3974, %v3978
      %v3980 = vshrl.u32 %v3723, 16
      %v3982 = vor.u32 %v3980, %v3978
      %v3984 = vshrl.u32 %v3741, 16
      %v3986 = vshll.u32 %v3741, 16
      %v3988 = vrot.slane %v3986, 1
      %v3989 = vor.u32 %v3984, %v3988
      %v3991 = vshll.u32 %v3725, 16
      %v3993 = vrot.slane %v3991, 1
      %v3994 = vsel %vm533, %v3989, %v3993
      %v3995 = vshrl.u32 %v3725, 16
      %v3997 = vor.u32 %v3995, %v3993
      %v4030 = vrot.slane %v3726, 1
      %v4031 = vrot.slane %v3742, 1
      %v4032 = vsel %vm790, %v4030, %v4031
      %v4033 = vrot.slane %v3727, 1
      %v4034 = vrot.slane %v3743, 1
      %v4035 = vsel %vm790, %v4033, %v4034
      %v4036 = vrot.slane %v3728, 1
      %v4037 = vrot.slane %v3744, 1
      %v4038 = vsel %vm790, %v4036, %v4037
      %v4039 = vrot.slane %v3729, 1
      %v4040 = vrot.slane %v3745, 1
      %v4041 = vsel %vm790, %v4039, %v4040
      %v4042 = vrot.slane %v3730, 1
      %v4043 = vrot.slane %v3746, 1
      %v4044 = vsel %vm790, %v4042, %v4043
      %v4045 = vrot.slane %v3731, 1
      %v4046 = vrot.slane %v3747, 1
      %v4047 = vsel %vm790, %v4045, %v4046
      %v4048 = vrot.slane %v3732, 1
      %v4049 = vrot.slane %v3748, 1
      %v4050 = vsel %vm790, %v4048, %v4049
      %v4051 = vrot.slane %v3733, 1
      %v4052 = vrot.slane %v3749, 1
      %v4053 = vsel %vm790, %v4051, %v4052
      %v4054 = vrot.slane %v3734, 1
      %v4055 = vrot.slane %v3750, 1
      %v4056 = vsel %vm790, %v4054, %v4055
      %v4057 = vrot.slane %v3735, 1
      %v4058 = vrot.slane %v3751, 1
      %v4059 = vsel %vm790, %v4057, %v4058
      %v4060 = vrot.slane %v3736, 1
      %v4061 = vrot.slane %v3752, 1
      %v4062 = vsel %vm790, %v4060, %v4061
      %v4063 = vrot.slane %v3737, 1
      %v4064 = vrot.slane %v3753, 1
      %v4065 = vsel %vm790, %v4063, %v4064
      %v4066 = vrot.slane %v3738, 1
      %v4067 = vrot.slane %v3754, 1
      %v4068 = vsel %vm790, %v4066, %v4067
      %v4069 = vrot.slane %v3739, 1
      %v4070 = vrot.slane %v3755, 1
      %v4071 = vsel %vm790, %v4069, %v4070
      %v4072 = vrot.slane %v3740, 1
      %v4073 = vrot.slane %v3756, 1
      %v4074 = vsel %vm790, %v4072, %v4073
      %v4075 = vrot.slane %v3741, 1
      %v4076 = vrot.slane %v3757, 1
      %v4077 = vsel %vm790, %v4075, %v4076
      %vm4078 = vsmask.f32 4352
      %v4080 = vshrl.u32 %v3694, 16
      %v4082 = vrot.slane %v4080, 3
      %v4083 = vshll.u32 %v3694, 16
      %v4085 = vrot.slane %v4083, 4
      %v4086 = vor.u32 %v4082, %v4085
      %v4087 = vrot.slane %v3770, 3
      %v4088 = vrot.slane %v3766, 4
      %v4089 = vor.u32 %v4087, %v4088
      %v4090 = vsel %vm4078, %v4086, %v4089
      %v4092 = vshrl.u32 %v3769, 16
      %v4094 = vrot.slane %v4092, 3
      %v4095 = vshll.u32 %v3769, 16
      %v4097 = vrot.slane %v4095, 4
      %v4098 = vor.u32 %v4094, %v4097
      %v4100 = vshrl.u32 %v3772, 16
      %v4102 = vrot.slane %v4100, 3
      %v4103 = vshll.u32 %v3772, 16
      %v4105 = vrot.slane %v4103, 4
      %v4106 = vor.u32 %v4102, %v4105
      %v4107 = vsel %vm4078, %v4098, %v4106
      %v4109 = vshrl.u32 %v4032, 16
      %v4111 = vrot.slane %v4109, 3
      %v4112 = vshll.u32 %v4032, 16
      %v4114 = vrot.slane %v4112, 4
      %v4115 = vor.u32 %v4111, %v4114
      %v4117 = vshrl.u32 %v4031, 16
      %v4119 = vrot.slane %v4117, 3
      %v4120 = vshll.u32 %v4031, 16
      %v4122 = vrot.slane %v4120, 4
      %v4123 = vor.u32 %v4119, %v4122
      %v4124 = vsel %vm4078, %v4115, %v4123
      %v4126 = vshrl.u32 %v3696, 16
      %v4128 = vrot.slane %v4126, 3
      %v4129 = vshll.u32 %v3696, 16
      %v4131 = vrot.slane %v4129, 4
      %v4132 = vor.u32 %v4128, %v4131
      %v4133 = vrot.slane %v3785, 3
      %v4134 = vrot.slane %v3781, 4
      %v4135 = vor.u32 %v4133, %v4134
      %v4136 = vsel %vm4078, %v4132, %v4135
      %v4138 = vshrl.u32 %v3784, 16
      %v4140 = vrot.slane %v4138, 3
      %v4141 = vshll.u32 %v3784, 16
      %v4143 = vrot.slane %v4141, 4
      %v4144 = vor.u32 %v4140, %v4143
      %v4146 = vshrl.u32 %v3787, 16
      %v4148 = vrot.slane %v4146, 3
      %v4149 = vshll.u32 %v3787, 16
      %v4151 = vrot.slane %v4149, 4
      %v4152 = vor.u32 %v4148, %v4151
      %v4153 = vsel %vm4078, %v4144, %v4152
      %v4155 = vshrl.u32 %v4035, 16
      %v4157 = vrot.slane %v4155, 3
      %v4158 = vshll.u32 %v4035, 16
      %v4160 = vrot.slane %v4158, 4
      %v4161 = vor.u32 %v4157, %v4160
      %v4163 = vshrl.u32 %v4034, 16
      %v4165 = vrot.slane %v4163, 3
      %v4166 = vshll.u32 %v4034, 16
      %v4168 = vrot.slane %v4166, 4
      %v4169 = vor.u32 %v4165, %v4168
      %v4170 = vsel %vm4078, %v4161, %v4169
      %v4172 = vshrl.u32 %v3698, 16
      %v4174 = vrot.slane %v4172, 3
      %v4175 = vshll.u32 %v3698, 16
      %v4177 = vrot.slane %v4175, 4
      %v4178 = vor.u32 %v4174, %v4177
      %v4179 = vrot.slane %v3800, 3
      %v4180 = vrot.slane %v3796, 4
      %v4181 = vor.u32 %v4179, %v4180
      %v4182 = vsel %vm4078, %v4178, %v4181
      %v4184 = vshrl.u32 %v3799, 16
      %v4186 = vrot.slane %v4184, 3
      %v4187 = vshll.u32 %v3799, 16
      %v4189 = vrot.slane %v4187, 4
      %v4190 = vor.u32 %v4186, %v4189
      %v4192 = vshrl.u32 %v3802, 16
      %v4194 = vrot.slane %v4192, 3
      %v4195 = vshll.u32 %v3802, 16
      %v4197 = vrot.slane %v4195, 4
      %v4198 = vor.u32 %v4194, %v4197
      %v4199 = vsel %vm4078, %v4190, %v4198
      %v4201 = vshrl.u32 %v4038, 16
      %v4203 = vrot.slane %v4201, 3
      %v4204 = vshll.u32 %v4038, 16
      %v4206 = vrot.slane %v4204, 4
      %v4207 = vor.u32 %v4203, %v4206
      %v4209 = vshrl.u32 %v4037, 16
      %v4211 = vrot.slane %v4209, 3
      %v4212 = vshll.u32 %v4037, 16
      %v4214 = vrot.slane %v4212, 4
      %v4215 = vor.u32 %v4211, %v4214
      %v4216 = vsel %vm4078, %v4207, %v4215
      %v4218 = vshrl.u32 %v3700, 16
      %v4220 = vrot.slane %v4218, 3
      %v4221 = vshll.u32 %v3700, 16
      %v4223 = vrot.slane %v4221, 4
      %v4224 = vor.u32 %v4220, %v4223
      %v4225 = vrot.slane %v3815, 3
      %v4226 = vrot.slane %v3811, 4
      %v4227 = vor.u32 %v4225, %v4226
      %v4228 = vsel %vm4078, %v4224, %v4227
      %v4230 = vshrl.u32 %v3814, 16
      %v4232 = vrot.slane %v4230, 3
      %v4233 = vshll.u32 %v3814, 16
      %v4235 = vrot.slane %v4233, 4
      %v4236 = vor.u32 %v4232, %v4235
      %v4238 = vshrl.u32 %v3817, 16
      %v4240 = vrot.slane %v4238, 3
      %v4241 = vshll.u32 %v3817, 16
      %v4243 = vrot.slane %v4241, 4
      %v4244 = vor.u32 %v4240, %v4243
      %v4245 = vsel %vm4078, %v4236, %v4244
      %v4247 = vshrl.u32 %v4041, 16
      %v4249 = vrot.slane %v4247, 3
      %v4250 = vshll.u32 %v4041, 16
      %v4252 = vrot.slane %v4250, 4
      %v4253 = vor.u32 %v4249, %v4252
      %v4255 = vshrl.u32 %v4040, 16
      %v4257 = vrot.slane %v4255, 3
      %v4258 = vshll.u32 %v4040, 16
      %v4260 = vrot.slane %v4258, 4
      %v4261 = vor.u32 %v4257, %v4260
      %v4262 = vsel %vm4078, %v4253, %v4261
      %v4264 = vshrl.u32 %v3702, 16
      %v4266 = vrot.slane %v4264, 3
      %v4267 = vshll.u32 %v3702, 16
      %v4269 = vrot.slane %v4267, 4
      %v4270 = vor.u32 %v4266, %v4269
      %v4271 = vrot.slane %v3830, 3
      %v4272 = vrot.slane %v3826, 4
      %v4273 = vor.u32 %v4271, %v4272
      %v4274 = vsel %vm4078, %v4270, %v4273
      %v4276 = vshrl.u32 %v3829, 16
      %v4278 = vrot.slane %v4276, 3
      %v4279 = vshll.u32 %v3829, 16
      %v4281 = vrot.slane %v4279, 4
      %v4282 = vor.u32 %v4278, %v4281
      %v4284 = vshrl.u32 %v3832, 16
      %v4286 = vrot.slane %v4284, 3
      %v4287 = vshll.u32 %v3832, 16
      %v4289 = vrot.slane %v4287, 4
      %v4290 = vor.u32 %v4286, %v4289
      %v4291 = vsel %vm4078, %v4282, %v4290
      %v4293 = vshrl.u32 %v4044, 16
      %v4295 = vrot.slane %v4293, 3
      %v4296 = vshll.u32 %v4044, 16
      %v4298 = vrot.slane %v4296, 4
      %v4299 = vor.u32 %v4295, %v4298
      %v4301 = vshrl.u32 %v4043, 16
      %v4303 = vrot.slane %v4301, 3
      %v4304 = vshll.u32 %v4043, 16
      %v4306 = vrot.slane %v4304, 4
      %v4307 = vor.u32 %v4303, %v4306
      %v4308 = vsel %vm4078, %v4299, %v4307
      %v4310 = vshrl.u32 %v3704, 16
      %v4312 = vrot.slane %v4310, 3
      %v4313 = vshll.u32 %v3704, 16
      %v4315 = vrot.slane %v4313, 4
      %v4316 = vor.u32 %v4312, %v4315
      %v4317 = vrot.slane %v3845, 3
      %v4318 = vrot.slane %v3841, 4
      %v4319 = vor.u32 %v4317, %v4318
      %v4320 = vsel %vm4078, %v4316, %v4319
      %v4322 = vshrl.u32 %v3844, 16
      %v4324 = vrot.slane %v4322, 3
      %v4325 = vshll.u32 %v3844, 16
      %v4327 = vrot.slane %v4325, 4
      %v4328 = vor.u32 %v4324, %v4327
      %v4330 = vshrl.u32 %v3847, 16
      %v4332 = vrot.slane %v4330, 3
      %v4333 = vshll.u32 %v3847, 16
      %v4335 = vrot.slane %v4333, 4
      %v4336 = vor.u32 %v4332, %v4335
      %v4337 = vsel %vm4078, %v4328, %v4336
      %v4339 = vshrl.u32 %v4047, 16
      %v4341 = vrot.slane %v4339, 3
      %v4342 = vshll.u32 %v4047, 16
      %v4344 = vrot.slane %v4342, 4
      %v4345 = vor.u32 %v4341, %v4344
      %v4347 = vshrl.u32 %v4046, 16
      %v4349 = vrot.slane %v4347, 3
      %v4350 = vshll.u32 %v4046, 16
      %v4352 = vrot.slane %v4350, 4
      %v4353 = vor.u32 %v4349, %v4352
      %v4354 = vsel %vm4078, %v4345, %v4353
      %v4356 = vshrl.u32 %v3706, 16
      %v4358 = vrot.slane %v4356, 3
      %v4359 = vshll.u32 %v3706, 16
      %v4361 = vrot.slane %v4359, 4
      %v4362 = vor.u32 %v4358, %v4361
      %v4363 = vrot.slane %v3860, 3
      %v4364 = vrot.slane %v3856, 4
      %v4365 = vor.u32 %v4363, %v4364
      %v4366 = vsel %vm4078, %v4362, %v4365
      %v4368 = vshrl.u32 %v3859, 16
      %v4370 = vrot.slane %v4368, 3
      %v4371 = vshll.u32 %v3859, 16
      %v4373 = vrot.slane %v4371, 4
      %v4374 = vor.u32 %v4370, %v4373
      %v4376 = vshrl.u32 %v3862, 16
      %v4378 = vrot.slane %v4376, 3
      %v4379 = vshll.u32 %v3862, 16
      %v4381 = vrot.slane %v4379, 4
      %v4382 = vor.u32 %v4378, %v4381
      %v4383 = vsel %vm4078, %v4374, %v4382
      %v4385 = vshrl.u32 %v4050, 16
      %v4387 = vrot.slane %v4385, 3
      %v4388 = vshll.u32 %v4050, 16
      %v4390 = vrot.slane %v4388, 4
      %v4391 = vor.u32 %v4387, %v4390
      %v4393 = vshrl.u32 %v4049, 16
      %v4395 = vrot.slane %v4393, 3
      %v4396 = vshll.u32 %v4049, 16
      %v4398 = vrot.slane %v4396, 4
      %v4399 = vor.u32 %v4395, %v4398
      %v4400 = vsel %vm4078, %v4391, %v4399
      %v4402 = vshrl.u32 %v3708, 16
      %v4404 = vrot.slane %v4402, 3
      %v4405 = vshll.u32 %v3708, 16
      %v4407 = vrot.slane %v4405, 4
      %v4408 = vor.u32 %v4404, %v4407
      %v4409 = vrot.slane %v3875, 3
      %v4410 = vrot.slane %v3871, 4
      %v4411 = vor.u32 %v4409, %v4410
      %v4412 = vsel %vm4078, %v4408, %v4411
      %v4414 = vshrl.u32 %v3874, 16
      %v4416 = vrot.slane %v4414, 3
      %v4417 = vshll.u32 %v3874, 16
      %v4419 = vrot.slane %v4417, 4
      %v4420 = vor.u32 %v4416, %v4419
      %v4422 = vshrl.u32 %v3877, 16
      %v4424 = vrot.slane %v4422, 3
      %v4425 = vshll.u32 %v3877, 16
      %v4427 = vrot.slane %v4425, 4
      %v4428 = vor.u32 %v4424, %v4427
      %v4429 = vsel %vm4078, %v4420, %v4428
      %v4431 = vshrl.u32 %v4053, 16
      %v4433 = vrot.slane %v4431, 3
      %v4434 = vshll.u32 %v4053, 16
      %v4436 = vrot.slane %v4434, 4
      %v4437 = vor.u32 %v4433, %v4436
      %v4439 = vshrl.u32 %v4052, 16
      %v4441 = vrot.slane %v4439, 3
      %v4442 = vshll.u32 %v4052, 16
      %v4444 = vrot.slane %v4442, 4
      %v4445 = vor.u32 %v4441, %v4444
      %v4446 = vsel %vm4078, %v4437, %v4445
      %v4448 = vshrl.u32 %v3710, 16
      %v4450 = vrot.slane %v4448, 3
      %v4451 = vshll.u32 %v3710, 16
      %v4453 = vrot.slane %v4451, 4
      %v4454 = vor.u32 %v4450, %v4453
      %v4455 = vrot.slane %v3890, 3
      %v4456 = vrot.slane %v3886, 4
      %v4457 = vor.u32 %v4455, %v4456
      %v4458 = vsel %vm4078, %v4454, %v4457
      %v4460 = vshrl.u32 %v3889, 16
      %v4462 = vrot.slane %v4460, 3
      %v4463 = vshll.u32 %v3889, 16
      %v4465 = vrot.slane %v4463, 4
      %v4466 = vor.u32 %v4462, %v4465
      %v4468 = vshrl.u32 %v3892, 16
      %v4470 = vrot.slane %v4468, 3
      %v4471 = vshll.u32 %v3892, 16
      %v4473 = vrot.slane %v4471, 4
      %v4474 = vor.u32 %v4470, %v4473
      %v4475 = vsel %vm4078, %v4466, %v4474
      %v4477 = vshrl.u32 %v4056, 16
      %v4479 = vrot.slane %v4477, 3
      %v4480 = vshll.u32 %v4056, 16
      %v4482 = vrot.slane %v4480, 4
      %v4483 = vor.u32 %v4479, %v4482
      %v4485 = vshrl.u32 %v4055, 16
      %v4487 = vrot.slane %v4485, 3
      %v4488 = vshll.u32 %v4055, 16
      %v4490 = vrot.slane %v4488, 4
      %v4491 = vor.u32 %v4487, %v4490
      %v4492 = vsel %vm4078, %v4483, %v4491
      %v4494 = vshrl.u32 %v3712, 16
      %v4496 = vrot.slane %v4494, 3
      %v4497 = vshll.u32 %v3712, 16
      %v4499 = vrot.slane %v4497, 4
      %v4500 = vor.u32 %v4496, %v4499
      %v4501 = vrot.slane %v3905, 3
      %v4502 = vrot.slane %v3901, 4
      %v4503 = vor.u32 %v4501, %v4502
      %v4504 = vsel %vm4078, %v4500, %v4503
      %v4506 = vshrl.u32 %v3904, 16
      %v4508 = vrot.slane %v4506, 3
      %v4509 = vshll.u32 %v3904, 16
      %v4511 = vrot.slane %v4509, 4
      %v4512 = vor.u32 %v4508, %v4511
      %v4514 = vshrl.u32 %v3907, 16
      %v4516 = vrot.slane %v4514, 3
      %v4517 = vshll.u32 %v3907, 16
      %v4519 = vrot.slane %v4517, 4
      %v4520 = vor.u32 %v4516, %v4519
      %v4521 = vsel %vm4078, %v4512, %v4520
      %v4523 = vshrl.u32 %v4059, 16
      %v4525 = vrot.slane %v4523, 3
      %v4526 = vshll.u32 %v4059, 16
      %v4528 = vrot.slane %v4526, 4
      %v4529 = vor.u32 %v4525, %v4528
      %v4531 = vshrl.u32 %v4058, 16
      %v4533 = vrot.slane %v4531, 3
      %v4534 = vshll.u32 %v4058, 16
      %v4536 = vrot.slane %v4534, 4
      %v4537 = vor.u32 %v4533, %v4536
      %v4538 = vsel %vm4078, %v4529, %v4537
      %v4540 = vshrl.u32 %v3714, 16
      %v4542 = vrot.slane %v4540, 3
      %v4543 = vshll.u32 %v3714, 16
      %v4545 = vrot.slane %v4543, 4
      %v4546 = vor.u32 %v4542, %v4545
      %v4547 = vrot.slane %v3920, 3
      %v4548 = vrot.slane %v3916, 4
      %v4549 = vor.u32 %v4547, %v4548
      %v4550 = vsel %vm4078, %v4546, %v4549
      %v4552 = vshrl.u32 %v3919, 16
      %v4554 = vrot.slane %v4552, 3
      %v4555 = vshll.u32 %v3919, 16
      %v4557 = vrot.slane %v4555, 4
      %v4558 = vor.u32 %v4554, %v4557
      %v4560 = vshrl.u32 %v3922, 16
      %v4562 = vrot.slane %v4560, 3
      %v4563 = vshll.u32 %v3922, 16
      %v4565 = vrot.slane %v4563, 4
      %v4566 = vor.u32 %v4562, %v4565
      %v4567 = vsel %vm4078, %v4558, %v4566
      %v4569 = vshrl.u32 %v4062, 16
      %v4571 = vrot.slane %v4569, 3
      %v4572 = vshll.u32 %v4062, 16
      %v4574 = vrot.slane %v4572, 4
      %v4575 = vor.u32 %v4571, %v4574
      %v4577 = vshrl.u32 %v4061, 16
      %v4579 = vrot.slane %v4577, 3
      %v4580 = vshll.u32 %v4061, 16
      %v4582 = vrot.slane %v4580, 4
      %v4583 = vor.u32 %v4579, %v4582
      %v4584 = vsel %vm4078, %v4575, %v4583
      %v4586 = vshrl.u32 %v3716, 16
      %v4588 = vrot.slane %v4586, 3
      %v4589 = vshll.u32 %v3716, 16
      %v4591 = vrot.slane %v4589, 4
      %v4592 = vor.u32 %v4588, %v4591
      %v4593 = vrot.slane %v3935, 3
      %v4594 = vrot.slane %v3931, 4
      %v4595 = vor.u32 %v4593, %v4594
      %v4596 = vsel %vm4078, %v4592, %v4595
      %v4598 = vshrl.u32 %v3934, 16
      %v4600 = vrot.slane %v4598, 3
      %v4601 = vshll.u32 %v3934, 16
      %v4603 = vrot.slane %v4601, 4
      %v4604 = vor.u32 %v4600, %v4603
      %v4606 = vshrl.u32 %v3937, 16
      %v4608 = vrot.slane %v4606, 3
      %v4609 = vshll.u32 %v3937, 16
      %v4611 = vrot.slane %v4609, 4
      %v4612 = vor.u32 %v4608, %v4611
      %v4613 = vsel %vm4078, %v4604, %v4612
      %v4615 = vshrl.u32 %v4065, 16
      %v4617 = vrot.slane %v4615, 3
      %v4618 = vshll.u32 %v4065, 16
      %v4620 = vrot.slane %v4618, 4
      %v4621 = vor.u32 %v4617, %v4620
      %v4623 = vshrl.u32 %v4064, 16
      %v4625 = vrot.slane %v4623, 3
      %v4626 = vshll.u32 %v4064, 16
      %v4628 = vrot.slane %v4626, 4
      %v4629 = vor.u32 %v4625, %v4628
      %v4630 = vsel %vm4078, %v4621, %v4629
      %v4632 = vshrl.u32 %v3718, 16
      %v4634 = vrot.slane %v4632, 3
      %v4635 = vshll.u32 %v3718, 16
      %v4637 = vrot.slane %v4635, 4
      %v4638 = vor.u32 %v4634, %v4637
      %v4639 = vrot.slane %v3950, 3
      %v4640 = vrot.slane %v3946, 4
      %v4641 = vor.u32 %v4639, %v4640
      %v4642 = vsel %vm4078, %v4638, %v4641
      %v4644 = vshrl.u32 %v3949, 16
      %v4646 = vrot.slane %v4644, 3
      %v4647 = vshll.u32 %v3949, 16
      %v4649 = vrot.slane %v4647, 4
      %v4650 = vor.u32 %v4646, %v4649
      %v4652 = vshrl.u32 %v3952, 16
      %v4654 = vrot.slane %v4652, 3
      %v4655 = vshll.u32 %v3952, 16
      %v4657 = vrot.slane %v4655, 4
      %v4658 = vor.u32 %v4654, %v4657
      %v4659 = vsel %vm4078, %v4650, %v4658
      %v4661 = vshrl.u32 %v4068, 16
      %v4663 = vrot.slane %v4661, 3
      %v4664 = vshll.u32 %v4068, 16
      %v4666 = vrot.slane %v4664, 4
      %v4667 = vor.u32 %v4663, %v4666
      %v4669 = vshrl.u32 %v4067, 16
      %v4671 = vrot.slane %v4669, 3
      %v4672 = vshll.u32 %v4067, 16
      %v4674 = vrot.slane %v4672, 4
      %v4675 = vor.u32 %v4671, %v4674
      %v4676 = vsel %vm4078, %v4667, %v4675
      %v4678 = vshrl.u32 %v3720, 16
      %v4680 = vrot.slane %v4678, 3
      %v4681 = vshll.u32 %v3720, 16
      %v4683 = vrot.slane %v4681, 4
      %v4684 = vor.u32 %v4680, %v4683
      %v4685 = vrot.slane %v3965, 3
      %v4686 = vrot.slane %v3961, 4
      %v4687 = vor.u32 %v4685, %v4686
      %v4688 = vsel %vm4078, %v4684, %v4687
      %v4690 = vshrl.u32 %v3964, 16
      %v4692 = vrot.slane %v4690, 3
      %v4693 = vshll.u32 %v3964, 16
      %v4695 = vrot.slane %v4693, 4
      %v4696 = vor.u32 %v4692, %v4695
      %v4698 = vshrl.u32 %v3967, 16
      %v4700 = vrot.slane %v4698, 3
      %v4701 = vshll.u32 %v3967, 16
      %v4703 = vrot.slane %v4701, 4
      %v4704 = vor.u32 %v4700, %v4703
      %v4705 = vsel %vm4078, %v4696, %v4704
      %v4707 = vshrl.u32 %v4071, 16
      %v4709 = vrot.slane %v4707, 3
      %v4710 = vshll.u32 %v4071, 16
      %v4712 = vrot.slane %v4710, 4
      %v4713 = vor.u32 %v4709, %v4712
      %v4715 = vshrl.u32 %v4070, 16
      %v4717 = vrot.slane %v4715, 3
      %v4718 = vshll.u32 %v4070, 16
      %v4720 = vrot.slane %v4718, 4
      %v4721 = vor.u32 %v4717, %v4720
      %v4722 = vsel %vm4078, %v4713, %v4721
      %v4724 = vshrl.u32 %v3722, 16
      %v4726 = vrot.slane %v4724, 3
      %v4727 = vshll.u32 %v3722, 16
      %v4729 = vrot.slane %v4727, 4
      %v4730 = vor.u32 %v4726, %v4729
      %v4731 = vrot.slane %v3980, 3
      %v4732 = vrot.slane %v3976, 4
      %v4733 = vor.u32 %v4731, %v4732
      %v4734 = vsel %vm4078, %v4730, %v4733
      %v4736 = vshrl.u32 %v3979, 16
      %v4738 = vrot.slane %v4736, 3
      %v4739 = vshll.u32 %v3979, 16
      %v4741 = vrot.slane %v4739, 4
      %v4742 = vor.u32 %v4738, %v4741
      %v4744 = vshrl.u32 %v3982, 16
      %v4746 = vrot.slane %v4744, 3
      %v4747 = vshll.u32 %v3982, 16
      %v4749 = vrot.slane %v4747, 4
      %v4750 = vor.u32 %v4746, %v4749
      %v4751 = vsel %vm4078, %v4742, %v4750
      %v4753 = vshrl.u32 %v4074, 16
      %v4755 = vrot.slane %v4753, 3
      %v4756 = vshll.u32 %v4074, 16
      %v4758 = vrot.slane %v4756, 4
      %v4759 = vor.u32 %v4755, %v4758
      %v4761 = vshrl.u32 %v4073, 16
      %v4763 = vrot.slane %v4761, 3
      %v4764 = vshll.u32 %v4073, 16
      %v4766 = vrot.slane %v4764, 4
      %v4767 = vor.u32 %v4763, %v4766
      %v4768 = vsel %vm4078, %v4759, %v4767
      %v4770 = vshrl.u32 %v3724, 16
      %v4772 = vrot.slane %v4770, 3
      %v4773 = vshll.u32 %v3724, 16
      %v4775 = vrot.slane %v4773, 4
      %v4776 = vor.u32 %v4772, %v4775
      %v4777 = vrot.slane %v3995, 3
      %v4778 = vrot.slane %v3991, 4
      %v4779 = vor.u32 %v4777, %v4778
      %v4780 = vsel %vm4078, %v4776, %v4779
      %v4782 = vshrl.u32 %v3994, 16
      %v4784 = vrot.slane %v4782, 3
      %v4785 = vshll.u32 %v3994, 16
      %v4787 = vrot.slane %v4785, 4
      %v4788 = vor.u32 %v4784, %v4787
      %v4790 = vshrl.u32 %v3997, 16
      %v4792 = vrot.slane %v4790, 3
      %v4793 = vshll.u32 %v3997, 16
      %v4795 = vrot.slane %v4793, 4
      %v4796 = vor.u32 %v4792, %v4795
      %v4797 = vsel %vm4078, %v4788, %v4796
      %v4799 = vshrl.u32 %v4077, 16
      %v4801 = vrot.slane %v4799, 3
      %v4802 = vshll.u32 %v4077, 16
      %v4804 = vrot.slane %v4802, 4
      %v4805 = vor.u32 %v4801, %v4804
      %v4807 = vshrl.u32 %v4076, 16
      %v4809 = vrot.slane %v4807, 3
      %v4810 = vshll.u32 %v4076, 16
      %v4812 = vrot.slane %v4810, 4
      %v4813 = vor.u32 %v4809, %v4812
      %v4814 = vsel %vm4078, %v4805, %v4813
      %v4863 = vld [vmem:[%s4] sm:$0xf]
      %v4864 = vld [vmem:[%s4 + $0x4] sm:$0xf]
      %v4865 = vld [vmem:[%s4 + $0x8] sm:$0xf]
      %v4866 = vld [vmem:[%s4 + $0xc] sm:$0xf]
      %v4867 = vld [vmem:[%s4 + $0x10] sm:$0xf]
      %v4868 = vld [vmem:[%s4 + $0x14] sm:$0xf]
      %v4869 = vld [vmem:[%s4 + $0x18] sm:$0xf]
      %v4870 = vld [vmem:[%s4 + $0x1c] sm:$0xf]
      %v4871 = vld [vmem:[%s4 + $0x20] sm:$0xf]
      %v4872 = vld [vmem:[%s4 + $0x24] sm:$0xf]
      %v4873 = vld [vmem:[%s4 + $0x28] sm:$0xf]
      %v4874 = vld [vmem:[%s4 + $0x2c] sm:$0xf]
      %v4875 = vld [vmem:[%s4 + $0x30] sm:$0xf]
      %v4876 = vld [vmem:[%s4 + $0x34] sm:$0xf]
      %v4877 = vld [vmem:[%s4 + $0x38] sm:$0xf]
      %v4878 = vld [vmem:[%s4 + $0x3c] sm:$0xf]
      %v4879 = vld [vmem:[%s4 + $0x40] sm:$0xf]
      %v4880 = vld [vmem:[%s4 + $0x44] sm:$0xf]
      %v4881 = vld [vmem:[%s4 + $0x48] sm:$0xf]
      %v4882 = vld [vmem:[%s4 + $0x4c] sm:$0xf]
      %v4883 = vld [vmem:[%s4 + $0x50] sm:$0xf]
      %v4884 = vld [vmem:[%s4 + $0x54] sm:$0xf]
      %v4885 = vld [vmem:[%s4 + $0x58] sm:$0xf]
      %v4886 = vld [vmem:[%s4 + $0x5c] sm:$0xf]
      %v4887 = vld [vmem:[%s4 + $0x60] sm:$0xf]
      %v4888 = vld [vmem:[%s4 + $0x64] sm:$0xf]
      %v4889 = vld [vmem:[%s4 + $0x68] sm:$0xf]
      %v4890 = vld [vmem:[%s4 + $0x6c] sm:$0xf]
      %v4891 = vld [vmem:[%s4 + $0x70] sm:$0xf]
      %v4892 = vld [vmem:[%s4 + $0x74] sm:$0xf]
      %v4893 = vld [vmem:[%s4 + $0x78] sm:$0xf]
      %v4894 = vld [vmem:[%s4 + $0x7c] sm:$0xf]
      %v4895 = vld [vmem:[%s4 + $0x80] sm:$0xf]
      %v4896 = vld [vmem:[%s4 + $0x84] sm:$0xf]
      %v4897 = vld [vmem:[%s4 + $0x88] sm:$0xf]
      %v4898 = vld [vmem:[%s4 + $0x8c] sm:$0xf]
      %v4899 = vld [vmem:[%s4 + $0x90] sm:$0xf]
      %v4900 = vld [vmem:[%s4 + $0x94] sm:$0xf]
      %v4901 = vld [vmem:[%s4 + $0x98] sm:$0xf]
      %v4902 = vld [vmem:[%s4 + $0x9c] sm:$0xf]
      %v4903 = vld [vmem:[%s4 + $0xa0] sm:$0xf]
      %v4904 = vld [vmem:[%s4 + $0xa4] sm:$0xf]
      %v4905 = vld [vmem:[%s4 + $0xa8] sm:$0xf]
      %v4906 = vld [vmem:[%s4 + $0xac] sm:$0xf]
      %v4907 = vld [vmem:[%s4 + $0xb0] sm:$0xf]
      %v4908 = vld [vmem:[%s4 + $0xb4] sm:$0xf]
      %v4909 = vld [vmem:[%s4 + $0xb8] sm:$0xf]
      %v4910 = vld [vmem:[%s4 + $0xbc] sm:$0xf]
      %v4911 = vld [vmem:[%s3661] sm:$0xf8]
      %v4912 = vld [vmem:[%s3661 + $0x8] sm:$0xf]
      %v4913 = vld [vmem:[%s3661 + $0x10] sm:$0xf8]
      %v4914 = vld [vmem:[%s3661 + $0x18] sm:$0xf]
      %v4915 = vld [vmem:[%s3661 + $0x20] sm:$0xf8]
      %v4916 = vld [vmem:[%s3661 + $0x28] sm:$0xf]
      %v4917 = vld [vmem:[%s3661 + $0x30] sm:$0xf8]
      %v4918 = vld [vmem:[%s3661 + $0x38] sm:$0xf]
      %v4919 = vld [vmem:[%s3661 + $0x40] sm:$0xf8]
      %v4920 = vld [vmem:[%s3661 + $0x48] sm:$0xf]
      %v4921 = vld [vmem:[%s3661 + $0x50] sm:$0xf8]
      %v4922 = vld [vmem:[%s3661 + $0x58] sm:$0xf]
      %v4923 = vld [vmem:[%s3661 + $0x60] sm:$0xf8]
      %v4924 = vld [vmem:[%s3661 + $0x68] sm:$0xf]
      %v4925 = vld [vmem:[%s3661 + $0x70] sm:$0xf8]
      %v4926 = vld [vmem:[%s3661 + $0x78] sm:$0xf]
      %v4927 = vld [vmem:[%s3661 + $0x80] sm:$0xf8]
      %v4928 = vld [vmem:[%s3661 + $0x88] sm:$0xf]
      %v4929 = vld [vmem:[%s3661 + $0x90] sm:$0xf8]
      %v4930 = vld [vmem:[%s3661 + $0x98] sm:$0xf]
      %v4931 = vld [vmem:[%s3661 + $0xa0] sm:$0xf8]
      %v4932 = vld [vmem:[%s3661 + $0xa8] sm:$0xf]
      %v4933 = vld [vmem:[%s3661 + $0xb0] sm:$0xf8]
      %v4934 = vld [vmem:[%s3661 + $0xb8] sm:$0xf]
      %v4935 = vld [vmem:[%s3661 + $0xc0] sm:$0xf8]
      %v4936 = vld [vmem:[%s3661 + $0xc8] sm:$0xf]
      %v4937 = vld [vmem:[%s3661 + $0xd0] sm:$0xf8]
      %v4938 = vld [vmem:[%s3661 + $0xd8] sm:$0xf]
      %v4939 = vld [vmem:[%s3661 + $0xe0] sm:$0xf8]
      %v4940 = vld [vmem:[%s3661 + $0xe8] sm:$0xf]
      %v4941 = vld [vmem:[%s3661 + $0xf0] sm:$0xf8]
      %v4942 = vld [vmem:[%s3661 + $0xf8] sm:$0xf]
      %v4943 = vld [vmem:[%s3661] sm:$0xf0]
      %v4944 = vld [vmem:[%s3661 + $0x10] sm:$0xf0]
      %v4945 = vld [vmem:[%s3661 + $0x20] sm:$0xf0]
      %v4946 = vld [vmem:[%s3661 + $0x30] sm:$0xf0]
      %v4947 = vld [vmem:[%s3661 + $0x40] sm:$0xf0]
      %v4948 = vld [vmem:[%s3661 + $0x50] sm:$0xf0]
      %v4949 = vld [vmem:[%s3661 + $0x60] sm:$0xf0]
      %v4950 = vld [vmem:[%s3661 + $0x70] sm:$0xf0]
      %v4951 = vld [vmem:[%s3661 + $0x80] sm:$0xf0]
      %v4952 = vld [vmem:[%s3661 + $0x90] sm:$0xf0]
      %v4953 = vld [vmem:[%s3661 + $0xa0] sm:$0xf0]
      %v4954 = vld [vmem:[%s3661 + $0xb0] sm:$0xf0]
      %v4955 = vld [vmem:[%s3661 + $0xc0] sm:$0xf0]
      %v4956 = vld [vmem:[%s3661 + $0xd0] sm:$0xf0]
      %v4957 = vld [vmem:[%s3661 + $0xe0] sm:$0xf0]
      %v4958 = vld [vmem:[%s3661 + $0xf0] sm:$0xf0]
      %v4959 = vld [vmem:[%s3661 + $0x8] sm:$0x1f]
      %v4960 = vld [vmem:[%s3661 + $0x18] sm:$0x1f]
      %v4961 = vld [vmem:[%s3661 + $0x28] sm:$0x1f]
      %v4962 = vld [vmem:[%s3661 + $0x38] sm:$0x1f]
      %v4963 = vld [vmem:[%s3661 + $0x48] sm:$0x1f]
      %v4964 = vld [vmem:[%s3661 + $0x58] sm:$0x1f]
      %v4965 = vld [vmem:[%s3661 + $0x68] sm:$0x1f]
      %v4966 = vld [vmem:[%s3661 + $0x78] sm:$0x1f]
      %v4967 = vld [vmem:[%s3661 + $0x88] sm:$0x1f]
      %v4968 = vld [vmem:[%s3661 + $0x98] sm:$0x1f]
      %v4969 = vld [vmem:[%s3661 + $0xa8] sm:$0x1f]
      %v4970 = vld [vmem:[%s3661 + $0xb8] sm:$0x1f]
      %v4971 = vld [vmem:[%s3661 + $0xc8] sm:$0x1f]
      %v4972 = vld [vmem:[%s3661 + $0xd8] sm:$0x1f]
      %v4973 = vld [vmem:[%s3661 + $0xe8] sm:$0x1f]
      %v4974 = vld [vmem:[%s3661 + $0xf8] sm:$0x1f]
      %v4976 = vshrl.u32 %v4943, 16
      %v4978 = vshll.u32 %v4943, 16
      %v4980 = vrot.slane %v4978, 1
      %v4981 = vor.u32 %v4976, %v4980
      %v4983 = vshll.u32 %v4912, 16
      %v4985 = vrot.slane %v4983, 1
      %v4986 = vsel %vm533, %v4981, %v4985
      %v4987 = vshrl.u32 %v4912, 16
      %v4989 = vor.u32 %v4987, %v4985
      %v4991 = vshrl.u32 %v4944, 16
      %v4993 = vshll.u32 %v4944, 16
      %v4995 = vrot.slane %v4993, 1
      %v4996 = vor.u32 %v4991, %v4995
      %v4998 = vshll.u32 %v4914, 16
      %v5000 = vrot.slane %v4998, 1
      %v5001 = vsel %vm533, %v4996, %v5000
      %v5002 = vshrl.u32 %v4914, 16
      %v5004 = vor.u32 %v5002, %v5000
      %v5006 = vshrl.u32 %v4945, 16
      %v5008 = vshll.u32 %v4945, 16
      %v5010 = vrot.slane %v5008, 1
      %v5011 = vor.u32 %v5006, %v5010
      %v5013 = vshll.u32 %v4916, 16
      %v5015 = vrot.slane %v5013, 1
      %v5016 = vsel %vm533, %v5011, %v5015
      %v5017 = vshrl.u32 %v4916, 16
      %v5019 = vor.u32 %v5017, %v5015
      %v5021 = vshrl.u32 %v4946, 16
      %v5023 = vshll.u32 %v4946, 16
      %v5025 = vrot.slane %v5023, 1
      %v5026 = vor.u32 %v5021, %v5025
      %v5028 = vshll.u32 %v4918, 16
      %v5030 = vrot.slane %v5028, 1
      %v5031 = vsel %vm533, %v5026, %v5030
      %v5032 = vshrl.u32 %v4918, 16
      %v5034 = vor.u32 %v5032, %v5030
      %v5036 = vshrl.u32 %v4947, 16
      %v5038 = vshll.u32 %v4947, 16
      %v5040 = vrot.slane %v5038, 1
      %v5041 = vor.u32 %v5036, %v5040
      %v5043 = vshll.u32 %v4920, 16
      %v5045 = vrot.slane %v5043, 1
      %v5046 = vsel %vm533, %v5041, %v5045
      %v5047 = vshrl.u32 %v4920, 16
      %v5049 = vor.u32 %v5047, %v5045
      %v5051 = vshrl.u32 %v4948, 16
      %v5053 = vshll.u32 %v4948, 16
      %v5055 = vrot.slane %v5053, 1
      %v5056 = vor.u32 %v5051, %v5055
      %v5058 = vshll.u32 %v4922, 16
      %v5060 = vrot.slane %v5058, 1
      %v5061 = vsel %vm533, %v5056, %v5060
      %v5062 = vshrl.u32 %v4922, 16
      %v5064 = vor.u32 %v5062, %v5060
      %v5066 = vshrl.u32 %v4949, 16
      %v5068 = vshll.u32 %v4949, 16
      %v5070 = vrot.slane %v5068, 1
      %v5071 = vor.u32 %v5066, %v5070
      %v5073 = vshll.u32 %v4924, 16
      %v5075 = vrot.slane %v5073, 1
      %v5076 = vsel %vm533, %v5071, %v5075
      %v5077 = vshrl.u32 %v4924, 16
      %v5079 = vor.u32 %v5077, %v5075
      %v5081 = vshrl.u32 %v4950, 16
      %v5083 = vshll.u32 %v4950, 16
      %v5085 = vrot.slane %v5083, 1
      %v5086 = vor.u32 %v5081, %v5085
      %v5088 = vshll.u32 %v4926, 16
      %v5090 = vrot.slane %v5088, 1
      %v5091 = vsel %vm533, %v5086, %v5090
      %v5092 = vshrl.u32 %v4926, 16
      %v5094 = vor.u32 %v5092, %v5090
      %v5096 = vshrl.u32 %v4951, 16
      %v5098 = vshll.u32 %v4951, 16
      %v5100 = vrot.slane %v5098, 1
      %v5101 = vor.u32 %v5096, %v5100
      %v5103 = vshll.u32 %v4928, 16
      %v5105 = vrot.slane %v5103, 1
      %v5106 = vsel %vm533, %v5101, %v5105
      %v5107 = vshrl.u32 %v4928, 16
      %v5109 = vor.u32 %v5107, %v5105
      %v5111 = vshrl.u32 %v4952, 16
      %v5113 = vshll.u32 %v4952, 16
      %v5115 = vrot.slane %v5113, 1
      %v5116 = vor.u32 %v5111, %v5115
      %v5118 = vshll.u32 %v4930, 16
      %v5120 = vrot.slane %v5118, 1
      %v5121 = vsel %vm533, %v5116, %v5120
      %v5122 = vshrl.u32 %v4930, 16
      %v5124 = vor.u32 %v5122, %v5120
      %v5126 = vshrl.u32 %v4953, 16
      %v5128 = vshll.u32 %v4953, 16
      %v5130 = vrot.slane %v5128, 1
      %v5131 = vor.u32 %v5126, %v5130
      %v5133 = vshll.u32 %v4932, 16
      %v5135 = vrot.slane %v5133, 1
      %v5136 = vsel %vm533, %v5131, %v5135
      %v5137 = vshrl.u32 %v4932, 16
      %v5139 = vor.u32 %v5137, %v5135
      %v5141 = vshrl.u32 %v4954, 16
      %v5143 = vshll.u32 %v4954, 16
      %v5145 = vrot.slane %v5143, 1
      %v5146 = vor.u32 %v5141, %v5145
      %v5148 = vshll.u32 %v4934, 16
      %v5150 = vrot.slane %v5148, 1
      %v5151 = vsel %vm533, %v5146, %v5150
      %v5152 = vshrl.u32 %v4934, 16
      %v5154 = vor.u32 %v5152, %v5150
      %v5156 = vshrl.u32 %v4955, 16
      %v5158 = vshll.u32 %v4955, 16
      %v5160 = vrot.slane %v5158, 1
      %v5161 = vor.u32 %v5156, %v5160
      %v5163 = vshll.u32 %v4936, 16
      %v5165 = vrot.slane %v5163, 1
      %v5166 = vsel %vm533, %v5161, %v5165
      %v5167 = vshrl.u32 %v4936, 16
      %v5169 = vor.u32 %v5167, %v5165
      %v5171 = vshrl.u32 %v4956, 16
      %v5173 = vshll.u32 %v4956, 16
      %v5175 = vrot.slane %v5173, 1
      %v5176 = vor.u32 %v5171, %v5175
      %v5178 = vshll.u32 %v4938, 16
      %v5180 = vrot.slane %v5178, 1
      %v5181 = vsel %vm533, %v5176, %v5180
      %v5182 = vshrl.u32 %v4938, 16
      %v5184 = vor.u32 %v5182, %v5180
      %v5186 = vshrl.u32 %v4957, 16
      %v5188 = vshll.u32 %v4957, 16
      %v5190 = vrot.slane %v5188, 1
      %v5191 = vor.u32 %v5186, %v5190
      %v5193 = vshll.u32 %v4940, 16
      %v5195 = vrot.slane %v5193, 1
      %v5196 = vsel %vm533, %v5191, %v5195
      %v5197 = vshrl.u32 %v4940, 16
      %v5199 = vor.u32 %v5197, %v5195
      %v5201 = vshrl.u32 %v4958, 16
      %v5203 = vshll.u32 %v4958, 16
      %v5205 = vrot.slane %v5203, 1
      %v5206 = vor.u32 %v5201, %v5205
      %v5208 = vshll.u32 %v4942, 16
      %v5210 = vrot.slane %v5208, 1
      %v5211 = vsel %vm533, %v5206, %v5210
      %v5212 = vshrl.u32 %v4942, 16
      %v5214 = vor.u32 %v5212, %v5210
      %v5247 = vrot.slane %v4943, 1
      %v5248 = vrot.slane %v4959, 1
      %v5249 = vsel %vm790, %v5247, %v5248
      %v5250 = vrot.slane %v4944, 1
      %v5251 = vrot.slane %v4960, 1
      %v5252 = vsel %vm790, %v5250, %v5251
      %v5253 = vrot.slane %v4945, 1
      %v5254 = vrot.slane %v4961, 1
      %v5255 = vsel %vm790, %v5253, %v5254
      %v5256 = vrot.slane %v4946, 1
      %v5257 = vrot.slane %v4962, 1
      %v5258 = vsel %vm790, %v5256, %v5257
      %v5259 = vrot.slane %v4947, 1
      %v5260 = vrot.slane %v4963, 1
      %v5261 = vsel %vm790, %v5259, %v5260
      %v5262 = vrot.slane %v4948, 1
      %v5263 = vrot.slane %v4964, 1
      %v5264 = vsel %vm790, %v5262, %v5263
      %v5265 = vrot.slane %v4949, 1
      %v5266 = vrot.slane %v4965, 1
      %v5267 = vsel %vm790, %v5265, %v5266
      %v5268 = vrot.slane %v4950, 1
      %v5269 = vrot.slane %v4966, 1
      %v5270 = vsel %vm790, %v5268, %v5269
      %v5271 = vrot.slane %v4951, 1
      %v5272 = vrot.slane %v4967, 1
      %v5273 = vsel %vm790, %v5271, %v5272
      %v5274 = vrot.slane %v4952, 1
      %v5275 = vrot.slane %v4968, 1
      %v5276 = vsel %vm790, %v5274, %v5275
      %v5277 = vrot.slane %v4953, 1
      %v5278 = vrot.slane %v4969, 1
      %v5279 = vsel %vm790, %v5277, %v5278
      %v5280 = vrot.slane %v4954, 1
      %v5281 = vrot.slane %v4970, 1
      %v5282 = vsel %vm790, %v5280, %v5281
      %v5283 = vrot.slane %v4955, 1
      %v5284 = vrot.slane %v4971, 1
      %v5285 = vsel %vm790, %v5283, %v5284
      %v5286 = vrot.slane %v4956, 1
      %v5287 = vrot.slane %v4972, 1
      %v5288 = vsel %vm790, %v5286, %v5287
      %v5289 = vrot.slane %v4957, 1
      %v5290 = vrot.slane %v4973, 1
      %v5291 = vsel %vm790, %v5289, %v5290
      %v5292 = vrot.slane %v4958, 1
      %v5293 = vrot.slane %v4974, 1
      %v5294 = vsel %vm790, %v5292, %v5293
      %v5296 = vshrl.u32 %v4911, 16
      %v5298 = vrot.slane %v5296, 3
      %v5299 = vshll.u32 %v4911, 16
      %v5301 = vrot.slane %v5299, 4
      %v5302 = vor.u32 %v5298, %v5301
      %v5303 = vrot.slane %v4987, 3
      %v5304 = vrot.slane %v4983, 4
      %v5305 = vor.u32 %v5303, %v5304
      %v5306 = vsel %vm4078, %v5302, %v5305
      %v5308 = vshrl.u32 %v4986, 16
      %v5310 = vrot.slane %v5308, 3
      %v5311 = vshll.u32 %v4986, 16
      %v5313 = vrot.slane %v5311, 4
      %v5314 = vor.u32 %v5310, %v5313
      %v5316 = vshrl.u32 %v4989, 16
      %v5318 = vrot.slane %v5316, 3
      %v5319 = vshll.u32 %v4989, 16
      %v5321 = vrot.slane %v5319, 4
      %v5322 = vor.u32 %v5318, %v5321
      %v5323 = vsel %vm4078, %v5314, %v5322
      %v5325 = vshrl.u32 %v5249, 16
      %v5327 = vrot.slane %v5325, 3
      %v5328 = vshll.u32 %v5249, 16
      %v5330 = vrot.slane %v5328, 4
      %v5331 = vor.u32 %v5327, %v5330
      %v5333 = vshrl.u32 %v5248, 16
      %v5335 = vrot.slane %v5333, 3
      %v5336 = vshll.u32 %v5248, 16
      %v5338 = vrot.slane %v5336, 4
      %v5339 = vor.u32 %v5335, %v5338
      %v5340 = vsel %vm4078, %v5331, %v5339
      %v5342 = vshrl.u32 %v4913, 16
      %v5344 = vrot.slane %v5342, 3
      %v5345 = vshll.u32 %v4913, 16
      %v5347 = vrot.slane %v5345, 4
      %v5348 = vor.u32 %v5344, %v5347
      %v5349 = vrot.slane %v5002, 3
      %v5350 = vrot.slane %v4998, 4
      %v5351 = vor.u32 %v5349, %v5350
      %v5352 = vsel %vm4078, %v5348, %v5351
      %v5354 = vshrl.u32 %v5001, 16
      %v5356 = vrot.slane %v5354, 3
      %v5357 = vshll.u32 %v5001, 16
      %v5359 = vrot.slane %v5357, 4
      %v5360 = vor.u32 %v5356, %v5359
      %v5362 = vshrl.u32 %v5004, 16
      %v5364 = vrot.slane %v5362, 3
      %v5365 = vshll.u32 %v5004, 16
      %v5367 = vrot.slane %v5365, 4
      %v5368 = vor.u32 %v5364, %v5367
      %v5369 = vsel %vm4078, %v5360, %v5368
      %v5371 = vshrl.u32 %v5252, 16
      %v5373 = vrot.slane %v5371, 3
      %v5374 = vshll.u32 %v5252, 16
      %v5376 = vrot.slane %v5374, 4
      %v5377 = vor.u32 %v5373, %v5376
      %v5379 = vshrl.u32 %v5251, 16
      %v5381 = vrot.slane %v5379, 3
      %v5382 = vshll.u32 %v5251, 16
      %v5384 = vrot.slane %v5382, 4
      %v5385 = vor.u32 %v5381, %v5384
      %v5386 = vsel %vm4078, %v5377, %v5385
      %v5388 = vshrl.u32 %v4915, 16
      %v5390 = vrot.slane %v5388, 3
      %v5391 = vshll.u32 %v4915, 16
      %v5393 = vrot.slane %v5391, 4
      %v5394 = vor.u32 %v5390, %v5393
      %v5395 = vrot.slane %v5017, 3
      %v5396 = vrot.slane %v5013, 4
      %v5397 = vor.u32 %v5395, %v5396
      %v5398 = vsel %vm4078, %v5394, %v5397
      %v5400 = vshrl.u32 %v5016, 16
      %v5402 = vrot.slane %v5400, 3
      %v5403 = vshll.u32 %v5016, 16
      %v5405 = vrot.slane %v5403, 4
      %v5406 = vor.u32 %v5402, %v5405
      %v5408 = vshrl.u32 %v5019, 16
      %v5410 = vrot.slane %v5408, 3
      %v5411 = vshll.u32 %v5019, 16
      %v5413 = vrot.slane %v5411, 4
      %v5414 = vor.u32 %v5410, %v5413
      %v5415 = vsel %vm4078, %v5406, %v5414
      %v5417 = vshrl.u32 %v5255, 16
      %v5419 = vrot.slane %v5417, 3
      %v5420 = vshll.u32 %v5255, 16
      %v5422 = vrot.slane %v5420, 4
      %v5423 = vor.u32 %v5419, %v5422
      %v5425 = vshrl.u32 %v5254, 16
      %v5427 = vrot.slane %v5425, 3
      %v5428 = vshll.u32 %v5254, 16
      %v5430 = vrot.slane %v5428, 4
      %v5431 = vor.u32 %v5427, %v5430
      %v5432 = vsel %vm4078, %v5423, %v5431
      %v5434 = vshrl.u32 %v4917, 16
      %v5436 = vrot.slane %v5434, 3
      %v5437 = vshll.u32 %v4917, 16
      %v5439 = vrot.slane %v5437, 4
      %v5440 = vor.u32 %v5436, %v5439
      %v5441 = vrot.slane %v5032, 3
      %v5442 = vrot.slane %v5028, 4
      %v5443 = vor.u32 %v5441, %v5442
      %v5444 = vsel %vm4078, %v5440, %v5443
      %v5446 = vshrl.u32 %v5031, 16
      %v5448 = vrot.slane %v5446, 3
      %v5449 = vshll.u32 %v5031, 16
      %v5451 = vrot.slane %v5449, 4
      %v5452 = vor.u32 %v5448, %v5451
      %v5454 = vshrl.u32 %v5034, 16
      %v5456 = vrot.slane %v5454, 3
      %v5457 = vshll.u32 %v5034, 16
      %v5459 = vrot.slane %v5457, 4
      %v5460 = vor.u32 %v5456, %v5459
      %v5461 = vsel %vm4078, %v5452, %v5460
      %v5463 = vshrl.u32 %v5258, 16
      %v5465 = vrot.slane %v5463, 3
      %v5466 = vshll.u32 %v5258, 16
      %v5468 = vrot.slane %v5466, 4
      %v5469 = vor.u32 %v5465, %v5468
      %v5471 = vshrl.u32 %v5257, 16
      %v5473 = vrot.slane %v5471, 3
      %v5474 = vshll.u32 %v5257, 16
      %v5476 = vrot.slane %v5474, 4
      %v5477 = vor.u32 %v5473, %v5476
      %v5478 = vsel %vm4078, %v5469, %v5477
      %v5480 = vshrl.u32 %v4919, 16
      %v5482 = vrot.slane %v5480, 3
      %v5483 = vshll.u32 %v4919, 16
      %v5485 = vrot.slane %v5483, 4
      %v5486 = vor.u32 %v5482, %v5485
      %v5487 = vrot.slane %v5047, 3
      %v5488 = vrot.slane %v5043, 4
      %v5489 = vor.u32 %v5487, %v5488
      %v5490 = vsel %vm4078, %v5486, %v5489
      %v5492 = vshrl.u32 %v5046, 16
      %v5494 = vrot.slane %v5492, 3
      %v5495 = vshll.u32 %v5046, 16
      %v5497 = vrot.slane %v5495, 4
      %v5498 = vor.u32 %v5494, %v5497
      %v5500 = vshrl.u32 %v5049, 16
      %v5502 = vrot.slane %v5500, 3
      %v5503 = vshll.u32 %v5049, 16
      %v5505 = vrot.slane %v5503, 4
      %v5506 = vor.u32 %v5502, %v5505
      %v5507 = vsel %vm4078, %v5498, %v5506
      %v5509 = vshrl.u32 %v5261, 16
      %v5511 = vrot.slane %v5509, 3
      %v5512 = vshll.u32 %v5261, 16
      %v5514 = vrot.slane %v5512, 4
      %v5515 = vor.u32 %v5511, %v5514
      %v5517 = vshrl.u32 %v5260, 16
      %v5519 = vrot.slane %v5517, 3
      %v5520 = vshll.u32 %v5260, 16
      %v5522 = vrot.slane %v5520, 4
      %v5523 = vor.u32 %v5519, %v5522
      %v5524 = vsel %vm4078, %v5515, %v5523
      %v5526 = vshrl.u32 %v4921, 16
      %v5528 = vrot.slane %v5526, 3
      %v5529 = vshll.u32 %v4921, 16
      %v5531 = vrot.slane %v5529, 4
      %v5532 = vor.u32 %v5528, %v5531
      %v5533 = vrot.slane %v5062, 3
      %v5534 = vrot.slane %v5058, 4
      %v5535 = vor.u32 %v5533, %v5534
      %v5536 = vsel %vm4078, %v5532, %v5535
      %v5538 = vshrl.u32 %v5061, 16
      %v5540 = vrot.slane %v5538, 3
      %v5541 = vshll.u32 %v5061, 16
      %v5543 = vrot.slane %v5541, 4
      %v5544 = vor.u32 %v5540, %v5543
      %v5546 = vshrl.u32 %v5064, 16
      %v5548 = vrot.slane %v5546, 3
      %v5549 = vshll.u32 %v5064, 16
      %v5551 = vrot.slane %v5549, 4
      %v5552 = vor.u32 %v5548, %v5551
      %v5553 = vsel %vm4078, %v5544, %v5552
      %v5555 = vshrl.u32 %v5264, 16
      %v5557 = vrot.slane %v5555, 3
      %v5558 = vshll.u32 %v5264, 16
      %v5560 = vrot.slane %v5558, 4
      %v5561 = vor.u32 %v5557, %v5560
      %v5563 = vshrl.u32 %v5263, 16
      %v5565 = vrot.slane %v5563, 3
      %v5566 = vshll.u32 %v5263, 16
      %v5568 = vrot.slane %v5566, 4
      %v5569 = vor.u32 %v5565, %v5568
      %v5570 = vsel %vm4078, %v5561, %v5569
      %v5572 = vshrl.u32 %v4923, 16
      %v5574 = vrot.slane %v5572, 3
      %v5575 = vshll.u32 %v4923, 16
      %v5577 = vrot.slane %v5575, 4
      %v5578 = vor.u32 %v5574, %v5577
      %v5579 = vrot.slane %v5077, 3
      %v5580 = vrot.slane %v5073, 4
      %v5581 = vor.u32 %v5579, %v5580
      %v5582 = vsel %vm4078, %v5578, %v5581
      %v5584 = vshrl.u32 %v5076, 16
      %v5586 = vrot.slane %v5584, 3
      %v5587 = vshll.u32 %v5076, 16
      %v5589 = vrot.slane %v5587, 4
      %v5590 = vor.u32 %v5586, %v5589
      %v5592 = vshrl.u32 %v5079, 16
      %v5594 = vrot.slane %v5592, 3
      %v5595 = vshll.u32 %v5079, 16
      %v5597 = vrot.slane %v5595, 4
      %v5598 = vor.u32 %v5594, %v5597
      %v5599 = vsel %vm4078, %v5590, %v5598
      %v5601 = vshrl.u32 %v5267, 16
      %v5603 = vrot.slane %v5601, 3
      %v5604 = vshll.u32 %v5267, 16
      %v5606 = vrot.slane %v5604, 4
      %v5607 = vor.u32 %v5603, %v5606
      %v5609 = vshrl.u32 %v5266, 16
      %v5611 = vrot.slane %v5609, 3
      %v5612 = vshll.u32 %v5266, 16
      %v5614 = vrot.slane %v5612, 4
      %v5615 = vor.u32 %v5611, %v5614
      %v5616 = vsel %vm4078, %v5607, %v5615
      %v5618 = vshrl.u32 %v4925, 16
      %v5620 = vrot.slane %v5618, 3
      %v5621 = vshll.u32 %v4925, 16
      %v5623 = vrot.slane %v5621, 4
      %v5624 = vor.u32 %v5620, %v5623
      %v5625 = vrot.slane %v5092, 3
      %v5626 = vrot.slane %v5088, 4
      %v5627 = vor.u32 %v5625, %v5626
      %v5628 = vsel %vm4078, %v5624, %v5627
      %v5630 = vshrl.u32 %v5091, 16
      %v5632 = vrot.slane %v5630, 3
      %v5633 = vshll.u32 %v5091, 16
      %v5635 = vrot.slane %v5633, 4
      %v5636 = vor.u32 %v5632, %v5635
      %v5638 = vshrl.u32 %v5094, 16
      %v5640 = vrot.slane %v5638, 3
      %v5641 = vshll.u32 %v5094, 16
      %v5643 = vrot.slane %v5641, 4
      %v5644 = vor.u32 %v5640, %v5643
      %v5645 = vsel %vm4078, %v5636, %v5644
      %v5647 = vshrl.u32 %v5270, 16
      %v5649 = vrot.slane %v5647, 3
      %v5650 = vshll.u32 %v5270, 16
      %v5652 = vrot.slane %v5650, 4
      %v5653 = vor.u32 %v5649, %v5652
      %v5655 = vshrl.u32 %v5269, 16
      %v5657 = vrot.slane %v5655, 3
      %v5658 = vshll.u32 %v5269, 16
      %v5660 = vrot.slane %v5658, 4
      %v5661 = vor.u32 %v5657, %v5660
      %v5662 = vsel %vm4078, %v5653, %v5661
      %v5664 = vshrl.u32 %v4927, 16
      %v5666 = vrot.slane %v5664, 3
      %v5667 = vshll.u32 %v4927, 16
      %v5669 = vrot.slane %v5667, 4
      %v5670 = vor.u32 %v5666, %v5669
      %v5671 = vrot.slane %v5107, 3
      %v5672 = vrot.slane %v5103, 4
      %v5673 = vor.u32 %v5671, %v5672
      %v5674 = vsel %vm4078, %v5670, %v5673
      %v5676 = vshrl.u32 %v5106, 16
      %v5678 = vrot.slane %v5676, 3
      %v5679 = vshll.u32 %v5106, 16
      %v5681 = vrot.slane %v5679, 4
      %v5682 = vor.u32 %v5678, %v5681
      %v5684 = vshrl.u32 %v5109, 16
      %v5686 = vrot.slane %v5684, 3
      %v5687 = vshll.u32 %v5109, 16
      %v5689 = vrot.slane %v5687, 4
      %v5690 = vor.u32 %v5686, %v5689
      %v5691 = vsel %vm4078, %v5682, %v5690
      %v5693 = vshrl.u32 %v5273, 16
      %v5695 = vrot.slane %v5693, 3
      %v5696 = vshll.u32 %v5273, 16
      %v5698 = vrot.slane %v5696, 4
      %v5699 = vor.u32 %v5695, %v5698
      %v5701 = vshrl.u32 %v5272, 16
      %v5703 = vrot.slane %v5701, 3
      %v5704 = vshll.u32 %v5272, 16
      %v5706 = vrot.slane %v5704, 4
      %v5707 = vor.u32 %v5703, %v5706
      %v5708 = vsel %vm4078, %v5699, %v5707
      %v5710 = vshrl.u32 %v4929, 16
      %v5712 = vrot.slane %v5710, 3
      %v5713 = vshll.u32 %v4929, 16
      %v5715 = vrot.slane %v5713, 4
      %v5716 = vor.u32 %v5712, %v5715
      %v5717 = vrot.slane %v5122, 3
      %v5718 = vrot.slane %v5118, 4
      %v5719 = vor.u32 %v5717, %v5718
      %v5720 = vsel %vm4078, %v5716, %v5719
      %v5722 = vshrl.u32 %v5121, 16
      %v5724 = vrot.slane %v5722, 3
      %v5725 = vshll.u32 %v5121, 16
      %v5727 = vrot.slane %v5725, 4
      %v5728 = vor.u32 %v5724, %v5727
      %v5730 = vshrl.u32 %v5124, 16
      %v5732 = vrot.slane %v5730, 3
      %v5733 = vshll.u32 %v5124, 16
      %v5735 = vrot.slane %v5733, 4
      %v5736 = vor.u32 %v5732, %v5735
      %v5737 = vsel %vm4078, %v5728, %v5736
      %v5739 = vshrl.u32 %v5276, 16
      %v5741 = vrot.slane %v5739, 3
      %v5742 = vshll.u32 %v5276, 16
      %v5744 = vrot.slane %v5742, 4
      %v5745 = vor.u32 %v5741, %v5744
      %v5747 = vshrl.u32 %v5275, 16
      %v5749 = vrot.slane %v5747, 3
      %v5750 = vshll.u32 %v5275, 16
      %v5752 = vrot.slane %v5750, 4
      %v5753 = vor.u32 %v5749, %v5752
      %v5754 = vsel %vm4078, %v5745, %v5753
      %v5756 = vshrl.u32 %v4931, 16
      %v5758 = vrot.slane %v5756, 3
      %v5759 = vshll.u32 %v4931, 16
      %v5761 = vrot.slane %v5759, 4
      %v5762 = vor.u32 %v5758, %v5761
      %v5763 = vrot.slane %v5137, 3
      %v5764 = vrot.slane %v5133, 4
      %v5765 = vor.u32 %v5763, %v5764
      %v5766 = vsel %vm4078, %v5762, %v5765
      %v5768 = vshrl.u32 %v5136, 16
      %v5770 = vrot.slane %v5768, 3
      %v5771 = vshll.u32 %v5136, 16
      %v5773 = vrot.slane %v5771, 4
      %v5774 = vor.u32 %v5770, %v5773
      %v5776 = vshrl.u32 %v5139, 16
      %v5778 = vrot.slane %v5776, 3
      %v5779 = vshll.u32 %v5139, 16
      %v5781 = vrot.slane %v5779, 4
      %v5782 = vor.u32 %v5778, %v5781
      %v5783 = vsel %vm4078, %v5774, %v5782
      %v5785 = vshrl.u32 %v5279, 16
      %v5787 = vrot.slane %v5785, 3
      %v5788 = vshll.u32 %v5279, 16
      %v5790 = vrot.slane %v5788, 4
      %v5791 = vor.u32 %v5787, %v5790
      %v5793 = vshrl.u32 %v5278, 16
      %v5795 = vrot.slane %v5793, 3
      %v5796 = vshll.u32 %v5278, 16
      %v5798 = vrot.slane %v5796, 4
      %v5799 = vor.u32 %v5795, %v5798
      %v5800 = vsel %vm4078, %v5791, %v5799
      %v5802 = vshrl.u32 %v4933, 16
      %v5804 = vrot.slane %v5802, 3
      %v5805 = vshll.u32 %v4933, 16
      %v5807 = vrot.slane %v5805, 4
      %v5808 = vor.u32 %v5804, %v5807
      %v5809 = vrot.slane %v5152, 3
      %v5810 = vrot.slane %v5148, 4
      %v5811 = vor.u32 %v5809, %v5810
      %v5812 = vsel %vm4078, %v5808, %v5811
      %v5814 = vshrl.u32 %v5151, 16
      %v5816 = vrot.slane %v5814, 3
      %v5817 = vshll.u32 %v5151, 16
      %v5819 = vrot.slane %v5817, 4
      %v5820 = vor.u32 %v5816, %v5819
      %v5822 = vshrl.u32 %v5154, 16
      %v5824 = vrot.slane %v5822, 3
      %v5825 = vshll.u32 %v5154, 16
      %v5827 = vrot.slane %v5825, 4
      %v5828 = vor.u32 %v5824, %v5827
      %v5829 = vsel %vm4078, %v5820, %v5828
      %v5831 = vshrl.u32 %v5282, 16
      %v5833 = vrot.slane %v5831, 3
      %v5834 = vshll.u32 %v5282, 16
      %v5836 = vrot.slane %v5834, 4
      %v5837 = vor.u32 %v5833, %v5836
      %v5839 = vshrl.u32 %v5281, 16
      %v5841 = vrot.slane %v5839, 3
      %v5842 = vshll.u32 %v5281, 16
      %v5844 = vrot.slane %v5842, 4
      %v5845 = vor.u32 %v5841, %v5844
      %v5846 = vsel %vm4078, %v5837, %v5845
      %v5848 = vshrl.u32 %v4935, 16
      %v5850 = vrot.slane %v5848, 3
      %v5851 = vshll.u32 %v4935, 16
      %v5853 = vrot.slane %v5851, 4
      %v5854 = vor.u32 %v5850, %v5853
      %v5855 = vrot.slane %v5167, 3
      %v5856 = vrot.slane %v5163, 4
      %v5857 = vor.u32 %v5855, %v5856
      %v5858 = vsel %vm4078, %v5854, %v5857
      %v5860 = vshrl.u32 %v5166, 16
      %v5862 = vrot.slane %v5860, 3
      %v5863 = vshll.u32 %v5166, 16
      %v5865 = vrot.slane %v5863, 4
      %v5866 = vor.u32 %v5862, %v5865
      %v5868 = vshrl.u32 %v5169, 16
      %v5870 = vrot.slane %v5868, 3
      %v5871 = vshll.u32 %v5169, 16
      %v5873 = vrot.slane %v5871, 4
      %v5874 = vor.u32 %v5870, %v5873
      %v5875 = vsel %vm4078, %v5866, %v5874
      %v5877 = vshrl.u32 %v5285, 16
      %v5879 = vrot.slane %v5877, 3
      %v5880 = vshll.u32 %v5285, 16
      %v5882 = vrot.slane %v5880, 4
      %v5883 = vor.u32 %v5879, %v5882
      %v5885 = vshrl.u32 %v5284, 16
      %v5887 = vrot.slane %v5885, 3
      %v5888 = vshll.u32 %v5284, 16
      %v5890 = vrot.slane %v5888, 4
      %v5891 = vor.u32 %v5887, %v5890
      %v5892 = vsel %vm4078, %v5883, %v5891
      %v5894 = vshrl.u32 %v4937, 16
      %v5896 = vrot.slane %v5894, 3
      %v5897 = vshll.u32 %v4937, 16
      %v5899 = vrot.slane %v5897, 4
      %v5900 = vor.u32 %v5896, %v5899
      %v5901 = vrot.slane %v5182, 3
      %v5902 = vrot.slane %v5178, 4
      %v5903 = vor.u32 %v5901, %v5902
      %v5904 = vsel %vm4078, %v5900, %v5903
      %v5906 = vshrl.u32 %v5181, 16
      %v5908 = vrot.slane %v5906, 3
      %v5909 = vshll.u32 %v5181, 16
      %v5911 = vrot.slane %v5909, 4
      %v5912 = vor.u32 %v5908, %v5911
      %v5914 = vshrl.u32 %v5184, 16
      %v5916 = vrot.slane %v5914, 3
      %v5917 = vshll.u32 %v5184, 16
      %v5919 = vrot.slane %v5917, 4
      %v5920 = vor.u32 %v5916, %v5919
      %v5921 = vsel %vm4078, %v5912, %v5920
      %v5923 = vshrl.u32 %v5288, 16
      %v5925 = vrot.slane %v5923, 3
      %v5926 = vshll.u32 %v5288, 16
      %v5928 = vrot.slane %v5926, 4
      %v5929 = vor.u32 %v5925, %v5928
      %v5931 = vshrl.u32 %v5287, 16
      %v5933 = vrot.slane %v5931, 3
      %v5934 = vshll.u32 %v5287, 16
      %v5936 = vrot.slane %v5934, 4
      %v5937 = vor.u32 %v5933, %v5936
      %v5938 = vsel %vm4078, %v5929, %v5937
      %v5940 = vshrl.u32 %v4939, 16
      %v5942 = vrot.slane %v5940, 3
      %v5943 = vshll.u32 %v4939, 16
      %v5945 = vrot.slane %v5943, 4
      %v5946 = vor.u32 %v5942, %v5945
      %v5947 = vrot.slane %v5197, 3
      %v5948 = vrot.slane %v5193, 4
      %v5949 = vor.u32 %v5947, %v5948
      %v5950 = vsel %vm4078, %v5946, %v5949
      %v5952 = vshrl.u32 %v5196, 16
      %v5954 = vrot.slane %v5952, 3
      %v5955 = vshll.u32 %v5196, 16
      %v5957 = vrot.slane %v5955, 4
      %v5958 = vor.u32 %v5954, %v5957
      %v5960 = vshrl.u32 %v5199, 16
      %v5962 = vrot.slane %v5960, 3
      %v5963 = vshll.u32 %v5199, 16
      %v5965 = vrot.slane %v5963, 4
      %v5966 = vor.u32 %v5962, %v5965
      %v5967 = vsel %vm4078, %v5958, %v5966
      %v5969 = vshrl.u32 %v5291, 16
      %v5971 = vrot.slane %v5969, 3
      %v5972 = vshll.u32 %v5291, 16
      %v5974 = vrot.slane %v5972, 4
      %v5975 = vor.u32 %v5971, %v5974
      %v5977 = vshrl.u32 %v5290, 16
      %v5979 = vrot.slane %v5977, 3
      %v5980 = vshll.u32 %v5290, 16
      %v5982 = vrot.slane %v5980, 4
      %v5983 = vor.u32 %v5979, %v5982
      %v5984 = vsel %vm4078, %v5975, %v5983
      %v5986 = vshrl.u32 %v4941, 16
      %v5988 = vrot.slane %v5986, 3
      %v5989 = vshll.u32 %v4941, 16
      %v5991 = vrot.slane %v5989, 4
      %v5992 = vor.u32 %v5988, %v5991
      %v5993 = vrot.slane %v5212, 3
      %v5994 = vrot.slane %v5208, 4
      %v5995 = vor.u32 %v5993, %v5994
      %v5996 = vsel %vm4078, %v5992, %v5995
      %v5998 = vshrl.u32 %v5211, 16
      %v6000 = vrot.slane %v5998, 3
      %v6001 = vshll.u32 %v5211, 16
      %v6003 = vrot.slane %v6001, 4
      %v6004 = vor.u32 %v6000, %v6003
      %v6006 = vshrl.u32 %v5214, 16
      %v6008 = vrot.slane %v6006, 3
      %v6009 = vshll.u32 %v5214, 16
      %v6011 = vrot.slane %v6009, 4
      %v6012 = vor.u32 %v6008, %v6011
      %v6013 = vsel %vm4078, %v6004, %v6012
      %v6015 = vshrl.u32 %v5294, 16
      %v6017 = vrot.slane %v6015, 3
      %v6018 = vshll.u32 %v5294, 16
      %v6020 = vrot.slane %v6018, 4
      %v6021 = vor.u32 %v6017, %v6020
      %v6023 = vshrl.u32 %v5293, 16
      %v6025 = vrot.slane %v6023, 3
      %v6026 = vshll.u32 %v5293, 16
      %v6028 = vrot.slane %v6026, 4
      %v6029 = vor.u32 %v6025, %v6028
      %v6030 = vsel %vm4078, %v6021, %v6029
      %s6079 = scalar_lea.vmem %s4, 192
      %v6080 = vld [vmem:[%s6079] sm:$0xf]
      %v6081 = vld [vmem:[%s6079 + $0x4] sm:$0xf]
      %v6082 = vld [vmem:[%s6079 + $0x8] sm:$0xf]
      %v6083 = vld [vmem:[%s6079 + $0xc] sm:$0xf]
      %v6084 = vld [vmem:[%s6079 + $0x10] sm:$0xf]
      %v6085 = vld [vmem:[%s6079 + $0x14] sm:$0xf]
      %v6086 = vld [vmem:[%s6079 + $0x18] sm:$0xf]
      %v6087 = vld [vmem:[%s6079 + $0x1c] sm:$0xf]
      %v6088 = vld [vmem:[%s6079 + $0x20] sm:$0xf]
      %v6089 = vld [vmem:[%s6079 + $0x24] sm:$0xf]
      %v6090 = vld [vmem:[%s6079 + $0x28] sm:$0xf]
      %v6091 = vld [vmem:[%s6079 + $0x2c] sm:$0xf]
      %v6092 = vld [vmem:[%s6079 + $0x30] sm:$0xf]
      %v6093 = vld [vmem:[%s6079 + $0x34] sm:$0xf]
      %v6094 = vld [vmem:[%s6079 + $0x38] sm:$0xf]
      %v6095 = vld [vmem:[%s6079 + $0x3c] sm:$0xf]
      %v6096 = vld [vmem:[%s6079 + $0x40] sm:$0xf]
      %v6097 = vld [vmem:[%s6079 + $0x44] sm:$0xf]
      %v6098 = vld [vmem:[%s6079 + $0x48] sm:$0xf]
      %v6099 = vld [vmem:[%s6079 + $0x4c] sm:$0xf]
      %v6100 = vld [vmem:[%s6079 + $0x50] sm:$0xf]
      %v6101 = vld [vmem:[%s6079 + $0x54] sm:$0xf]
      %v6102 = vld [vmem:[%s6079 + $0x58] sm:$0xf]
      %v6103 = vld [vmem:[%s6079 + $0x5c] sm:$0xf]
      %v6104 = vld [vmem:[%s6079 + $0x60] sm:$0xf]
      %v6105 = vld [vmem:[%s6079 + $0x64] sm:$0xf]
      %v6106 = vld [vmem:[%s6079 + $0x68] sm:$0xf]
      %v6107 = vld [vmem:[%s6079 + $0x6c] sm:$0xf]
      %v6108 = vld [vmem:[%s6079 + $0x70] sm:$0xf]
      %v6109 = vld [vmem:[%s6079 + $0x74] sm:$0xf]
      %v6110 = vld [vmem:[%s6079 + $0x78] sm:$0xf]
      %v6111 = vld [vmem:[%s6079 + $0x7c] sm:$0xf]
      %v6112 = vld [vmem:[%s6079 + $0x80] sm:$0xf]
      %v6113 = vld [vmem:[%s6079 + $0x84] sm:$0xf]
      %v6114 = vld [vmem:[%s6079 + $0x88] sm:$0xf]
      %v6115 = vld [vmem:[%s6079 + $0x8c] sm:$0xf]
      %v6116 = vld [vmem:[%s6079 + $0x90] sm:$0xf]
      %v6117 = vld [vmem:[%s6079 + $0x94] sm:$0xf]
      %v6118 = vld [vmem:[%s6079 + $0x98] sm:$0xf]
      %v6119 = vld [vmem:[%s6079 + $0x9c] sm:$0xf]
      %v6120 = vld [vmem:[%s6079 + $0xa0] sm:$0xf]
      %v6121 = vld [vmem:[%s6079 + $0xa4] sm:$0xf]
      %v6122 = vld [vmem:[%s6079 + $0xa8] sm:$0xf]
      %v6123 = vld [vmem:[%s6079 + $0xac] sm:$0xf]
      %v6124 = vld [vmem:[%s6079 + $0xb0] sm:$0xf]
      %v6125 = vld [vmem:[%s6079 + $0xb4] sm:$0xf]
      %v6126 = vld [vmem:[%s6079 + $0xb8] sm:$0xf]
      %v6127 = vld [vmem:[%s6079 + $0xbc] sm:$0xf]
      %v6176 = vunpack.c.l.b16 %v6080
      %v6177 = vunpack.c.l.b16 %v6081
      %v6178 = vunpack.c.l.b16 %v6082
      %v6179 = vunpack.c.l.b16 %v6083
      %v6180 = vunpack.c.l.b16 %v6084
      %v6181 = vunpack.c.l.b16 %v6085
      %v6182 = vunpack.c.l.b16 %v6086
      %v6183 = vunpack.c.l.b16 %v6087
      %v6184 = vunpack.c.l.b16 %v6088
      %v6185 = vunpack.c.l.b16 %v6089
      %v6186 = vunpack.c.l.b16 %v6090
      %v6187 = vunpack.c.l.b16 %v6091
      %v6188 = vunpack.c.l.b16 %v6092
      %v6189 = vunpack.c.l.b16 %v6093
      %v6190 = vunpack.c.l.b16 %v6094
      %v6191 = vunpack.c.l.b16 %v6095
      %v6192 = vunpack.c.l.b16 %v6096
      %v6193 = vunpack.c.l.b16 %v6097
      %v6194 = vunpack.c.l.b16 %v6098
      %v6195 = vunpack.c.l.b16 %v6099
      %v6196 = vunpack.c.l.b16 %v6100
      %v6197 = vunpack.c.l.b16 %v6101
      %v6198 = vunpack.c.l.b16 %v6102
      %v6199 = vunpack.c.l.b16 %v6103
      %v6200 = vunpack.c.l.b16 %v6104
      %v6201 = vunpack.c.l.b16 %v6105
      %v6202 = vunpack.c.l.b16 %v6106
      %v6203 = vunpack.c.l.b16 %v6107
      %v6204 = vunpack.c.l.b16 %v6108
      %v6205 = vunpack.c.l.b16 %v6109
      %v6206 = vunpack.c.l.b16 %v6110
      %v6207 = vunpack.c.l.b16 %v6111
      %v6208 = vunpack.c.l.b16 %v6112
      %v6209 = vunpack.c.l.b16 %v6113
      %v6210 = vunpack.c.l.b16 %v6114
      %v6211 = vunpack.c.l.b16 %v6115
      %v6212 = vunpack.c.l.b16 %v6116
      %v6213 = vunpack.c.l.b16 %v6117
      %v6214 = vunpack.c.l.b16 %v6118
      %v6215 = vunpack.c.l.b16 %v6119
      %v6216 = vunpack.c.l.b16 %v6120
      %v6217 = vunpack.c.l.b16 %v6121
      %v6218 = vunpack.c.l.b16 %v6122
      %v6219 = vunpack.c.l.b16 %v6123
      %v6220 = vunpack.c.l.b16 %v6124
      %v6221 = vunpack.c.l.b16 %v6125
      %v6222 = vunpack.c.l.b16 %v6126
      %v6223 = vunpack.c.l.b16 %v6127
      %v6224 = vpack.c.b16 %v6177, %v6176
      %v6225 = vpack.c.b16 %v6179, %v6178
      %v6226 = vpack.c.b16 %v6181, %v6180
      %v6227 = vpack.c.b16 %v6183, %v6182
      %v6228 = vpack.c.b16 %v6185, %v6184
      %v6229 = vpack.c.b16 %v6187, %v6186
      %v6230 = vpack.c.b16 %v6189, %v6188
      %v6231 = vpack.c.b16 %v6191, %v6190
      %v6232 = vpack.c.b16 %v6193, %v6192
      %v6233 = vpack.c.b16 %v6195, %v6194
      %v6234 = vpack.c.b16 %v6197, %v6196
      %v6235 = vpack.c.b16 %v6199, %v6198
      %v6236 = vpack.c.b16 %v6201, %v6200
      %v6237 = vpack.c.b16 %v6203, %v6202
      %v6238 = vpack.c.b16 %v6205, %v6204
      %v6239 = vpack.c.b16 %v6207, %v6206
      %v6240 = vpack.c.b16 %v6209, %v6208
      %v6241 = vpack.c.b16 %v6211, %v6210
      %v6242 = vpack.c.b16 %v6213, %v6212
      %v6243 = vpack.c.b16 %v6215, %v6214
      %v6244 = vpack.c.b16 %v6217, %v6216
      %v6245 = vpack.c.b16 %v6219, %v6218
      %v6246 = vpack.c.b16 %v6221, %v6220
      %v6247 = vpack.c.b16 %v6223, %v6222
      %6272 = vmatprep.subr.bf16.mxu0 0
      %6273 = vmatpush1.bf16.msra.mxu0 %v6224
      %6274 = vmatprep.subr.bf16.mxu0 0
      %6275 = vmatpush1.bf16.msra.mxu0 %v6225
      %6276 = vmatprep.subr.bf16.mxu0 0
      %6277 = vmatpush1.bf16.msra.mxu0 %v6226
      %6278 = vmatprep.subr.bf16.mxu0 0
      %6279 = vmatpush1.bf16.msra.mxu0 %v6227
      %6280 = vmatprep.subr.bf16.mxu0 0
      %6281 = vmatpush1.bf16.msra.mxu0 %v6228
      %6282 = vmatprep.subr.bf16.mxu0 0
      %6283 = vmatpush1.bf16.msra.mxu0 %v6229
      %6284 = vmatprep.subr.bf16.mxu0 0
      %6285 = vmatpush1.bf16.msra.mxu0 %v6230
      %6286 = vmatprep.subr.bf16.mxu0 0
      %6287 = vmatpush1.bf16.msra.mxu0 %v6231
      %6288 = vmatprep.subr.bf16.mxu0 0
      %6289 = vmatpush1.bf16.msra.mxu0 %v6232
      %6290 = vmatprep.subr.bf16.mxu0 0
      %6291 = vmatpush1.bf16.msra.mxu0 %v6233
      %6292 = vmatprep.subr.bf16.mxu0 0
      %6293 = vmatpush1.bf16.msra.mxu0 %v6234
      %6294 = vmatprep.subr.bf16.mxu0 0
      %6295 = vmatpush1.bf16.msra.mxu0 %v6235
      %6296 = vmatprep.subr.bf16.mxu0 0
      %6297 = vmatpush1.bf16.msra.mxu0 %v6236
      %6298 = vmatprep.subr.bf16.mxu0 0
      %6299 = vmatpush1.bf16.msra.mxu0 %v6237
      %6300 = vmatprep.subr.bf16.mxu0 0
      %6301 = vmatpush1.bf16.msra.mxu0 %v6238
      %6302 = vmatprep.subr.bf16.mxu0 0
      %6303 = vmatpush1.bf16.msra.mxu0 %v6239
      %6304 = vmatprep.mubr.bf16.mxu0 %v5323
      %6305 = vmatmul.mubr.bf16.gmra.mrb[0].mxu0 %v5306
      %v6306 = vpop.f32.mrb[0].mxu0
      %v6307 = vadd.f32 0.0, %v6306
      %v6308 = vpop.f32.mrb[0].mxu0
      %v6309 = vpop.f32.mrb[0].mxu0
      %v6310 = vadd.f32 0.0, %v6309
      %v6311 = vpop.f32.mrb[0].mxu0
      %6312 = vmatprep.mubr.bf16.mxu0 %v5369
      %6313 = vmatmul.mubr.bf16.gmra.mrb[0].mxu0 %v5352
      %v6314 = vpop.f32.mrb[0].mxu0
      %v6315 = vadd.f32 0.0, %v6314
      %v6316 = vpop.f32.mrb[0].mxu0
      %v6317 = vpop.f32.mrb[0].mxu0
      %v6318 = vadd.f32 0.0, %v6317
      %v6319 = vpop.f32.mrb[0].mxu0
      %6320 = vmatprep.mubr.bf16.mxu0 %v5415
      %6321 = vmatmul.mubr.bf16.gmra.mrb[0].mxu0 %v5398
      %v6322 = vpop.f32.mrb[0].mxu0
      %v6323 = vadd.f32 0.0, %v6322
      %v6324 = vpop.f32.mrb[0].mxu0
      %v6325 = vpop.f32.mrb[0].mxu0
      %v6326 = vadd.f32 0.0, %v6325
      %v6327 = vpop.f32.mrb[0].mxu0
      %6328 = vmatprep.mubr.bf16.mxu0 %v5461
      %6329 = vmatmul.mubr.bf16.gmra.mrb[0].mxu0 %v5444
      %v6330 = vpop.f32.mrb[0].mxu0
      %v6331 = vadd.f32 0.0, %v6330
      %v6332 = vpop.f32.mrb[0].mxu0
      %v6333 = vpop.f32.mrb[0].mxu0
      %v6334 = vadd.f32 0.0, %v6333
      %v6335 = vpop.f32.mrb[0].mxu0
      %6336 = vmatprep.mubr.bf16.mxu0 %v5507
      %6337 = vmatmul.mubr.bf16.gmra.mrb[0].mxu0 %v5490
      %v6338 = vpop.f32.mrb[0].mxu0
      %v6339 = vadd.f32 0.0, %v6338
      %v6340 = vpop.f32.mrb[0].mxu0
      %v6341 = vpop.f32.mrb[0].mxu0
      %v6342 = vadd.f32 0.0, %v6341
      %v6343 = vpop.f32.mrb[0].mxu0
      %6344 = vmatprep.mubr.bf16.mxu0 %v5553
      %6345 = vmatmul.mubr.bf16.gmra.mrb[0].mxu0 %v5536
      %v6346 = vpop.f32.mrb[0].mxu0
      %v6347 = vadd.f32 0.0, %v6346
      %v6348 = vpop.f32.mrb[0].mxu0
      %v6349 = vpop.f32.mrb[0].mxu0
      %v6350 = vadd.f32 0.0, %v6349
      %v6351 = vpop.f32.mrb[0].mxu0
      %6352 = vmatprep.mubr.bf16.mxu0 %v5599
      %6353 = vmatmul.mubr.bf16.gmra.mrb[0].mxu0 %v5582
      %v6354 = vpop.f32.mrb[0].mxu0
      %v6355 = vadd.f32 0.0, %v6354
      %v6356 = vpop.f32.mrb[0].mxu0
      %v6357 = vpop.f32.mrb[0].mxu0
      %v6358 = vadd.f32 0.0, %v6357
      %v6359 = vpop.f32.mrb[0].mxu0
      %6360 = vmatprep.mubr.bf16.mxu0 %v5645
      %6361 = vmatmul.mubr.bf16.gmra.mrb[0].mxu0 %v5628
      %v6362 = vpop.f32.mrb[0].mxu0
      %v6363 = vadd.f32 0.0, %v6362
      %v6364 = vpop.f32.mrb[0].mxu0
      %v6365 = vpop.f32.mrb[0].mxu0
      %v6366 = vadd.f32 0.0, %v6365
      %v6367 = vpop.f32.mrb[0].mxu0
      %6368 = vmatprep.mubr.bf16.mxu0 %v5691
      %6369 = vmatmul.mubr.bf16.gmra.mrb[0].mxu0 %v5674
      %v6370 = vpop.f32.mrb[0].mxu0
      %v6371 = vadd.f32 0.0, %v6370
      %v6372 = vpop.f32.mrb[0].mxu0
      %v6373 = vpop.f32.mrb[0].mxu0
      %v6374 = vadd.f32 0.0, %v6373
      %v6375 = vpop.f32.mrb[0].mxu0
      %6376 = vmatprep.mubr.bf16.mxu0 %v5737
      %6377 = vmatmul.mubr.bf16.gmra.mrb[0].mxu0 %v5720
      %v6378 = vpop.f32.mrb[0].mxu0
      %v6379 = vadd.f32 0.0, %v6378
      %v6380 = vpop.f32.mrb[0].mxu0
      %v6381 = vpop.f32.mrb[0].mxu0
      %v6382 = vadd.f32 0.0, %v6381
      %v6383 = vpop.f32.mrb[0].mxu0
      %6384 = vmatprep.mubr.bf16.mxu0 %v5783
      %6385 = vmatmul.mubr.bf16.gmra.mrb[0].mxu0 %v5766
      %v6386 = vpop.f32.mrb[0].mxu0
      %v6387 = vadd.f32 0.0, %v6386
      %v6388 = vpop.f32.mrb[0].mxu0
      %v6389 = vpop.f32.mrb[0].mxu0
      %v6390 = vadd.f32 0.0, %v6389
      %v6391 = vpop.f32.mrb[0].mxu0
      %6392 = vmatprep.mubr.bf16.mxu0 %v5829
      %6393 = vmatmul.mubr.bf16.gmra.mrb[0].mxu0 %v5812
      %v6394 = vpop.f32.mrb[0].mxu0
      %v6395 = vadd.f32 0.0, %v6394
      %v6396 = vpop.f32.mrb[0].mxu0
      %v6397 = vpop.f32.mrb[0].mxu0
      %v6398 = vadd.f32 0.0, %v6397
      %v6399 = vpop.f32.mrb[0].mxu0
      %6400 = vmatprep.mubr.bf16.mxu0 %v5875
      %6401 = vmatmul.mubr.bf16.gmra.mrb[0].mxu0 %v5858
      %v6402 = vpop.f32.mrb[0].mxu0
      %v6403 = vadd.f32 0.0, %v6402
      %v6404 = vpop.f32.mrb[0].mxu0
      %v6405 = vpop.f32.mrb[0].mxu0
      %v6406 = vadd.f32 0.0, %v6405
      %v6407 = vpop.f32.mrb[0].mxu0
      %6408 = vmatprep.mubr.bf16.mxu0 %v5921
      %6409 = vmatmul.mubr.bf16.gmra.mrb[0].mxu0 %v5904
      %v6410 = vpop.f32.mrb[0].mxu0
      %v6411 = vadd.f32 0.0, %v6410
      %v6412 = vpop.f32.mrb[0].mxu0
      %v6413 = vpop.f32.mrb[0].mxu0
      %v6414 = vadd.f32 0.0, %v6413
      %v6415 = vpop.f32.mrb[0].mxu0
      %6416 = vmatprep.mubr.bf16.mxu0 %v5967
      %6417 = vmatmul.mubr.bf16.gmra.mrb[0].mxu0 %v5950
      %v6418 = vpop.f32.mrb[0].mxu0
      %v6419 = vadd.f32 0.0, %v6418
      %v6420 = vpop.f32.mrb[0].mxu0
      %v6421 = vpop.f32.mrb[0].mxu0
      %v6422 = vadd.f32 0.0, %v6421
      %v6423 = vpop.f32.mrb[0].mxu0
      %6424 = vmatprep.mubr.bf16.mxu0 %v6013
      %6425 = vmatmul.mubr.bf16.gmra.mrb[0].mxu0 %v5996
      %v6426 = vpop.f32.mrb[0].mxu0
      %v6427 = vadd.f32 0.0, %v6426
      %v6428 = vpop.f32.mrb[0].mxu0
      %v6429 = vpop.f32.mrb[0].mxu0
      %v6430 = vadd.f32 0.0, %v6429
      %v6431 = vpop.f32.mrb[0].mxu0
      %6432 = vdwg.mxu0
      %6433 = vmatprep.subr.bf16.mxu0 0
      %6434 = vmatpush1.bf16.msra.mxu0 %v6240
      %6435 = vmatprep.subr.bf16.mxu0 0
      %6436 = vmatpush1.bf16.msra.mxu0 %v6241
      %6437 = vmatprep.subr.bf16.mxu0 0
      %6438 = vmatpush1.bf16.msra.mxu0 %v6242
      %6439 = vmatprep.subr.bf16.mxu0 0
      %6440 = vmatpush1.bf16.msra.mxu0 %v6243
      %6441 = vmatprep.subr.bf16.mxu0 0
      %6442 = vmatpush1.bf16.msra.mxu0 %v6244
      %6443 = vmatprep.subr.bf16.mxu0 0
      %6444 = vmatpush1.bf16.msra.mxu0 %v6245
      %6445 = vmatprep.subr.bf16.mxu0 0
      %6446 = vmatpush1.bf16.msra.mxu0 %v6246
      %6447 = vmatprep.subr.bf16.mxu0 0
      %6448 = vmatpush1.bf16.msra.mxu0 %v6247
      %6449 = vmatprep.subr.bf16.mxu0 0
      %6450 = vmatpush1.bf16.msra.mxu0 0
      %6451 = vmatprep.subr.bf16.mxu0 0
      %6452 = vmatpush1.bf16.msra.mxu0 0
      %6453 = vmatprep.subr.bf16.mxu0 0
      %6454 = vmatpush1.bf16.msra.mxu0 0
      %6455 = vmatprep.subr.bf16.mxu0 0
      %6456 = vmatpush1.bf16.msra.mxu0 0
      %6457 = vmatprep.subr.bf16.mxu0 0
      %6458 = vmatpush1.bf16.msra.mxu0 0
      %6459 = vmatprep.subr.bf16.mxu0 0
      %6460 = vmatpush1.bf16.msra.mxu0 0
      %6461 = vmatprep.subr.bf16.mxu0 0
      %6462 = vmatpush1.bf16.msra.mxu0 0
      %6463 = vmatprep.subr.bf16.mxu0 0
      %6464 = vmatpush1.bf16.msra.mxu0 0
      %6465 = vmatprep.mubr.bf16.mxu0 0
      %6466 = vmatmul.mubr.bf16.gmra.mrb[0].mxu0 %v5340
      %v6467 = vpop.f32.mrb[0].mxu0
      %v6468 = vadd.f32 %v6307, %v6467
      %v6469 = vpop.f32.mrb[0].mxu0
      %v6470 = vpop.f32.mrb[0].mxu0
      %v6471 = vadd.f32 %v6310, %v6470
      %v6472 = vpop.f32.mrb[0].mxu0
      %6473 = vmatprep.mubr.bf16.mxu0 0
      %6474 = vmatmul.mubr.bf16.gmra.mrb[0].mxu0 %v5386
      %v6475 = vpop.f32.mrb[0].mxu0
      %v6476 = vadd.f32 %v6315, %v6475
      %v6477 = vpop.f32.mrb[0].mxu0
      %v6478 = vpop.f32.mrb[0].mxu0
      %v6479 = vadd.f32 %v6318, %v6478
      %v6480 = vpop.f32.mrb[0].mxu0
      %6481 = vmatprep.mubr.bf16.mxu0 0
      %6482 = vmatmul.mubr.bf16.gmra.mrb[0].mxu0 %v5432
      %v6483 = vpop.f32.mrb[0].mxu0
      %v6484 = vadd.f32 %v6323, %v6483
      %v6485 = vpop.f32.mrb[0].mxu0
      %v6486 = vpop.f32.mrb[0].mxu0
      %v6487 = vadd.f32 %v6326, %v6486
      %v6488 = vpop.f32.mrb[0].mxu0
      %6489 = vmatprep.mubr.bf16.mxu0 0
      %6490 = vmatmul.mubr.bf16.gmra.mrb[0].mxu0 %v5478
      %v6491 = vpop.f32.mrb[0].mxu0
      %v6492 = vadd.f32 %v6331, %v6491
      %v6493 = vpop.f32.mrb[0].mxu0
      %v6494 = vpop.f32.mrb[0].mxu0
      %v6495 = vadd.f32 %v6334, %v6494
      %v6496 = vpop.f32.mrb[0].mxu0
      %6497 = vmatprep.mubr.bf16.mxu0 0
      %6498 = vmatmul.mubr.bf16.gmra.mrb[0].mxu0 %v5524
      %v6499 = vpop.f32.mrb[0].mxu0
      %v6500 = vadd.f32 %v6339, %v6499
      %v6501 = vpop.f32.mrb[0].mxu0
      %v6502 = vpop.f32.mrb[0].mxu0
      %v6503 = vadd.f32 %v6342, %v6502
      %v6504 = vpop.f32.mrb[0].mxu0
      %6505 = vmatprep.mubr.bf16.mxu0 0
      %6506 = vmatmul.mubr.bf16.gmra.mrb[0].mxu0 %v5570
      %v6507 = vpop.f32.mrb[0].mxu0
      %v6508 = vadd.f32 %v6347, %v6507
      %v6509 = vpop.f32.mrb[0].mxu0
      %v6510 = vpop.f32.mrb[0].mxu0
      %v6511 = vadd.f32 %v6350, %v6510
      %v6512 = vpop.f32.mrb[0].mxu0
      %6513 = vmatprep.mubr.bf16.mxu0 0
      %6514 = vmatmul.mubr.bf16.gmra.mrb[0].mxu0 %v5616
      %v6515 = vpop.f32.mrb[0].mxu0
      %v6516 = vadd.f32 %v6355, %v6515
      %v6517 = vpop.f32.mrb[0].mxu0
      %v6518 = vpop.f32.mrb[0].mxu0
      %v6519 = vadd.f32 %v6358, %v6518
      %v6520 = vpop.f32.mrb[0].mxu0
      %6521 = vmatprep.mubr.bf16.mxu0 0
      %6522 = vmatmul.mubr.bf16.gmra.mrb[0].mxu0 %v5662
      %v6523 = vpop.f32.mrb[0].mxu0
      %v6524 = vadd.f32 %v6363, %v6523
      %v6525 = vpop.f32.mrb[0].mxu0
      %v6526 = vpop.f32.mrb[0].mxu0
      %v6527 = vadd.f32 %v6366, %v6526
      %v6528 = vpop.f32.mrb[0].mxu0
      %6529 = vmatprep.mubr.bf16.mxu0 0
      %6530 = vmatmul.mubr.bf16.gmra.mrb[0].mxu0 %v5708
      %v6531 = vpop.f32.mrb[0].mxu0
      %v6532 = vadd.f32 %v6371, %v6531
      %v6533 = vpop.f32.mrb[0].mxu0
      %v6534 = vpop.f32.mrb[0].mxu0
      %v6535 = vadd.f32 %v6374, %v6534
      %v6536 = vpop.f32.mrb[0].mxu0
      %6537 = vmatprep.mubr.bf16.mxu0 0
      %6538 = vmatmul.mubr.bf16.gmra.mrb[0].mxu0 %v5754
      %v6539 = vpop.f32.mrb[0].mxu0
      %v6540 = vadd.f32 %v6379, %v6539
      %v6541 = vpop.f32.mrb[0].mxu0
      %v6542 = vpop.f32.mrb[0].mxu0
      %v6543 = vadd.f32 %v6382, %v6542
      %v6544 = vpop.f32.mrb[0].mxu0
      %6545 = vmatprep.mubr.bf16.mxu0 0
      %6546 = vmatmul.mubr.bf16.gmra.mrb[0].mxu0 %v5800
      %v6547 = vpop.f32.mrb[0].mxu0
      %v6548 = vadd.f32 %v6387, %v6547
      %v6549 = vpop.f32.mrb[0].mxu0
      %v6550 = vpop.f32.mrb[0].mxu0
      %v6551 = vadd.f32 %v6390, %v6550
      %v6552 = vpop.f32.mrb[0].mxu0
      %6553 = vmatprep.mubr.bf16.mxu0 0
      %6554 = vmatmul.mubr.bf16.gmra.mrb[0].mxu0 %v5846
      %v6555 = vpop.f32.mrb[0].mxu0
      %v6556 = vadd.f32 %v6395, %v6555
      %v6557 = vpop.f32.mrb[0].mxu0
      %v6558 = vpop.f32.mrb[0].mxu0
      %v6559 = vadd.f32 %v6398, %v6558
      %v6560 = vpop.f32.mrb[0].mxu0
      %6561 = vmatprep.mubr.bf16.mxu0 0
      %6562 = vmatmul.mubr.bf16.gmra.mrb[0].mxu0 %v5892
      %v6563 = vpop.f32.mrb[0].mxu0
      %v6564 = vadd.f32 %v6403, %v6563
      %v6565 = vpop.f32.mrb[0].mxu0
      %v6566 = vpop.f32.mrb[0].mxu0
      %v6567 = vadd.f32 %v6406, %v6566
      %v6568 = vpop.f32.mrb[0].mxu0
      %6569 = vmatprep.mubr.bf16.mxu0 0
      %6570 = vmatmul.mubr.bf16.gmra.mrb[0].mxu0 %v5938
      %v6571 = vpop.f32.mrb[0].mxu0
      %v6572 = vadd.f32 %v6411, %v6571
      %v6573 = vpop.f32.mrb[0].mxu0
      %v6574 = vpop.f32.mrb[0].mxu0
      %v6575 = vadd.f32 %v6414, %v6574
      %v6576 = vpop.f32.mrb[0].mxu0
      %6577 = vmatprep.mubr.bf16.mxu0 0
      %6578 = vmatmul.mubr.bf16.gmra.mrb[0].mxu0 %v5984
      %v6579 = vpop.f32.mrb[0].mxu0
      %v6580 = vadd.f32 %v6419, %v6579
      %v6581 = vpop.f32.mrb[0].mxu0
      %v6582 = vpop.f32.mrb[0].mxu0
      %v6583 = vadd.f32 %v6422, %v6582
      %v6584 = vpop.f32.mrb[0].mxu0
      %6585 = vmatprep.mubr.bf16.mxu0 0
      %6586 = vmatmul.mubr.bf16.gmra.mrb[0].mxu0 %v6030
      %v6587 = vpop.f32.mrb[0].mxu0
      %v6588 = vadd.f32 %v6427, %v6587
      %v6589 = vpop.f32.mrb[0].mxu0
      %v6590 = vpop.f32.mrb[0].mxu0
      %v6591 = vadd.f32 %v6430, %v6590
      %v6592 = vpop.f32.mrb[0].mxu0
      %6593 = vdwg.mxu0
      %v6642 = vunpack.c.l.b16 %v4863
      %v6643 = vunpack.c.l.b16 %v4864
      %v6644 = vunpack.c.l.b16 %v4865
      %v6645 = vunpack.c.l.b16 %v4866
      %v6646 = vunpack.c.l.b16 %v4867
      %v6647 = vunpack.c.l.b16 %v4868
      %v6648 = vunpack.c.l.b16 %v4869
      %v6649 = vunpack.c.l.b16 %v4870
      %v6650 = vunpack.c.l.b16 %v4871
      %v6651 = vunpack.c.l.b16 %v4872
      %v6652 = vunpack.c.l.b16 %v4873
      %v6653 = vunpack.c.l.b16 %v4874
      %v6654 = vunpack.c.l.b16 %v4875
      %v6655 = vunpack.c.l.b16 %v4876
      %v6656 = vunpack.c.l.b16 %v4877
      %v6657 = vunpack.c.l.b16 %v4878
      %v6658 = vunpack.c.l.b16 %v4879
      %v6659 = vunpack.c.l.b16 %v4880
      %v6660 = vunpack.c.l.b16 %v4881
      %v6661 = vunpack.c.l.b16 %v4882
      %v6662 = vunpack.c.l.b16 %v4883
      %v6663 = vunpack.c.l.b16 %v4884
      %v6664 = vunpack.c.l.b16 %v4885
      %v6665 = vunpack.c.l.b16 %v4886
      %v6666 = vunpack.c.l.b16 %v4887
      %v6667 = vunpack.c.l.b16 %v4888
      %v6668 = vunpack.c.l.b16 %v4889
      %v6669 = vunpack.c.l.b16 %v4890
      %v6670 = vunpack.c.l.b16 %v4891
      %v6671 = vunpack.c.l.b16 %v4892
      %v6672 = vunpack.c.l.b16 %v4893
      %v6673 = vunpack.c.l.b16 %v4894
      %v6674 = vunpack.c.l.b16 %v4895
      %v6675 = vunpack.c.l.b16 %v4896
      %v6676 = vunpack.c.l.b16 %v4897
      %v6677 = vunpack.c.l.b16 %v4898
      %v6678 = vunpack.c.l.b16 %v4899
      %v6679 = vunpack.c.l.b16 %v4900
      %v6680 = vunpack.c.l.b16 %v4901
      %v6681 = vunpack.c.l.b16 %v4902
      %v6682 = vunpack.c.l.b16 %v4903
      %v6683 = vunpack.c.l.b16 %v4904
      %v6684 = vunpack.c.l.b16 %v4905
      %v6685 = vunpack.c.l.b16 %v4906
      %v6686 = vunpack.c.l.b16 %v4907
      %v6687 = vunpack.c.l.b16 %v4908
      %v6688 = vunpack.c.l.b16 %v4909
      %v6689 = vunpack.c.l.b16 %v4910
      %v6690 = vpack.c.b16 %v6643, %v6642
      %v6691 = vpack.c.b16 %v6645, %v6644
      %v6692 = vpack.c.b16 %v6647, %v6646
      %v6693 = vpack.c.b16 %v6649, %v6648
      %v6694 = vpack.c.b16 %v6651, %v6650
      %v6695 = vpack.c.b16 %v6653, %v6652
      %v6696 = vpack.c.b16 %v6655, %v6654
      %v6697 = vpack.c.b16 %v6657, %v6656
      %v6698 = vpack.c.b16 %v6659, %v6658
      %v6699 = vpack.c.b16 %v6661, %v6660
      %v6700 = vpack.c.b16 %v6663, %v6662
      %v6701 = vpack.c.b16 %v6665, %v6664
      %v6702 = vpack.c.b16 %v6667, %v6666
      %v6703 = vpack.c.b16 %v6669, %v6668
      %v6704 = vpack.c.b16 %v6671, %v6670
      %v6705 = vpack.c.b16 %v6673, %v6672
      %v6706 = vpack.c.b16 %v6675, %v6674
      %v6707 = vpack.c.b16 %v6677, %v6676
      %v6708 = vpack.c.b16 %v6679, %v6678
      %v6709 = vpack.c.b16 %v6681, %v6680
      %v6710 = vpack.c.b16 %v6683, %v6682
      %v6711 = vpack.c.b16 %v6685, %v6684
      %v6712 = vpack.c.b16 %v6687, %v6686
      %v6713 = vpack.c.b16 %v6689, %v6688
      %6738 = vmatprep.subr.bf16.mxu0 0
      %6739 = vmatpush1.bf16.msra.mxu0 %v6690
      %6740 = vmatprep.subr.bf16.mxu0 0
      %6741 = vmatpush1.bf16.msra.mxu0 %v6691
      %6742 = vmatprep.subr.bf16.mxu0 0
      %6743 = vmatpush1.bf16.msra.mxu0 %v6692
      %6744 = vmatprep.subr.bf16.mxu0 0
      %6745 = vmatpush1.bf16.msra.mxu0 %v6693
      %6746 = vmatprep.subr.bf16.mxu0 0
      %6747 = vmatpush1.bf16.msra.mxu0 %v6694
      %6748 = vmatprep.subr.bf16.mxu0 0
      %6749 = vmatpush1.bf16.msra.mxu0 %v6695
      %6750 = vmatprep.subr.bf16.mxu0 0
      %6751 = vmatpush1.bf16.msra.mxu0 %v6696
      %6752 = vmatprep.subr.bf16.mxu0 0
      %6753 = vmatpush1.bf16.msra.mxu0 %v6697
      %6754 = vmatprep.subr.bf16.mxu0 0
      %6755 = vmatpush1.bf16.msra.mxu0 %v6698
      %6756 = vmatprep.subr.bf16.mxu0 0
      %6757 = vmatpush1.bf16.msra.mxu0 %v6699
      %6758 = vmatprep.subr.bf16.mxu0 0
      %6759 = vmatpush1.bf16.msra.mxu0 %v6700
      %6760 = vmatprep.subr.bf16.mxu0 0
      %6761 = vmatpush1.bf16.msra.mxu0 %v6701
      %6762 = vmatprep.subr.bf16.mxu0 0
      %6763 = vmatpush1.bf16.msra.mxu0 %v6702
      %6764 = vmatprep.subr.bf16.mxu0 0
      %6765 = vmatpush1.bf16.msra.mxu0 %v6703
      %6766 = vmatprep.subr.bf16.mxu0 0
      %6767 = vmatpush1.bf16.msra.mxu0 %v6704
      %6768 = vmatprep.subr.bf16.mxu0 0
      %6769 = vmatpush1.bf16.msra.mxu0 %v6705
      %6770 = vmatprep.mubr.bf16.mxu0 %v4107
      %6771 = vmatmul.mubr.bf16.gmra.mrb[0].mxu0 %v4090
      %v6772 = vpop.f32.mrb[0].mxu0
      %v6773 = vadd.f32 %v6468, %v6772
      %v6774 = vpop.f32.mrb[0].mxu0
      %v6775 = vpop.f32.mrb[0].mxu0
      %v6776 = vadd.f32 %v6471, %v6775
      %v6777 = vpop.f32.mrb[0].mxu0
      %6778 = vmatprep.mubr.bf16.mxu0 %v4153
      %6779 = vmatmul.mubr.bf16.gmra.mrb[0].mxu0 %v4136
      %v6780 = vpop.f32.mrb[0].mxu0
      %v6781 = vadd.f32 %v6476, %v6780
      %v6782 = vpop.f32.mrb[0].mxu0
      %v6783 = vpop.f32.mrb[0].mxu0
      %v6784 = vadd.f32 %v6479, %v6783
      %v6785 = vpop.f32.mrb[0].mxu0
      %6786 = vmatprep.mubr.bf16.mxu0 %v4199
      %6787 = vmatmul.mubr.bf16.gmra.mrb[0].mxu0 %v4182
      %v6788 = vpop.f32.mrb[0].mxu0
      %v6789 = vadd.f32 %v6484, %v6788
      %v6790 = vpop.f32.mrb[0].mxu0
      %v6791 = vpop.f32.mrb[0].mxu0
      %v6792 = vadd.f32 %v6487, %v6791
      %v6793 = vpop.f32.mrb[0].mxu0
      %6794 = vmatprep.mubr.bf16.mxu0 %v4245
      %6795 = vmatmul.mubr.bf16.gmra.mrb[0].mxu0 %v4228
      %v6796 = vpop.f32.mrb[0].mxu0
      %v6797 = vadd.f32 %v6492, %v6796
      %v6798 = vpop.f32.mrb[0].mxu0
      %v6799 = vpop.f32.mrb[0].mxu0
      %v6800 = vadd.f32 %v6495, %v6799
      %v6801 = vpop.f32.mrb[0].mxu0
      %6802 = vmatprep.mubr.bf16.mxu0 %v4291
      %6803 = vmatmul.mubr.bf16.gmra.mrb[0].mxu0 %v4274
      %v6804 = vpop.f32.mrb[0].mxu0
      %v6805 = vadd.f32 %v6500, %v6804
      %v6806 = vpop.f32.mrb[0].mxu0
      %v6807 = vpop.f32.mrb[0].mxu0
      %v6808 = vadd.f32 %v6503, %v6807
      %v6809 = vpop.f32.mrb[0].mxu0
      %6810 = vmatprep.mubr.bf16.mxu0 %v4337
      %6811 = vmatmul.mubr.bf16.gmra.mrb[0].mxu0 %v4320
      %v6812 = vpop.f32.mrb[0].mxu0
      %v6813 = vadd.f32 %v6508, %v6812
      %v6814 = vpop.f32.mrb[0].mxu0
      %v6815 = vpop.f32.mrb[0].mxu0
      %v6816 = vadd.f32 %v6511, %v6815
      %v6817 = vpop.f32.mrb[0].mxu0
      %6818 = vmatprep.mubr.bf16.mxu0 %v4383
      %6819 = vmatmul.mubr.bf16.gmra.mrb[0].mxu0 %v4366
      %v6820 = vpop.f32.mrb[0].mxu0
      %v6821 = vadd.f32 %v6516, %v6820
      %v6822 = vpop.f32.mrb[0].mxu0
      %v6823 = vpop.f32.mrb[0].mxu0
      %v6824 = vadd.f32 %v6519, %v6823
      %v6825 = vpop.f32.mrb[0].mxu0
      %6826 = vmatprep.mubr.bf16.mxu0 %v4429
      %6827 = vmatmul.mubr.bf16.gmra.mrb[0].mxu0 %v4412
      %v6828 = vpop.f32.mrb[0].mxu0
      %v6829 = vadd.f32 %v6524, %v6828
      %v6830 = vpop.f32.mrb[0].mxu0
      %v6831 = vpop.f32.mrb[0].mxu0
      %v6832 = vadd.f32 %v6527, %v6831
      %v6833 = vpop.f32.mrb[0].mxu0
      %6834 = vmatprep.mubr.bf16.mxu0 %v4475
      %6835 = vmatmul.mubr.bf16.gmra.mrb[0].mxu0 %v4458
      %v6836 = vpop.f32.mrb[0].mxu0
      %v6837 = vadd.f32 %v6532, %v6836
      %v6838 = vpop.f32.mrb[0].mxu0
      %v6839 = vpop.f32.mrb[0].mxu0
      %v6840 = vadd.f32 %v6535, %v6839
      %v6841 = vpop.f32.mrb[0].mxu0
      %6842 = vmatprep.mubr.bf16.mxu0 %v4521
      %6843 = vmatmul.mubr.bf16.gmra.mrb[0].mxu0 %v4504
      %v6844 = vpop.f32.mrb[0].mxu0
      %v6845 = vadd.f32 %v6540, %v6844
      %v6846 = vpop.f32.mrb[0].mxu0
      %v6847 = vpop.f32.mrb[0].mxu0
      %v6848 = vadd.f32 %v6543, %v6847
      %v6849 = vpop.f32.mrb[0].mxu0
      %6850 = vmatprep.mubr.bf16.mxu0 %v4567
      %6851 = vmatmul.mubr.bf16.gmra.mrb[0].mxu0 %v4550
      %v6852 = vpop.f32.mrb[0].mxu0
      %v6853 = vadd.f32 %v6548, %v6852
      %v6854 = vpop.f32.mrb[0].mxu0
      %v6855 = vpop.f32.mrb[0].mxu0
      %v6856 = vadd.f32 %v6551, %v6855
      %v6857 = vpop.f32.mrb[0].mxu0
      %6858 = vmatprep.mubr.bf16.mxu0 %v4613
      %6859 = vmatmul.mubr.bf16.gmra.mrb[0].mxu0 %v4596
      %v6860 = vpop.f32.mrb[0].mxu0
      %v6861 = vadd.f32 %v6556, %v6860
      %v6862 = vpop.f32.mrb[0].mxu0
      %v6863 = vpop.f32.mrb[0].mxu0
      %v6864 = vadd.f32 %v6559, %v6863
      %v6865 = vpop.f32.mrb[0].mxu0
      %6866 = vmatprep.mubr.bf16.mxu0 %v4659
      %6867 = vmatmul.mubr.bf16.gmra.mrb[0].mxu0 %v4642
      %v6868 = vpop.f32.mrb[0].mxu0
      %v6869 = vadd.f32 %v6564, %v6868
      %v6870 = vpop.f32.mrb[0].mxu0
      %v6871 = vpop.f32.mrb[0].mxu0
      %v6872 = vadd.f32 %v6567, %v6871
      %v6873 = vpop.f32.mrb[0].mxu0
      %6874 = vmatprep.mubr.bf16.mxu0 %v4705
      %6875 = vmatmul.mubr.bf16.gmra.mrb[0].mxu0 %v4688
      %v6876 = vpop.f32.mrb[0].mxu0
      %v6877 = vadd.f32 %v6572, %v6876
      %v6878 = vpop.f32.mrb[0].mxu0
      %v6879 = vpop.f32.mrb[0].mxu0
      %v6880 = vadd.f32 %v6575, %v6879
      %v6881 = vpop.f32.mrb[0].mxu0
      %6882 = vmatprep.mubr.bf16.mxu0 %v4751
      %6883 = vmatmul.mubr.bf16.gmra.mrb[0].mxu0 %v4734
      %v6884 = vpop.f32.mrb[0].mxu0
      %v6885 = vadd.f32 %v6580, %v6884
      %v6886 = vpop.f32.mrb[0].mxu0
      %v6887 = vpop.f32.mrb[0].mxu0
      %v6888 = vadd.f32 %v6583, %v6887
      %v6889 = vpop.f32.mrb[0].mxu0
      %6890 = vmatprep.mubr.bf16.mxu0 %v4797
      %6891 = vmatmul.mubr.bf16.gmra.mrb[0].mxu0 %v4780
      %v6892 = vpop.f32.mrb[0].mxu0
      %v6893 = vadd.f32 %v6588, %v6892
      %v6894 = vpop.f32.mrb[0].mxu0
      %v6895 = vpop.f32.mrb[0].mxu0
      %v6896 = vadd.f32 %v6591, %v6895
      %v6897 = vpop.f32.mrb[0].mxu0
      %6898 = vdwg.mxu0
      %6899 = vmatprep.subr.bf16.mxu0 0
      %6900 = vmatpush1.bf16.msra.mxu0 %v6706
      %6901 = vmatprep.subr.bf16.mxu0 0
      %6902 = vmatpush1.bf16.msra.mxu0 %v6707
      %6903 = vmatprep.subr.bf16.mxu0 0
      %6904 = vmatpush1.bf16.msra.mxu0 %v6708
      %6905 = vmatprep.subr.bf16.mxu0 0
      %6906 = vmatpush1.bf16.msra.mxu0 %v6709
      %6907 = vmatprep.subr.bf16.mxu0 0
      %6908 = vmatpush1.bf16.msra.mxu0 %v6710
      %6909 = vmatprep.subr.bf16.mxu0 0
      %6910 = vmatpush1.bf16.msra.mxu0 %v6711
      %6911 = vmatprep.subr.bf16.mxu0 0
      %6912 = vmatpush1.bf16.msra.mxu0 %v6712
      %6913 = vmatprep.subr.bf16.mxu0 0
      %6914 = vmatpush1.bf16.msra.mxu0 %v6713
      %6915 = vmatprep.subr.bf16.mxu0 0
      %6916 = vmatpush1.bf16.msra.mxu0 0
      %6917 = vmatprep.subr.bf16.mxu0 0
      %6918 = vmatpush1.bf16.msra.mxu0 0
      %6919 = vmatprep.subr.bf16.mxu0 0
      %6920 = vmatpush1.bf16.msra.mxu0 0
      %6921 = vmatprep.subr.bf16.mxu0 0
      %6922 = vmatpush1.bf16.msra.mxu0 0
      %6923 = vmatprep.subr.bf16.mxu0 0
      %6924 = vmatpush1.bf16.msra.mxu0 0
      %6925 = vmatprep.subr.bf16.mxu0 0
      %6926 = vmatpush1.bf16.msra.mxu0 0
      %6927 = vmatprep.subr.bf16.mxu0 0
      %6928 = vmatpush1.bf16.msra.mxu0 0
      %6929 = vmatprep.subr.bf16.mxu0 0
      %6930 = vmatpush1.bf16.msra.mxu0 0
      %6931 = vmatprep.mubr.bf16.mxu0 0
      %6932 = vmatmul.mubr.bf16.gmra.mrb[0].mxu0 %v4124
      %v6933 = vpop.f32.mrb[0].mxu0
      %v6934 = vadd.f32 %v6773, %v6933
      %v6935 = vpop.f32.mrb[0].mxu0
      %v6936 = vpop.f32.mrb[0].mxu0
      %v6937 = vadd.f32 %v6776, %v6936
      %v6938 = vpop.f32.mrb[0].mxu0
      %6939 = vmatprep.mubr.bf16.mxu0 0
      %6940 = vmatmul.mubr.bf16.gmra.mrb[0].mxu0 %v4170
      %v6941 = vpop.f32.mrb[0].mxu0
      %v6942 = vadd.f32 %v6781, %v6941
      %v6943 = vpop.f32.mrb[0].mxu0
      %v6944 = vpop.f32.mrb[0].mxu0
      %v6945 = vadd.f32 %v6784, %v6944
      %v6946 = vpop.f32.mrb[0].mxu0
      %6947 = vmatprep.mubr.bf16.mxu0 0
      %6948 = vmatmul.mubr.bf16.gmra.mrb[0].mxu0 %v4216
      %v6949 = vpop.f32.mrb[0].mxu0
      %v6950 = vadd.f32 %v6789, %v6949
      %v6951 = vpop.f32.mrb[0].mxu0
      %v6952 = vpop.f32.mrb[0].mxu0
      %v6953 = vadd.f32 %v6792, %v6952
      %v6954 = vpop.f32.mrb[0].mxu0
      %6955 = vmatprep.mubr.bf16.mxu0 0
      %6956 = vmatmul.mubr.bf16.gmra.mrb[0].mxu0 %v4262
      %v6957 = vpop.f32.mrb[0].mxu0
      %v6958 = vadd.f32 %v6797, %v6957
      %v6959 = vpop.f32.mrb[0].mxu0
      %v6960 = vpop.f32.mrb[0].mxu0
      %v6961 = vadd.f32 %v6800, %v6960
      %v6962 = vpop.f32.mrb[0].mxu0
      %6963 = vmatprep.mubr.bf16.mxu0 0
      %6964 = vmatmul.mubr.bf16.gmra.mrb[0].mxu0 %v4308
      %v6965 = vpop.f32.mrb[0].mxu0
      %v6966 = vadd.f32 %v6805, %v6965
      %v6967 = vpop.f32.mrb[0].mxu0
      %v6968 = vpop.f32.mrb[0].mxu0
      %v6969 = vadd.f32 %v6808, %v6968
      %v6970 = vpop.f32.mrb[0].mxu0
      %6971 = vmatprep.mubr.bf16.mxu0 0
      %6972 = vmatmul.mubr.bf16.gmra.mrb[0].mxu0 %v4354
      %v6973 = vpop.f32.mrb[0].mxu0
      %v6974 = vadd.f32 %v6813, %v6973
      %v6975 = vpop.f32.mrb[0].mxu0
      %v6976 = vpop.f32.mrb[0].mxu0
      %v6977 = vadd.f32 %v6816, %v6976
      %v6978 = vpop.f32.mrb[0].mxu0
      %6979 = vmatprep.mubr.bf16.mxu0 0
      %6980 = vmatmul.mubr.bf16.gmra.mrb[0].mxu0 %v4400
      %v6981 = vpop.f32.mrb[0].mxu0
      %v6982 = vadd.f32 %v6821, %v6981
      %v6983 = vpop.f32.mrb[0].mxu0
      %v6984 = vpop.f32.mrb[0].mxu0
      %v6985 = vadd.f32 %v6824, %v6984
      %v6986 = vpop.f32.mrb[0].mxu0
      %6987 = vmatprep.mubr.bf16.mxu0 0
      %6988 = vmatmul.mubr.bf16.gmra.mrb[0].mxu0 %v4446
      %v6989 = vpop.f32.mrb[0].mxu0
      %v6990 = vadd.f32 %v6829, %v6989
      %v6991 = vpop.f32.mrb[0].mxu0
      %v6992 = vpop.f32.mrb[0].mxu0
      %v6993 = vadd.f32 %v6832, %v6992
      %v6994 = vpop.f32.mrb[0].mxu0
      %6995 = vmatprep.mubr.bf16.mxu0 0
      %6996 = vmatmul.mubr.bf16.gmra.mrb[0].mxu0 %v4492
      %v6997 = vpop.f32.mrb[0].mxu0
      %v6998 = vadd.f32 %v6837, %v6997
      %v6999 = vpop.f32.mrb[0].mxu0
      %v7000 = vpop.f32.mrb[0].mxu0
      %v7001 = vadd.f32 %v6840, %v7000
      %v7002 = vpop.f32.mrb[0].mxu0
      %7003 = vmatprep.mubr.bf16.mxu0 0
      %7004 = vmatmul.mubr.bf16.gmra.mrb[0].mxu0 %v4538
      %v7005 = vpop.f32.mrb[0].mxu0
      %v7006 = vadd.f32 %v6845, %v7005
      %v7007 = vpop.f32.mrb[0].mxu0
      %v7008 = vpop.f32.mrb[0].mxu0
      %v7009 = vadd.f32 %v6848, %v7008
      %v7010 = vpop.f32.mrb[0].mxu0
      %7011 = vmatprep.mubr.bf16.mxu0 0
      %7012 = vmatmul.mubr.bf16.gmra.mrb[0].mxu0 %v4584
      %v7013 = vpop.f32.mrb[0].mxu0
      %v7014 = vadd.f32 %v6853, %v7013
      %v7015 = vpop.f32.mrb[0].mxu0
      %v7016 = vpop.f32.mrb[0].mxu0
      %v7017 = vadd.f32 %v6856, %v7016
      %v7018 = vpop.f32.mrb[0].mxu0
      %7019 = vmatprep.mubr.bf16.mxu0 0
      %7020 = vmatmul.mubr.bf16.gmra.mrb[0].mxu0 %v4630
      %v7021 = vpop.f32.mrb[0].mxu0
      %v7022 = vadd.f32 %v6861, %v7021
      %v7023 = vpop.f32.mrb[0].mxu0
      %v7024 = vpop.f32.mrb[0].mxu0
      %v7025 = vadd.f32 %v6864, %v7024
      %v7026 = vpop.f32.mrb[0].mxu0
      %7027 = vmatprep.mubr.bf16.mxu0 0
      %7028 = vmatmul.mubr.bf16.gmra.mrb[0].mxu0 %v4676
      %v7029 = vpop.f32.mrb[0].mxu0
      %v7030 = vadd.f32 %v6869, %v7029
      %v7031 = vpop.f32.mrb[0].mxu0
      %v7032 = vpop.f32.mrb[0].mxu0
      %v7033 = vadd.f32 %v6872, %v7032
      %v7034 = vpop.f32.mrb[0].mxu0
      %7035 = vmatprep.mubr.bf16.mxu0 0
      %7036 = vmatmul.mubr.bf16.gmra.mrb[0].mxu0 %v4722
      %v7037 = vpop.f32.mrb[0].mxu0
      %v7038 = vadd.f32 %v6877, %v7037
      %v7039 = vpop.f32.mrb[0].mxu0
      %v7040 = vpop.f32.mrb[0].mxu0
      %v7041 = vadd.f32 %v6880, %v7040
      %v7042 = vpop.f32.mrb[0].mxu0
      %7043 = vmatprep.mubr.bf16.mxu0 0
      %7044 = vmatmul.mubr.bf16.gmra.mrb[0].mxu0 %v4768
      %v7045 = vpop.f32.mrb[0].mxu0
      %v7046 = vadd.f32 %v6885, %v7045
      %v7047 = vpop.f32.mrb[0].mxu0
      %v7048 = vpop.f32.mrb[0].mxu0
      %v7049 = vadd.f32 %v6888, %v7048
      %v7050 = vpop.f32.mrb[0].mxu0
      %7051 = vmatprep.mubr.bf16.mxu0 0
      %7052 = vmatmul.mubr.bf16.gmra.mrb[0].mxu0 %v4814
      %v7053 = vpop.f32.mrb[0].mxu0
      %v7054 = vadd.f32 %v6893, %v7053
      %v7055 = vpop.f32.mrb[0].mxu0
      %v7056 = vpop.f32.mrb[0].mxu0
      %v7057 = vadd.f32 %v6896, %v7056
      %v7058 = vpop.f32.mrb[0].mxu0
      %7059 = vdwg.mxu0
      %s7060 = scalar_lea.vmem [#allocation2], 32
      %v7061 = vld [vmem:[%s7060] sm:$0xf8]
      %v7062 = vld [vmem:[%s7060 + $0x8] sm:$0xf]
      %v7063 = vld [vmem:[%s7060 + $0x10] sm:$0xf8]
      %v7064 = vld [vmem:[%s7060 + $0x18] sm:$0xf]
      %v7065 = vld [vmem:[%s7060 + $0x20] sm:$0xf8]
      %v7066 = vld [vmem:[%s7060 + $0x28] sm:$0xf]
      %v7067 = vld [vmem:[%s7060 + $0x30] sm:$0xf8]
      %v7068 = vld [vmem:[%s7060 + $0x38] sm:$0xf]
      %v7069 = vld [vmem:[%s7060 + $0x40] sm:$0xf8]
      %v7070 = vld [vmem:[%s7060 + $0x48] sm:$0xf]
      %v7071 = vld [vmem:[%s7060 + $0x50] sm:$0xf8]
      %v7072 = vld [vmem:[%s7060 + $0x58] sm:$0xf]
      %v7073 = vld [vmem:[%s7060 + $0x60] sm:$0xf8]
      %v7074 = vld [vmem:[%s7060 + $0x68] sm:$0xf]
      %v7075 = vld [vmem:[%s7060 + $0x70] sm:$0xf8]
      %v7076 = vld [vmem:[%s7060 + $0x78] sm:$0xf]
      %v7077 = vld [vmem:[%s7060 + $0x80] sm:$0xf8]
      %v7078 = vld [vmem:[%s7060 + $0x88] sm:$0xf]
      %v7079 = vld [vmem:[%s7060 + $0x90] sm:$0xf8]
      %v7080 = vld [vmem:[%s7060 + $0x98] sm:$0xf]
      %v7081 = vld [vmem:[%s7060 + $0xa0] sm:$0xf8]
      %v7082 = vld [vmem:[%s7060 + $0xa8] sm:$0xf]
      %v7083 = vld [vmem:[%s7060 + $0xb0] sm:$0xf8]
      %v7084 = vld [vmem:[%s7060 + $0xb8] sm:$0xf]
      %v7085 = vld [vmem:[%s7060 + $0xc0] sm:$0xf8]
      %v7086 = vld [vmem:[%s7060 + $0xc8] sm:$0xf]
      %v7087 = vld [vmem:[%s7060 + $0xd0] sm:$0xf8]
      %v7088 = vld [vmem:[%s7060 + $0xd8] sm:$0xf]
      %v7089 = vld [vmem:[%s7060 + $0xe0] sm:$0xf8]
      %v7090 = vld [vmem:[%s7060 + $0xe8] sm:$0xf]
      %v7091 = vld [vmem:[%s7060 + $0xf0] sm:$0xf8]
      %v7092 = vld [vmem:[%s7060 + $0xf8] sm:$0xf]
      %v7093 = vld [vmem:[%s7060] sm:$0xf0]
      %v7094 = vld [vmem:[%s7060 + $0x10] sm:$0xf0]
      %v7095 = vld [vmem:[%s7060 + $0x20] sm:$0xf0]
      %v7096 = vld [vmem:[%s7060 + $0x30] sm:$0xf0]
      %v7097 = vld [vmem:[%s7060 + $0x40] sm:$0xf0]
      %v7098 = vld [vmem:[%s7060 + $0x50] sm:$0xf0]
      %v7099 = vld [vmem:[%s7060 + $0x60] sm:$0xf0]
      %v7100 = vld [vmem:[%s7060 + $0x70] sm:$0xf0]
      %v7101 = vld [vmem:[%s7060 + $0x80] sm:$0xf0]
      %v7102 = vld [vmem:[%s7060 + $0x90] sm:$0xf0]
      %v7103 = vld [vmem:[%s7060 + $0xa0] sm:$0xf0]
      %v7104 = vld [vmem:[%s7060 + $0xb0] sm:$0xf0]
      %v7105 = vld [vmem:[%s7060 + $0xc0] sm:$0xf0]
      %v7106 = vld [vmem:[%s7060 + $0xd0] sm:$0xf0]
      %v7107 = vld [vmem:[%s7060 + $0xe0] sm:$0xf0]
      %v7108 = vld [vmem:[%s7060 + $0xf0] sm:$0xf0]
      %v7109 = vld [vmem:[%s7060 + $0x8] sm:$0x1f]
      %v7110 = vld [vmem:[%s7060 + $0x18] sm:$0x1f]
      %v7111 = vld [vmem:[%s7060 + $0x28] sm:$0x1f]
      %v7112 = vld [vmem:[%s7060 + $0x38] sm:$0x1f]
      %v7113 = vld [vmem:[%s7060 + $0x48] sm:$0x1f]
      %v7114 = vld [vmem:[%s7060 + $0x58] sm:$0x1f]
      %v7115 = vld [vmem:[%s7060 + $0x68] sm:$0x1f]
      %v7116 = vld [vmem:[%s7060 + $0x78] sm:$0x1f]
      %v7117 = vld [vmem:[%s7060 + $0x88] sm:$0x1f]
      %v7118 = vld [vmem:[%s7060 + $0x98] sm:$0x1f]
      %v7119 = vld [vmem:[%s7060 + $0xa8] sm:$0x1f]
      %v7120 = vld [vmem:[%s7060 + $0xb8] sm:$0x1f]
      %v7121 = vld [vmem:[%s7060 + $0xc8] sm:$0x1f]
      %v7122 = vld [vmem:[%s7060 + $0xd8] sm:$0x1f]
      %v7123 = vld [vmem:[%s7060 + $0xe8] sm:$0x1f]
      %v7124 = vld [vmem:[%s7060 + $0xf8] sm:$0x1f]
      %v7126 = vshrl.u32 %v7093, 16
      %v7128 = vshll.u32 %v7093, 16
      %v7130 = vrot.slane %v7128, 1
      %v7131 = vor.u32 %v7126, %v7130
      %v7133 = vshll.u32 %v7062, 16
      %v7135 = vrot.slane %v7133, 1
      %v7136 = vsel %vm533, %v7131, %v7135
      %v7137 = vshrl.u32 %v7062, 16
      %v7139 = vor.u32 %v7137, %v7135
      %v7141 = vshrl.u32 %v7094, 16
      %v7143 = vshll.u32 %v7094, 16
      %v7145 = vrot.slane %v7143, 1
      %v7146 = vor.u32 %v7141, %v7145
      %v7148 = vshll.u32 %v7064, 16
      %v7150 = vrot.slane %v7148, 1
      %v7151 = vsel %vm533, %v7146, %v7150
      %v7152 = vshrl.u32 %v7064, 16
      %v7154 = vor.u32 %v7152, %v7150
      %v7156 = vshrl.u32 %v7095, 16
      %v7158 = vshll.u32 %v7095, 16
      %v7160 = vrot.slane %v7158, 1
      %v7161 = vor.u32 %v7156, %v7160
      %v7163 = vshll.u32 %v7066, 16
      %v7165 = vrot.slane %v7163, 1
      %v7166 = vsel %vm533, %v7161, %v7165
      %v7167 = vshrl.u32 %v7066, 16
      %v7169 = vor.u32 %v7167, %v7165
      %v7171 = vshrl.u32 %v7096, 16
      %v7173 = vshll.u32 %v7096, 16
      %v7175 = vrot.slane %v7173, 1
      %v7176 = vor.u32 %v7171, %v7175
      %v7178 = vshll.u32 %v7068, 16
      %v7180 = vrot.slane %v7178, 1
      %v7181 = vsel %vm533, %v7176, %v7180
      %v7182 = vshrl.u32 %v7068, 16
      %v7184 = vor.u32 %v7182, %v7180
      %v7186 = vshrl.u32 %v7097, 16
      %v7188 = vshll.u32 %v7097, 16
      %v7190 = vrot.slane %v7188, 1
      %v7191 = vor.u32 %v7186, %v7190
      %v7193 = vshll.u32 %v7070, 16
      %v7195 = vrot.slane %v7193, 1
      %v7196 = vsel %vm533, %v7191, %v7195
      %v7197 = vshrl.u32 %v7070, 16
      %v7199 = vor.u32 %v7197, %v7195
      %v7201 = vshrl.u32 %v7098, 16
      %v7203 = vshll.u32 %v7098, 16
      %v7205 = vrot.slane %v7203, 1
      %v7206 = vor.u32 %v7201, %v7205
      %v7208 = vshll.u32 %v7072, 16
      %v7210 = vrot.slane %v7208, 1
      %v7211 = vsel %vm533, %v7206, %v7210
      %v7212 = vshrl.u32 %v7072, 16
      %v7214 = vor.u32 %v7212, %v7210
      %v7216 = vshrl.u32 %v7099, 16
      %v7218 = vshll.u32 %v7099, 16
      %v7220 = vrot.slane %v7218, 1
      %v7221 = vor.u32 %v7216, %v7220
      %v7223 = vshll.u32 %v7074, 16
      %v7225 = vrot.slane %v7223, 1
      %v7226 = vsel %vm533, %v7221, %v7225
      %v7227 = vshrl.u32 %v7074, 16
      %v7229 = vor.u32 %v7227, %v7225
      %v7231 = vshrl.u32 %v7100, 16
      %v7233 = vshll.u32 %v7100, 16
      %v7235 = vrot.slane %v7233, 1
      %v7236 = vor.u32 %v7231, %v7235
      %v7238 = vshll.u32 %v7076, 16
      %v7240 = vrot.slane %v7238, 1
      %v7241 = vsel %vm533, %v7236, %v7240
      %v7242 = vshrl.u32 %v7076, 16
      %v7244 = vor.u32 %v7242, %v7240
      %v7246 = vshrl.u32 %v7101, 16
      %v7248 = vshll.u32 %v7101, 16
      %v7250 = vrot.slane %v7248, 1
      %v7251 = vor.u32 %v7246, %v7250
      %v7253 = vshll.u32 %v7078, 16
      %v7255 = vrot.slane %v7253, 1
      %v7256 = vsel %vm533, %v7251, %v7255
      %v7257 = vshrl.u32 %v7078, 16
      %v7259 = vor.u32 %v7257, %v7255
      %v7261 = vshrl.u32 %v7102, 16
      %v7263 = vshll.u32 %v7102, 16
      %v7265 = vrot.slane %v7263, 1
      %v7266 = vor.u32 %v7261, %v7265
      %v7268 = vshll.u32 %v7080, 16
      %v7270 = vrot.slane %v7268, 1
      %v7271 = vsel %vm533, %v7266, %v7270
      %v7272 = vshrl.u32 %v7080, 16
      %v7274 = vor.u32 %v7272, %v7270
      %v7276 = vshrl.u32 %v7103, 16
      %v7278 = vshll.u32 %v7103, 16
      %v7280 = vrot.slane %v7278, 1
      %v7281 = vor.u32 %v7276, %v7280
      %v7283 = vshll.u32 %v7082, 16
      %v7285 = vrot.slane %v7283, 1
      %v7286 = vsel %vm533, %v7281, %v7285
      %v7287 = vshrl.u32 %v7082, 16
      %v7289 = vor.u32 %v7287, %v7285
      %v7291 = vshrl.u32 %v7104, 16
      %v7293 = vshll.u32 %v7104, 16
      %v7295 = vrot.slane %v7293, 1
      %v7296 = vor.u32 %v7291, %v7295
      %v7298 = vshll.u32 %v7084, 16
      %v7300 = vrot.slane %v7298, 1
      %v7301 = vsel %vm533, %v7296, %v7300
      %v7302 = vshrl.u32 %v7084, 16
      %v7304 = vor.u32 %v7302, %v7300
      %v7306 = vshrl.u32 %v7105, 16
      %v7308 = vshll.u32 %v7105, 16
      %v7310 = vrot.slane %v7308, 1
      %v7311 = vor.u32 %v7306, %v7310
      %v7313 = vshll.u32 %v7086, 16
      %v7315 = vrot.slane %v7313, 1
      %v7316 = vsel %vm533, %v7311, %v7315
      %v7317 = vshrl.u32 %v7086, 16
      %v7319 = vor.u32 %v7317, %v7315
      %v7321 = vshrl.u32 %v7106, 16
      %v7323 = vshll.u32 %v7106, 16
      %v7325 = vrot.slane %v7323, 1
      %v7326 = vor.u32 %v7321, %v7325
      %v7328 = vshll.u32 %v7088, 16
      %v7330 = vrot.slane %v7328, 1
      %v7331 = vsel %vm533, %v7326, %v7330
      %v7332 = vshrl.u32 %v7088, 16
      %v7334 = vor.u32 %v7332, %v7330
      %v7336 = vshrl.u32 %v7107, 16
      %v7338 = vshll.u32 %v7107, 16
      %v7340 = vrot.slane %v7338, 1
      %v7341 = vor.u32 %v7336, %v7340
      %v7343 = vshll.u32 %v7090, 16
      %v7345 = vrot.slane %v7343, 1
      %v7346 = vsel %vm533, %v7341, %v7345
      %v7347 = vshrl.u32 %v7090, 16
      %v7349 = vor.u32 %v7347, %v7345
      %v7351 = vshrl.u32 %v7108, 16
      %v7353 = vshll.u32 %v7108, 16
      %v7355 = vrot.slane %v7353, 1
      %v7356 = vor.u32 %v7351, %v7355
      %v7358 = vshll.u32 %v7092, 16
      %v7360 = vrot.slane %v7358, 1
      %v7361 = vsel %vm533, %v7356, %v7360
      %v7362 = vshrl.u32 %v7092, 16
      %v7364 = vor.u32 %v7362, %v7360
      %v7397 = vrot.slane %v7093, 1
      %v7398 = vrot.slane %v7109, 1
      %v7399 = vsel %vm790, %v7397, %v7398
      %v7400 = vrot.slane %v7094, 1
      %v7401 = vrot.slane %v7110, 1
      %v7402 = vsel %vm790, %v7400, %v7401
      %v7403 = vrot.slane %v7095, 1
      %v7404 = vrot.slane %v7111, 1
      %v7405 = vsel %vm790, %v7403, %v7404
      %v7406 = vrot.slane %v7096, 1
      %v7407 = vrot.slane %v7112, 1
      %v7408 = vsel %vm790, %v7406, %v7407
      %v7409 = vrot.slane %v7097, 1
      %v7410 = vrot.slane %v7113, 1
      %v7411 = vsel %vm790, %v7409, %v7410
      %v7412 = vrot.slane %v7098, 1
      %v7413 = vrot.slane %v7114, 1
      %v7414 = vsel %vm790, %v7412, %v7413
      %v7415 = vrot.slane %v7099, 1
      %v7416 = vrot.slane %v7115, 1
      %v7417 = vsel %vm790, %v7415, %v7416
      %v7418 = vrot.slane %v7100, 1
      %v7419 = vrot.slane %v7116, 1
      %v7420 = vsel %vm790, %v7418, %v7419
      %v7421 = vrot.slane %v7101, 1
      %v7422 = vrot.slane %v7117, 1
      %v7423 = vsel %vm790, %v7421, %v7422
      %v7424 = vrot.slane %v7102, 1
      %v7425 = vrot.slane %v7118, 1
      %v7426 = vsel %vm790, %v7424, %v7425
      %v7427 = vrot.slane %v7103, 1
      %v7428 = vrot.slane %v7119, 1
      %v7429 = vsel %vm790, %v7427, %v7428
      %v7430 = vrot.slane %v7104, 1
      %v7431 = vrot.slane %v7120, 1
      %v7432 = vsel %vm790, %v7430, %v7431
      %v7433 = vrot.slane %v7105, 1
      %v7434 = vrot.slane %v7121, 1
      %v7435 = vsel %vm790, %v7433, %v7434
      %v7436 = vrot.slane %v7106, 1
      %v7437 = vrot.slane %v7122, 1
      %v7438 = vsel %vm790, %v7436, %v7437
      %v7439 = vrot.slane %v7107, 1
      %v7440 = vrot.slane %v7123, 1
      %v7441 = vsel %vm790, %v7439, %v7440
      %v7442 = vrot.slane %v7108, 1
      %v7443 = vrot.slane %v7124, 1
      %v7444 = vsel %vm790, %v7442, %v7443
      %v7446 = vshrl.u32 %v7061, 16
      %v7448 = vrot.slane %v7446, 3
      %v7449 = vshll.u32 %v7061, 16
      %v7451 = vrot.slane %v7449, 4
      %v7452 = vor.u32 %v7448, %v7451
      %v7453 = vrot.slane %v7137, 3
      %v7454 = vrot.slane %v7133, 4
      %v7455 = vor.u32 %v7453, %v7454
      %v7456 = vsel %vm4078, %v7452, %v7455
      %v7458 = vshrl.u32 %v7136, 16
      %v7460 = vrot.slane %v7458, 3
      %v7461 = vshll.u32 %v7136, 16
      %v7463 = vrot.slane %v7461, 4
      %v7464 = vor.u32 %v7460, %v7463
      %v7466 = vshrl.u32 %v7139, 16
      %v7468 = vrot.slane %v7466, 3
      %v7469 = vshll.u32 %v7139, 16
      %v7471 = vrot.slane %v7469, 4
      %v7472 = vor.u32 %v7468, %v7471
      %v7473 = vsel %vm4078, %v7464, %v7472
      %v7475 = vshrl.u32 %v7399, 16
      %v7477 = vrot.slane %v7475, 3
      %v7478 = vshll.u32 %v7399, 16
      %v7480 = vrot.slane %v7478, 4
      %v7481 = vor.u32 %v7477, %v7480
      %v7483 = vshrl.u32 %v7398, 16
      %v7485 = vrot.slane %v7483, 3
      %v7486 = vshll.u32 %v7398, 16
      %v7488 = vrot.slane %v7486, 4
      %v7489 = vor.u32 %v7485, %v7488
      %v7490 = vsel %vm4078, %v7481, %v7489
      %v7492 = vshrl.u32 %v7063, 16
      %v7494 = vrot.slane %v7492, 3
      %v7495 = vshll.u32 %v7063, 16
      %v7497 = vrot.slane %v7495, 4
      %v7498 = vor.u32 %v7494, %v7497
      %v7499 = vrot.slane %v7152, 3
      %v7500 = vrot.slane %v7148, 4
      %v7501 = vor.u32 %v7499, %v7500
      %v7502 = vsel %vm4078, %v7498, %v7501
      %v7504 = vshrl.u32 %v7151, 16
      %v7506 = vrot.slane %v7504, 3
      %v7507 = vshll.u32 %v7151, 16
      %v7509 = vrot.slane %v7507, 4
      %v7510 = vor.u32 %v7506, %v7509
      %v7512 = vshrl.u32 %v7154, 16
      %v7514 = vrot.slane %v7512, 3
      %v7515 = vshll.u32 %v7154, 16
      %v7517 = vrot.slane %v7515, 4
      %v7518 = vor.u32 %v7514, %v7517
      %v7519 = vsel %vm4078, %v7510, %v7518
      %v7521 = vshrl.u32 %v7402, 16
      %v7523 = vrot.slane %v7521, 3
      %v7524 = vshll.u32 %v7402, 16
      %v7526 = vrot.slane %v7524, 4
      %v7527 = vor.u32 %v7523, %v7526
      %v7529 = vshrl.u32 %v7401, 16
      %v7531 = vrot.slane %v7529, 3
      %v7532 = vshll.u32 %v7401, 16
      %v7534 = vrot.slane %v7532, 4
      %v7535 = vor.u32 %v7531, %v7534
      %v7536 = vsel %vm4078, %v7527, %v7535
      %v7538 = vshrl.u32 %v7065, 16
      %v7540 = vrot.slane %v7538, 3
      %v7541 = vshll.u32 %v7065, 16
      %v7543 = vrot.slane %v7541, 4
      %v7544 = vor.u32 %v7540, %v7543
      %v7545 = vrot.slane %v7167, 3
      %v7546 = vrot.slane %v7163, 4
      %v7547 = vor.u32 %v7545, %v7546
      %v7548 = vsel %vm4078, %v7544, %v7547
      %v7550 = vshrl.u32 %v7166, 16
      %v7552 = vrot.slane %v7550, 3
      %v7553 = vshll.u32 %v7166, 16
      %v7555 = vrot.slane %v7553, 4
      %v7556 = vor.u32 %v7552, %v7555
      %v7558 = vshrl.u32 %v7169, 16
      %v7560 = vrot.slane %v7558, 3
      %v7561 = vshll.u32 %v7169, 16
      %v7563 = vrot.slane %v7561, 4
      %v7564 = vor.u32 %v7560, %v7563
      %v7565 = vsel %vm4078, %v7556, %v7564
      %v7567 = vshrl.u32 %v7405, 16
      %v7569 = vrot.slane %v7567, 3
      %v7570 = vshll.u32 %v7405, 16
      %v7572 = vrot.slane %v7570, 4
      %v7573 = vor.u32 %v7569, %v7572
      %v7575 = vshrl.u32 %v7404, 16
      %v7577 = vrot.slane %v7575, 3
      %v7578 = vshll.u32 %v7404, 16
      %v7580 = vrot.slane %v7578, 4
      %v7581 = vor.u32 %v7577, %v7580
      %v7582 = vsel %vm4078, %v7573, %v7581
      %v7584 = vshrl.u32 %v7067, 16
      %v7586 = vrot.slane %v7584, 3
      %v7587 = vshll.u32 %v7067, 16
      %v7589 = vrot.slane %v7587, 4
      %v7590 = vor.u32 %v7586, %v7589
      %v7591 = vrot.slane %v7182, 3
      %v7592 = vrot.slane %v7178, 4
      %v7593 = vor.u32 %v7591, %v7592
      %v7594 = vsel %vm4078, %v7590, %v7593
      %v7596 = vshrl.u32 %v7181, 16
      %v7598 = vrot.slane %v7596, 3
      %v7599 = vshll.u32 %v7181, 16
      %v7601 = vrot.slane %v7599, 4
      %v7602 = vor.u32 %v7598, %v7601
      %v7604 = vshrl.u32 %v7184, 16
      %v7606 = vrot.slane %v7604, 3
      %v7607 = vshll.u32 %v7184, 16
      %v7609 = vrot.slane %v7607, 4
      %v7610 = vor.u32 %v7606, %v7609
      %v7611 = vsel %vm4078, %v7602, %v7610
      %v7613 = vshrl.u32 %v7408, 16
      %v7615 = vrot.slane %v7613, 3
      %v7616 = vshll.u32 %v7408, 16
      %v7618 = vrot.slane %v7616, 4
      %v7619 = vor.u32 %v7615, %v7618
      %v7621 = vshrl.u32 %v7407, 16
      %v7623 = vrot.slane %v7621, 3
      %v7624 = vshll.u32 %v7407, 16
      %v7626 = vrot.slane %v7624, 4
      %v7627 = vor.u32 %v7623, %v7626
      %v7628 = vsel %vm4078, %v7619, %v7627
      %v7630 = vshrl.u32 %v7069, 16
      %v7632 = vrot.slane %v7630, 3
      %v7633 = vshll.u32 %v7069, 16
      %v7635 = vrot.slane %v7633, 4
      %v7636 = vor.u32 %v7632, %v7635
      %v7637 = vrot.slane %v7197, 3
      %v7638 = vrot.slane %v7193, 4
      %v7639 = vor.u32 %v7637, %v7638
      %v7640 = vsel %vm4078, %v7636, %v7639
      %v7642 = vshrl.u32 %v7196, 16
      %v7644 = vrot.slane %v7642, 3
      %v7645 = vshll.u32 %v7196, 16
      %v7647 = vrot.slane %v7645, 4
      %v7648 = vor.u32 %v7644, %v7647
      %v7650 = vshrl.u32 %v7199, 16
      %v7652 = vrot.slane %v7650, 3
      %v7653 = vshll.u32 %v7199, 16
      %v7655 = vrot.slane %v7653, 4
      %v7656 = vor.u32 %v7652, %v7655
      %v7657 = vsel %vm4078, %v7648, %v7656
      %v7659 = vshrl.u32 %v7411, 16
      %v7661 = vrot.slane %v7659, 3
      %v7662 = vshll.u32 %v7411, 16
      %v7664 = vrot.slane %v7662, 4
      %v7665 = vor.u32 %v7661, %v7664
      %v7667 = vshrl.u32 %v7410, 16
      %v7669 = vrot.slane %v7667, 3
      %v7670 = vshll.u32 %v7410, 16
      %v7672 = vrot.slane %v7670, 4
      %v7673 = vor.u32 %v7669, %v7672
      %v7674 = vsel %vm4078, %v7665, %v7673
      %v7676 = vshrl.u32 %v7071, 16
      %v7678 = vrot.slane %v7676, 3
      %v7679 = vshll.u32 %v7071, 16
      %v7681 = vrot.slane %v7679, 4
      %v7682 = vor.u32 %v7678, %v7681
      %v7683 = vrot.slane %v7212, 3
      %v7684 = vrot.slane %v7208, 4
      %v7685 = vor.u32 %v7683, %v7684
      %v7686 = vsel %vm4078, %v7682, %v7685
      %v7688 = vshrl.u32 %v7211, 16
      %v7690 = vrot.slane %v7688, 3
      %v7691 = vshll.u32 %v7211, 16
      %v7693 = vrot.slane %v7691, 4
      %v7694 = vor.u32 %v7690, %v7693
      %v7696 = vshrl.u32 %v7214, 16
      %v7698 = vrot.slane %v7696, 3
      %v7699 = vshll.u32 %v7214, 16
      %v7701 = vrot.slane %v7699, 4
      %v7702 = vor.u32 %v7698, %v7701
      %v7703 = vsel %vm4078, %v7694, %v7702
      %v7705 = vshrl.u32 %v7414, 16
      %v7707 = vrot.slane %v7705, 3
      %v7708 = vshll.u32 %v7414, 16
      %v7710 = vrot.slane %v7708, 4
      %v7711 = vor.u32 %v7707, %v7710
      %v7713 = vshrl.u32 %v7413, 16
      %v7715 = vrot.slane %v7713, 3
      %v7716 = vshll.u32 %v7413, 16
      %v7718 = vrot.slane %v7716, 4
      %v7719 = vor.u32 %v7715, %v7718
      %v7720 = vsel %vm4078, %v7711, %v7719
      %v7722 = vshrl.u32 %v7073, 16
      %v7724 = vrot.slane %v7722, 3
      %v7725 = vshll.u32 %v7073, 16
      %v7727 = vrot.slane %v7725, 4
      %v7728 = vor.u32 %v7724, %v7727
      %v7729 = vrot.slane %v7227, 3
      %v7730 = vrot.slane %v7223, 4
      %v7731 = vor.u32 %v7729, %v7730
      %v7732 = vsel %vm4078, %v7728, %v7731
      %v7734 = vshrl.u32 %v7226, 16
      %v7736 = vrot.slane %v7734, 3
      %v7737 = vshll.u32 %v7226, 16
      %v7739 = vrot.slane %v7737, 4
      %v7740 = vor.u32 %v7736, %v7739
      %v7742 = vshrl.u32 %v7229, 16
      %v7744 = vrot.slane %v7742, 3
      %v7745 = vshll.u32 %v7229, 16
      %v7747 = vrot.slane %v7745, 4
      %v7748 = vor.u32 %v7744, %v7747
      %v7749 = vsel %vm4078, %v7740, %v7748
      %v7751 = vshrl.u32 %v7417, 16
      %v7753 = vrot.slane %v7751, 3
      %v7754 = vshll.u32 %v7417, 16
      %v7756 = vrot.slane %v7754, 4
      %v7757 = vor.u32 %v7753, %v7756
      %v7759 = vshrl.u32 %v7416, 16
      %v7761 = vrot.slane %v7759, 3
      %v7762 = vshll.u32 %v7416, 16
      %v7764 = vrot.slane %v7762, 4
      %v7765 = vor.u32 %v7761, %v7764
      %v7766 = vsel %vm4078, %v7757, %v7765
      %v7768 = vshrl.u32 %v7075, 16
      %v7770 = vrot.slane %v7768, 3
      %v7771 = vshll.u32 %v7075, 16
      %v7773 = vrot.slane %v7771, 4
      %v7774 = vor.u32 %v7770, %v7773
      %v7775 = vrot.slane %v7242, 3
      %v7776 = vrot.slane %v7238, 4
      %v7777 = vor.u32 %v7775, %v7776
      %v7778 = vsel %vm4078, %v7774, %v7777
      %v7780 = vshrl.u32 %v7241, 16
      %v7782 = vrot.slane %v7780, 3
      %v7783 = vshll.u32 %v7241, 16
      %v7785 = vrot.slane %v7783, 4
      %v7786 = vor.u32 %v7782, %v7785
      %v7788 = vshrl.u32 %v7244, 16
      %v7790 = vrot.slane %v7788, 3
      %v7791 = vshll.u32 %v7244, 16
      %v7793 = vrot.slane %v7791, 4
      %v7794 = vor.u32 %v7790, %v7793
      %v7795 = vsel %vm4078, %v7786, %v7794
      %v7797 = vshrl.u32 %v7420, 16
      %v7799 = vrot.slane %v7797, 3
      %v7800 = vshll.u32 %v7420, 16
      %v7802 = vrot.slane %v7800, 4
      %v7803 = vor.u32 %v7799, %v7802
      %v7805 = vshrl.u32 %v7419, 16
      %v7807 = vrot.slane %v7805, 3
      %v7808 = vshll.u32 %v7419, 16
      %v7810 = vrot.slane %v7808, 4
      %v7811 = vor.u32 %v7807, %v7810
      %v7812 = vsel %vm4078, %v7803, %v7811
      %v7814 = vshrl.u32 %v7077, 16
      %v7816 = vrot.slane %v7814, 3
      %v7817 = vshll.u32 %v7077, 16
      %v7819 = vrot.slane %v7817, 4
      %v7820 = vor.u32 %v7816, %v7819
      %v7821 = vrot.slane %v7257, 3
      %v7822 = vrot.slane %v7253, 4
      %v7823 = vor.u32 %v7821, %v7822
      %v7824 = vsel %vm4078, %v7820, %v7823
      %v7826 = vshrl.u32 %v7256, 16
      %v7828 = vrot.slane %v7826, 3
      %v7829 = vshll.u32 %v7256, 16
      %v7831 = vrot.slane %v7829, 4
      %v7832 = vor.u32 %v7828, %v7831
      %v7834 = vshrl.u32 %v7259, 16
      %v7836 = vrot.slane %v7834, 3
      %v7837 = vshll.u32 %v7259, 16
      %v7839 = vrot.slane %v7837, 4
      %v7840 = vor.u32 %v7836, %v7839
      %v7841 = vsel %vm4078, %v7832, %v7840
      %v7843 = vshrl.u32 %v7423, 16
      %v7845 = vrot.slane %v7843, 3
      %v7846 = vshll.u32 %v7423, 16
      %v7848 = vrot.slane %v7846, 4
      %v7849 = vor.u32 %v7845, %v7848
      %v7851 = vshrl.u32 %v7422, 16
      %v7853 = vrot.slane %v7851, 3
      %v7854 = vshll.u32 %v7422, 16
      %v7856 = vrot.slane %v7854, 4
      %v7857 = vor.u32 %v7853, %v7856
      %v7858 = vsel %vm4078, %v7849, %v7857
      %v7860 = vshrl.u32 %v7079, 16
      %v7862 = vrot.slane %v7860, 3
      %v7863 = vshll.u32 %v7079, 16
      %v7865 = vrot.slane %v7863, 4
      %v7866 = vor.u32 %v7862, %v7865
      %v7867 = vrot.slane %v7272, 3
      %v7868 = vrot.slane %v7268, 4
      %v7869 = vor.u32 %v7867, %v7868
      %v7870 = vsel %vm4078, %v7866, %v7869
      %v7872 = vshrl.u32 %v7271, 16
      %v7874 = vrot.slane %v7872, 3
      %v7875 = vshll.u32 %v7271, 16
      %v7877 = vrot.slane %v7875, 4
      %v7878 = vor.u32 %v7874, %v7877
      %v7880 = vshrl.u32 %v7274, 16
      %v7882 = vrot.slane %v7880, 3
      %v7883 = vshll.u32 %v7274, 16
      %v7885 = vrot.slane %v7883, 4
      %v7886 = vor.u32 %v7882, %v7885
      %v7887 = vsel %vm4078, %v7878, %v7886
      %v7889 = vshrl.u32 %v7426, 16
      %v7891 = vrot.slane %v7889, 3
      %v7892 = vshll.u32 %v7426, 16
      %v7894 = vrot.slane %v7892, 4
      %v7895 = vor.u32 %v7891, %v7894
      %v7897 = vshrl.u32 %v7425, 16
      %v7899 = vrot.slane %v7897, 3
      %v7900 = vshll.u32 %v7425, 16
      %v7902 = vrot.slane %v7900, 4
      %v7903 = vor.u32 %v7899, %v7902
      %v7904 = vsel %vm4078, %v7895, %v7903
      %v7906 = vshrl.u32 %v7081, 16
      %v7908 = vrot.slane %v7906, 3
      %v7909 = vshll.u32 %v7081, 16
      %v7911 = vrot.slane %v7909, 4
      %v7912 = vor.u32 %v7908, %v7911
      %v7913 = vrot.slane %v7287, 3
      %v7914 = vrot.slane %v7283, 4
      %v7915 = vor.u32 %v7913, %v7914
      %v7916 = vsel %vm4078, %v7912, %v7915
      %v7918 = vshrl.u32 %v7286, 16
      %v7920 = vrot.slane %v7918, 3
      %v7921 = vshll.u32 %v7286, 16
      %v7923 = vrot.slane %v7921, 4
      %v7924 = vor.u32 %v7920, %v7923
      %v7926 = vshrl.u32 %v7289, 16
      %v7928 = vrot.slane %v7926, 3
      %v7929 = vshll.u32 %v7289, 16
      %v7931 = vrot.slane %v7929, 4
      %v7932 = vor.u32 %v7928, %v7931
      %v7933 = vsel %vm4078, %v7924, %v7932
      %v7935 = vshrl.u32 %v7429, 16
      %v7937 = vrot.slane %v7935, 3
      %v7938 = vshll.u32 %v7429, 16
      %v7940 = vrot.slane %v7938, 4
      %v7941 = vor.u32 %v7937, %v7940
      %v7943 = vshrl.u32 %v7428, 16
      %v7945 = vrot.slane %v7943, 3
      %v7946 = vshll.u32 %v7428, 16
      %v7948 = vrot.slane %v7946, 4
      %v7949 = vor.u32 %v7945, %v7948
      %v7950 = vsel %vm4078, %v7941, %v7949
      %v7952 = vshrl.u32 %v7083, 16
      %v7954 = vrot.slane %v7952, 3
      %v7955 = vshll.u32 %v7083, 16
      %v7957 = vrot.slane %v7955, 4
      %v7958 = vor.u32 %v7954, %v7957
      %v7959 = vrot.slane %v7302, 3
      %v7960 = vrot.slane %v7298, 4
      %v7961 = vor.u32 %v7959, %v7960
      %v7962 = vsel %vm4078, %v7958, %v7961
      %v7964 = vshrl.u32 %v7301, 16
      %v7966 = vrot.slane %v7964, 3
      %v7967 = vshll.u32 %v7301, 16
      %v7969 = vrot.slane %v7967, 4
      %v7970 = vor.u32 %v7966, %v7969
      %v7972 = vshrl.u32 %v7304, 16
      %v7974 = vrot.slane %v7972, 3
      %v7975 = vshll.u32 %v7304, 16
      %v7977 = vrot.slane %v7975, 4
      %v7978 = vor.u32 %v7974, %v7977
      %v7979 = vsel %vm4078, %v7970, %v7978
      %v7981 = vshrl.u32 %v7432, 16
      %v7983 = vrot.slane %v7981, 3
      %v7984 = vshll.u32 %v7432, 16
      %v7986 = vrot.slane %v7984, 4
      %v7987 = vor.u32 %v7983, %v7986
      %v7989 = vshrl.u32 %v7431, 16
      %v7991 = vrot.slane %v7989, 3
      %v7992 = vshll.u32 %v7431, 16
      %v7994 = vrot.slane %v7992, 4
      %v7995 = vor.u32 %v7991, %v7994
      %v7996 = vsel %vm4078, %v7987, %v7995
      %v7998 = vshrl.u32 %v7085, 16
      %v8000 = vrot.slane %v7998, 3
      %v8001 = vshll.u32 %v7085, 16
      %v8003 = vrot.slane %v8001, 4
      %v8004 = vor.u32 %v8000, %v8003
      %v8005 = vrot.slane %v7317, 3
      %v8006 = vrot.slane %v7313, 4
      %v8007 = vor.u32 %v8005, %v8006
      %v8008 = vsel %vm4078, %v8004, %v8007
      %v8010 = vshrl.u32 %v7316, 16
      %v8012 = vrot.slane %v8010, 3
      %v8013 = vshll.u32 %v7316, 16
      %v8015 = vrot.slane %v8013, 4
      %v8016 = vor.u32 %v8012, %v8015
      %v8018 = vshrl.u32 %v7319, 16
      %v8020 = vrot.slane %v8018, 3
      %v8021 = vshll.u32 %v7319, 16
      %v8023 = vrot.slane %v8021, 4
      %v8024 = vor.u32 %v8020, %v8023
      %v8025 = vsel %vm4078, %v8016, %v8024
      %v8027 = vshrl.u32 %v7435, 16
      %v8029 = vrot.slane %v8027, 3
      %v8030 = vshll.u32 %v7435, 16
      %v8032 = vrot.slane %v8030, 4
      %v8033 = vor.u32 %v8029, %v8032
      %v8035 = vshrl.u32 %v7434, 16
      %v8037 = vrot.slane %v8035, 3
      %v8038 = vshll.u32 %v7434, 16
      %v8040 = vrot.slane %v8038, 4
      %v8041 = vor.u32 %v8037, %v8040
      %v8042 = vsel %vm4078, %v8033, %v8041
      %v8044 = vshrl.u32 %v7087, 16
      %v8046 = vrot.slane %v8044, 3
      %v8047 = vshll.u32 %v7087, 16
      %v8049 = vrot.slane %v8047, 4
      %v8050 = vor.u32 %v8046, %v8049
      %v8051 = vrot.slane %v7332, 3
      %v8052 = vrot.slane %v7328, 4
      %v8053 = vor.u32 %v8051, %v8052
      %v8054 = vsel %vm4078, %v8050, %v8053
      %v8056 = vshrl.u32 %v7331, 16
      %v8058 = vrot.slane %v8056, 3
      %v8059 = vshll.u32 %v7331, 16
      %v8061 = vrot.slane %v8059, 4
      %v8062 = vor.u32 %v8058, %v8061
      %v8064 = vshrl.u32 %v7334, 16
      %v8066 = vrot.slane %v8064, 3
      %v8067 = vshll.u32 %v7334, 16
      %v8069 = vrot.slane %v8067, 4
      %v8070 = vor.u32 %v8066, %v8069
      %v8071 = vsel %vm4078, %v8062, %v8070
      %v8073 = vshrl.u32 %v7438, 16
      %v8075 = vrot.slane %v8073, 3
      %v8076 = vshll.u32 %v7438, 16
      %v8078 = vrot.slane %v8076, 4
      %v8079 = vor.u32 %v8075, %v8078
      %v8081 = vshrl.u32 %v7437, 16
      %v8083 = vrot.slane %v8081, 3
      %v8084 = vshll.u32 %v7437, 16
      %v8086 = vrot.slane %v8084, 4
      %v8087 = vor.u32 %v8083, %v8086
      %v8088 = vsel %vm4078, %v8079, %v8087
      %v8090 = vshrl.u32 %v7089, 16
      %v8092 = vrot.slane %v8090, 3
      %v8093 = vshll.u32 %v7089, 16
      %v8095 = vrot.slane %v8093, 4
      %v8096 = vor.u32 %v8092, %v8095
      %v8097 = vrot.slane %v7347, 3
      %v8098 = vrot.slane %v7343, 4
      %v8099 = vor.u32 %v8097, %v8098
      %v8100 = vsel %vm4078, %v8096, %v8099
      %v8102 = vshrl.u32 %v7346, 16
      %v8104 = vrot.slane %v8102, 3
      %v8105 = vshll.u32 %v7346, 16
      %v8107 = vrot.slane %v8105, 4
      %v8108 = vor.u32 %v8104, %v8107
      %v8110 = vshrl.u32 %v7349, 16
      %v8112 = vrot.slane %v8110, 3
      %v8113 = vshll.u32 %v7349, 16
      %v8115 = vrot.slane %v8113, 4
      %v8116 = vor.u32 %v8112, %v8115
      %v8117 = vsel %vm4078, %v8108, %v8116
      %v8119 = vshrl.u32 %v7441, 16
      %v8121 = vrot.slane %v8119, 3
      %v8122 = vshll.u32 %v7441, 16
      %v8124 = vrot.slane %v8122, 4
      %v8125 = vor.u32 %v8121, %v8124
      %v8127 = vshrl.u32 %v7440, 16
      %v8129 = vrot.slane %v8127, 3
      %v8130 = vshll.u32 %v7440, 16
      %v8132 = vrot.slane %v8130, 4
      %v8133 = vor.u32 %v8129, %v8132
      %v8134 = vsel %vm4078, %v8125, %v8133
      %v8136 = vshrl.u32 %v7091, 16
      %v8138 = vrot.slane %v8136, 3
      %v8139 = vshll.u32 %v7091, 16
      %v8141 = vrot.slane %v8139, 4
      %v8142 = vor.u32 %v8138, %v8141
      %v8143 = vrot.slane %v7362, 3
      %v8144 = vrot.slane %v7358, 4
      %v8145 = vor.u32 %v8143, %v8144
      %v8146 = vsel %vm4078, %v8142, %v8145
      %v8148 = vshrl.u32 %v7361, 16
      %v8150 = vrot.slane %v8148, 3
      %v8151 = vshll.u32 %v7361, 16
      %v8153 = vrot.slane %v8151, 4
      %v8154 = vor.u32 %v8150, %v8153
      %v8156 = vshrl.u32 %v7364, 16
      %v8158 = vrot.slane %v8156, 3
      %v8159 = vshll.u32 %v7364, 16
      %v8161 = vrot.slane %v8159, 4
      %v8162 = vor.u32 %v8158, %v8161
      %v8163 = vsel %vm4078, %v8154, %v8162
      %v8165 = vshrl.u32 %v7444, 16
      %v8167 = vrot.slane %v8165, 3
      %v8168 = vshll.u32 %v7444, 16
      %v8170 = vrot.slane %v8168, 4
      %v8171 = vor.u32 %v8167, %v8170
      %v8173 = vshrl.u32 %v7443, 16
      %v8175 = vrot.slane %v8173, 3
      %v8176 = vshll.u32 %v7443, 16
      %v8178 = vrot.slane %v8176, 4
      %v8179 = vor.u32 %v8175, %v8178
      %v8180 = vsel %vm4078, %v8171, %v8179
      %s8229 = scalar_lea.vmem %s4, 384
      %v8230 = vld [vmem:[%s8229] sm:$0xf]
      %v8231 = vld [vmem:[%s8229 + $0x4] sm:$0xf]
      %v8232 = vld [vmem:[%s8229 + $0x8] sm:$0xf]
      %v8233 = vld [vmem:[%s8229 + $0xc] sm:$0xf]
      %v8234 = vld [vmem:[%s8229 + $0x10] sm:$0xf]
      %v8235 = vld [vmem:[%s8229 + $0x14] sm:$0xf]
      %v8236 = vld [vmem:[%s8229 + $0x18] sm:$0xf]
      %v8237 = vld [vmem:[%s8229 + $0x1c] sm:$0xf]
      %v8238 = vld [vmem:[%s8229 + $0x20] sm:$0xf]
      %v8239 = vld [vmem:[%s8229 + $0x24] sm:$0xf]
      %v8240 = vld [vmem:[%s8229 + $0x28] sm:$0xf]
      %v8241 = vld [vmem:[%s8229 + $0x2c] sm:$0xf]
      %v8242 = vld [vmem:[%s8229 + $0x30] sm:$0xf]
      %v8243 = vld [vmem:[%s8229 + $0x34] sm:$0xf]
      %v8244 = vld [vmem:[%s8229 + $0x38] sm:$0xf]
      %v8245 = vld [vmem:[%s8229 + $0x3c] sm:$0xf]
      %v8246 = vld [vmem:[%s8229 + $0x40] sm:$0xf]
      %v8247 = vld [vmem:[%s8229 + $0x44] sm:$0xf]
      %v8248 = vld [vmem:[%s8229 + $0x48] sm:$0xf]
      %v8249 = vld [vmem:[%s8229 + $0x4c] sm:$0xf]
      %v8250 = vld [vmem:[%s8229 + $0x50] sm:$0xf]
      %v8251 = vld [vmem:[%s8229 + $0x54] sm:$0xf]
      %v8252 = vld [vmem:[%s8229 + $0x58] sm:$0xf]
      %v8253 = vld [vmem:[%s8229 + $0x5c] sm:$0xf]
      %v8254 = vld [vmem:[%s8229 + $0x60] sm:$0xf]
      %v8255 = vld [vmem:[%s8229 + $0x64] sm:$0xf]
      %v8256 = vld [vmem:[%s8229 + $0x68] sm:$0xf]
      %v8257 = vld [vmem:[%s8229 + $0x6c] sm:$0xf]
      %v8258 = vld [vmem:[%s8229 + $0x70] sm:$0xf]
      %v8259 = vld [vmem:[%s8229 + $0x74] sm:$0xf]
      %v8260 = vld [vmem:[%s8229 + $0x78] sm:$0xf]
      %v8261 = vld [vmem:[%s8229 + $0x7c] sm:$0xf]
      %v8262 = vld [vmem:[%s8229 + $0x80] sm:$0xf]
      %v8263 = vld [vmem:[%s8229 + $0x84] sm:$0xf]
      %v8264 = vld [vmem:[%s8229 + $0x88] sm:$0xf]
      %v8265 = vld [vmem:[%s8229 + $0x8c] sm:$0xf]
      %v8266 = vld [vmem:[%s8229 + $0x90] sm:$0xf]
      %v8267 = vld [vmem:[%s8229 + $0x94] sm:$0xf]
      %v8268 = vld [vmem:[%s8229 + $0x98] sm:$0xf]
      %v8269 = vld [vmem:[%s8229 + $0x9c] sm:$0xf]
      %v8270 = vld [vmem:[%s8229 + $0xa0] sm:$0xf]
      %v8271 = vld [vmem:[%s8229 + $0xa4] sm:$0xf]
      %v8272 = vld [vmem:[%s8229 + $0xa8] sm:$0xf]
      %v8273 = vld [vmem:[%s8229 + $0xac] sm:$0xf]
      %v8274 = vld [vmem:[%s8229 + $0xb0] sm:$0xf]
      %v8275 = vld [vmem:[%s8229 + $0xb4] sm:$0xf]
      %v8276 = vld [vmem:[%s8229 + $0xb8] sm:$0xf]
      %v8277 = vld [vmem:[%s8229 + $0xbc] sm:$0xf]
      %v8326 = vunpack.c.l.b16 %v8230
      %v8327 = vunpack.c.l.b16 %v8231
      %v8328 = vunpack.c.l.b16 %v8232
      %v8329 = vunpack.c.l.b16 %v8233
      %v8330 = vunpack.c.l.b16 %v8234
      %v8331 = vunpack.c.l.b16 %v8235
      %v8332 = vunpack.c.l.b16 %v8236
      %v8333 = vunpack.c.l.b16 %v8237
      %v8334 = vunpack.c.l.b16 %v8238
      %v8335 = vunpack.c.l.b16 %v8239
      %v8336 = vunpack.c.l.b16 %v8240
      %v8337 = vunpack.c.l.b16 %v8241
      %v8338 = vunpack.c.l.b16 %v8242
      %v8339 = vunpack.c.l.b16 %v8243
      %v8340 = vunpack.c.l.b16 %v8244
      %v8341 = vunpack.c.l.b16 %v8245
      %v8342 = vunpack.c.l.b16 %v8246
      %v8343 = vunpack.c.l.b16 %v8247
      %v8344 = vunpack.c.l.b16 %v8248
      %v8345 = vunpack.c.l.b16 %v8249
      %v8346 = vunpack.c.l.b16 %v8250
      %v8347 = vunpack.c.l.b16 %v8251
      %v8348 = vunpack.c.l.b16 %v8252
      %v8349 = vunpack.c.l.b16 %v8253
      %v8350 = vunpack.c.l.b16 %v8254
      %v8351 = vunpack.c.l.b16 %v8255
      %v8352 = vunpack.c.l.b16 %v8256
      %v8353 = vunpack.c.l.b16 %v8257
      %v8354 = vunpack.c.l.b16 %v8258
      %v8355 = vunpack.c.l.b16 %v8259
      %v8356 = vunpack.c.l.b16 %v8260
      %v8357 = vunpack.c.l.b16 %v8261
      %v8358 = vunpack.c.l.b16 %v8262
      %v8359 = vunpack.c.l.b16 %v8263
      %v8360 = vunpack.c.l.b16 %v8264
      %v8361 = vunpack.c.l.b16 %v8265
      %v8362 = vunpack.c.l.b16 %v8266
      %v8363 = vunpack.c.l.b16 %v8267
      %v8364 = vunpack.c.l.b16 %v8268
      %v8365 = vunpack.c.l.b16 %v8269
      %v8366 = vunpack.c.l.b16 %v8270
      %v8367 = vunpack.c.l.b16 %v8271
      %v8368 = vunpack.c.l.b16 %v8272
      %v8369 = vunpack.c.l.b16 %v8273
      %v8370 = vunpack.c.l.b16 %v8274
      %v8371 = vunpack.c.l.b16 %v8275
      %v8372 = vunpack.c.l.b16 %v8276
      %v8373 = vunpack.c.l.b16 %v8277
      %v8374 = vpack.c.b16 %v8327, %v8326
      %v8375 = vpack.c.b16 %v8329, %v8328
      %v8376 = vpack.c.b16 %v8331, %v8330
      %v8377 = vpack.c.b16 %v8333, %v8332
      %v8378 = vpack.c.b16 %v8335, %v8334
      %v8379 = vpack.c.b16 %v8337, %v8336
      %v8380 = vpack.c.b16 %v8339, %v8338
      %v8381 = vpack.c.b16 %v8341, %v8340
      %v8382 = vpack.c.b16 %v8343, %v8342
      %v8383 = vpack.c.b16 %v8345, %v8344
      %v8384 = vpack.c.b16 %v8347, %v8346
      %v8385 = vpack.c.b16 %v8349, %v8348
      %v8386 = vpack.c.b16 %v8351, %v8350
      %v8387 = vpack.c.b16 %v8353, %v8352
      %v8388 = vpack.c.b16 %v8355, %v8354
      %v8389 = vpack.c.b16 %v8357, %v8356
      %v8390 = vpack.c.b16 %v8359, %v8358
      %v8391 = vpack.c.b16 %v8361, %v8360
      %v8392 = vpack.c.b16 %v8363, %v8362
      %v8393 = vpack.c.b16 %v8365, %v8364
      %v8394 = vpack.c.b16 %v8367, %v8366
      %v8395 = vpack.c.b16 %v8369, %v8368
      %v8396 = vpack.c.b16 %v8371, %v8370
      %v8397 = vpack.c.b16 %v8373, %v8372
      %8422 = vmatprep.subr.bf16.mxu0 0
      %8423 = vmatpush1.bf16.msra.mxu0 %v8374
      %8424 = vmatprep.subr.bf16.mxu0 0
      %8425 = vmatpush1.bf16.msra.mxu0 %v8375
      %8426 = vmatprep.subr.bf16.mxu0 0
      %8427 = vmatpush1.bf16.msra.mxu0 %v8376
      %8428 = vmatprep.subr.bf16.mxu0 0
      %8429 = vmatpush1.bf16.msra.mxu0 %v8377
      %8430 = vmatprep.subr.bf16.mxu0 0
      %8431 = vmatpush1.bf16.msra.mxu0 %v8378
      %8432 = vmatprep.subr.bf16.mxu0 0
      %8433 = vmatpush1.bf16.msra.mxu0 %v8379
      %8434 = vmatprep.subr.bf16.mxu0 0
      %8435 = vmatpush1.bf16.msra.mxu0 %v8380
      %8436 = vmatprep.subr.bf16.mxu0 0
      %8437 = vmatpush1.bf16.msra.mxu0 %v8381
      %8438 = vmatprep.subr.bf16.mxu0 0
      %8439 = vmatpush1.bf16.msra.mxu0 %v8382
      %8440 = vmatprep.subr.bf16.mxu0 0
      %8441 = vmatpush1.bf16.msra.mxu0 %v8383
      %8442 = vmatprep.subr.bf16.mxu0 0
      %8443 = vmatpush1.bf16.msra.mxu0 %v8384
      %8444 = vmatprep.subr.bf16.mxu0 0
      %8445 = vmatpush1.bf16.msra.mxu0 %v8385
      %8446 = vmatprep.subr.bf16.mxu0 0
      %8447 = vmatpush1.bf16.msra.mxu0 %v8386
      %8448 = vmatprep.subr.bf16.mxu0 0
      %8449 = vmatpush1.bf16.msra.mxu0 %v8387
      %8450 = vmatprep.subr.bf16.mxu0 0
      %8451 = vmatpush1.bf16.msra.mxu0 %v8388
      %8452 = vmatprep.subr.bf16.mxu0 0
      %8453 = vmatpush1.bf16.msra.mxu0 %v8389
      %8454 = vmatprep.mubr.bf16.mxu0 %v7473
      %8455 = vmatmul.mubr.bf16.gmra.mrb[0].mxu0 %v7456
      %v8456 = vpop.f32.mrb[0].mxu0
      %v8457 = vadd.f32 0.0, %v8456
      %v8458 = vpop.f32.mrb[0].mxu0
      %v8459 = vpop.f32.mrb[0].mxu0
      %v8460 = vadd.f32 0.0, %v8459
      %v8461 = vpop.f32.mrb[0].mxu0
      %8462 = vmatprep.mubr.bf16.mxu0 %v7519
      %8463 = vmatmul.mubr.bf16.gmra.mrb[0].mxu0 %v7502
      %v8464 = vpop.f32.mrb[0].mxu0
      %v8465 = vadd.f32 0.0, %v8464
      %v8466 = vpop.f32.mrb[0].mxu0
      %v8467 = vpop.f32.mrb[0].mxu0
      %v8468 = vadd.f32 0.0, %v8467
      %v8469 = vpop.f32.mrb[0].mxu0
      %8470 = vmatprep.mubr.bf16.mxu0 %v7565
      %8471 = vmatmul.mubr.bf16.gmra.mrb[0].mxu0 %v7548
      %v8472 = vpop.f32.mrb[0].mxu0
      %v8473 = vadd.f32 0.0, %v8472
      %v8474 = vpop.f32.mrb[0].mxu0
      %v8475 = vpop.f32.mrb[0].mxu0
      %v8476 = vadd.f32 0.0, %v8475
      %v8477 = vpop.f32.mrb[0].mxu0
      %8478 = vmatprep.mubr.bf16.mxu0 %v7611
      %8479 = vmatmul.mubr.bf16.gmra.mrb[0].mxu0 %v7594
      %v8480 = vpop.f32.mrb[0].mxu0
      %v8481 = vadd.f32 0.0, %v8480
      %v8482 = vpop.f32.mrb[0].mxu0
      %v8483 = vpop.f32.mrb[0].mxu0
      %v8484 = vadd.f32 0.0, %v8483
      %v8485 = vpop.f32.mrb[0].mxu0
      %8486 = vmatprep.mubr.bf16.mxu0 %v7657
      %8487 = vmatmul.mubr.bf16.gmra.mrb[0].mxu0 %v7640
      %v8488 = vpop.f32.mrb[0].mxu0
      %v8489 = vadd.f32 0.0, %v8488
      %v8490 = vpop.f32.mrb[0].mxu0
      %v8491 = vpop.f32.mrb[0].mxu0
      %v8492 = vadd.f32 0.0, %v8491
      %v8493 = vpop.f32.mrb[0].mxu0
      %8494 = vmatprep.mubr.bf16.mxu0 %v7703
      %8495 = vmatmul.mubr.bf16.gmra.mrb[0].mxu0 %v7686
      %v8496 = vpop.f32.mrb[0].mxu0
      %v8497 = vadd.f32 0.0, %v8496
      %v8498 = vpop.f32.mrb[0].mxu0
      %v8499 = vpop.f32.mrb[0].mxu0
      %v8500 = vadd.f32 0.0, %v8499
      %v8501 = vpop.f32.mrb[0].mxu0
      %8502 = vmatprep.mubr.bf16.mxu0 %v7749
      %8503 = vmatmul.mubr.bf16.gmra.mrb[0].mxu0 %v7732
      %v8504 = vpop.f32.mrb[0].mxu0
      %v8505 = vadd.f32 0.0, %v8504
      %v8506 = vpop.f32.mrb[0].mxu0
      %v8507 = vpop.f32.mrb[0].mxu0
      %v8508 = vadd.f32 0.0, %v8507
      %v8509 = vpop.f32.mrb[0].mxu0
      %8510 = vmatprep.mubr.bf16.mxu0 %v7795
      %8511 = vmatmul.mubr.bf16.gmra.mrb[0].mxu0 %v7778
      %v8512 = vpop.f32.mrb[0].mxu0
      %v8513 = vadd.f32 0.0, %v8512
      %v8514 = vpop.f32.mrb[0].mxu0
      %v8515 = vpop.f32.mrb[0].mxu0
      %v8516 = vadd.f32 0.0, %v8515
      %v8517 = vpop.f32.mrb[0].mxu0
      %8518 = vmatprep.mubr.bf16.mxu0 %v7841
      %8519 = vmatmul.mubr.bf16.gmra.mrb[0].mxu0 %v7824
      %v8520 = vpop.f32.mrb[0].mxu0
      %v8521 = vadd.f32 0.0, %v8520
      %v8522 = vpop.f32.mrb[0].mxu0
      %v8523 = vpop.f32.mrb[0].mxu0
      %v8524 = vadd.f32 0.0, %v8523
      %v8525 = vpop.f32.mrb[0].mxu0
      %8526 = vmatprep.mubr.bf16.mxu0 %v7887
      %8527 = vmatmul.mubr.bf16.gmra.mrb[0].mxu0 %v7870
      %v8528 = vpop.f32.mrb[0].mxu0
      %v8529 = vadd.f32 0.0, %v8528
      %v8530 = vpop.f32.mrb[0].mxu0
      %v8531 = vpop.f32.mrb[0].mxu0
      %v8532 = vadd.f32 0.0, %v8531
      %v8533 = vpop.f32.mrb[0].mxu0
      %8534 = vmatprep.mubr.bf16.mxu0 %v7933
      %8535 = vmatmul.mubr.bf16.gmra.mrb[0].mxu0 %v7916
      %v8536 = vpop.f32.mrb[0].mxu0
      %v8537 = vadd.f32 0.0, %v8536
      %v8538 = vpop.f32.mrb[0].mxu0
      %v8539 = vpop.f32.mrb[0].mxu0
      %v8540 = vadd.f32 0.0, %v8539
      %v8541 = vpop.f32.mrb[0].mxu0
      %8542 = vmatprep.mubr.bf16.mxu0 %v7979
      %8543 = vmatmul.mubr.bf16.gmra.mrb[0].mxu0 %v7962
      %v8544 = vpop.f32.mrb[0].mxu0
      %v8545 = vadd.f32 0.0, %v8544
      %v8546 = vpop.f32.mrb[0].mxu0
      %v8547 = vpop.f32.mrb[0].mxu0
      %v8548 = vadd.f32 0.0, %v8547
      %v8549 = vpop.f32.mrb[0].mxu0
      %8550 = vmatprep.mubr.bf16.mxu0 %v8025
      %8551 = vmatmul.mubr.bf16.gmra.mrb[0].mxu0 %v8008
      %v8552 = vpop.f32.mrb[0].mxu0
      %v8553 = vadd.f32 0.0, %v8552
      %v8554 = vpop.f32.mrb[0].mxu0
      %v8555 = vpop.f32.mrb[0].mxu0
      %v8556 = vadd.f32 0.0, %v8555
      %v8557 = vpop.f32.mrb[0].mxu0
      %8558 = vmatprep.mubr.bf16.mxu0 %v8071
      %8559 = vmatmul.mubr.bf16.gmra.mrb[0].mxu0 %v8054
      %v8560 = vpop.f32.mrb[0].mxu0
      %v8561 = vadd.f32 0.0, %v8560
      %v8562 = vpop.f32.mrb[0].mxu0
      %v8563 = vpop.f32.mrb[0].mxu0
      %v8564 = vadd.f32 0.0, %v8563
      %v8565 = vpop.f32.mrb[0].mxu0
      %8566 = vmatprep.mubr.bf16.mxu0 %v8117
      %8567 = vmatmul.mubr.bf16.gmra.mrb[0].mxu0 %v8100
      %v8568 = vpop.f32.mrb[0].mxu0
      %v8569 = vadd.f32 0.0, %v8568
      %v8570 = vpop.f32.mrb[0].mxu0
      %v8571 = vpop.f32.mrb[0].mxu0
      %v8572 = vadd.f32 0.0, %v8571
      %v8573 = vpop.f32.mrb[0].mxu0
      %8574 = vmatprep.mubr.bf16.mxu0 %v8163
      %8575 = vmatmul.mubr.bf16.gmra.mrb[0].mxu0 %v8146
      %v8576 = vpop.f32.mrb[0].mxu0
      %v8577 = vadd.f32 0.0, %v8576
      %v8578 = vpop.f32.mrb[0].mxu0
      %v8579 = vpop.f32.mrb[0].mxu0
      %v8580 = vadd.f32 0.0, %v8579
      %v8581 = vpop.f32.mrb[0].mxu0
      %8582 = vdwg.mxu0
      %8583 = vmatprep.subr.bf16.mxu0 0
      %8584 = vmatpush1.bf16.msra.mxu0 %v8390
      %8585 = vmatprep.subr.bf16.mxu0 0
      %8586 = vmatpush1.bf16.msra.mxu0 %v8391
      %8587 = vmatprep.subr.bf16.mxu0 0
      %8588 = vmatpush1.bf16.msra.mxu0 %v8392
      %8589 = vmatprep.subr.bf16.mxu0 0
      %8590 = vmatpush1.bf16.msra.mxu0 %v8393
      %8591 = vmatprep.subr.bf16.mxu0 0
      %8592 = vmatpush1.bf16.msra.mxu0 %v8394
      %8593 = vmatprep.subr.bf16.mxu0 0
      %8594 = vmatpush1.bf16.msra.mxu0 %v8395
      %8595 = vmatprep.subr.bf16.mxu0 0
      %8596 = vmatpush1.bf16.msra.mxu0 %v8396
      %8597 = vmatprep.subr.bf16.mxu0 0
      %8598 = vmatpush1.bf16.msra.mxu0 %v8397
      %8599 = vmatprep.subr.bf16.mxu0 0
      %8600 = vmatpush1.bf16.msra.mxu0 0
      %8601 = vmatprep.subr.bf16.mxu0 0
      %8602 = vmatpush1.bf16.msra.mxu0 0
      %8603 = vmatprep.subr.bf16.mxu0 0
      %8604 = vmatpush1.bf16.msra.mxu0 0
      %8605 = vmatprep.subr.bf16.mxu0 0
      %8606 = vmatpush1.bf16.msra.mxu0 0
      %8607 = vmatprep.subr.bf16.mxu0 0
      %8608 = vmatpush1.bf16.msra.mxu0 0
      %8609 = vmatprep.subr.bf16.mxu0 0
      %8610 = vmatpush1.bf16.msra.mxu0 0
      %8611 = vmatprep.subr.bf16.mxu0 0
      %8612 = vmatpush1.bf16.msra.mxu0 0
      %8613 = vmatprep.subr.bf16.mxu0 0
      %8614 = vmatpush1.bf16.msra.mxu0 0
      %8615 = vmatprep.mubr.bf16.mxu0 0
      %8616 = vmatmul.mubr.bf16.gmra.mrb[0].mxu0 %v7490
      %v8617 = vpop.f32.mrb[0].mxu0
      %v8618 = vadd.f32 %v8457, %v8617
      %v8619 = vpop.f32.mrb[0].mxu0
      %v8620 = vpop.f32.mrb[0].mxu0
      %v8621 = vadd.f32 %v8460, %v8620
      %v8622 = vpop.f32.mrb[0].mxu0
      %8623 = vmatprep.mubr.bf16.mxu0 0
      %8624 = vmatmul.mubr.bf16.gmra.mrb[0].mxu0 %v7536
      %v8625 = vpop.f32.mrb[0].mxu0
      %v8626 = vadd.f32 %v8465, %v8625
      %v8627 = vpop.f32.mrb[0].mxu0
      %v8628 = vpop.f32.mrb[0].mxu0
      %v8629 = vadd.f32 %v8468, %v8628
      %v8630 = vpop.f32.mrb[0].mxu0
      %8631 = vmatprep.mubr.bf16.mxu0 0
      %8632 = vmatmul.mubr.bf16.gmra.mrb[0].mxu0 %v7582
      %v8633 = vpop.f32.mrb[0].mxu0
      %v8634 = vadd.f32 %v8473, %v8633
      %v8635 = vpop.f32.mrb[0].mxu0
      %v8636 = vpop.f32.mrb[0].mxu0
      %v8637 = vadd.f32 %v8476, %v8636
      %v8638 = vpop.f32.mrb[0].mxu0
      %8639 = vmatprep.mubr.bf16.mxu0 0
      %8640 = vmatmul.mubr.bf16.gmra.mrb[0].mxu0 %v7628
      %v8641 = vpop.f32.mrb[0].mxu0
      %v8642 = vadd.f32 %v8481, %v8641
      %v8643 = vpop.f32.mrb[0].mxu0
      %v8644 = vpop.f32.mrb[0].mxu0
      %v8645 = vadd.f32 %v8484, %v8644
      %v8646 = vpop.f32.mrb[0].mxu0
      %8647 = vmatprep.mubr.bf16.mxu0 0
      %8648 = vmatmul.mubr.bf16.gmra.mrb[0].mxu0 %v7674
      %v8649 = vpop.f32.mrb[0].mxu0
      %v8650 = vadd.f32 %v8489, %v8649
      %v8651 = vpop.f32.mrb[0].mxu0
      %v8652 = vpop.f32.mrb[0].mxu0
      %v8653 = vadd.f32 %v8492, %v8652
      %v8654 = vpop.f32.mrb[0].mxu0
      %8655 = vmatprep.mubr.bf16.mxu0 0
      %8656 = vmatmul.mubr.bf16.gmra.mrb[0].mxu0 %v7720
      %v8657 = vpop.f32.mrb[0].mxu0
      %v8658 = vadd.f32 %v8497, %v8657
      %v8659 = vpop.f32.mrb[0].mxu0
      %v8660 = vpop.f32.mrb[0].mxu0
      %v8661 = vadd.f32 %v8500, %v8660
      %v8662 = vpop.f32.mrb[0].mxu0
      %8663 = vmatprep.mubr.bf16.mxu0 0
      %8664 = vmatmul.mubr.bf16.gmra.mrb[0].mxu0 %v7766
      %v8665 = vpop.f32.mrb[0].mxu0
      %v8666 = vadd.f32 %v8505, %v8665
      %v8667 = vpop.f32.mrb[0].mxu0
      %v8668 = vpop.f32.mrb[0].mxu0
      %v8669 = vadd.f32 %v8508, %v8668
      %v8670 = vpop.f32.mrb[0].mxu0
      %8671 = vmatprep.mubr.bf16.mxu0 0
      %8672 = vmatmul.mubr.bf16.gmra.mrb[0].mxu0 %v7812
      %v8673 = vpop.f32.mrb[0].mxu0
      %v8674 = vadd.f32 %v8513, %v8673
      %v8675 = vpop.f32.mrb[0].mxu0
      %v8676 = vpop.f32.mrb[0].mxu0
      %v8677 = vadd.f32 %v8516, %v8676
      %v8678 = vpop.f32.mrb[0].mxu0
      %8679 = vmatprep.mubr.bf16.mxu0 0
      %8680 = vmatmul.mubr.bf16.gmra.mrb[0].mxu0 %v7858
      %v8681 = vpop.f32.mrb[0].mxu0
      %v8682 = vadd.f32 %v8521, %v8681
      %v8683 = vpop.f32.mrb[0].mxu0
      %v8684 = vpop.f32.mrb[0].mxu0
      %v8685 = vadd.f32 %v8524, %v8684
      %v8686 = vpop.f32.mrb[0].mxu0
      %8687 = vmatprep.mubr.bf16.mxu0 0
      %8688 = vmatmul.mubr.bf16.gmra.mrb[0].mxu0 %v7904
      %v8689 = vpop.f32.mrb[0].mxu0
      %v8690 = vadd.f32 %v8529, %v8689
      %v8691 = vpop.f32.mrb[0].mxu0
      %v8692 = vpop.f32.mrb[0].mxu0
      %v8693 = vadd.f32 %v8532, %v8692
      %v8694 = vpop.f32.mrb[0].mxu0
      %8695 = vmatprep.mubr.bf16.mxu0 0
      %8696 = vmatmul.mubr.bf16.gmra.mrb[0].mxu0 %v7950
      %v8697 = vpop.f32.mrb[0].mxu0
      %v8698 = vadd.f32 %v8537, %v8697
      %v8699 = vpop.f32.mrb[0].mxu0
      %v8700 = vpop.f32.mrb[0].mxu0
      %v8701 = vadd.f32 %v8540, %v8700
      %v8702 = vpop.f32.mrb[0].mxu0
      %8703 = vmatprep.mubr.bf16.mxu0 0
      %8704 = vmatmul.mubr.bf16.gmra.mrb[0].mxu0 %v7996
      %v8705 = vpop.f32.mrb[0].mxu0
      %v8706 = vadd.f32 %v8545, %v8705
      %v8707 = vpop.f32.mrb[0].mxu0
      %v8708 = vpop.f32.mrb[0].mxu0
      %v8709 = vadd.f32 %v8548, %v8708
      %v8710 = vpop.f32.mrb[0].mxu0
      %8711 = vmatprep.mubr.bf16.mxu0 0
      %8712 = vmatmul.mubr.bf16.gmra.mrb[0].mxu0 %v8042
      %v8713 = vpop.f32.mrb[0].mxu0
      %v8714 = vadd.f32 %v8553, %v8713
      %v8715 = vpop.f32.mrb[0].mxu0
      %v8716 = vpop.f32.mrb[0].mxu0
      %v8717 = vadd.f32 %v8556, %v8716
      %v8718 = vpop.f32.mrb[0].mxu0
      %8719 = vmatprep.mubr.bf16.mxu0 0
      %8720 = vmatmul.mubr.bf16.gmra.mrb[0].mxu0 %v8088
      %v8721 = vpop.f32.mrb[0].mxu0
      %v8722 = vadd.f32 %v8561, %v8721
      %v8723 = vpop.f32.mrb[0].mxu0
      %v8724 = vpop.f32.mrb[0].mxu0
      %v8725 = vadd.f32 %v8564, %v8724
      %v8726 = vpop.f32.mrb[0].mxu0
      %8727 = vmatprep.mubr.bf16.mxu0 0
      %8728 = vmatmul.mubr.bf16.gmra.mrb[0].mxu0 %v8134
      %v8729 = vpop.f32.mrb[0].mxu0
      %v8730 = vadd.f32 %v8569, %v8729
      %v8731 = vpop.f32.mrb[0].mxu0
      %v8732 = vpop.f32.mrb[0].mxu0
      %v8733 = vadd.f32 %v8572, %v8732
      %v8734 = vpop.f32.mrb[0].mxu0
      %8735 = vmatprep.mubr.bf16.mxu0 0
      %8736 = vmatmul.mubr.bf16.gmra.mrb[0].mxu0 %v8180
      %v8737 = vpop.f32.mrb[0].mxu0
      %v8738 = vadd.f32 %v8577, %v8737
      %v8739 = vpop.f32.mrb[0].mxu0
      %v8740 = vpop.f32.mrb[0].mxu0
      %v8741 = vadd.f32 %v8580, %v8740
      %v8742 = vpop.f32.mrb[0].mxu0
      %8743 = vdwg.mxu0
      %v8744 = vadd.f32 %v6934, %v8618
      %v8745 = vadd.f32 %v6937, %v8621
      %v8746 = vadd.f32 %v6942, %v8626
      %v8747 = vadd.f32 %v6945, %v8629
      %v8748 = vadd.f32 %v6950, %v8634
      %v8749 = vadd.f32 %v6953, %v8637
      %v8750 = vadd.f32 %v6958, %v8642
      %v8751 = vadd.f32 %v6961, %v8645
      %v8752 = vadd.f32 %v6966, %v8650
      %v8753 = vadd.f32 %v6969, %v8653
      %v8754 = vadd.f32 %v6974, %v8658
      %v8755 = vadd.f32 %v6977, %v8661
      %v8756 = vadd.f32 %v6982, %v8666
      %v8757 = vadd.f32 %v6985, %v8669
      %v8758 = vadd.f32 %v6990, %v8674
      %v8759 = vadd.f32 %v6993, %v8677
      %v8760 = vadd.f32 %v6998, %v8682
      %v8761 = vadd.f32 %v7001, %v8685
      %v8762 = vadd.f32 %v7006, %v8690
      %v8763 = vadd.f32 %v7009, %v8693
      %v8764 = vadd.f32 %v7014, %v8698
      %v8765 = vadd.f32 %v7017, %v8701
      %v8766 = vadd.f32 %v7022, %v8706
      %v8767 = vadd.f32 %v7025, %v8709
      %v8768 = vadd.f32 %v7030, %v8714
      %v8769 = vadd.f32 %v7033, %v8717
      %v8770 = vadd.f32 %v7038, %v8722
      %v8771 = vadd.f32 %v7041, %v8725
      %v8772 = vadd.f32 %v7046, %v8730
      %v8773 = vadd.f32 %v7049, %v8733
      %v8774 = vadd.f32 %v7054, %v8738
      %v8775 = vadd.f32 %v7057, %v8741
      %v8776 = vmax.f32 %v8744, 0.0
      %v8777 = vmax.f32 %v8745, 0.0
      %v8778 = vmax.f32 %v8746, 0.0
      %v8779 = vmax.f32 %v8747, 0.0
      %v8780 = vmax.f32 %v8748, 0.0
      %v8781 = vmax.f32 %v8749, 0.0
      %v8782 = vmax.f32 %v8750, 0.0
      %v8783 = vmax.f32 %v8751, 0.0
      %v8784 = vmax.f32 %v8752, 0.0
      %v8785 = vmax.f32 %v8753, 0.0
      %v8786 = vmax.f32 %v8754, 0.0
      %v8787 = vmax.f32 %v8755, 0.0
      %v8788 = vmax.f32 %v8756, 0.0
      %v8789 = vmax.f32 %v8757, 0.0
      %v8790 = vmax.f32 %v8758, 0.0
      %v8791 = vmax.f32 %v8759, 0.0
      %v8792 = vmax.f32 %v8760, 0.0
      %v8793 = vmax.f32 %v8761, 0.0
      %v8794 = vmax.f32 %v8762, 0.0
      %v8795 = vmax.f32 %v8763, 0.0
      %v8796 = vmax.f32 %v8764, 0.0
      %v8797 = vmax.f32 %v8765, 0.0
      %v8798 = vmax.f32 %v8766, 0.0
      %v8799 = vmax.f32 %v8767, 0.0
      %v8800 = vmax.f32 %v8768, 0.0
      %v8801 = vmax.f32 %v8769, 0.0
      %v8802 = vmax.f32 %v8770, 0.0
      %v8803 = vmax.f32 %v8771, 0.0
      %v8804 = vmax.f32 %v8772, 0.0
      %v8805 = vmax.f32 %v8773, 0.0
      %v8806 = vmax.f32 %v8774, 0.0
      %v8807 = vmax.f32 %v8775, 0.0
      %v8809 = vlaneseq
      %v8810 = vshrl.u32 %v8809, 7
      %v8811 = vsub.s32 0, %v8810
      %v8812 = vrot.slane %v323, %v8811
      %v8814 = vmul.f32 %v8776, %v8812
      %v8815 = vmul.f32 %v8777, %v8812
      %v8816 = vmul.f32 %v8778, %v8812
      %v8817 = vmul.f32 %v8779, %v8812
      %v8818 = vmul.f32 %v8780, %v8812
      %v8819 = vmul.f32 %v8781, %v8812
      %v8820 = vmul.f32 %v8782, %v8812
      %v8821 = vmul.f32 %v8783, %v8812
      %v8822 = vmul.f32 %v8784, %v8812
      %v8823 = vmul.f32 %v8785, %v8812
      %v8824 = vmul.f32 %v8786, %v8812
      %v8825 = vmul.f32 %v8787, %v8812
      %v8826 = vmul.f32 %v8788, %v8812
      %v8827 = vmul.f32 %v8789, %v8812
      %v8828 = vmul.f32 %v8790, %v8812
      %v8829 = vmul.f32 %v8791, %v8812
      %v8830 = vmul.f32 %v8792, %v8812
      %v8831 = vmul.f32 %v8793, %v8812
      %v8832 = vmul.f32 %v8794, %v8812
      %v8833 = vmul.f32 %v8795, %v8812
      %v8834 = vmul.f32 %v8796, %v8812
      %v8835 = vmul.f32 %v8797, %v8812
      %v8836 = vmul.f32 %v8798, %v8812
      %v8837 = vmul.f32 %v8799, %v8812
      %v8838 = vmul.f32 %v8800, %v8812
      %v8839 = vmul.f32 %v8801, %v8812
      %v8840 = vmul.f32 %v8802, %v8812
      %v8841 = vmul.f32 %v8803, %v8812
      %v8842 = vmul.f32 %v8804, %v8812
      %v8843 = vmul.f32 %v8805, %v8812
      %v8844 = vmul.f32 %v8806, %v8812
      %v8845 = vmul.f32 %v8807, %v8812
      %v8847 = vlaneseq
      %v8848 = vshrl.u32 %v8847, 7
      %v8849 = vsub.s32 0, %v8848
      %v8850 = vrot.slane %v324, %v8849
      %v8852 = vadd.f32 %v8814, %v8850
      %v8853 = vadd.f32 %v8815, %v8850
      %v8854 = vadd.f32 %v8816, %v8850
      %v8855 = vadd.f32 %v8817, %v8850
      %v8856 = vadd.f32 %v8818, %v8850
      %v8857 = vadd.f32 %v8819, %v8850
      %v8858 = vadd.f32 %v8820, %v8850
      %v8859 = vadd.f32 %v8821, %v8850
      %v8860 = vadd.f32 %v8822, %v8850
      %v8861 = vadd.f32 %v8823, %v8850
      %v8862 = vadd.f32 %v8824, %v8850
      %v8863 = vadd.f32 %v8825, %v8850
      %v8864 = vadd.f32 %v8826, %v8850
      %v8865 = vadd.f32 %v8827, %v8850
      %v8866 = vadd.f32 %v8828, %v8850
      %v8867 = vadd.f32 %v8829, %v8850
      %v8868 = vadd.f32 %v8830, %v8850
      %v8869 = vadd.f32 %v8831, %v8850
      %v8870 = vadd.f32 %v8832, %v8850
      %v8871 = vadd.f32 %v8833, %v8850
      %v8872 = vadd.f32 %v8834, %v8850
      %v8873 = vadd.f32 %v8835, %v8850
      %v8874 = vadd.f32 %v8836, %v8850
      %v8875 = vadd.f32 %v8837, %v8850
      %v8876 = vadd.f32 %v8838, %v8850
      %v8877 = vadd.f32 %v8839, %v8850
      %v8878 = vadd.f32 %v8840, %v8850
      %v8879 = vadd.f32 %v8841, %v8850
      %v8880 = vadd.f32 %v8842, %v8850
      %v8881 = vadd.f32 %v8843, %v8850
      %v8882 = vadd.f32 %v8844, %v8850
      %v8883 = vadd.f32 %v8845, %v8850
      %v8884 = vld [vmem:[%s903] sm:$0xf]
      %v8885 = vld [vmem:[%s903 + $0x4] sm:$0xf]
      %v8886 = vld [vmem:[%s903 + $0x8] sm:$0x1]
      %v8887 = vld [vmem:[%s903 + $0xc] sm:$0xf]
      %v8888 = vld [vmem:[%s903 + $0x10] sm:$0xf]
      %v8889 = vld [vmem:[%s903 + $0x14] sm:$0x1]
      %v8890 = vld [vmem:[%s903 + $0x18] sm:$0xf]
      %v8891 = vld [vmem:[%s903 + $0x1c] sm:$0xf]
      %v8892 = vld [vmem:[%s903 + $0x20] sm:$0x1]
      %v8893 = vld [vmem:[%s903 + $0x24] sm:$0xf]
      %v8894 = vld [vmem:[%s903 + $0x28] sm:$0xf]
      %v8895 = vld [vmem:[%s903 + $0x2c] sm:$0x1]
      %v8896 = vld [vmem:[%s903 + $0x30] sm:$0xf]
      %v8897 = vld [vmem:[%s903 + $0x34] sm:$0xf]
      %v8898 = vld [vmem:[%s903 + $0x38] sm:$0x1]
      %v8899 = vld [vmem:[%s903 + $0x3c] sm:$0xf]
      %v8900 = vld [vmem:[%s903 + $0x40] sm:$0xf]
      %v8901 = vld [vmem:[%s903 + $0x44] sm:$0x1]
      %v8902 = vld [vmem:[%s903 + $0x48] sm:$0xf]
      %v8903 = vld [vmem:[%s903 + $0x4c] sm:$0xf]
      %v8904 = vld [vmem:[%s903 + $0x50] sm:$0x1]
      %v8905 = vld [vmem:[%s903 + $0x54] sm:$0xf]
      %v8906 = vld [vmem:[%s903 + $0x58] sm:$0xf]
      %v8907 = vld [vmem:[%s903 + $0x5c] sm:$0x1]
      %v8908 = vld [vmem:[%s903 + $0x60] sm:$0xf]
      %v8909 = vld [vmem:[%s903 + $0x64] sm:$0xf]
      %v8910 = vld [vmem:[%s903 + $0x68] sm:$0x1]
      %v8911 = vld [vmem:[%s903 + $0x6c] sm:$0xf]
      %v8912 = vld [vmem:[%s903 + $0x70] sm:$0xf]
      %v8913 = vld [vmem:[%s903 + $0x74] sm:$0x1]
      %v8914 = vld [vmem:[%s903 + $0x78] sm:$0xf]
      %v8915 = vld [vmem:[%s903 + $0x7c] sm:$0xf]
      %v8916 = vld [vmem:[%s903 + $0x80] sm:$0x1]
      %v8917 = vld [vmem:[%s903 + $0x84] sm:$0xf]
      %v8918 = vld [vmem:[%s903 + $0x88] sm:$0xf]
      %v8919 = vld [vmem:[%s903 + $0x8c] sm:$0x1]
      %v8920 = vld [vmem:[%s903 + $0x90] sm:$0xf]
      %v8921 = vld [vmem:[%s903 + $0x94] sm:$0xf]
      %v8922 = vld [vmem:[%s903 + $0x98] sm:$0x1]
      %v8923 = vld [vmem:[%s903 + $0x9c] sm:$0xf]
      %v8924 = vld [vmem:[%s903 + $0xa0] sm:$0xf]
      %v8925 = vld [vmem:[%s903 + $0xa4] sm:$0x1]
      %v8926 = vld [vmem:[%s903 + $0xa8] sm:$0xf]
      %v8927 = vld [vmem:[%s903 + $0xac] sm:$0xf]
      %v8928 = vld [vmem:[%s903 + $0xb0] sm:$0x1]
      %v8929 = vld [vmem:[%s903 + $0xb4] sm:$0xf]
      %v8930 = vld [vmem:[%s903 + $0xb8] sm:$0xf]
      %v8931 = vld [vmem:[%s903 + $0xbc] sm:$0x1]
      %v8932 = vunpack.c.l.bf16 %v8884
      %v8933 = vunpack.c.l.bf16 %v8885
      %v8934 = vunpack.c.l.bf16 %v8886
      %v8935 = vunpack.c.l.bf16 %v8887
      %v8936 = vunpack.c.l.bf16 %v8888
      %v8937 = vunpack.c.l.bf16 %v8889
      %v8938 = vunpack.c.l.bf16 %v8890
      %v8939 = vunpack.c.l.bf16 %v8891
      %v8940 = vunpack.c.l.bf16 %v8892
      %v8941 = vunpack.c.l.bf16 %v8893
      %v8942 = vunpack.c.l.bf16 %v8894
      %v8943 = vunpack.c.l.bf16 %v8895
      %v8944 = vunpack.c.l.bf16 %v8896
      %v8945 = vunpack.c.l.bf16 %v8897
      %v8946 = vunpack.c.l.bf16 %v8898
      %v8947 = vunpack.c.l.bf16 %v8899
      %v8948 = vunpack.c.l.bf16 %v8900
      %v8949 = vunpack.c.l.bf16 %v8901
      %v8950 = vunpack.c.l.bf16 %v8902
      %v8951 = vunpack.c.l.bf16 %v8903
      %v8952 = vunpack.c.l.bf16 %v8904
      %v8953 = vunpack.c.l.bf16 %v8905
      %v8954 = vunpack.c.l.bf16 %v8906
      %v8955 = vunpack.c.l.bf16 %v8907
      %v8956 = vunpack.c.l.bf16 %v8908
      %v8957 = vunpack.c.l.bf16 %v8909
      %v8958 = vunpack.c.l.bf16 %v8910
      %v8959 = vunpack.c.l.bf16 %v8911
      %v8960 = vunpack.c.l.bf16 %v8912
      %v8961 = vunpack.c.l.bf16 %v8913
      %v8962 = vunpack.c.l.bf16 %v8914
      %v8963 = vunpack.c.l.bf16 %v8915
      %v8964 = vunpack.c.l.bf16 %v8916
      %v8965 = vunpack.c.l.bf16 %v8917
      %v8966 = vunpack.c.l.bf16 %v8918
      %v8967 = vunpack.c.l.bf16 %v8919
      %v8968 = vunpack.c.l.bf16 %v8920
      %v8969 = vunpack.c.l.bf16 %v8921
      %v8970 = vunpack.c.l.bf16 %v8922
      %v8971 = vunpack.c.l.bf16 %v8923
      %v8972 = vunpack.c.l.bf16 %v8924
      %v8973 = vunpack.c.l.bf16 %v8925
      %v8974 = vunpack.c.l.bf16 %v8926
      %v8975 = vunpack.c.l.bf16 %v8927
      %v8976 = vunpack.c.l.bf16 %v8928
      %v8977 = vunpack.c.l.bf16 %v8929
      %v8978 = vunpack.c.l.bf16 %v8930
      %v8979 = vunpack.c.l.bf16 %v8931
      %vm9028 = vcmask 1046528
      %v9029 = vrot.slane %v8932, 1
      %v9030 = vrot.slane %v8933, 1
      %v9031 = vsel %vm9028, %v9029, %v9030
      %v9032 = vrot.slane %v8934, 1
      %v9033 = vsel %vm9028, %v9030, %v9032
      %v9034 = vrot.slane %v8935, 1
      %v9035 = vrot.slane %v8936, 1
      %v9036 = vsel %vm9028, %v9034, %v9035
      %v9037 = vrot.slane %v8937, 1
      %v9038 = vsel %vm9028, %v9035, %v9037
      %v9039 = vrot.slane %v8938, 1
      %v9040 = vrot.slane %v8939, 1
      %v9041 = vsel %vm9028, %v9039, %v9040
      %v9042 = vrot.slane %v8940, 1
      %v9043 = vsel %vm9028, %v9040, %v9042
      %v9044 = vrot.slane %v8941, 1
      %v9045 = vrot.slane %v8942, 1
      %v9046 = vsel %vm9028, %v9044, %v9045
      %v9047 = vrot.slane %v8943, 1
      %v9048 = vsel %vm9028, %v9045, %v9047
      %v9049 = vrot.slane %v8944, 1
      %v9050 = vrot.slane %v8945, 1
      %v9051 = vsel %vm9028, %v9049, %v9050
      %v9052 = vrot.slane %v8946, 1
      %v9053 = vsel %vm9028, %v9050, %v9052
      %v9054 = vrot.slane %v8947, 1
      %v9055 = vrot.slane %v8948, 1
      %v9056 = vsel %vm9028, %v9054, %v9055
      %v9057 = vrot.slane %v8949, 1
      %v9058 = vsel %vm9028, %v9055, %v9057
      %v9059 = vrot.slane %v8950, 1
      %v9060 = vrot.slane %v8951, 1
      %v9061 = vsel %vm9028, %v9059, %v9060
      %v9062 = vrot.slane %v8952, 1
      %v9063 = vsel %vm9028, %v9060, %v9062
      %v9064 = vrot.slane %v8953, 1
      %v9065 = vrot.slane %v8954, 1
      %v9066 = vsel %vm9028, %v9064, %v9065
      %v9067 = vrot.slane %v8955, 1
      %v9068 = vsel %vm9028, %v9065, %v9067
      %v9069 = vrot.slane %v8956, 1
      %v9070 = vrot.slane %v8957, 1
      %v9071 = vsel %vm9028, %v9069, %v9070
      %v9072 = vrot.slane %v8958, 1
      %v9073 = vsel %vm9028, %v9070, %v9072
      %v9074 = vrot.slane %v8959, 1
      %v9075 = vrot.slane %v8960, 1
      %v9076 = vsel %vm9028, %v9074, %v9075
      %v9077 = vrot.slane %v8961, 1
      %v9078 = vsel %vm9028, %v9075, %v9077
      %v9079 = vrot.slane %v8962, 1
      %v9080 = vrot.slane %v8963, 1
      %v9081 = vsel %vm9028, %v9079, %v9080
      %v9082 = vrot.slane %v8964, 1
      %v9083 = vsel %vm9028, %v9080, %v9082
      %v9084 = vrot.slane %v8965, 1
      %v9085 = vrot.slane %v8966, 1
      %v9086 = vsel %vm9028, %v9084, %v9085
      %v9087 = vrot.slane %v8967, 1
      %v9088 = vsel %vm9028, %v9085, %v9087
      %v9089 = vrot.slane %v8968, 1
      %v9090 = vrot.slane %v8969, 1
      %v9091 = vsel %vm9028, %v9089, %v9090
      %v9092 = vrot.slane %v8970, 1
      %v9093 = vsel %vm9028, %v9090, %v9092
      %v9094 = vrot.slane %v8971, 1
      %v9095 = vrot.slane %v8972, 1
      %v9096 = vsel %vm9028, %v9094, %v9095
      %v9097 = vrot.slane %v8973, 1
      %v9098 = vsel %vm9028, %v9095, %v9097
      %v9099 = vrot.slane %v8974, 1
      %v9100 = vrot.slane %v8975, 1
      %v9101 = vsel %vm9028, %v9099, %v9100
      %v9102 = vrot.slane %v8976, 1
      %v9103 = vsel %vm9028, %v9100, %v9102
      %v9104 = vrot.slane %v8977, 1
      %v9105 = vrot.slane %v8978, 1
      %v9106 = vsel %vm9028, %v9104, %v9105
      %v9107 = vrot.slane %v8979, 1
      %v9108 = vsel %vm9028, %v9105, %v9107
      %v9141 = vadd.f32 %v8852, %v9031
      %v9142 = vadd.f32 %v8853, %v9033
      %v9143 = vadd.f32 %v8854, %v9036
      %v9144 = vadd.f32 %v8855, %v9038
      %v9145 = vadd.f32 %v8856, %v9041
      %v9146 = vadd.f32 %v8857, %v9043
      %v9147 = vadd.f32 %v8858, %v9046
      %v9148 = vadd.f32 %v8859, %v9048
      %v9149 = vadd.f32 %v8860, %v9051
      %v9150 = vadd.f32 %v8861, %v9053
      %v9151 = vadd.f32 %v8862, %v9056
      %v9152 = vadd.f32 %v8863, %v9058
      %v9153 = vadd.f32 %v8864, %v9061
      %v9154 = vadd.f32 %v8865, %v9063
      %v9155 = vadd.f32 %v8866, %v9066
      %v9156 = vadd.f32 %v8867, %v9068
      %v9157 = vadd.f32 %v8868, %v9071
      %v9158 = vadd.f32 %v8869, %v9073
      %v9159 = vadd.f32 %v8870, %v9076
      %v9160 = vadd.f32 %v8871, %v9078
      %v9161 = vadd.f32 %v8872, %v9081
      %v9162 = vadd.f32 %v8873, %v9083
      %v9163 = vadd.f32 %v8874, %v9086
      %v9164 = vadd.f32 %v8875, %v9088
      %v9165 = vadd.f32 %v8876, %v9091
      %v9166 = vadd.f32 %v8877, %v9093
      %v9167 = vadd.f32 %v8878, %v9096
      %v9168 = vadd.f32 %v8879, %v9098
      %v9169 = vadd.f32 %v8880, %v9101
      %v9170 = vadd.f32 %v8881, %v9103
      %v9171 = vadd.f32 %v8882, %v9106
      %v9172 = vadd.f32 %v8883, %v9108
      %v9173 = vpack.c.bf16 %v9142, %v9141
      %v9174 = vpack.c.bf16 %v9144, %v9143
      %v9175 = vpack.c.bf16 %v9146, %v9145
      %v9176 = vpack.c.bf16 %v9148, %v9147
      %v9177 = vpack.c.bf16 %v9150, %v9149
      %v9178 = vpack.c.bf16 %v9152, %v9151
      %v9179 = vpack.c.bf16 %v9154, %v9153
      %v9180 = vpack.c.bf16 %v9156, %v9155
      %v9181 = vpack.c.bf16 %v9158, %v9157
      %v9182 = vpack.c.bf16 %v9160, %v9159
      %v9183 = vpack.c.bf16 %v9162, %v9161
      %v9184 = vpack.c.bf16 %v9164, %v9163
      %v9185 = vpack.c.bf16 %v9166, %v9165
      %v9186 = vpack.c.bf16 %v9168, %v9167
      %v9187 = vpack.c.bf16 %v9170, %v9169
      %v9188 = vpack.c.bf16 %v9172, %v9171
      %v9205 = vunpack.c.l.b16 %v9173
      %v9206 = vunpack.c.h.b16 %v9173
      %v9207 = vunpack.c.l.b16 %v9174
      %v9208 = vunpack.c.h.b16 %v9174
      %v9209 = vunpack.c.l.b16 %v9175
      %v9210 = vunpack.c.h.b16 %v9175
      %v9211 = vunpack.c.l.b16 %v9176
      %v9212 = vunpack.c.h.b16 %v9176
      %v9213 = vunpack.c.l.b16 %v9177
      %v9214 = vunpack.c.h.b16 %v9177
      %v9215 = vunpack.c.l.b16 %v9178
      %v9216 = vunpack.c.h.b16 %v9178
      %v9217 = vunpack.c.l.b16 %v9179
      %v9218 = vunpack.c.h.b16 %v9179
      %v9219 = vunpack.c.l.b16 %v9180
      %v9220 = vunpack.c.h.b16 %v9180
      %v9221 = vunpack.c.l.b16 %v9181
      %v9222 = vunpack.c.h.b16 %v9181
      %v9223 = vunpack.c.l.b16 %v9182
      %v9224 = vunpack.c.h.b16 %v9182
      %v9225 = vunpack.c.l.b16 %v9183
      %v9226 = vunpack.c.h.b16 %v9183
      %v9227 = vunpack.c.l.b16 %v9184
      %v9228 = vunpack.c.h.b16 %v9184
      %v9229 = vunpack.c.l.b16 %v9185
      %v9230 = vunpack.c.h.b16 %v9185
      %v9231 = vunpack.c.l.b16 %v9186
      %v9232 = vunpack.c.h.b16 %v9186
      %v9233 = vunpack.c.l.b16 %v9187
      %v9234 = vunpack.c.h.b16 %v9187
      %v9235 = vunpack.c.l.b16 %v9188
      %v9236 = vunpack.c.h.b16 %v9188
      %v9237 = vpack.c.b16 %v9205, %v9205
      %v9238 = vpack.c.b16 %v9206, %v9206
      %v9239 = vpack.c.b16 %v9207, %v9207
      %v9240 = vpack.c.b16 %v9208, %v9208
      %v9241 = vpack.c.b16 %v9209, %v9209
      %v9242 = vpack.c.b16 %v9210, %v9210
      %v9243 = vpack.c.b16 %v9211, %v9211
      %v9244 = vpack.c.b16 %v9212, %v9212
      %v9245 = vpack.c.b16 %v9213, %v9213
      %v9246 = vpack.c.b16 %v9214, %v9214
      %v9247 = vpack.c.b16 %v9215, %v9215
      %v9248 = vpack.c.b16 %v9216, %v9216
      %v9249 = vpack.c.b16 %v9217, %v9217
      %v9250 = vpack.c.b16 %v9218, %v9218
      %v9251 = vpack.c.b16 %v9219, %v9219
      %v9252 = vpack.c.b16 %v9220, %v9220
      %v9253 = vpack.c.b16 %v9221, %v9221
      %v9254 = vpack.c.b16 %v9222, %v9222
      %v9255 = vpack.c.b16 %v9223, %v9223
      %v9256 = vpack.c.b16 %v9224, %v9224
      %v9257 = vpack.c.b16 %v9225, %v9225
      %v9258 = vpack.c.b16 %v9226, %v9226
      %v9259 = vpack.c.b16 %v9227, %v9227
      %v9260 = vpack.c.b16 %v9228, %v9228
      %v9261 = vpack.c.b16 %v9229, %v9229
      %v9262 = vpack.c.b16 %v9230, %v9230
      %v9263 = vpack.c.b16 %v9231, %v9231
      %v9264 = vpack.c.b16 %v9232, %v9232
      %v9265 = vpack.c.b16 %v9233, %v9233
      %v9266 = vpack.c.b16 %v9234, %v9234
      %v9267 = vpack.c.b16 %v9235, %v9235
      %v9268 = vpack.c.b16 %v9236, %v9236
      %9301 = vst [vmem:[%s278] sm:$0xf] %v9237
      %9302 = vst [vmem:[%s278 + $0x4] sm:$0xf] %v9238
      %9303 = vst [vmem:[%s278 + $0x8] sm:$0xf] %v9239
      %9304 = vst [vmem:[%s278 + $0xc] sm:$0xf] %v9240
      %9305 = vst [vmem:[%s278 + $0x10] sm:$0xf] %v9241
      %9306 = vst [vmem:[%s278 + $0x14] sm:$0xf] %v9242
      %9307 = vst [vmem:[%s278 + $0x18] sm:$0xf] %v9243
      %9308 = vst [vmem:[%s278 + $0x1c] sm:$0xf] %v9244
      %9309 = vst [vmem:[%s278 + $0x20] sm:$0xf] %v9245
      %9310 = vst [vmem:[%s278 + $0x24] sm:$0xf] %v9246
      %9311 = vst [vmem:[%s278 + $0x28] sm:$0xf] %v9247
      %9312 = vst [vmem:[%s278 + $0x2c] sm:$0xf] %v9248
      %9313 = vst [vmem:[%s278 + $0x30] sm:$0xf] %v9249
      %9314 = vst [vmem:[%s278 + $0x34] sm:$0xf] %v9250
      %9315 = vst [vmem:[%s278 + $0x38] sm:$0xf] %v9251
      %9316 = vst [vmem:[%s278 + $0x3c] sm:$0xf] %v9252
      %9317 = vst [vmem:[%s278 + $0x40] sm:$0xf] %v9253
      %9318 = vst [vmem:[%s278 + $0x44] sm:$0xf] %v9254
      %9319 = vst [vmem:[%s278 + $0x48] sm:$0xf] %v9255
      %9320 = vst [vmem:[%s278 + $0x4c] sm:$0xf] %v9256
      %9321 = vst [vmem:[%s278 + $0x50] sm:$0xf] %v9257
      %9322 = vst [vmem:[%s278 + $0x54] sm:$0xf] %v9258
      %9323 = vst [vmem:[%s278 + $0x58] sm:$0xf] %v9259
      %9324 = vst [vmem:[%s278 + $0x5c] sm:$0xf] %v9260
      %9325 = vst [vmem:[%s278 + $0x60] sm:$0xf] %v9261
      %9326 = vst [vmem:[%s278 + $0x64] sm:$0xf] %v9262
      %9327 = vst [vmem:[%s278 + $0x68] sm:$0xf] %v9263
      %9328 = vst [vmem:[%s278 + $0x6c] sm:$0xf] %v9264
      %9329 = vst [vmem:[%s278 + $0x70] sm:$0xf] %v9265
      %9330 = vst [vmem:[%s278 + $0x74] sm:$0xf] %v9266
      %9331 = vst [vmem:[%s278 + $0x78] sm:$0xf] %v9267
      %9332 = vst [vmem:[%s278 + $0x7c] sm:$0xf] %v9268
      %p9333 = scmp.lt.s32.totalorder %s18, 1
      %s9334 = scalar_select %p9333, %s18, 1
      %s9335 = smul.addr %s9334, 32
      %s9336 = smul.addr %s9335, 4
      %s9337 = scalar_lea.vmem %s7, %s9336
      // Predicated region
      $region49: #{basic_block_forward.1} parent=47 // pred_check
        %p9338 = pneg %p188
      $region50: #{basic_block_forward.1} parent=47 // pred_check_branch
        %9340 = sbr.rel (%p9338) target = $region52
      $region51: #{basic_block_forward.1} parent=47 // pred_region
        _
      $region52: #{basic_block_forward.1} parent=47 // pred_fallthru
        _
    $region48: #{basic_block_forward.1} parent=5 // pred_fallthru
      _
    %p9341 = scmp.le.s32.totalorder 2, %s13
    // Predicated region
    $region53: #{basic_block_forward.1} parent=5 // pred_check
      %p9342 = pneg %p9341
    $region54: #{basic_block_forward.1} parent=5 // pred_check_branch
      %9344 = sbr.rel (%p9342) target = $region56
    $region55: #{basic_block_forward.1} parent=5 // pred_region
      %s9345 = ssub.s32 %s13, 2
      // Predicated region
      $region57: #{basic_block_forward.1} parent=55 // pred_check
        %p9346 = pneg %p194
      $region58: #{basic_block_forward.1} parent=55 // pred_check_branch
        %9348 = sbr.rel (%p9346) target = $region60
      $region59: #{basic_block_forward.1} parent=55 // pred_region
        %p9349 = scmp.lt.s32.totalorder %s19, 1
        %s9350 = scalar_select %p9349, %s19, 1
        %s9351 = smul.addr %s9350, 32
        %s9352 = smul.addr %s9351, 4
        %s9353 = scalar_lea.vmem %s7, %s9352
      $region60: #{basic_block_forward.1} parent=55 // pred_fallthru
        _
    $region56: #{basic_block_forward.1} parent=5 // pred_fallthru
      _
  $region6: #{basic_block_forward.1} parent=0 // loop_footer
    %s17 = sadd.s32 1, %s13
  $region7: #{basic_block_forward.1} parent=0 // loop_footer_branch
    %12 = sbr.rel target = $region3
  $region8: #{basic_block_forward.1} parent=0 // loop_exit
    _

</llo_original>
